<compile_context>
chip_gen: v7x
topology: tpu7x:2x2x1
jax: 0.10.0
libtpu: 0.0.40
codegen_flags: <defaults>
</compile_context>

<pallas_src>
import numpy as np
import jax
import jax.numpy as jnp
from jax import lax
from jax.experimental import pallas as pl
from jax.experimental.pallas import tpu as pltpu

EPS_GN = 1e-5
EPS_BN = 1e-5

# 3x3 tap offsets in (dy, dx), ordered t = ky*3 + kx (must match w3cat / mask layout).
_OFFS3 = tuple((ky - 1, kx - 1) for ky in range(3) for kx in range(3))

_ROLL_SIGN = None
_MM_PRECISION = None


def _roll_sign():
    """Determine pltpu.roll's rotation convention once, on device.

    Returns s such that  pltpu.roll(x, (s*a) % n, axis=-1)[..., p] == x[..., (p+a) % n].
    Must be called outside jit (it executes a tiny probe kernel eagerly).
    """
    global _ROLL_SIGN
    if _ROLL_SIGN is not None:
        return _ROLL_SIGN

    def probe_kernel(o_ref):
        v = lax.broadcasted_iota(jnp.int32, (8, 128), 1).astype(jnp.float32)
        o_ref[...] = pltpu.roll(v, 1, axis=1)

    try:
        r = pl.pallas_call(
            probe_kernel,
            out_shape=jax.ShapeDtypeStruct((8, 128), jnp.float32),
        )()
        first = float(jax.device_get(r)[0, 0])
        _ROLL_SIGN = -1 if first == 127.0 else 1
    except Exception:                       # fall back to jnp.roll convention
        _ROLL_SIGN = -1
    return _ROLL_SIGN


def _matmul_precision():
    """Pick the cheapest f32 matmul precision Mosaic accepts.

    HIGH (~3 bf16 passes) is numerically ~f32 and halves MXU work vs HIGHEST; if the
    lowering rejects it, fall back to HIGHEST (proven to compile in this environment).
    """
    global _MM_PRECISION
    if _MM_PRECISION is not None:
        return _MM_PRECISION

    def probe_kernel(a_ref, b_ref, o_ref):
        o_ref[...] = jnp.dot(a_ref[...], b_ref[...], precision=lax.Precision.HIGH,
                             preferred_element_type=jnp.float32)

    try:
        a = jnp.ones((8, 128), jnp.float32)
        b = jnp.ones((128, 128), jnp.float32)
        r = pl.pallas_call(
            probe_kernel, out_shape=jax.ShapeDtypeStruct((8, 128), jnp.float32))(a, b)
        jax.block_until_ready(r)
        _MM_PRECISION = lax.Precision.HIGH
    except Exception:
        _MM_PRECISION = lax.Precision.HIGHEST
    return _MM_PRECISION


def _build_kernel(C, H, W, roll_sign, precision):
    HW = H * W

    def dot32(a, b):
        return jnp.dot(a, b, precision=precision, preferred_element_type=jnp.float32)

    def kernel(x_ref, cv_ref, w1f_ref, w3cat_ref, gsum_ref, pool_ref, exp2_ref,
               k7_ref, mask3_ref, out_ref):
        x = x_ref[0]                                   # (C, HW) lane-dense f32
        cv = cv_ref[...]                               # (C, 8) packed per-channel vectors
        b1, b3 = cv[:, 0:1], cv[:, 1:2]
        gnw, gnb = cv[:, 2:3], cv[:, 3:4]
        scale, shift, wbn = cv[:, 4:5], cv[:, 5:6], cv[:, 6:7]

        # ---------------- EMA channel attention ----------------
        # fused directional pooling: one matmul gives [mean over W | mean over H]
        x_hw = dot32(x, pool_ref[...])                          # (C, H+W)
        g = jax.nn.sigmoid(dot32(w1f_ref[...], x_hw) + b1)      # (C, H+W)
        gate2 = dot32(g, exp2_ref[...])                         # (C, 2*HW): [gate_h|gate_w]
        att = x * gate2[:, :HW] * gate2[:, HW:]                 # (C, HW)

        # GroupNorm(Cg, Cg): each GN group holds one channel -> per-channel norm
        mu = jnp.mean(att, axis=1, keepdims=True)
        xc = att - mu
        var = jnp.mean(xc * xc, axis=1, keepdims=True)
        x1 = xc * lax.rsqrt(var + EPS_GN) * gnw + gnb

        # 3x3 grouped conv (padding=1): 9 rolls + host masks, ONE fused channel-mix matmul
        taps = []
        for t, (dy, dx) in enumerate(_OFFS3):
            amt = dy * W + dx
            if amt == 0:
                taps.append(x)                                   # center tap: no roll/mask
            else:
                sh = pltpu.roll(x, (roll_sign * amt) % HW, axis=1)
                taps.append(sh * mask3_ref[t])
        shifted = jnp.concatenate(taps, axis=0)                  # (9*C, HW)
        x2 = dot32(w3cat_ref[...], shifted) + b3                 # (C, HW)

        # cross attention: softmax over the Cg channels of each group
        def group_softmax(v):                                    # v: (C, 1)
            m = jnp.max(v, axis=0, keepdims=True)                # global max (shift-invariant)
            e = jnp.exp(v - m)
            denom = dot32(gsum_ref[...], e)                      # per-channel group sums
            return e * pl.reciprocal(denom)                      # exact recip keeps 1e-4 tol

        x11 = group_softmax(jnp.mean(x1, axis=1, keepdims=True))
        x21 = group_softmax(jnp.mean(x2, axis=1, keepdims=True))
        weighted = x11 * x2 + x21 * x1                           # (C, HW)
        wmap = dot32(gsum_ref[...], weighted)                    # group sum per channel
        ema_out = x * jax.nn.sigmoid(wmap)                       # channelattention(x)
        x_ca = x * ema_out                                       # x * channelattention(x)

        # ------- Spatial attention: 7x7 conv as two (1,HW)@(HW,HW) MXU matmuls -------
        avg = jnp.mean(x_ca, axis=0, keepdims=True)              # (1, HW)
        mx = jnp.max(x_ca, axis=0, keepdims=True)                # (1, HW)
        sa = dot32(avg, k7_ref[0]) + dot32(mx, k7_ref[1])        # (1, HW)
        x_sa = x_ca * jax.nn.sigmoid(sa)

        # ------- NAM (BatchNorm eval stats + channel reweight + sigmoid) -------
        def nam(t):
            return jax.nn.sigmoid((t * scale + shift) * wbn)

        out = x * nam(x) + x_sa * nam(x_sa)      # residual*NAM(residual) + x*NAM(x)
        out_ref[0] = out.astype(out_ref.dtype)

    return kernel


def emrncbam_pallas(x, params, groups):
    B, C, H, W = x.shape
    Cg = C // groups
    HW = H * W
    f32 = jnp.float32

    roll_sign = _roll_sign()
    precision = _matmul_precision()

    # ---------------- host-side constants (built once per call) ----------------
    eye_g = np.eye(groups, dtype=np.float32)

    w1 = np.asarray(params['w1'], np.float32).reshape(Cg, Cg)
    w1f = jnp.asarray(np.kron(eye_g, w1))                                    # (C, C)

    w3 = np.asarray(params['w3'], np.float32).reshape(Cg, Cg, 3, 3)
    w3cat = jnp.asarray(np.concatenate(
        [np.kron(eye_g, w3[:, :, ky, kx]) for ky in range(3) for kx in range(3)],
        axis=1))                                                             # (C, 9*C)

    gsum = jnp.asarray(np.kron(eye_g, np.ones((Cg, Cg), np.float32)))        # (C, C)

    p = np.arange(HW)
    rows, cols = p // W, p % W

    # fused directional pooling matrix: x @ pool_hw = [mean over W | mean over H]
    pool_hw = np.zeros((HW, H + W), np.float32)
    pool_hw[p, rows] = 1.0 / W
    pool_hw[p, H + cols] = 1.0 / H

    # fused gate expansion: g @ exp2 = [gate_h expanded | gate_w expanded]
    exp2 = np.zeros((H + W, 2 * HW), np.float32)
    exp2[rows, p] = 1.0
    exp2[H + cols, HW + p] = 1.0

    # 7x7 spatial conv folded into two (HW, HW) matrices (padding/masking baked in)
    wsp = np.asarray(params['wsp'], np.float32).reshape(2, 7, 7)
    k7 = np.zeros((2, HW, HW), np.float32)
    for dy in range(-3, 4):
        for dx in range(-3, 4):
            qr, qc = rows + dy, cols + dx
            valid = (qr >= 0) & (qr < H) & (qc >= 0) & (qc < W)
            pv = p[valid]
            qv = qr[valid] * W + qc[valid]
            k7[0, qv, pv] = wsp[0, dy + 3, dx + 3]
            k7[1, qv, pv] = wsp[1, dy + 3, dx + 3]
    k7 = jnp.asarray(k7)

    # boundary masks for the 9 3x3 taps (destination-indexed, applied post-roll)
    mask3 = np.zeros((9, 1, HW), np.float32)
    for t, (dy, dx) in enumerate(_OFFS3):
        valid = (rows + dy >= 0) & (rows + dy < H) & (cols + dx >= 0) & (cols + dx < W)
        mask3[t, 0] = valid.astype(np.float32)
    mask3 = jnp.asarray(mask3)

    # packed per-channel vectors: [b1, b3, gnw, gnb, bn_scale, bn_shift, bn_wbn, 0]
    bn_w = np.asarray(params['bn_w'], np.float32)
    bn_b = np.asarray(params['bn_b'], np.float32)
    bn_rm = np.asarray(params['bn_rm'], np.float32)
    bn_rv = np.asarray(params['bn_rv'], np.float32)
    inv_std = 1.0 / np.sqrt(bn_rv + EPS_BN)
    chanvec = np.zeros((C, 8), np.float32)
    chanvec[:, 0] = np.tile(np.asarray(params['b1'], np.float32), groups)
    chanvec[:, 1] = np.tile(np.asarray(params['b3'], np.float32), groups)
    chanvec[:, 2] = np.tile(np.asarray(params['gnw'], np.float32), groups)
    chanvec[:, 3] = np.tile(np.asarray(params['gnb'], np.float32), groups)
    chanvec[:, 4] = bn_w * inv_std
    chanvec[:, 5] = bn_b - bn_rm * bn_w * inv_std
    chanvec[:, 6] = np.abs(bn_w) / np.sum(np.abs(bn_w))
    chanvec = jnp.asarray(chanvec)

    kernel = _build_kernel(C, H, W, roll_sign, precision)

    def bcast(shape):
        nd = len(shape)
        return pl.BlockSpec(shape, lambda b, _nd=nd: (0,) * _nd)

    x_flat = x.reshape(B, C, HW).astype(f32)       # NCHW contiguous -> free relayout

    out = pl.pallas_call(
        kernel,
        out_shape=jax.ShapeDtypeStruct((B, C, HW), f32),
        grid=(B,),
        in_specs=[
            pl.BlockSpec((1, C, HW), lambda b: (b, 0, 0)),     # x (lane-dense)
            bcast((C, 8)),                                     # packed per-channel vectors
            bcast((C, C)),                                     # 1x1 block-diag weight
            bcast((C, 9 * C)),                                 # 3x3 block-diag, taps on K
            bcast((C, C)),                                     # group-sum matrix
            bcast((HW, H + W)),                                # fused directional pooling
            bcast((H + W, 2 * HW)),                            # fused gate expansion
            bcast((2, HW, HW)),                                # 7x7 conv matrices (avg,max)
            bcast((9, 1, HW)),                                 # 3x3 boundary masks
        ],
        out_specs=pl.BlockSpec((1, C, HW), lambda b: (b, 0, 0)),
        compiler_params=pltpu.CompilerParams(dimension_semantics=("parallel",)),
    )(x_flat, chanvec, w1f, w3cat, gsum, jnp.asarray(pool_hw), jnp.asarray(exp2),
      k7, mask3)

    return out.reshape(B, C, H, W)


def ref_forward(x, params, groups):
    """Pure-JAX reference of EMRNCBAM (NAM BatchNorm in eval mode)."""
    B, C, H, W = x.shape
    Cg = C // groups
    hp = lax.Precision.HIGHEST

    def ema(t):
        gx = t.reshape(B * groups, Cg, H, W)
        x_h = gx.mean(axis=3, keepdims=True)
        x_w = gx.mean(axis=2, keepdims=True).transpose(0, 1, 3, 2)
        cat = jnp.concatenate([x_h, x_w], axis=2)[..., 0]
        hw = jnp.einsum('oc,bcl->bol', params['w1'], cat, precision=hp) \
            + params['b1'][None, :, None]
        xh, xw = hw[:, :, :H], hw[:, :, H:]
        att = gx * jax.nn.sigmoid(xh)[..., None] * jax.nn.sigmoid(xw)[:, :, None, :]
        mu = att.mean(axis=(2, 3), keepdims=True)
        var = ((att - mu) ** 2).mean(axis=(2, 3), keepdims=True)
        x1 = (att - mu) / jnp.sqrt(var + EPS_GN)
        x1 = x1 * params['gnw'][None, :, None, None] + params['gnb'][None, :, None, None]
        x2 = lax.conv_general_dilated(
            gx, params['w3'], (1, 1), 'SAME',
            dimension_numbers=('NCHW', 'OIHW', 'NCHW'), precision=hp
        ) + params['b3'][None, :, None, None]
        x11 = jax.nn.softmax(x1.mean(axis=(2, 3)), axis=-1)
        x21 = jax.nn.softmax(x2.mean(axis=(2, 3)), axis=-1)
        wmap = (jnp.einsum('bc,bchw->bhw', x11, x2, precision=hp)
                + jnp.einsum('bc,bchw->bhw', x21, x1, precision=hp))
        return (gx * jax.nn.sigmoid(wmap)[:, None]).reshape(B, C, H, W)

    def spatial(t):
        avg = t.mean(axis=1, keepdims=True)
        mx = t.max(axis=1, keepdims=True)
        c2 = jnp.concatenate([avg, mx], axis=1)
        y = lax.conv_general_dilated(
            c2, params['wsp'], (1, 1), 'SAME',
            dimension_numbers=('NCHW', 'OIHW', 'NCHW'), precision=hp)
        return jax.nn.sigmoid(y)

    def nam(t):
        w, b = params['bn_w'], params['bn_b']
        rm, rv = params['bn_rm'], params['bn_rv']
        y = (t - rm[None, :, None, None]) / jnp.sqrt(rv[None, :, None, None] + EPS_BN)
        y = y * w[None, :, None, None] + b[None, :, None, None]
        wbn = jnp.abs(w) / jnp.sum(jnp.abs(w))
        return jax.nn.sigmoid(y * wbn[None, :, None, None])

    residual = x
    h1 = x * ema(x)
    h2 = h1 * spatial(h1)
    h3 = h2 * nam(h2)
    res = residual * nam(residual)
    return res + h3


if __name__ == "__main__":
    B, C, H, W = 2, 8, 16, 16
    GROUPS = 4                      # EMA "factor" (channels // factor must be > 0)
    Cg = C // GROUPS

    key = jax.random.PRNGKey(0)
    ks = jax.random.split(key, 12)
    x = jax.random.normal(ks[0], (B, C, H, W), jnp.float32)

    params = {
        'w1': 0.4 * jax.random.normal(ks[1], (Cg, Cg), jnp.float32),       # conv1x1 (O,I)
        'b1': 0.1 * jax.random.normal(ks[2], (Cg,), jnp.float32),
        'w3': 0.2 * jax.random.normal(ks[3], (Cg, Cg, 3, 3), jnp.float32), # conv3x3 OIHW
        'b3': 0.1 * jax.random.normal(ks[4], (Cg,), jnp.float32),
        'gnw': 1.0 + 0.1 * jax.random.normal(ks[5], (Cg,), jnp.float32),   # GroupNorm affine
        'gnb': 0.1 * jax.random.normal(ks[6], (Cg,), jnp.float32),
        'wsp': 0.1 * jax.random.normal(ks[7], (1, 2, 7, 7), jnp.float32),  # spatial conv, no bias
        'bn_w': 1.0 + 0.1 * jax.random.normal(ks[8], (C,), jnp.float32),   # NAM BatchNorm
        'bn_b': 0.05 * jax.random.normal(ks[9], (C,), jnp.float32),
        'bn_rm': 0.1 * jax.random.normal(ks[10], (C,), jnp.float32),
        'bn_rv': 0.5 + 0.5 * jax.nn.sigmoid(jax.random.normal(ks[11], (C,), jnp.float32)),
    }

    out = emrncbam_pallas(x, params, GROUPS)
    out = jax.block_until_ready(out)

    ref = ref_forward(x, params, GROUPS)
    assert out.shape == (B, C, H, W)
    max_err = float(jnp.max(jnp.abs(out - ref)))
    if not bool(jnp.allclose(out, ref, atol=1e-4, rtol=1e-3)):
        raise AssertionError(f"Pallas kernel mismatch vs JAX reference, max abs err={max_err}")
    print("KERNEL_OK")
</pallas_src>

<mosaic_0001>
module attributes {stable_mosaic.version = 11 : i64} {
  func.func @kernel(%arg0: i32, %arg1: memref<1x8x256xf32, #tpu.memory_space<vmem>>, %arg2: memref<8x8xf32, #tpu.memory_space<vmem>>, %arg3: memref<8x8xf32, #tpu.memory_space<vmem>>, %arg4: memref<8x72xf32, #tpu.memory_space<vmem>>, %arg5: memref<8x8xf32, #tpu.memory_space<vmem>>, %arg6: memref<256x32xf32, #tpu.memory_space<vmem>>, %arg7: memref<32x512xf32, #tpu.memory_space<vmem>>, %arg8: memref<2x256x256xf32, #tpu.memory_space<vmem>>, %arg9: memref<9x1x256xf32, #tpu.memory_space<vmem>>, %arg10: memref<1x8x256xf32, #tpu.memory_space<vmem>>) attributes {dimension_semantics = [#tpu.dimension_semantics<parallel>], iteration_bounds = array<i64: 2>, scalar_prefetch = 0 : i64, scratch_operands = 0 : i64, tpu.core_type = #tpu.core_type<tc>, window_params = [{transform_indices = @transform_0, window_bounds = array<i64: 1, 8, 256>}, {pipeline_mode = #tpu.pipeline_mode<synchronous>, transform_indices = @transform_1, window_bounds = array<i64: 8, 8>}, {pipeline_mode = #tpu.pipeline_mode<synchronous>, transform_indices = @transform_2, window_bounds = array<i64: 8, 8>}, {pipeline_mode = #tpu.pipeline_mode<synchronous>, transform_indices = @transform_3, window_bounds = array<i64: 8, 72>}, {pipeline_mode = #tpu.pipeline_mode<synchronous>, transform_indices = @transform_4, window_bounds = array<i64: 8, 8>}, {pipeline_mode = #tpu.pipeline_mode<synchronous>, transform_indices = @transform_5, window_bounds = array<i64: 256, 32>}, {pipeline_mode = #tpu.pipeline_mode<synchronous>, transform_indices = @transform_6, window_bounds = array<i64: 32, 512>}, {pipeline_mode = #tpu.pipeline_mode<synchronous>, transform_indices = @transform_7, window_bounds = array<i64: 2, 256, 256>}, {pipeline_mode = #tpu.pipeline_mode<synchronous>, transform_indices = @transform_8, window_bounds = array<i64: 9, 1, 256>}, {transform_indices = @transform_9, window_bounds = array<i64: 1, 8, 256>}]} {
    %c0 = arith.constant 0 : index
    %c0_0 = arith.constant 0 : index
    %c0_1 = arith.constant 0 : index
    %0 = vector.load %arg1[%c0, %c0_0, %c0_1] : memref<1x8x256xf32, #tpu.memory_space<vmem>>, vector<1x8x256xf32>
    %1 = vector.shape_cast %0 : vector<1x8x256xf32> to vector<8x256xf32>
    %c0_2 = arith.constant 0 : index
    %c0_3 = arith.constant 0 : index
    %2 = vector.load %arg2[%c0_2, %c0_3] : memref<8x8xf32, #tpu.memory_space<vmem>>, vector<8x8xf32>
    %3 = vector.extract_strided_slice %2 {offsets = [0, 0], sizes = [8, 1], strides = [1, 1]} : vector<8x8xf32> to vector<8x1xf32>
    %4 = vector.extract_strided_slice %2 {offsets = [0, 1], sizes = [8, 1], strides = [1, 1]} : vector<8x8xf32> to vector<8x1xf32>
    %5 = vector.extract_strided_slice %2 {offsets = [0, 2], sizes = [8, 1], strides = [1, 1]} : vector<8x8xf32> to vector<8x1xf32>
    %6 = vector.extract_strided_slice %2 {offsets = [0, 3], sizes = [8, 1], strides = [1, 1]} : vector<8x8xf32> to vector<8x1xf32>
    %7 = vector.extract_strided_slice %2 {offsets = [0, 4], sizes = [8, 1], strides = [1, 1]} : vector<8x8xf32> to vector<8x1xf32>
    %8 = vector.extract_strided_slice %2 {offsets = [0, 5], sizes = [8, 1], strides = [1, 1]} : vector<8x8xf32> to vector<8x1xf32>
    %9 = vector.extract_strided_slice %2 {offsets = [0, 6], sizes = [8, 1], strides = [1, 1]} : vector<8x8xf32> to vector<8x1xf32>
    %c0_4 = arith.constant 0 : index
    %c0_5 = arith.constant 0 : index
    %10 = vector.load %arg6[%c0_4, %c0_5] : memref<256x32xf32, #tpu.memory_space<vmem>>, vector<256x32xf32>
    %cst = arith.constant dense<0.000000e+00> : vector<8x32xf32>
    %11 = tpu.matmul %1, %10, %cst {dimension_numbers = #tpu.dot_dimension_numbers<[1], [0], [0], [1], [0, 0, 1, 1], [], []>, precision = #tpu.contract_precision<fp32>} : vector<8x256xf32>, vector<256x32xf32>, vector<8x32xf32> -> vector<8x32xf32>
    %c0_6 = arith.constant 0 : index
    %c0_7 = arith.constant 0 : index
    %12 = vector.load %arg3[%c0_6, %c0_7] : memref<8x8xf32, #tpu.memory_space<vmem>>, vector<8x8xf32>
    %cst_8 = arith.constant dense<0.000000e+00> : vector<8x32xf32>
    %13 = tpu.matmul %12, %11, %cst_8 {dimension_numbers = #tpu.dot_dimension_numbers<[1], [0], [0], [1], [0, 0, 1, 1], [], []>, precision = #tpu.contract_precision<fp32>} : vector<8x8xf32>, vector<8x32xf32>, vector<8x32xf32> -> vector<8x32xf32>
    %14 = vector.broadcast %3 : vector<8x1xf32> to vector<8x32xf32>
    %15 = arith.addf %13, %14 : vector<8x32xf32>
    %16 = arith.negf %15 : vector<8x32xf32>
    %17 = math.exp %16 : vector<8x32xf32>
    %cst_9 = arith.constant 1.000000e+00 : f32
    %18 = vector.broadcast %cst_9 : f32 to vector<8x32xf32>
    %19 = arith.addf %18, %17 : vector<8x32xf32>
    %20 = arith.divf %18, %19 : vector<8x32xf32>
    %c0_10 = arith.constant 0 : index
    %c0_11 = arith.constant 0 : index
    %21 = vector.load %arg7[%c0_10, %c0_11] : memref<32x512xf32, #tpu.memory_space<vmem>>, vector<32x512xf32>
    %cst_12 = arith.constant dense<0.000000e+00> : vector<8x512xf32>
    %22 = tpu.matmul %20, %21, %cst_12 {dimension_numbers = #tpu.dot_dimension_numbers<[1], [0], [0], [1], [0, 0, 1, 1], [], []>, precision = #tpu.contract_precision<fp32>} : vector<8x32xf32>, vector<32x512xf32>, vector<8x512xf32> -> vector<8x512xf32>
    %23 = vector.extract_strided_slice %22 {offsets = [0, 0], sizes = [8, 256], strides = [1, 1]} : vector<8x512xf32> to vector<8x256xf32>
    %24 = arith.mulf %1, %23 : vector<8x256xf32>
    %25 = vector.extract_strided_slice %22 {offsets = [0, 256], sizes = [8, 256], strides = [1, 1]} : vector<8x512xf32> to vector<8x256xf32>
    %26 = arith.mulf %24, %25 : vector<8x256xf32>
    %cst_13 = arith.constant dense<0.000000e+00> : vector<8xf32>
    %27 = vector.multi_reduction <add>, %26, %cst_13 [1] : vector<8x256xf32> to vector<8xf32>
    %28 = vector.shape_cast %27 : vector<8xf32> to vector<8x1xf32>
    %cst_14 = arith.constant 2.560000e+02 : f32
    %29 = vector.broadcast %cst_14 : f32 to vector<8x1xf32>
    %30 = arith.divf %28, %29 : vector<8x1xf32>
    %31 = vector.broadcast %30 : vector<8x1xf32> to vector<8x256xf32>
    %32 = arith.subf %26, %31 : vector<8x256xf32>
    %33 = arith.mulf %32, %32 : vector<8x256xf32>
    %cst_15 = arith.constant dense<0.000000e+00> : vector<8xf32>
    %34 = vector.multi_reduction <add>, %33, %cst_15 [1] : vector<8x256xf32> to vector<8xf32>
    %35 = vector.shape_cast %34 : vector<8xf32> to vector<8x1xf32>
    %cst_16 = arith.constant 2.560000e+02 : f32
    %36 = vector.broadcast %cst_16 : f32 to vector<8x1xf32>
    %37 = arith.divf %35, %36 : vector<8x1xf32>
    %cst_17 = arith.constant 9.99999974E-6 : f32
    %38 = vector.broadcast %cst_17 : f32 to vector<8x1xf32>
    %39 = arith.addf %37, %38 : vector<8x1xf32>
    %40 = math.rsqrt %39 : vector<8x1xf32>
    %41 = vector.broadcast %40 : vector<8x1xf32> to vector<8x256xf32>
    %42 = arith.mulf %32, %41 : vector<8x256xf32>
    %43 = vector.broadcast %5 : vector<8x1xf32> to vector<8x256xf32>
    %44 = arith.mulf %42, %43 : vector<8x256xf32>
    %45 = vector.broadcast %6 : vector<8x1xf32> to vector<8x256xf32>
    %46 = arith.addf %44, %45 : vector<8x256xf32>
    %c17_i32 = arith.constant 17 : i32
    %47 = tpu.dynamic_rotate %1 by %c17_i32 dim 1 : vector<8x256xf32>, i32 -> vector<8x256xf32>
    %c0_18 = arith.constant 0 : index
    %c0_19 = arith.constant 0 : index
    %c0_20 = arith.constant 0 : index
    %48 = vector.load %arg9[%c0_18, %c0_19, %c0_20] : memref<9x1x256xf32, #tpu.memory_space<vmem>>, vector<1x1x256xf32>
    %49 = vector.shape_cast %48 : vector<1x1x256xf32> to vector<1x256xf32>
    %50 = vector.broadcast %49 : vector<1x256xf32> to vector<8x256xf32>
    %51 = arith.mulf %47, %50 : vector<8x256xf32>
    %c16_i32 = arith.constant 16 : i32
    %52 = tpu.dynamic_rotate %1 by %c16_i32 dim 1 : vector<8x256xf32>, i32 -> vector<8x256xf32>
    %c1 = arith.constant 1 : index
    %c0_21 = arith.constant 0 : index
    %c0_22 = arith.constant 0 : index
    %53 = vector.load %arg9[%c1, %c0_21, %c0_22] : memref<9x1x256xf32, #tpu.memory_space<vmem>>, vector<1x1x256xf32>
    %54 = vector.shape_cast %53 : vector<1x1x256xf32> to vector<1x256xf32>
    %55 = vector.broadcast %54 : vector<1x256xf32> to vector<8x256xf32>
    %56 = arith.mulf %52, %55 : vector<8x256xf32>
    %c15_i32 = arith.constant 15 : i32
    %57 = tpu.dynamic_rotate %1 by %c15_i32 dim 1 : vector<8x256xf32>, i32 -> vector<8x256xf32>
    %c2 = arith.constant 2 : index
    %c0_23 = arith.constant 0 : index
    %c0_24 = arith.constant 0 : index
    %58 = vector.load %arg9[%c2, %c0_23, %c0_24] : memref<9x1x256xf32, #tpu.memory_space<vmem>>, vector<1x1x256xf32>
    %59 = vector.shape_cast %58 : vector<1x1x256xf32> to vector<1x256xf32>
    %60 = vector.broadcast %59 : vector<1x256xf32> to vector<8x256xf32>
    %61 = arith.mulf %57, %60 : vector<8x256xf32>
    %c1_i32 = arith.constant 1 : i32
    %62 = tpu.dynamic_rotate %1 by %c1_i32 dim 1 : vector<8x256xf32>, i32 -> vector<8x256xf32>
    %c3 = arith.constant 3 : index
    %c0_25 = arith.constant 0 : index
    %c0_26 = arith.constant 0 : index
    %63 = vector.load %arg9[%c3, %c0_25, %c0_26] : memref<9x1x256xf32, #tpu.memory_space<vmem>>, vector<1x1x256xf32>
    %64 = vector.shape_cast %63 : vector<1x1x256xf32> to vector<1x256xf32>
    %65 = vector.broadcast %64 : vector<1x256xf32> to vector<8x256xf32>
    %66 = arith.mulf %62, %65 : vector<8x256xf32>
    %c255_i32 = arith.constant 255 : i32
    %67 = tpu.dynamic_rotate %1 by %c255_i32 dim 1 : vector<8x256xf32>, i32 -> vector<8x256xf32>
    %c5 = arith.constant 5 : index
    %c0_27 = arith.constant 0 : index
    %c0_28 = arith.constant 0 : index
    %68 = vector.load %arg9[%c5, %c0_27, %c0_28] : memref<9x1x256xf32, #tpu.memory_space<vmem>>, vector<1x1x256xf32>
    %69 = vector.shape_cast %68 : vector<1x1x256xf32> to vector<1x256xf32>
    %70 = vector.broadcast %69 : vector<1x256xf32> to vector<8x256xf32>
    %71 = arith.mulf %67, %70 : vector<8x256xf32>
    %c241_i32 = arith.constant 241 : i32
    %72 = tpu.dynamic_rotate %1 by %c241_i32 dim 1 : vector<8x256xf32>, i32 -> vector<8x256xf32>
    %c6 = arith.constant 6 : index
    %c0_29 = arith.constant 0 : index
    %c0_30 = arith.constant 0 : index
    %73 = vector.load %arg9[%c6, %c0_29, %c0_30] : memref<9x1x256xf32, #tpu.memory_space<vmem>>, vector<1x1x256xf32>
    %74 = vector.shape_cast %73 : vector<1x1x256xf32> to vector<1x256xf32>
    %75 = vector.broadcast %74 : vector<1x256xf32> to vector<8x256xf32>
    %76 = arith.mulf %72, %75 : vector<8x256xf32>
    %c240_i32 = arith.constant 240 : i32
    %77 = tpu.dynamic_rotate %1 by %c240_i32 dim 1 : vector<8x256xf32>, i32 -> vector<8x256xf32>
    %c7 = arith.constant 7 : index
    %c0_31 = arith.constant 0 : index
    %c0_32 = arith.constant 0 : index
    %78 = vector.load %arg9[%c7, %c0_31, %c0_32] : memref<9x1x256xf32, #tpu.memory_space<vmem>>, vector<1x1x256xf32>
    %79 = vector.shape_cast %78 : vector<1x1x256xf32> to vector<1x256xf32>
    %80 = vector.broadcast %79 : vector<1x256xf32> to vector<8x256xf32>
    %81 = arith.mulf %77, %80 : vector<8x256xf32>
    %c239_i32 = arith.constant 239 : i32
    %82 = tpu.dynamic_rotate %1 by %c239_i32 dim 1 : vector<8x256xf32>, i32 -> vector<8x256xf32>
    %c8 = arith.constant 8 : index
    %c0_33 = arith.constant 0 : index
    %c0_34 = arith.constant 0 : index
    %83 = vector.load %arg9[%c8, %c0_33, %c0_34] : memref<9x1x256xf32, #tpu.memory_space<vmem>>, vector<1x1x256xf32>
    %84 = vector.shape_cast %83 : vector<1x1x256xf32> to vector<1x256xf32>
    %85 = vector.broadcast %84 : vector<1x256xf32> to vector<8x256xf32>
    %86 = arith.mulf %82, %85 : vector<8x256xf32>
    %87 = tpu.concatenate %51, %56, %61, %66, %1, %71, %76, %81, %86 in 0 : vector<8x256xf32>, vector<8x256xf32>, vector<8x256xf32>, vector<8x256xf32>, vector<8x256xf32>, vector<8x256xf32>, vector<8x256xf32>, vector<8x256xf32>, vector<8x256xf32> -> vector<72x256xf32>
    %c0_35 = arith.constant 0 : index
    %c0_36 = arith.constant 0 : index
    %88 = vector.load %arg4[%c0_35, %c0_36] : memref<8x72xf32, #tpu.memory_space<vmem>>, vector<8x72xf32>
    %cst_37 = arith.constant dense<0.000000e+00> : vector<8x256xf32>
    %89 = tpu.matmul %88, %87, %cst_37 {dimension_numbers = #tpu.dot_dimension_numbers<[1], [0], [0], [1], [0, 0, 1, 1], [], []>, precision = #tpu.contract_precision<fp32>} : vector<8x72xf32>, vector<72x256xf32>, vector<8x256xf32> -> vector<8x256xf32>
    %90 = vector.broadcast %4 : vector<8x1xf32> to vector<8x256xf32>
    %91 = arith.addf %89, %90 : vector<8x256xf32>
    %cst_38 = arith.constant dense<0.000000e+00> : vector<8xf32>
    %92 = vector.multi_reduction <add>, %46, %cst_38 [1] : vector<8x256xf32> to vector<8xf32>
    %93 = vector.shape_cast %92 : vector<8xf32> to vector<8x1xf32>
    %cst_39 = arith.constant 2.560000e+02 : f32
    %94 = vector.broadcast %cst_39 : f32 to vector<8x1xf32>
    %95 = arith.divf %93, %94 : vector<8x1xf32>
    %cst_40 = arith.constant dense<0xFF800000> : vector<1xf32>
    %96 = vector.multi_reduction <maximumf>, %95, %cst_40 [0] : vector<8x1xf32> to vector<1xf32>
    %97 = vector.shape_cast %96 : vector<1xf32> to vector<1x1xf32>
    %98 = vector.broadcast %97 : vector<1x1xf32> to vector<8x1xf32>
    %99 = arith.subf %95, %98 : vector<8x1xf32>
    %100 = math.exp %99 : vector<8x1xf32>
    %c0_41 = arith.constant 0 : index
    %c0_42 = arith.constant 0 : index
    %101 = vector.load %arg5[%c0_41, %c0_42] : memref<8x8xf32, #tpu.memory_space<vmem>>, vector<8x8xf32>
    %cst_43 = arith.constant dense<0.000000e+00> : vector<8x1xf32>
    %102 = tpu.matmul %101, %100, %cst_43 {dimension_numbers = #tpu.dot_dimension_numbers<[1], [0], [0], [1], [0, 0, 1, 1], [], []>, precision = #tpu.contract_precision<fp32>} : vector<8x8xf32>, vector<8x1xf32>, vector<8x1xf32> -> vector<8x1xf32>
    %103 = tpu.reciprocal %102 : vector<8x1xf32> -> vector<8x1xf32>
    %104 = arith.mulf %100, %103 : vector<8x1xf32>
    %cst_44 = arith.constant dense<0.000000e+00> : vector<8xf32>
    %105 = vector.multi_reduction <add>, %91, %cst_44 [1] : vector<8x256xf32> to vector<8xf32>
    %106 = vector.shape_cast %105 : vector<8xf32> to vector<8x1xf32>
    %cst_45 = arith.constant 2.560000e+02 : f32
    %107 = vector.broadcast %cst_45 : f32 to vector<8x1xf32>
    %108 = arith.divf %106, %107 : vector<8x1xf32>
    %cst_46 = arith.constant dense<0xFF800000> : vector<1xf32>
    %109 = vector.multi_reduction <maximumf>, %108, %cst_46 [0] : vector<8x1xf32> to vector<1xf32>
    %110 = vector.shape_cast %109 : vector<1xf32> to vector<1x1xf32>
    %111 = vector.broadcast %110 : vector<1x1xf32> to vector<8x1xf32>
    %112 = arith.subf %108, %111 : vector<8x1xf32>
    %113 = math.exp %112 : vector<8x1xf32>
    %c0_47 = arith.constant 0 : index
    %c0_48 = arith.constant 0 : index
    %114 = vector.load %arg5[%c0_47, %c0_48] : memref<8x8xf32, #tpu.memory_space<vmem>>, vector<8x8xf32>
    %cst_49 = arith.constant dense<0.000000e+00> : vector<8x1xf32>
    %115 = tpu.matmul %114, %113, %cst_49 {dimension_numbers = #tpu.dot_dimension_numbers<[1], [0], [0], [1], [0, 0, 1, 1], [], []>, precision = #tpu.contract_precision<fp32>} : vector<8x8xf32>, vector<8x1xf32>, vector<8x1xf32> -> vector<8x1xf32>
    %116 = tpu.reciprocal %115 : vector<8x1xf32> -> vector<8x1xf32>
    %117 = arith.mulf %113, %116 : vector<8x1xf32>
    %118 = vector.broadcast %104 : vector<8x1xf32> to vector<8x256xf32>
    %119 = arith.mulf %118, %91 : vector<8x256xf32>
    %120 = vector.broadcast %117 : vector<8x1xf32> to vector<8x256xf32>
    %121 = arith.mulf %120, %46 : vector<8x256xf32>
    %122 = arith.addf %119, %121 : vector<8x256xf32>
    %c0_50 = arith.constant 0 : index
    %c0_51 = arith.constant 0 : index
    %123 = vector.load %arg5[%c0_50, %c0_51] : memref<8x8xf32, #tpu.memory_space<vmem>>, vector<8x8xf32>
    %cst_52 = arith.constant dense<0.000000e+00> : vector<8x256xf32>
    %124 = tpu.matmul %123, %122, %cst_52 {dimension_numbers = #tpu.dot_dimension_numbers<[1], [0], [0], [1], [0, 0, 1, 1], [], []>, precision = #tpu.contract_precision<fp32>} : vector<8x8xf32>, vector<8x256xf32>, vector<8x256xf32> -> vector<8x256xf32>
    %125 = arith.negf %124 : vector<8x256xf32>
    %126 = math.exp %125 : vector<8x256xf32>
    %cst_53 = arith.constant 1.000000e+00 : f32
    %127 = vector.broadcast %cst_53 : f32 to vector<8x256xf32>
    %128 = arith.addf %127, %126 : vector<8x256xf32>
    %129 = arith.divf %127, %128 : vector<8x256xf32>
    %130 = arith.mulf %1, %129 : vector<8x256xf32>
    %131 = arith.mulf %1, %130 : vector<8x256xf32>
    %cst_54 = arith.constant dense<0.000000e+00> : vector<256xf32>
    %132 = vector.multi_reduction <add>, %131, %cst_54 [0] : vector<8x256xf32> to vector<256xf32>
    %133 = vector.shape_cast %132 : vector<256xf32> to vector<1x256xf32>
    %cst_55 = arith.constant 8.000000e+00 : f32
    %134 = vector.broadcast %cst_55 : f32 to vector<1x256xf32>
    %135 = arith.divf %133, %134 : vector<1x256xf32>
    %cst_56 = arith.constant dense<0xFF800000> : vector<256xf32>
    %136 = vector.multi_reduction <maximumf>, %131, %cst_56 [0] : vector<8x256xf32> to vector<256xf32>
    %137 = vector.shape_cast %136 : vector<256xf32> to vector<1x256xf32>
    %c0_57 = arith.constant 0 : index
    %c0_58 = arith.constant 0 : index
    %c0_59 = arith.constant 0 : index
    %138 = vector.load %arg8[%c0_57, %c0_58, %c0_59] : memref<2x256x256xf32, #tpu.memory_space<vmem>>, vector<1x256x256xf32>
    %139 = vector.shape_cast %138 : vector<1x256x256xf32> to vector<256x256xf32>
    %cst_60 = arith.constant dense<0.000000e+00> : vector<1x256xf32>
    %140 = tpu.matmul %135, %139, %cst_60 {dimension_numbers = #tpu.dot_dimension_numbers<[1], [0], [0], [1], [0, 0, 1, 1], [], []>, precision = #tpu.contract_precision<fp32>} : vector<1x256xf32>, vector<256x256xf32>, vector<1x256xf32> -> vector<1x256xf32>
    %c1_61 = arith.constant 1 : index
    %c0_62 = arith.constant 0 : index
    %c0_63 = arith.constant 0 : index
    %141 = vector.load %arg8[%c1_61, %c0_62, %c0_63] : memref<2x256x256xf32, #tpu.memory_space<vmem>>, vector<1x256x256xf32>
    %142 = vector.shape_cast %141 : vector<1x256x256xf32> to vector<256x256xf32>
    %cst_64 = arith.constant dense<0.000000e+00> : vector<1x256xf32>
    %143 = tpu.matmul %137, %142, %cst_64 {dimension_numbers = #tpu.dot_dimension_numbers<[1], [0], [0], [1], [0, 0, 1, 1], [], []>, precision = #tpu.contract_precision<fp32>} : vector<1x256xf32>, vector<256x256xf32>, vector<1x256xf32> -> vector<1x256xf32>
    %144 = arith.addf %140, %143 : vector<1x256xf32>
    %145 = arith.negf %144 : vector<1x256xf32>
    %146 = math.exp %145 : vector<1x256xf32>
    %cst_65 = arith.constant 1.000000e+00 : f32
    %147 = vector.broadcast %cst_65 : f32 to vector<1x256xf32>
    %148 = arith.addf %147, %146 : vector<1x256xf32>
    %149 = arith.divf %147, %148 : vector<1x256xf32>
    %150 = vector.broadcast %149 : vector<1x256xf32> to vector<8x256xf32>
    %151 = arith.mulf %131, %150 : vector<8x256xf32>
    %152 = vector.broadcast %7 : vector<8x1xf32> to vector<8x256xf32>
    %153 = arith.mulf %1, %152 : vector<8x256xf32>
    %154 = vector.broadcast %8 : vector<8x1xf32> to vector<8x256xf32>
    %155 = arith.addf %153, %154 : vector<8x256xf32>
    %156 = vector.broadcast %9 : vector<8x1xf32> to vector<8x256xf32>
    %157 = arith.mulf %155, %156 : vector<8x256xf32>
    %158 = arith.negf %157 : vector<8x256xf32>
    %159 = math.exp %158 : vector<8x256xf32>
    %cst_66 = arith.constant 1.000000e+00 : f32
    %160 = vector.broadcast %cst_66 : f32 to vector<8x256xf32>
    %161 = arith.addf %160, %159 : vector<8x256xf32>
    %162 = arith.divf %160, %161 : vector<8x256xf32>
    %163 = arith.mulf %1, %162 : vector<8x256xf32>
    %164 = vector.broadcast %7 : vector<8x1xf32> to vector<8x256xf32>
    %165 = arith.mulf %151, %164 : vector<8x256xf32>
    %166 = vector.broadcast %8 : vector<8x1xf32> to vector<8x256xf32>
    %167 = arith.addf %165, %166 : vector<8x256xf32>
    %168 = vector.broadcast %9 : vector<8x1xf32> to vector<8x256xf32>
    %169 = arith.mulf %167, %168 : vector<8x256xf32>
    %170 = arith.negf %169 : vector<8x256xf32>
    %171 = math.exp %170 : vector<8x256xf32>
    %cst_67 = arith.constant 1.000000e+00 : f32
    %172 = vector.broadcast %cst_67 : f32 to vector<8x256xf32>
    %173 = arith.addf %172, %171 : vector<8x256xf32>
    %174 = arith.divf %172, %173 : vector<8x256xf32>
    %175 = arith.mulf %151, %174 : vector<8x256xf32>
    %176 = arith.addf %163, %175 : vector<8x256xf32>
    %c0_68 = arith.constant 0 : index
    %c0_69 = arith.constant 0 : index
    %c0_70 = arith.constant 0 : index
    %177 = vector.load %arg10[%c0_68, %c0_69, %c0_70] : memref<1x8x256xf32, #tpu.memory_space<vmem>>, vector<1x8x256xf32>
    %178 = vector.shape_cast %177 : vector<1x8x256xf32> to vector<8x256xf32>
    %179 = vector.shape_cast %176 : vector<8x256xf32> to vector<1x8x256xf32>
    tpu.vector_store %arg10[%c0_68, %c0_69, %c0_70], %179 {strides = array<i32>} : memref<1x8x256xf32, #tpu.memory_space<vmem>>, vector<1x8x256xf32>,
    return
  }
  func.func @transform_0(%arg0: i32) -> (i32, i32, i32) {
    %c0_i32 = arith.constant 0 : i32
    %c0_i32_0 = arith.constant 0 : i32
    %c0_i32_1 = arith.constant 0 : i32
    return %arg0, %c0_i32, %c0_i32_0 : i32, i32, i32
  }
  func.func @transform_1(%arg0: i32) -> (i32, i32) {
    %c0_i32 = arith.constant 0 : i32
    %c0_i32_0 = arith.constant 0 : i32
    %c0_i32_1 = arith.constant 0 : i32
    return %c0_i32, %c0_i32_0 : i32, i32
  }
  func.func @transform_2(%arg0: i32) -> (i32, i32) {
    %c0_i32 = arith.constant 0 : i32
    %c0_i32_0 = arith.constant 0 : i32
    %c0_i32_1 = arith.constant 0 : i32
    return %c0_i32, %c0_i32_0 : i32, i32
  }
  func.func @transform_3(%arg0: i32) -> (i32, i32) {
    %c0_i32 = arith.constant 0 : i32
    %c0_i32_0 = arith.constant 0 : i32
    %c0_i32_1 = arith.constant 0 : i32
    return %c0_i32, %c0_i32_0 : i32, i32
  }
  func.func @transform_4(%arg0: i32) -> (i32, i32) {
    %c0_i32 = arith.constant 0 : i32
    %c0_i32_0 = arith.constant 0 : i32
    %c0_i32_1 = arith.constant 0 : i32
    return %c0_i32, %c0_i32_0 : i32, i32
  }
  func.func @transform_5(%arg0: i32) -> (i32, i32) {
    %c0_i32 = arith.constant 0 : i32
    %c0_i32_0 = arith.constant 0 : i32
    %c0_i32_1 = arith.constant 0 : i32
    return %c0_i32, %c0_i32_0 : i32, i32
  }
  func.func @transform_6(%arg0: i32) -> (i32, i32) {
    %c0_i32 = arith.constant 0 : i32
    %c0_i32_0 = arith.constant 0 : i32
    %c0_i32_1 = arith.constant 0 : i32
    return %c0_i32, %c0_i32_0 : i32, i32
  }
  func.func @transform_7(%arg0: i32) -> (i32, i32, i32) {
    %c0_i32 = arith.constant 0 : i32
    %c0_i32_0 = arith.constant 0 : i32
    %c0_i32_1 = arith.constant 0 : i32
    %c0_i32_2 = arith.constant 0 : i32
    return %c0_i32, %c0_i32_0, %c0_i32_1 : i32, i32, i32
  }
  func.func @transform_8(%arg0: i32) -> (i32, i32, i32) {
    %c0_i32 = arith.constant 0 : i32
    %c0_i32_0 = arith.constant 0 : i32
    %c0_i32_1 = arith.constant 0 : i32
    %c0_i32_2 = arith.constant 0 : i32
    return %c0_i32, %c0_i32_0, %c0_i32_1 : i32, i32, i32
  }
  func.func @transform_9(%arg0: i32) -> (i32, i32, i32) {
    %c0_i32 = arith.constant 0 : i32
    %c0_i32_0 = arith.constant 0 : i32
    %c0_i32_1 = arith.constant 0 : i32
    return %arg0, %c0_i32, %c0_i32_0 : i32, i32, i32
  }
}

</mosaic_0001>

<llo_original>
// kernel: tpu_custom_call.1
$region0: #{tpu_custom_call.1}
  #allocation0 [shape = 'u32[]', space=smem, size = 0x4, offset = 0x4, fixed_abs, tag = 'smem constant byte address 0x4 - core index']
  #allocation1 [shape = 'u32[144,128]{1,0:T(1,128)}', space=vmem, size = 0x12000, scoped, tag = 'internal scratch']
  %s0 = inlined_call_operand.vmem [shape: f32[2,8,256], index: 0, kind: input, shape index: {}]
  %s1 = inlined_call_operand.vmem [shape: f32[8,8], index: 1, kind: input, shape index: {}]
  %s2 = inlined_call_operand.vmem [shape: f32[8,8], index: 2, kind: input, shape index: {}]
  %s3 = inlined_call_operand.vmem [shape: f32[8,72], index: 3, kind: input, shape index: {}]
  %s4 = inlined_call_operand.vmem [shape: f32[8,8], index: 4, kind: input, shape index: {}]
  %s5 = inlined_call_operand.vmem [shape: f32[256,32], index: 5, kind: input, shape index: {}]
  %s6 = inlined_call_operand.vmem [shape: f32[32,512], index: 6, kind: input, shape index: {}]
  %s7 = inlined_call_operand.hbm [shape: f32[2,256,256], index: 7, kind: input, shape index: {}]
  %s8 = inlined_call_operand.vmem [shape: f32[9,1,256], index: 8, kind: input, shape index: {}]
  %s9 = inlined_call_operand.hbm [shape: f32[2,8,256], index: 9, kind: output, shape index: {}]
  %s10 = sld [smem:[#allocation0]]
  $region73: #{tpu_custom_call.1} parent=0
    _
  %s12 = ssub.s32 1, %s10
  %s13 = scalar_select 0, %s12, %s10
  $region1: #{tpu_custom_call.1} parent=0
    #allocation2 [shape = 'u8[524288]{0}', space=vmem, size = 0x80000, scoped, tag = 'input window, operand 7, single buffered']
    #allocation3 [shape = 's32[2]{0}', space=sflag, size = 0x8, scoped, tag = 'scoped memory for tpu_custom_call.1']
    #allocation4 [shape = 's32[2]{0}', space=sflag, size = 0x8, scoped, tag = 'scoped memory for tpu_custom_call.1']
    #allocation5 [shape = 'u8[16384]{0}', space=vmem, size = 0x4000, scoped, tag = 'output window, operand 0']
    %14 = vsyncpa [#allocation3], 0
    %15 = vsyncpa [#allocation4], 0
    %s16 = scalar_lea.sflag [#allocation4], 1
    %17 = vsyncpa %s16, 0
    loop: start=0, step=1, limit=4
    $region2: #{tpu_custom_call.1} parent=1 // loop_pre_header
      _
    $region3: #{tpu_custom_call.1} parent=1 // loop_header
      %s19 = sphi 0, %s23
      %p20 = scmp.ge.s32.totalorder %s19, 4
      %s29 = sphi 0, %s31
      %s32 = sphi 0, %s29
      %s33 = sphi 0, %s32
      %s49 = sphi 0, %s33
      %s53 = sphi 0, %s53
      %s55 = sphi 0, %s53
      %s56 = sphi 0, %s55
      %s70 = sphi 0, %s56
      %s74 = sphi 0, %s74
      %s76 = sphi 0, %s74
      %s77 = sphi 0, %s76
      %s91 = sphi 0, %s77
      %s95 = sphi 0, %s95
      %s97 = sphi 0, %s95
      %s98 = sphi 0, %s97
      %s112 = sphi 0, %s98
      %s116 = sphi 0, %s116
      %s118 = sphi 0, %s116
      %s119 = sphi 0, %s118
      %s133 = sphi 0, %s119
      %s137 = sphi 0, %s137
      %s139 = sphi 0, %s137
      %s140 = sphi 0, %s139
      %s154 = sphi 0, %s140
      %s158 = sphi 0, %s158
      %s160 = sphi 0, %s158
      %s161 = sphi 0, %s160
      %s175 = sphi 0, %s161
      %s179 = sphi 0, %s179
      %s181 = sphi 0, %s179
      %s182 = sphi 0, %s181
      %s196 = sphi 0, %s182
      %s200 = sphi 0, %s200
      %s202 = sphi 0, %s200
      %s203 = sphi 0, %s202
      %s217 = sphi 0, %s203
      %s223 = sphi 0, %s225
      %s226 = sphi 0, %s223
      %s227 = sphi 0, %s226
      %s243 = sphi 0, %s227
    $region4: #{tpu_custom_call.1} parent=1 // loop_header_branch
      %22 = sbr.rel (%p20) target = $region8
    $region5: #{tpu_custom_call.1} parent=1 // loop_body
      %s24 = ssub.s32 %s19, 1
      %s25 = ssub.s32 %s19, 2
      %s26 = sadd.s32 %s19, 1
      %s27 = ssub.s32 %s19, %s26
      %p28 = scmp.eq.s32.totalorder %s27, 0
      %s30 = sadd.s32 %s29, 1
      %s31 = scalar_select %p28, %s29, %s30
      %p34 = pneg %p28
      %p35 = scmp.eq.s32.totalorder %s19, 1
      %p36 = por %p34, %p35
      %p37 = scmp.ne.s32.totalorder %s29, %s32
      %p38 = scmp.eq.s32.totalorder %s19, 0
      %p39 = por %p37, %p38
      %p40 = scmp.ne.s32.totalorder %s29, %s32
      %p41 = scmp.eq.s32.totalorder %s24, 1
      %p42 = por %p40, %p41
      %p43 = scmp.ne.s32.totalorder %s32, %s33
      %p44 = scmp.eq.s32.totalorder %s24, 0
      %p45 = por %p43, %p44
      %p46 = scmp.ne.s32.totalorder %s32, %s33
      %p47 = scmp.eq.s32.totalorder %s25, 1
      %p48 = por %p46, %p47
      %p50 = scmp.ne.s32.totalorder %s33, %s49
      %p51 = scmp.eq.s32.totalorder %s25, 0
      %p52 = por %p50, %p51
      %s54 = sadd.s32 %s53, 1
      %p57 = scmp.eq.s32.totalorder %s19, 1
      %p58 = scmp.ne.s32.totalorder %s53, %s55
      %p59 = scmp.eq.s32.totalorder %s19, 0
      %p60 = por %p58, %p59
      %p61 = scmp.ne.s32.totalorder %s53, %s55
      %p62 = scmp.eq.s32.totalorder %s24, 1
      %p63 = por %p61, %p62
      %p64 = scmp.ne.s32.totalorder %s55, %s56
      %p65 = scmp.eq.s32.totalorder %s24, 0
      %p66 = por %p64, %p65
      %p67 = scmp.ne.s32.totalorder %s55, %s56
      %p68 = scmp.eq.s32.totalorder %s25, 1
      %p69 = por %p67, %p68
      %p71 = scmp.ne.s32.totalorder %s56, %s70
      %p72 = scmp.eq.s32.totalorder %s25, 0
      %p73 = por %p71, %p72
      %s75 = sadd.s32 %s74, 1
      %p78 = scmp.eq.s32.totalorder %s19, 1
      %p79 = scmp.ne.s32.totalorder %s74, %s76
      %p80 = scmp.eq.s32.totalorder %s19, 0
      %p81 = por %p79, %p80
      %p82 = scmp.ne.s32.totalorder %s74, %s76
      %p83 = scmp.eq.s32.totalorder %s24, 1
      %p84 = por %p82, %p83
      %p85 = scmp.ne.s32.totalorder %s76, %s77
      %p86 = scmp.eq.s32.totalorder %s24, 0
      %p87 = por %p85, %p86
      %p88 = scmp.ne.s32.totalorder %s76, %s77
      %p89 = scmp.eq.s32.totalorder %s25, 1
      %p90 = por %p88, %p89
      %p92 = scmp.ne.s32.totalorder %s77, %s91
      %p93 = scmp.eq.s32.totalorder %s25, 0
      %p94 = por %p92, %p93
      %s96 = sadd.s32 %s95, 1
      %p99 = scmp.eq.s32.totalorder %s19, 1
      %p100 = scmp.ne.s32.totalorder %s95, %s97
      %p101 = scmp.eq.s32.totalorder %s19, 0
      %p102 = por %p100, %p101
      %p103 = scmp.ne.s32.totalorder %s95, %s97
      %p104 = scmp.eq.s32.totalorder %s24, 1
      %p105 = por %p103, %p104
      %p106 = scmp.ne.s32.totalorder %s97, %s98
      %p107 = scmp.eq.s32.totalorder %s24, 0
      %p108 = por %p106, %p107
      %p109 = scmp.ne.s32.totalorder %s97, %s98
      %p110 = scmp.eq.s32.totalorder %s25, 1
      %p111 = por %p109, %p110
      %p113 = scmp.ne.s32.totalorder %s98, %s112
      %p114 = scmp.eq.s32.totalorder %s25, 0
      %p115 = por %p113, %p114
      %s117 = sadd.s32 %s116, 1
      %p120 = scmp.eq.s32.totalorder %s19, 1
      %p121 = scmp.ne.s32.totalorder %s116, %s118
      %p122 = scmp.eq.s32.totalorder %s19, 0
      %p123 = por %p121, %p122
      %p124 = scmp.ne.s32.totalorder %s116, %s118
      %p125 = scmp.eq.s32.totalorder %s24, 1
      %p126 = por %p124, %p125
      %p127 = scmp.ne.s32.totalorder %s118, %s119
      %p128 = scmp.eq.s32.totalorder %s24, 0
      %p129 = por %p127, %p128
      %p130 = scmp.ne.s32.totalorder %s118, %s119
      %p131 = scmp.eq.s32.totalorder %s25, 1
      %p132 = por %p130, %p131
      %p134 = scmp.ne.s32.totalorder %s119, %s133
      %p135 = scmp.eq.s32.totalorder %s25, 0
      %p136 = por %p134, %p135
      %s138 = sadd.s32 %s137, 1
      %p141 = scmp.eq.s32.totalorder %s19, 1
      %p142 = scmp.ne.s32.totalorder %s137, %s139
      %p143 = scmp.eq.s32.totalorder %s19, 0
      %p144 = por %p142, %p143
      %p145 = scmp.ne.s32.totalorder %s137, %s139
      %p146 = scmp.eq.s32.totalorder %s24, 1
      %p147 = por %p145, %p146
      %p148 = scmp.ne.s32.totalorder %s139, %s140
      %p149 = scmp.eq.s32.totalorder %s24, 0
      %p150 = por %p148, %p149
      %p151 = scmp.ne.s32.totalorder %s139, %s140
      %p152 = scmp.eq.s32.totalorder %s25, 1
      %p153 = por %p151, %p152
      %p155 = scmp.ne.s32.totalorder %s140, %s154
      %p156 = scmp.eq.s32.totalorder %s25, 0
      %p157 = por %p155, %p156
      %s159 = sadd.s32 %s158, 1
      %p162 = scmp.eq.s32.totalorder %s19, 1
      %p163 = scmp.ne.s32.totalorder %s158, %s160
      %p164 = scmp.eq.s32.totalorder %s19, 0
      %p165 = por %p163, %p164
      %p166 = scmp.ne.s32.totalorder %s158, %s160
      %p167 = scmp.eq.s32.totalorder %s24, 1
      %p168 = por %p166, %p167
      %p169 = scmp.ne.s32.totalorder %s160, %s161
      %p170 = scmp.eq.s32.totalorder %s24, 0
      %p171 = por %p169, %p170
      %p172 = scmp.ne.s32.totalorder %s160, %s161
      %p173 = scmp.eq.s32.totalorder %s25, 1
      %p174 = por %p172, %p173
      %p176 = scmp.ne.s32.totalorder %s161, %s175
      %p177 = scmp.eq.s32.totalorder %s25, 0
      %p178 = por %p176, %p177
      %s180 = sadd.s32 %s179, 1
      %p183 = scmp.eq.s32.totalorder %s19, 1
      %p184 = scmp.ne.s32.totalorder %s179, %s181
      %p185 = scmp.eq.s32.totalorder %s19, 0
      %p186 = por %p184, %p185
      %p187 = scmp.ne.s32.totalorder %s179, %s181
      %p188 = scmp.eq.s32.totalorder %s24, 1
      %p189 = por %p187, %p188
      %p190 = scmp.ne.s32.totalorder %s181, %s182
      %p191 = scmp.eq.s32.totalorder %s24, 0
      %p192 = por %p190, %p191
      %p193 = scmp.ne.s32.totalorder %s181, %s182
      %p194 = scmp.eq.s32.totalorder %s25, 1
      %p195 = por %p193, %p194
      %p197 = scmp.ne.s32.totalorder %s182, %s196
      %p198 = scmp.eq.s32.totalorder %s25, 0
      %p199 = por %p197, %p198
      %s201 = sadd.s32 %s200, 1
      %p204 = scmp.eq.s32.totalorder %s19, 1
      %p205 = scmp.ne.s32.totalorder %s200, %s202
      %p206 = scmp.eq.s32.totalorder %s19, 0
      %p207 = por %p205, %p206
      %p208 = scmp.ne.s32.totalorder %s200, %s202
      %p209 = scmp.eq.s32.totalorder %s24, 1
      %p210 = por %p208, %p209
      %p211 = scmp.ne.s32.totalorder %s202, %s203
      %p212 = scmp.eq.s32.totalorder %s24, 0
      %p213 = por %p211, %p212
      %p214 = scmp.ne.s32.totalorder %s202, %s203
      %p215 = scmp.eq.s32.totalorder %s25, 1
      %p216 = por %p214, %p215
      %p218 = scmp.ne.s32.totalorder %s203, %s217
      %p219 = scmp.eq.s32.totalorder %s25, 0
      %p220 = por %p218, %p219
      %s221 = ssub.s32 %s19, %s26
      %p222 = scmp.eq.s32.totalorder %s221, 0
      %s224 = sadd.s32 %s223, 1
      %s225 = scalar_select %p222, %s223, %s224
      %p228 = pneg %p222
      %p229 = scmp.eq.s32.totalorder %s19, 1
      %p230 = por %p228, %p229
      %p231 = scmp.ne.s32.totalorder %s223, %s226
      %p232 = scmp.eq.s32.totalorder %s19, 0
      %p233 = por %p231, %p232
      %p234 = scmp.ne.s32.totalorder %s223, %s226
      %p235 = scmp.eq.s32.totalorder %s24, 1
      %p236 = por %p234, %p235
      %p237 = scmp.ne.s32.totalorder %s226, %s227
      %p238 = scmp.eq.s32.totalorder %s24, 0
      %p239 = por %p237, %p238
      %p240 = scmp.ne.s32.totalorder %s226, %s227
      %p241 = scmp.eq.s32.totalorder %s25, 1
      %p242 = por %p240, %p241
      %p244 = scmp.ne.s32.totalorder %s227, %s243
      %p245 = scmp.eq.s32.totalorder %s25, 0
      %p246 = por %p244, %p245
      %p247 = scmp.le.s32.totalorder 1, %s19
      %p248 = scmp.lt.s32.totalorder %s19, 3
      %p249 = pnand %p247, %p248
      %p250 = pneg %p249
      // Predicated region
      $region9: #{tpu_custom_call.1} parent=5 // pred_check
        _
      $region10: #{tpu_custom_call.1} parent=5 // pred_check_branch
        %252 = sbr.rel (%p249) target = $region12
      $region11: #{tpu_custom_call.1} parent=5 // pred_region
        %s253 = ssub.s32 %s19, 1
        // Predicated region
        $region13: #{tpu_custom_call.1} parent=11 // pred_check
          %p254 = pneg %p66
        $region14: #{tpu_custom_call.1} parent=11 // pred_check_branch
          %256 = sbr.rel (%p254) target = $region16
        $region15: #{tpu_custom_call.1} parent=11 // pred_region
          _
        $region16: #{tpu_custom_call.1} parent=11 // pred_fallthru
          _
        // Predicated region
        $region17: #{tpu_custom_call.1} parent=11 // pred_check
          %p257 = pneg %p87
        $region18: #{tpu_custom_call.1} parent=11 // pred_check_branch
          %259 = sbr.rel (%p257) target = $region20
        $region19: #{tpu_custom_call.1} parent=11 // pred_region
          _
        $region20: #{tpu_custom_call.1} parent=11 // pred_fallthru
          _
        // Predicated region
        $region21: #{tpu_custom_call.1} parent=11 // pred_check
          %p260 = pneg %p108
        $region22: #{tpu_custom_call.1} parent=11 // pred_check_branch
          %262 = sbr.rel (%p260) target = $region24
        $region23: #{tpu_custom_call.1} parent=11 // pred_region
          _
        $region24: #{tpu_custom_call.1} parent=11 // pred_fallthru
          _
        // Predicated region
        $region25: #{tpu_custom_call.1} parent=11 // pred_check
          %p263 = pneg %p129
        $region26: #{tpu_custom_call.1} parent=11 // pred_check_branch
          %265 = sbr.rel (%p263) target = $region28
        $region27: #{tpu_custom_call.1} parent=11 // pred_region
          _
        $region28: #{tpu_custom_call.1} parent=11 // pred_fallthru
          _
        // Predicated region
        $region29: #{tpu_custom_call.1} parent=11 // pred_check
          %p266 = pneg %p150
        $region30: #{tpu_custom_call.1} parent=11 // pred_check_branch
          %268 = sbr.rel (%p266) target = $region32
        $region31: #{tpu_custom_call.1} parent=11 // pred_region
          _
        $region32: #{tpu_custom_call.1} parent=11 // pred_fallthru
          _
        // Predicated region
        $region33: #{tpu_custom_call.1} parent=11 // pred_check
          %p269 = pneg %p171
        $region34: #{tpu_custom_call.1} parent=11 // pred_check_branch
          %271 = sbr.rel (%p269) target = $region36
        $region35: #{tpu_custom_call.1} parent=11 // pred_region
          _
        $region36: #{tpu_custom_call.1} parent=11 // pred_fallthru
          _
        // Predicated region
        $region37: #{tpu_custom_call.1} parent=11 // pred_check
          %p272 = pneg %p192
        $region38: #{tpu_custom_call.1} parent=11 // pred_check_branch
          %274 = sbr.rel (%p272) target = $region40
        $region39: #{tpu_custom_call.1} parent=11 // pred_region
          %s276 = ssub.s32 16384, 16384
          %277 = vsyncadd [#allocation3], %s276
          %s278 = sshll.u32 [#allocation2], 4
          %s279 = int_to_ptr.vmem [resolvable:$true] %s278
          %284 = dma.hbm_to_vmem [thread:$0]  %s7, 16384, %s279, [#allocation3], 256, 256, 16
        $region40: #{tpu_custom_call.1} parent=11 // pred_fallthru
          _
        // Predicated region
        $region41: #{tpu_custom_call.1} parent=11 // pred_check
          %p285 = pneg %p213
        $region42: #{tpu_custom_call.1} parent=11 // pred_check_branch
          %287 = sbr.rel (%p285) target = $region44
        $region43: #{tpu_custom_call.1} parent=11 // pred_region
          _
        $region44: #{tpu_custom_call.1} parent=11 // pred_fallthru
          _
      $region12: #{tpu_custom_call.1} parent=5 // pred_fallthru
        _
      %p288 = scmp.lt.s32.totalorder %s19, 2
      // Predicated region
      $region45: #{tpu_custom_call.1} parent=5 // pred_check
        %p289 = pneg %p288
      $region46: #{tpu_custom_call.1} parent=5 // pred_check_branch
        %291 = sbr.rel (%p289) target = $region48
      $region47: #{tpu_custom_call.1} parent=5 // pred_region
        // Predicated region
        $region49: #{tpu_custom_call.1} parent=47 // pred_check
          %p292 = pneg %p39
        $region50: #{tpu_custom_call.1} parent=47 // pred_check_branch
          %294 = sbr.rel (%p292) target = $region52
        $region51: #{tpu_custom_call.1} parent=47 // pred_region
          %p295 = scmp.lt.s32.totalorder %s19, 1
          %s296 = scalar_select %p295, %s19, 1
          %s297 = smul.addr %s296, 2
          %s298 = smul.addr %s297, 8
          %s299 = scalar_lea.vmem %s0, %s298
        $region52: #{tpu_custom_call.1} parent=47 // pred_fallthru
          _
      $region48: #{tpu_custom_call.1} parent=5 // pred_fallthru
        _
      %p300 = scmp.le.s32.totalorder 1, %s19
      %p301 = scmp.lt.s32.totalorder %s19, 3
      %p302 = pnand %p300, %p301
      %p303 = pneg %p302
      // Predicated region
      $region53: #{tpu_custom_call.1} parent=5 // pred_check
        _
      $region54: #{tpu_custom_call.1} parent=5 // pred_check_branch
        %305 = sbr.rel (%p302) target = $region56
      $region55: #{tpu_custom_call.1} parent=5 // pred_region
        %s306 = ssub.s32 %s19, 1
        // Predicated region
        $region57: #{tpu_custom_call.1} parent=55 // pred_check
          %p307 = pneg %p192
        $region58: #{tpu_custom_call.1} parent=55 // pred_check_branch
          %309 = sbr.rel (%p307) target = $region60
        $region59: #{tpu_custom_call.1} parent=55 // pred_region
          %310 = dma.done [#allocation3], 16384
        $region60: #{tpu_custom_call.1} parent=55 // pred_fallthru
          _
        %p311 = scmp.lt.s32.totalorder %s24, 1
        %s312 = scalar_select %p311, %s24, 1
        %s313 = smul.addr %s312, 2
        %s314 = smul.addr %s313, 8
        %s315 = scalar_lea.vmem %s0, %s314
        %p316 = pneg %p45
        %p317 = pneg %p42
        %p318 = pneg %p66
        %p319 = pneg %p63
        %p320 = pneg %p87
        %p321 = pneg %p84
        %p322 = pneg %p108
        %p323 = pneg %p105
        %p324 = pneg %p129
        %p325 = pneg %p126
        %p326 = pneg %p150
        %p327 = pneg %p147
        %p328 = pneg %p171
        %p329 = pneg %p168
        %p330 = pneg %p192
        %p331 = pneg %p189
        %p332 = pneg %p213
        %p333 = pneg %p210
        %p334 = pneg %p239
        %p335 = pneg %p236
        %s336 = sand.u32 %s226, 1
        %s337 = scalar_lea.sflag [#allocation4], %s336
        %s338 = sand.u32 %s226, 1
        %s339 = smul.addr %s338, 16
        %s340 = scalar_lea.vmem [#allocation5], %s339
        %p341 = scmp.lt.s32.totalorder %s24, 1
        %s342 = scalar_select %p341, %s24, 1
        %s343 = smul.addr %s342, 2
        %s344 = smul.addr %s343, 8
        %s345 = scalar_lea.vmem %s0, %s344
        %v346 = vld [vmem:[%s345] sm:$0xff]
        %v347 = vld [vmem:[%s345 + $0x8] sm:$0xff]
        %v348 = vld [vmem:[%s1] sm:$0xff]
        %v349 = vld [vmem:[%s5] sm:$0xff]
        %v350 = vld [vmem:[%s5 + $0x8] sm:$0xff]
        %v351 = vld [vmem:[%s5 + $0x10] sm:$0xff]
        %v352 = vld [vmem:[%s5 + $0x18] sm:$0xff]
        %v353 = vld [vmem:[%s5 + $0x20] sm:$0xff]
        %v354 = vld [vmem:[%s5 + $0x28] sm:$0xff]
        %v355 = vld [vmem:[%s5 + $0x30] sm:$0xff]
        %v356 = vld [vmem:[%s5 + $0x38] sm:$0xff]
        %v357 = vld [vmem:[%s5 + $0x40] sm:$0xff]
        %v358 = vld [vmem:[%s5 + $0x48] sm:$0xff]
        %v359 = vld [vmem:[%s5 + $0x50] sm:$0xff]
        %v360 = vld [vmem:[%s5 + $0x58] sm:$0xff]
        %v361 = vld [vmem:[%s5 + $0x60] sm:$0xff]
        %v362 = vld [vmem:[%s5 + $0x68] sm:$0xff]
        %v363 = vld [vmem:[%s5 + $0x70] sm:$0xff]
        %v364 = vld [vmem:[%s5 + $0x78] sm:$0xff]
        %v365 = vld [vmem:[%s5 + $0x80] sm:$0xff]
        %v366 = vld [vmem:[%s5 + $0x88] sm:$0xff]
        %v367 = vld [vmem:[%s5 + $0x90] sm:$0xff]
        %v368 = vld [vmem:[%s5 + $0x98] sm:$0xff]
        %v369 = vld [vmem:[%s5 + $0xa0] sm:$0xff]
        %v370 = vld [vmem:[%s5 + $0xa8] sm:$0xff]
        %v371 = vld [vmem:[%s5 + $0xb0] sm:$0xff]
        %v372 = vld [vmem:[%s5 + $0xb8] sm:$0xff]
        %v373 = vld [vmem:[%s5 + $0xc0] sm:$0xff]
        %v374 = vld [vmem:[%s5 + $0xc8] sm:$0xff]
        %v375 = vld [vmem:[%s5 + $0xd0] sm:$0xff]
        %v376 = vld [vmem:[%s5 + $0xd8] sm:$0xff]
        %v377 = vld [vmem:[%s5 + $0xe0] sm:$0xff]
        %v378 = vld [vmem:[%s5 + $0xe8] sm:$0xff]
        %v379 = vld [vmem:[%s5 + $0xf0] sm:$0xff]
        %v380 = vld [vmem:[%s5 + $0xf8] sm:$0xff]
        %381 = vmatprep.subr.mxu0 0.0
        %v382 = vand.u32 %v349, 4294901760
        %383 = vmatpush1.msra.mxu0 %v382
        %384 = vmatprep.subr.mxu0 0.0
        %v385 = vand.u32 %v350, 4294901760
        %386 = vmatpush1.msra.mxu0 %v385
        %387 = vmatprep.subr.mxu0 0.0
        %v388 = vand.u32 %v351, 4294901760
        %389 = vmatpush1.msra.mxu0 %v388
        %390 = vmatprep.subr.mxu0 0.0
        %v391 = vand.u32 %v352, 4294901760
        %392 = vmatpush1.msra.mxu0 %v391
        %393 = vmatprep.subr.mxu0 0.0
        %v394 = vand.u32 %v353, 4294901760
        %395 = vmatpush1.msra.mxu0 %v394
        %396 = vmatprep.subr.mxu0 0.0
        %v397 = vand.u32 %v354, 4294901760
        %398 = vmatpush1.msra.mxu0 %v397
        %399 = vmatprep.subr.mxu0 0.0
        %v400 = vand.u32 %v355, 4294901760
        %401 = vmatpush1.msra.mxu0 %v400
        %402 = vmatprep.subr.mxu0 0.0
        %v403 = vand.u32 %v356, 4294901760
        %404 = vmatpush1.msra.mxu0 %v403
        %405 = vmatprep.subr.mxu0 0.0
        %v406 = vand.u32 %v357, 4294901760
        %407 = vmatpush1.msra.mxu0 %v406
        %408 = vmatprep.subr.mxu0 0.0
        %v409 = vand.u32 %v358, 4294901760
        %410 = vmatpush1.msra.mxu0 %v409
        %411 = vmatprep.subr.mxu0 0.0
        %v412 = vand.u32 %v359, 4294901760
        %413 = vmatpush1.msra.mxu0 %v412
        %414 = vmatprep.subr.mxu0 0.0
        %v415 = vand.u32 %v360, 4294901760
        %416 = vmatpush1.msra.mxu0 %v415
        %417 = vmatprep.subr.mxu0 0.0
        %v418 = vand.u32 %v361, 4294901760
        %419 = vmatpush1.msra.mxu0 %v418
        %420 = vmatprep.subr.mxu0 0.0
        %v421 = vand.u32 %v362, 4294901760
        %422 = vmatpush1.msra.mxu0 %v421
        %423 = vmatprep.subr.mxu0 0.0
        %v424 = vand.u32 %v363, 4294901760
        %425 = vmatpush1.msra.mxu0 %v424
        %426 = vmatprep.subr.mxu0 0.0
        %v427 = vand.u32 %v364, 4294901760
        %428 = vmatpush1.msra.mxu0 %v427
        %429 = vmatprep.subr.mxu0 0.0
        %v430 = vand.u32 %v365, 4294901760
        %431 = vmatpush1.msra.mxu0 %v430
        %432 = vmatprep.subr.mxu0 0.0
        %v433 = vand.u32 %v366, 4294901760
        %434 = vmatpush1.msra.mxu0 %v433
        %435 = vmatprep.subr.mxu0 0.0
        %v436 = vand.u32 %v367, 4294901760
        %437 = vmatpush1.msra.mxu0 %v436
        %438 = vmatprep.subr.mxu0 0.0
        %v439 = vand.u32 %v368, 4294901760
        %440 = vmatpush1.msra.mxu0 %v439
        %441 = vmatprep.subr.mxu0 0.0
        %v442 = vand.u32 %v369, 4294901760
        %443 = vmatpush1.msra.mxu0 %v442
        %444 = vmatprep.subr.mxu0 0.0
        %v445 = vand.u32 %v370, 4294901760
        %446 = vmatpush1.msra.mxu0 %v445
        %447 = vmatprep.subr.mxu0 0.0
        %v448 = vand.u32 %v371, 4294901760
        %449 = vmatpush1.msra.mxu0 %v448
        %450 = vmatprep.subr.mxu0 0.0
        %v451 = vand.u32 %v372, 4294901760
        %452 = vmatpush1.msra.mxu0 %v451
        %453 = vmatprep.subr.mxu0 0.0
        %v454 = vand.u32 %v373, 4294901760
        %455 = vmatpush1.msra.mxu0 %v454
        %456 = vmatprep.subr.mxu0 0.0
        %v457 = vand.u32 %v374, 4294901760
        %458 = vmatpush1.msra.mxu0 %v457
        %459 = vmatprep.subr.mxu0 0.0
        %v460 = vand.u32 %v375, 4294901760
        %461 = vmatpush1.msra.mxu0 %v460
        %462 = vmatprep.subr.mxu0 0.0
        %v463 = vand.u32 %v376, 4294901760
        %464 = vmatpush1.msra.mxu0 %v463
        %465 = vmatprep.subr.mxu0 0.0
        %v466 = vand.u32 %v377, 4294901760
        %467 = vmatpush1.msra.mxu0 %v466
        %468 = vmatprep.subr.mxu0 0.0
        %v469 = vand.u32 %v378, 4294901760
        %470 = vmatpush1.msra.mxu0 %v469
        %471 = vmatprep.subr.mxu0 0.0
        %v472 = vand.u32 %v379, 4294901760
        %473 = vmatpush1.msra.mxu0 %v472
        %474 = vmatprep.subr.mxu0 0.0
        %v475 = vand.u32 %v380, 4294901760
        %476 = vmatpush1.msra.mxu0 %v475
        %v477 = vand.u32 %v347, 4294901760
        %v478 = vsub.f32 %v347, %v477
        %v479 = vand.u32 %v478, 4294901760
        %v480 = vsub.f32 %v478, %v479
        %v481 = vand.u32 %v480, 4294901760
        %482 = vmatprep.mubr.f32.mxu0 %v481
        %v483 = vand.u32 %v346, 4294901760
        %v484 = vsub.f32 %v346, %v483
        %v485 = vand.u32 %v484, 4294901760
        %v486 = vsub.f32 %v484, %v485
        %v487 = vand.u32 %v486, 4294901760
        %488 = vmatmul.mubr.f32.gmra.mrb[0].mxu0 %v487
        %v489 = vpop.f32.mrb[0].mxu0
        %v490 = vadd.f32 0.0, %v489
        %v491 = vpop.f32.mrb[0].mxu0
        %492 = vdwg.mxu0
        %493 = vmatprep.subr.mxu0 0.0
        %v494 = vand.u32 %v349, 4294901760
        %v495 = vsub.f32 %v349, %v494
        %v496 = vand.u32 %v495, 4294901760
        %v497 = vsub.f32 %v495, %v496
        %v498 = vand.u32 %v497, 4294901760
        %499 = vmatpush1.msra.mxu0 %v498
        %500 = vmatprep.subr.mxu0 0.0
        %v501 = vand.u32 %v350, 4294901760
        %v502 = vsub.f32 %v350, %v501
        %v503 = vand.u32 %v502, 4294901760
        %v504 = vsub.f32 %v502, %v503
        %v505 = vand.u32 %v504, 4294901760
        %506 = vmatpush1.msra.mxu0 %v505
        %507 = vmatprep.subr.mxu0 0.0
        %v508 = vand.u32 %v351, 4294901760
        %v509 = vsub.f32 %v351, %v508
        %v510 = vand.u32 %v509, 4294901760
        %v511 = vsub.f32 %v509, %v510
        %v512 = vand.u32 %v511, 4294901760
        %513 = vmatpush1.msra.mxu0 %v512
        %514 = vmatprep.subr.mxu0 0.0
        %v515 = vand.u32 %v352, 4294901760
        %v516 = vsub.f32 %v352, %v515
        %v517 = vand.u32 %v516, 4294901760
        %v518 = vsub.f32 %v516, %v517
        %v519 = vand.u32 %v518, 4294901760
        %520 = vmatpush1.msra.mxu0 %v519
        %521 = vmatprep.subr.mxu0 0.0
        %v522 = vand.u32 %v353, 4294901760
        %v523 = vsub.f32 %v353, %v522
        %v524 = vand.u32 %v523, 4294901760
        %v525 = vsub.f32 %v523, %v524
        %v526 = vand.u32 %v525, 4294901760
        %527 = vmatpush1.msra.mxu0 %v526
        %528 = vmatprep.subr.mxu0 0.0
        %v529 = vand.u32 %v354, 4294901760
        %v530 = vsub.f32 %v354, %v529
        %v531 = vand.u32 %v530, 4294901760
        %v532 = vsub.f32 %v530, %v531
        %v533 = vand.u32 %v532, 4294901760
        %534 = vmatpush1.msra.mxu0 %v533
        %535 = vmatprep.subr.mxu0 0.0
        %v536 = vand.u32 %v355, 4294901760
        %v537 = vsub.f32 %v355, %v536
        %v538 = vand.u32 %v537, 4294901760
        %v539 = vsub.f32 %v537, %v538
        %v540 = vand.u32 %v539, 4294901760
        %541 = vmatpush1.msra.mxu0 %v540
        %542 = vmatprep.subr.mxu0 0.0
        %v543 = vand.u32 %v356, 4294901760
        %v544 = vsub.f32 %v356, %v543
        %v545 = vand.u32 %v544, 4294901760
        %v546 = vsub.f32 %v544, %v545
        %v547 = vand.u32 %v546, 4294901760
        %548 = vmatpush1.msra.mxu0 %v547
        %549 = vmatprep.subr.mxu0 0.0
        %v550 = vand.u32 %v357, 4294901760
        %v551 = vsub.f32 %v357, %v550
        %v552 = vand.u32 %v551, 4294901760
        %v553 = vsub.f32 %v551, %v552
        %v554 = vand.u32 %v553, 4294901760
        %555 = vmatpush1.msra.mxu0 %v554
        %556 = vmatprep.subr.mxu0 0.0
        %v557 = vand.u32 %v358, 4294901760
        %v558 = vsub.f32 %v358, %v557
        %v559 = vand.u32 %v558, 4294901760
        %v560 = vsub.f32 %v558, %v559
        %v561 = vand.u32 %v560, 4294901760
        %562 = vmatpush1.msra.mxu0 %v561
        %563 = vmatprep.subr.mxu0 0.0
        %v564 = vand.u32 %v359, 4294901760
        %v565 = vsub.f32 %v359, %v564
        %v566 = vand.u32 %v565, 4294901760
        %v567 = vsub.f32 %v565, %v566
        %v568 = vand.u32 %v567, 4294901760
        %569 = vmatpush1.msra.mxu0 %v568
        %570 = vmatprep.subr.mxu0 0.0
        %v571 = vand.u32 %v360, 4294901760
        %v572 = vsub.f32 %v360, %v571
        %v573 = vand.u32 %v572, 4294901760
        %v574 = vsub.f32 %v572, %v573
        %v575 = vand.u32 %v574, 4294901760
        %576 = vmatpush1.msra.mxu0 %v575
        %577 = vmatprep.subr.mxu0 0.0
        %v578 = vand.u32 %v361, 4294901760
        %v579 = vsub.f32 %v361, %v578
        %v580 = vand.u32 %v579, 4294901760
        %v581 = vsub.f32 %v579, %v580
        %v582 = vand.u32 %v581, 4294901760
        %583 = vmatpush1.msra.mxu0 %v582
        %584 = vmatprep.subr.mxu0 0.0
        %v585 = vand.u32 %v362, 4294901760
        %v586 = vsub.f32 %v362, %v585
        %v587 = vand.u32 %v586, 4294901760
        %v588 = vsub.f32 %v586, %v587
        %v589 = vand.u32 %v588, 4294901760
        %590 = vmatpush1.msra.mxu0 %v589
        %591 = vmatprep.subr.mxu0 0.0
        %v592 = vand.u32 %v363, 4294901760
        %v593 = vsub.f32 %v363, %v592
        %v594 = vand.u32 %v593, 4294901760
        %v595 = vsub.f32 %v593, %v594
        %v596 = vand.u32 %v595, 4294901760
        %597 = vmatpush1.msra.mxu0 %v596
        %598 = vmatprep.subr.mxu0 0.0
        %v599 = vand.u32 %v364, 4294901760
        %v600 = vsub.f32 %v364, %v599
        %v601 = vand.u32 %v600, 4294901760
        %v602 = vsub.f32 %v600, %v601
        %v603 = vand.u32 %v602, 4294901760
        %604 = vmatpush1.msra.mxu0 %v603
        %605 = vmatprep.subr.mxu0 0.0
        %v606 = vand.u32 %v365, 4294901760
        %v607 = vsub.f32 %v365, %v606
        %v608 = vand.u32 %v607, 4294901760
        %v609 = vsub.f32 %v607, %v608
        %v610 = vand.u32 %v609, 4294901760
        %611 = vmatpush1.msra.mxu0 %v610
        %612 = vmatprep.subr.mxu0 0.0
        %v613 = vand.u32 %v366, 4294901760
        %v614 = vsub.f32 %v366, %v613
        %v615 = vand.u32 %v614, 4294901760
        %v616 = vsub.f32 %v614, %v615
        %v617 = vand.u32 %v616, 4294901760
        %618 = vmatpush1.msra.mxu0 %v617
        %619 = vmatprep.subr.mxu0 0.0
        %v620 = vand.u32 %v367, 4294901760
        %v621 = vsub.f32 %v367, %v620
        %v622 = vand.u32 %v621, 4294901760
        %v623 = vsub.f32 %v621, %v622
        %v624 = vand.u32 %v623, 4294901760
        %625 = vmatpush1.msra.mxu0 %v624
        %626 = vmatprep.subr.mxu0 0.0
        %v627 = vand.u32 %v368, 4294901760
        %v628 = vsub.f32 %v368, %v627
        %v629 = vand.u32 %v628, 4294901760
        %v630 = vsub.f32 %v628, %v629
        %v631 = vand.u32 %v630, 4294901760
        %632 = vmatpush1.msra.mxu0 %v631
        %633 = vmatprep.subr.mxu0 0.0
        %v634 = vand.u32 %v369, 4294901760
        %v635 = vsub.f32 %v369, %v634
        %v636 = vand.u32 %v635, 4294901760
        %v637 = vsub.f32 %v635, %v636
        %v638 = vand.u32 %v637, 4294901760
        %639 = vmatpush1.msra.mxu0 %v638
        %640 = vmatprep.subr.mxu0 0.0
        %v641 = vand.u32 %v370, 4294901760
        %v642 = vsub.f32 %v370, %v641
        %v643 = vand.u32 %v642, 4294901760
        %v644 = vsub.f32 %v642, %v643
        %v645 = vand.u32 %v644, 4294901760
        %646 = vmatpush1.msra.mxu0 %v645
        %647 = vmatprep.subr.mxu0 0.0
        %v648 = vand.u32 %v371, 4294901760
        %v649 = vsub.f32 %v371, %v648
        %v650 = vand.u32 %v649, 4294901760
        %v651 = vsub.f32 %v649, %v650
        %v652 = vand.u32 %v651, 4294901760
        %653 = vmatpush1.msra.mxu0 %v652
        %654 = vmatprep.subr.mxu0 0.0
        %v655 = vand.u32 %v372, 4294901760
        %v656 = vsub.f32 %v372, %v655
        %v657 = vand.u32 %v656, 4294901760
        %v658 = vsub.f32 %v656, %v657
        %v659 = vand.u32 %v658, 4294901760
        %660 = vmatpush1.msra.mxu0 %v659
        %661 = vmatprep.subr.mxu0 0.0
        %v662 = vand.u32 %v373, 4294901760
        %v663 = vsub.f32 %v373, %v662
        %v664 = vand.u32 %v663, 4294901760
        %v665 = vsub.f32 %v663, %v664
        %v666 = vand.u32 %v665, 4294901760
        %667 = vmatpush1.msra.mxu0 %v666
        %668 = vmatprep.subr.mxu0 0.0
        %v669 = vand.u32 %v374, 4294901760
        %v670 = vsub.f32 %v374, %v669
        %v671 = vand.u32 %v670, 4294901760
        %v672 = vsub.f32 %v670, %v671
        %v673 = vand.u32 %v672, 4294901760
        %674 = vmatpush1.msra.mxu0 %v673
        %675 = vmatprep.subr.mxu0 0.0
        %v676 = vand.u32 %v375, 4294901760
        %v677 = vsub.f32 %v375, %v676
        %v678 = vand.u32 %v677, 4294901760
        %v679 = vsub.f32 %v677, %v678
        %v680 = vand.u32 %v679, 4294901760
        %681 = vmatpush1.msra.mxu0 %v680
        %682 = vmatprep.subr.mxu0 0.0
        %v683 = vand.u32 %v376, 4294901760
        %v684 = vsub.f32 %v376, %v683
        %v685 = vand.u32 %v684, 4294901760
        %v686 = vsub.f32 %v684, %v685
        %v687 = vand.u32 %v686, 4294901760
        %688 = vmatpush1.msra.mxu0 %v687
        %689 = vmatprep.subr.mxu0 0.0
        %v690 = vand.u32 %v377, 4294901760
        %v691 = vsub.f32 %v377, %v690
        %v692 = vand.u32 %v691, 4294901760
        %v693 = vsub.f32 %v691, %v692
        %v694 = vand.u32 %v693, 4294901760
        %695 = vmatpush1.msra.mxu0 %v694
        %696 = vmatprep.subr.mxu0 0.0
        %v697 = vand.u32 %v378, 4294901760
        %v698 = vsub.f32 %v378, %v697
        %v699 = vand.u32 %v698, 4294901760
        %v700 = vsub.f32 %v698, %v699
        %v701 = vand.u32 %v700, 4294901760
        %702 = vmatpush1.msra.mxu0 %v701
        %703 = vmatprep.subr.mxu0 0.0
        %v704 = vand.u32 %v379, 4294901760
        %v705 = vsub.f32 %v379, %v704
        %v706 = vand.u32 %v705, 4294901760
        %v707 = vsub.f32 %v705, %v706
        %v708 = vand.u32 %v707, 4294901760
        %709 = vmatpush1.msra.mxu0 %v708
        %710 = vmatprep.subr.mxu0 0.0
        %v711 = vand.u32 %v380, 4294901760
        %v712 = vsub.f32 %v380, %v711
        %v713 = vand.u32 %v712, 4294901760
        %v714 = vsub.f32 %v712, %v713
        %v715 = vand.u32 %v714, 4294901760
        %716 = vmatpush1.msra.mxu0 %v715
        %v717 = vand.u32 %v347, 4294901760
        %718 = vmatprep.mubr.f32.mxu0 %v717
        %v719 = vand.u32 %v346, 4294901760
        %720 = vmatmul.mubr.f32.gmra.mrb[0].mxu0 %v719
        %v721 = vpop.f32.mrb[0].mxu0
        %v722 = vadd.f32 %v490, %v721
        %v723 = vpop.f32.mrb[0].mxu0
        %724 = vdwg.mxu0
        %725 = vmatprep.subr.mxu0 0.0
        %v726 = vand.u32 %v349, 4294901760
        %v727 = vsub.f32 %v349, %v726
        %728 = vmatpush1.msra.mxu0 %v727
        %729 = vmatprep.subr.mxu0 0.0
        %v730 = vand.u32 %v350, 4294901760
        %v731 = vsub.f32 %v350, %v730
        %732 = vmatpush1.msra.mxu0 %v731
        %733 = vmatprep.subr.mxu0 0.0
        %v734 = vand.u32 %v351, 4294901760
        %v735 = vsub.f32 %v351, %v734
        %736 = vmatpush1.msra.mxu0 %v735
        %737 = vmatprep.subr.mxu0 0.0
        %v738 = vand.u32 %v352, 4294901760
        %v739 = vsub.f32 %v352, %v738
        %740 = vmatpush1.msra.mxu0 %v739
        %741 = vmatprep.subr.mxu0 0.0
        %v742 = vand.u32 %v353, 4294901760
        %v743 = vsub.f32 %v353, %v742
        %744 = vmatpush1.msra.mxu0 %v743
        %745 = vmatprep.subr.mxu0 0.0
        %v746 = vand.u32 %v354, 4294901760
        %v747 = vsub.f32 %v354, %v746
        %748 = vmatpush1.msra.mxu0 %v747
        %749 = vmatprep.subr.mxu0 0.0
        %v750 = vand.u32 %v355, 4294901760
        %v751 = vsub.f32 %v355, %v750
        %752 = vmatpush1.msra.mxu0 %v751
        %753 = vmatprep.subr.mxu0 0.0
        %v754 = vand.u32 %v356, 4294901760
        %v755 = vsub.f32 %v356, %v754
        %756 = vmatpush1.msra.mxu0 %v755
        %757 = vmatprep.subr.mxu0 0.0
        %v758 = vand.u32 %v357, 4294901760
        %v759 = vsub.f32 %v357, %v758
        %760 = vmatpush1.msra.mxu0 %v759
        %761 = vmatprep.subr.mxu0 0.0
        %v762 = vand.u32 %v358, 4294901760
        %v763 = vsub.f32 %v358, %v762
        %764 = vmatpush1.msra.mxu0 %v763
        %765 = vmatprep.subr.mxu0 0.0
        %v766 = vand.u32 %v359, 4294901760
        %v767 = vsub.f32 %v359, %v766
        %768 = vmatpush1.msra.mxu0 %v767
        %769 = vmatprep.subr.mxu0 0.0
        %v770 = vand.u32 %v360, 4294901760
        %v771 = vsub.f32 %v360, %v770
        %772 = vmatpush1.msra.mxu0 %v771
        %773 = vmatprep.subr.mxu0 0.0
        %v774 = vand.u32 %v361, 4294901760
        %v775 = vsub.f32 %v361, %v774
        %776 = vmatpush1.msra.mxu0 %v775
        %777 = vmatprep.subr.mxu0 0.0
        %v778 = vand.u32 %v362, 4294901760
        %v779 = vsub.f32 %v362, %v778
        %780 = vmatpush1.msra.mxu0 %v779
        %781 = vmatprep.subr.mxu0 0.0
        %v782 = vand.u32 %v363, 4294901760
        %v783 = vsub.f32 %v363, %v782
        %784 = vmatpush1.msra.mxu0 %v783
        %785 = vmatprep.subr.mxu0 0.0
        %v786 = vand.u32 %v364, 4294901760
        %v787 = vsub.f32 %v364, %v786
        %788 = vmatpush1.msra.mxu0 %v787
        %789 = vmatprep.subr.mxu0 0.0
        %v790 = vand.u32 %v365, 4294901760
        %v791 = vsub.f32 %v365, %v790
        %792 = vmatpush1.msra.mxu0 %v791
        %793 = vmatprep.subr.mxu0 0.0
        %v794 = vand.u32 %v366, 4294901760
        %v795 = vsub.f32 %v366, %v794
        %796 = vmatpush1.msra.mxu0 %v795
        %797 = vmatprep.subr.mxu0 0.0
        %v798 = vand.u32 %v367, 4294901760
        %v799 = vsub.f32 %v367, %v798
        %800 = vmatpush1.msra.mxu0 %v799
        %801 = vmatprep.subr.mxu0 0.0
        %v802 = vand.u32 %v368, 4294901760
        %v803 = vsub.f32 %v368, %v802
        %804 = vmatpush1.msra.mxu0 %v803
        %805 = vmatprep.subr.mxu0 0.0
        %v806 = vand.u32 %v369, 4294901760
        %v807 = vsub.f32 %v369, %v806
        %808 = vmatpush1.msra.mxu0 %v807
        %809 = vmatprep.subr.mxu0 0.0
        %v810 = vand.u32 %v370, 4294901760
        %v811 = vsub.f32 %v370, %v810
        %812 = vmatpush1.msra.mxu0 %v811
        %813 = vmatprep.subr.mxu0 0.0
        %v814 = vand.u32 %v371, 4294901760
        %v815 = vsub.f32 %v371, %v814
        %816 = vmatpush1.msra.mxu0 %v815
        %817 = vmatprep.subr.mxu0 0.0
        %v818 = vand.u32 %v372, 4294901760
        %v819 = vsub.f32 %v372, %v818
        %820 = vmatpush1.msra.mxu0 %v819
        %821 = vmatprep.subr.mxu0 0.0
        %v822 = vand.u32 %v373, 4294901760
        %v823 = vsub.f32 %v373, %v822
        %824 = vmatpush1.msra.mxu0 %v823
        %825 = vmatprep.subr.mxu0 0.0
        %v826 = vand.u32 %v374, 4294901760
        %v827 = vsub.f32 %v374, %v826
        %828 = vmatpush1.msra.mxu0 %v827
        %829 = vmatprep.subr.mxu0 0.0
        %v830 = vand.u32 %v375, 4294901760
        %v831 = vsub.f32 %v375, %v830
        %832 = vmatpush1.msra.mxu0 %v831
        %833 = vmatprep.subr.mxu0 0.0
        %v834 = vand.u32 %v376, 4294901760
        %v835 = vsub.f32 %v376, %v834
        %836 = vmatpush1.msra.mxu0 %v835
        %837 = vmatprep.subr.mxu0 0.0
        %v838 = vand.u32 %v377, 4294901760
        %v839 = vsub.f32 %v377, %v838
        %840 = vmatpush1.msra.mxu0 %v839
        %841 = vmatprep.subr.mxu0 0.0
        %v842 = vand.u32 %v378, 4294901760
        %v843 = vsub.f32 %v378, %v842
        %844 = vmatpush1.msra.mxu0 %v843
        %845 = vmatprep.subr.mxu0 0.0
        %v846 = vand.u32 %v379, 4294901760
        %v847 = vsub.f32 %v379, %v846
        %848 = vmatpush1.msra.mxu0 %v847
        %849 = vmatprep.subr.mxu0 0.0
        %v850 = vand.u32 %v380, 4294901760
        %v851 = vsub.f32 %v380, %v850
        %852 = vmatpush1.msra.mxu0 %v851
        %v853 = vand.u32 %v347, 4294901760
        %v854 = vsub.f32 %v347, %v853
        %855 = vmatprep.mubr.f32.mxu0 %v854
        %v856 = vand.u32 %v346, 4294901760
        %v857 = vsub.f32 %v346, %v856
        %858 = vmatmul.mubr.f32.gmra.mrb[0].mxu0 %v857
        %v859 = vpop.f32.mrb[0].mxu0
        %v860 = vadd.f32 %v722, %v859
        %v861 = vpop.f32.mrb[0].mxu0
        %862 = vdwg.mxu0
        %863 = vmatprep.subr.mxu0 0.0
        %v864 = vand.u32 %v349, 4294901760
        %865 = vmatpush1.msra.mxu0 %v864
        %866 = vmatprep.subr.mxu0 0.0
        %v867 = vand.u32 %v350, 4294901760
        %868 = vmatpush1.msra.mxu0 %v867
        %869 = vmatprep.subr.mxu0 0.0
        %v870 = vand.u32 %v351, 4294901760
        %871 = vmatpush1.msra.mxu0 %v870
        %872 = vmatprep.subr.mxu0 0.0
        %v873 = vand.u32 %v352, 4294901760
        %874 = vmatpush1.msra.mxu0 %v873
        %875 = vmatprep.subr.mxu0 0.0
        %v876 = vand.u32 %v353, 4294901760
        %877 = vmatpush1.msra.mxu0 %v876
        %878 = vmatprep.subr.mxu0 0.0
        %v879 = vand.u32 %v354, 4294901760
        %880 = vmatpush1.msra.mxu0 %v879
        %881 = vmatprep.subr.mxu0 0.0
        %v882 = vand.u32 %v355, 4294901760
        %883 = vmatpush1.msra.mxu0 %v882
        %884 = vmatprep.subr.mxu0 0.0
        %v885 = vand.u32 %v356, 4294901760
        %886 = vmatpush1.msra.mxu0 %v885
        %887 = vmatprep.subr.mxu0 0.0
        %v888 = vand.u32 %v357, 4294901760
        %889 = vmatpush1.msra.mxu0 %v888
        %890 = vmatprep.subr.mxu0 0.0
        %v891 = vand.u32 %v358, 4294901760
        %892 = vmatpush1.msra.mxu0 %v891
        %893 = vmatprep.subr.mxu0 0.0
        %v894 = vand.u32 %v359, 4294901760
        %895 = vmatpush1.msra.mxu0 %v894
        %896 = vmatprep.subr.mxu0 0.0
        %v897 = vand.u32 %v360, 4294901760
        %898 = vmatpush1.msra.mxu0 %v897
        %899 = vmatprep.subr.mxu0 0.0
        %v900 = vand.u32 %v361, 4294901760
        %901 = vmatpush1.msra.mxu0 %v900
        %902 = vmatprep.subr.mxu0 0.0
        %v903 = vand.u32 %v362, 4294901760
        %904 = vmatpush1.msra.mxu0 %v903
        %905 = vmatprep.subr.mxu0 0.0
        %v906 = vand.u32 %v363, 4294901760
        %907 = vmatpush1.msra.mxu0 %v906
        %908 = vmatprep.subr.mxu0 0.0
        %v909 = vand.u32 %v364, 4294901760
        %910 = vmatpush1.msra.mxu0 %v909
        %911 = vmatprep.subr.mxu0 0.0
        %v912 = vand.u32 %v365, 4294901760
        %913 = vmatpush1.msra.mxu0 %v912
        %914 = vmatprep.subr.mxu0 0.0
        %v915 = vand.u32 %v366, 4294901760
        %916 = vmatpush1.msra.mxu0 %v915
        %917 = vmatprep.subr.mxu0 0.0
        %v918 = vand.u32 %v367, 4294901760
        %919 = vmatpush1.msra.mxu0 %v918
        %920 = vmatprep.subr.mxu0 0.0
        %v921 = vand.u32 %v368, 4294901760
        %922 = vmatpush1.msra.mxu0 %v921
        %923 = vmatprep.subr.mxu0 0.0
        %v924 = vand.u32 %v369, 4294901760
        %925 = vmatpush1.msra.mxu0 %v924
        %926 = vmatprep.subr.mxu0 0.0
        %v927 = vand.u32 %v370, 4294901760
        %928 = vmatpush1.msra.mxu0 %v927
        %929 = vmatprep.subr.mxu0 0.0
        %v930 = vand.u32 %v371, 4294901760
        %931 = vmatpush1.msra.mxu0 %v930
        %932 = vmatprep.subr.mxu0 0.0
        %v933 = vand.u32 %v372, 4294901760
        %934 = vmatpush1.msra.mxu0 %v933
        %935 = vmatprep.subr.mxu0 0.0
        %v936 = vand.u32 %v373, 4294901760
        %937 = vmatpush1.msra.mxu0 %v936
        %938 = vmatprep.subr.mxu0 0.0
        %v939 = vand.u32 %v374, 4294901760
        %940 = vmatpush1.msra.mxu0 %v939
        %941 = vmatprep.subr.mxu0 0.0
        %v942 = vand.u32 %v375, 4294901760
        %943 = vmatpush1.msra.mxu0 %v942
        %944 = vmatprep.subr.mxu0 0.0
        %v945 = vand.u32 %v376, 4294901760
        %946 = vmatpush1.msra.mxu0 %v945
        %947 = vmatprep.subr.mxu0 0.0
        %v948 = vand.u32 %v377, 4294901760
        %949 = vmatpush1.msra.mxu0 %v948
        %950 = vmatprep.subr.mxu0 0.0
        %v951 = vand.u32 %v378, 4294901760
        %952 = vmatpush1.msra.mxu0 %v951
        %953 = vmatprep.subr.mxu0 0.0
        %v954 = vand.u32 %v379, 4294901760
        %955 = vmatpush1.msra.mxu0 %v954
        %956 = vmatprep.subr.mxu0 0.0
        %v957 = vand.u32 %v380, 4294901760
        %958 = vmatpush1.msra.mxu0 %v957
        %v959 = vand.u32 %v347, 4294901760
        %v960 = vsub.f32 %v347, %v959
        %v961 = vand.u32 %v960, 4294901760
        %962 = vmatprep.mubr.f32.mxu0 %v961
        %v963 = vand.u32 %v346, 4294901760
        %v964 = vsub.f32 %v346, %v963
        %v965 = vand.u32 %v964, 4294901760
        %966 = vmatmul.mubr.f32.gmra.mrb[0].mxu0 %v965
        %v967 = vpop.f32.mrb[0].mxu0
        %v968 = vadd.f32 %v860, %v967
        %v969 = vpop.f32.mrb[0].mxu0
        %970 = vdwg.mxu0
        %971 = vmatprep.subr.mxu0 0.0
        %v972 = vand.u32 %v349, 4294901760
        %v973 = vsub.f32 %v349, %v972
        %v974 = vand.u32 %v973, 4294901760
        %975 = vmatpush1.msra.mxu0 %v974
        %976 = vmatprep.subr.mxu0 0.0
        %v977 = vand.u32 %v350, 4294901760
        %v978 = vsub.f32 %v350, %v977
        %v979 = vand.u32 %v978, 4294901760
        %980 = vmatpush1.msra.mxu0 %v979
        %981 = vmatprep.subr.mxu0 0.0
        %v982 = vand.u32 %v351, 4294901760
        %v983 = vsub.f32 %v351, %v982
        %v984 = vand.u32 %v983, 4294901760
        %985 = vmatpush1.msra.mxu0 %v984
        %986 = vmatprep.subr.mxu0 0.0
        %v987 = vand.u32 %v352, 4294901760
        %v988 = vsub.f32 %v352, %v987
        %v989 = vand.u32 %v988, 4294901760
        %990 = vmatpush1.msra.mxu0 %v989
        %991 = vmatprep.subr.mxu0 0.0
        %v992 = vand.u32 %v353, 4294901760
        %v993 = vsub.f32 %v353, %v992
        %v994 = vand.u32 %v993, 4294901760
        %995 = vmatpush1.msra.mxu0 %v994
        %996 = vmatprep.subr.mxu0 0.0
        %v997 = vand.u32 %v354, 4294901760
        %v998 = vsub.f32 %v354, %v997
        %v999 = vand.u32 %v998, 4294901760
        %1000 = vmatpush1.msra.mxu0 %v999
        %1001 = vmatprep.subr.mxu0 0.0
        %v1002 = vand.u32 %v355, 4294901760
        %v1003 = vsub.f32 %v355, %v1002
        %v1004 = vand.u32 %v1003, 4294901760
        %1005 = vmatpush1.msra.mxu0 %v1004
        %1006 = vmatprep.subr.mxu0 0.0
        %v1007 = vand.u32 %v356, 4294901760
        %v1008 = vsub.f32 %v356, %v1007
        %v1009 = vand.u32 %v1008, 4294901760
        %1010 = vmatpush1.msra.mxu0 %v1009
        %1011 = vmatprep.subr.mxu0 0.0
        %v1012 = vand.u32 %v357, 4294901760
        %v1013 = vsub.f32 %v357, %v1012
        %v1014 = vand.u32 %v1013, 4294901760
        %1015 = vmatpush1.msra.mxu0 %v1014
        %1016 = vmatprep.subr.mxu0 0.0
        %v1017 = vand.u32 %v358, 4294901760
        %v1018 = vsub.f32 %v358, %v1017
        %v1019 = vand.u32 %v1018, 4294901760
        %1020 = vmatpush1.msra.mxu0 %v1019
        %1021 = vmatprep.subr.mxu0 0.0
        %v1022 = vand.u32 %v359, 4294901760
        %v1023 = vsub.f32 %v359, %v1022
        %v1024 = vand.u32 %v1023, 4294901760
        %1025 = vmatpush1.msra.mxu0 %v1024
        %1026 = vmatprep.subr.mxu0 0.0
        %v1027 = vand.u32 %v360, 4294901760
        %v1028 = vsub.f32 %v360, %v1027
        %v1029 = vand.u32 %v1028, 4294901760
        %1030 = vmatpush1.msra.mxu0 %v1029
        %1031 = vmatprep.subr.mxu0 0.0
        %v1032 = vand.u32 %v361, 4294901760
        %v1033 = vsub.f32 %v361, %v1032
        %v1034 = vand.u32 %v1033, 4294901760
        %1035 = vmatpush1.msra.mxu0 %v1034
        %1036 = vmatprep.subr.mxu0 0.0
        %v1037 = vand.u32 %v362, 4294901760
        %v1038 = vsub.f32 %v362, %v1037
        %v1039 = vand.u32 %v1038, 4294901760
        %1040 = vmatpush1.msra.mxu0 %v1039
        %1041 = vmatprep.subr.mxu0 0.0
        %v1042 = vand.u32 %v363, 4294901760
        %v1043 = vsub.f32 %v363, %v1042
        %v1044 = vand.u32 %v1043, 4294901760
        %1045 = vmatpush1.msra.mxu0 %v1044
        %1046 = vmatprep.subr.mxu0 0.0
        %v1047 = vand.u32 %v364, 4294901760
        %v1048 = vsub.f32 %v364, %v1047
        %v1049 = vand.u32 %v1048, 4294901760
        %1050 = vmatpush1.msra.mxu0 %v1049
        %1051 = vmatprep.subr.mxu0 0.0
        %v1052 = vand.u32 %v365, 4294901760
        %v1053 = vsub.f32 %v365, %v1052
        %v1054 = vand.u32 %v1053, 4294901760
        %1055 = vmatpush1.msra.mxu0 %v1054
        %1056 = vmatprep.subr.mxu0 0.0
        %v1057 = vand.u32 %v366, 4294901760
        %v1058 = vsub.f32 %v366, %v1057
        %v1059 = vand.u32 %v1058, 4294901760
        %1060 = vmatpush1.msra.mxu0 %v1059
        %1061 = vmatprep.subr.mxu0 0.0
        %v1062 = vand.u32 %v367, 4294901760
        %v1063 = vsub.f32 %v367, %v1062
        %v1064 = vand.u32 %v1063, 4294901760
        %1065 = vmatpush1.msra.mxu0 %v1064
        %1066 = vmatprep.subr.mxu0 0.0
        %v1067 = vand.u32 %v368, 4294901760
        %v1068 = vsub.f32 %v368, %v1067
        %v1069 = vand.u32 %v1068, 4294901760
        %1070 = vmatpush1.msra.mxu0 %v1069
        %1071 = vmatprep.subr.mxu0 0.0
        %v1072 = vand.u32 %v369, 4294901760
        %v1073 = vsub.f32 %v369, %v1072
        %v1074 = vand.u32 %v1073, 4294901760
        %1075 = vmatpush1.msra.mxu0 %v1074
        %1076 = vmatprep.subr.mxu0 0.0
        %v1077 = vand.u32 %v370, 4294901760
        %v1078 = vsub.f32 %v370, %v1077
        %v1079 = vand.u32 %v1078, 4294901760
        %1080 = vmatpush1.msra.mxu0 %v1079
        %1081 = vmatprep.subr.mxu0 0.0
        %v1082 = vand.u32 %v371, 4294901760
        %v1083 = vsub.f32 %v371, %v1082
        %v1084 = vand.u32 %v1083, 4294901760
        %1085 = vmatpush1.msra.mxu0 %v1084
        %1086 = vmatprep.subr.mxu0 0.0
        %v1087 = vand.u32 %v372, 4294901760
        %v1088 = vsub.f32 %v372, %v1087
        %v1089 = vand.u32 %v1088, 4294901760
        %1090 = vmatpush1.msra.mxu0 %v1089
        %1091 = vmatprep.subr.mxu0 0.0
        %v1092 = vand.u32 %v373, 4294901760
        %v1093 = vsub.f32 %v373, %v1092
        %v1094 = vand.u32 %v1093, 4294901760
        %1095 = vmatpush1.msra.mxu0 %v1094
        %1096 = vmatprep.subr.mxu0 0.0
        %v1097 = vand.u32 %v374, 4294901760
        %v1098 = vsub.f32 %v374, %v1097
        %v1099 = vand.u32 %v1098, 4294901760
        %1100 = vmatpush1.msra.mxu0 %v1099
        %1101 = vmatprep.subr.mxu0 0.0
        %v1102 = vand.u32 %v375, 4294901760
        %v1103 = vsub.f32 %v375, %v1102
        %v1104 = vand.u32 %v1103, 4294901760
        %1105 = vmatpush1.msra.mxu0 %v1104
        %1106 = vmatprep.subr.mxu0 0.0
        %v1107 = vand.u32 %v376, 4294901760
        %v1108 = vsub.f32 %v376, %v1107
        %v1109 = vand.u32 %v1108, 4294901760
        %1110 = vmatpush1.msra.mxu0 %v1109
        %1111 = vmatprep.subr.mxu0 0.0
        %v1112 = vand.u32 %v377, 4294901760
        %v1113 = vsub.f32 %v377, %v1112
        %v1114 = vand.u32 %v1113, 4294901760
        %1115 = vmatpush1.msra.mxu0 %v1114
        %1116 = vmatprep.subr.mxu0 0.0
        %v1117 = vand.u32 %v378, 4294901760
        %v1118 = vsub.f32 %v378, %v1117
        %v1119 = vand.u32 %v1118, 4294901760
        %1120 = vmatpush1.msra.mxu0 %v1119
        %1121 = vmatprep.subr.mxu0 0.0
        %v1122 = vand.u32 %v379, 4294901760
        %v1123 = vsub.f32 %v379, %v1122
        %v1124 = vand.u32 %v1123, 4294901760
        %1125 = vmatpush1.msra.mxu0 %v1124
        %1126 = vmatprep.subr.mxu0 0.0
        %v1127 = vand.u32 %v380, 4294901760
        %v1128 = vsub.f32 %v380, %v1127
        %v1129 = vand.u32 %v1128, 4294901760
        %1130 = vmatpush1.msra.mxu0 %v1129
        %v1131 = vand.u32 %v347, 4294901760
        %1132 = vmatprep.mubr.f32.mxu0 %v1131
        %v1133 = vand.u32 %v346, 4294901760
        %1134 = vmatmul.mubr.f32.gmra.mrb[0].mxu0 %v1133
        %v1135 = vpop.f32.mrb[0].mxu0
        %v1136 = vadd.f32 %v968, %v1135
        %v1137 = vpop.f32.mrb[0].mxu0
        %1138 = vdwg.mxu0
        %1139 = vmatprep.subr.mxu0 0.0
        %v1140 = vand.u32 %v349, 4294901760
        %1141 = vmatpush1.msra.mxu0 %v1140
        %1142 = vmatprep.subr.mxu0 0.0
        %v1143 = vand.u32 %v350, 4294901760
        %1144 = vmatpush1.msra.mxu0 %v1143
        %1145 = vmatprep.subr.mxu0 0.0
        %v1146 = vand.u32 %v351, 4294901760
        %1147 = vmatpush1.msra.mxu0 %v1146
        %1148 = vmatprep.subr.mxu0 0.0
        %v1149 = vand.u32 %v352, 4294901760
        %1150 = vmatpush1.msra.mxu0 %v1149
        %1151 = vmatprep.subr.mxu0 0.0
        %v1152 = vand.u32 %v353, 4294901760
        %1153 = vmatpush1.msra.mxu0 %v1152
        %1154 = vmatprep.subr.mxu0 0.0
        %v1155 = vand.u32 %v354, 4294901760
        %1156 = vmatpush1.msra.mxu0 %v1155
        %1157 = vmatprep.subr.mxu0 0.0
        %v1158 = vand.u32 %v355, 4294901760
        %1159 = vmatpush1.msra.mxu0 %v1158
        %1160 = vmatprep.subr.mxu0 0.0
        %v1161 = vand.u32 %v356, 4294901760
        %1162 = vmatpush1.msra.mxu0 %v1161
        %1163 = vmatprep.subr.mxu0 0.0
        %v1164 = vand.u32 %v357, 4294901760
        %1165 = vmatpush1.msra.mxu0 %v1164
        %1166 = vmatprep.subr.mxu0 0.0
        %v1167 = vand.u32 %v358, 4294901760
        %1168 = vmatpush1.msra.mxu0 %v1167
        %1169 = vmatprep.subr.mxu0 0.0
        %v1170 = vand.u32 %v359, 4294901760
        %1171 = vmatpush1.msra.mxu0 %v1170
        %1172 = vmatprep.subr.mxu0 0.0
        %v1173 = vand.u32 %v360, 4294901760
        %1174 = vmatpush1.msra.mxu0 %v1173
        %1175 = vmatprep.subr.mxu0 0.0
        %v1176 = vand.u32 %v361, 4294901760
        %1177 = vmatpush1.msra.mxu0 %v1176
        %1178 = vmatprep.subr.mxu0 0.0
        %v1179 = vand.u32 %v362, 4294901760
        %1180 = vmatpush1.msra.mxu0 %v1179
        %1181 = vmatprep.subr.mxu0 0.0
        %v1182 = vand.u32 %v363, 4294901760
        %1183 = vmatpush1.msra.mxu0 %v1182
        %1184 = vmatprep.subr.mxu0 0.0
        %v1185 = vand.u32 %v364, 4294901760
        %1186 = vmatpush1.msra.mxu0 %v1185
        %1187 = vmatprep.subr.mxu0 0.0
        %v1188 = vand.u32 %v365, 4294901760
        %1189 = vmatpush1.msra.mxu0 %v1188
        %1190 = vmatprep.subr.mxu0 0.0
        %v1191 = vand.u32 %v366, 4294901760
        %1192 = vmatpush1.msra.mxu0 %v1191
        %1193 = vmatprep.subr.mxu0 0.0
        %v1194 = vand.u32 %v367, 4294901760
        %1195 = vmatpush1.msra.mxu0 %v1194
        %1196 = vmatprep.subr.mxu0 0.0
        %v1197 = vand.u32 %v368, 4294901760
        %1198 = vmatpush1.msra.mxu0 %v1197
        %1199 = vmatprep.subr.mxu0 0.0
        %v1200 = vand.u32 %v369, 4294901760
        %1201 = vmatpush1.msra.mxu0 %v1200
        %1202 = vmatprep.subr.mxu0 0.0
        %v1203 = vand.u32 %v370, 4294901760
        %1204 = vmatpush1.msra.mxu0 %v1203
        %1205 = vmatprep.subr.mxu0 0.0
        %v1206 = vand.u32 %v371, 4294901760
        %1207 = vmatpush1.msra.mxu0 %v1206
        %1208 = vmatprep.subr.mxu0 0.0
        %v1209 = vand.u32 %v372, 4294901760
        %1210 = vmatpush1.msra.mxu0 %v1209
        %1211 = vmatprep.subr.mxu0 0.0
        %v1212 = vand.u32 %v373, 4294901760
        %1213 = vmatpush1.msra.mxu0 %v1212
        %1214 = vmatprep.subr.mxu0 0.0
        %v1215 = vand.u32 %v374, 4294901760
        %1216 = vmatpush1.msra.mxu0 %v1215
        %1217 = vmatprep.subr.mxu0 0.0
        %v1218 = vand.u32 %v375, 4294901760
        %1219 = vmatpush1.msra.mxu0 %v1218
        %1220 = vmatprep.subr.mxu0 0.0
        %v1221 = vand.u32 %v376, 4294901760
        %1222 = vmatpush1.msra.mxu0 %v1221
        %1223 = vmatprep.subr.mxu0 0.0
        %v1224 = vand.u32 %v377, 4294901760
        %1225 = vmatpush1.msra.mxu0 %v1224
        %1226 = vmatprep.subr.mxu0 0.0
        %v1227 = vand.u32 %v378, 4294901760
        %1228 = vmatpush1.msra.mxu0 %v1227
        %1229 = vmatprep.subr.mxu0 0.0
        %v1230 = vand.u32 %v379, 4294901760
        %1231 = vmatpush1.msra.mxu0 %v1230
        %1232 = vmatprep.subr.mxu0 0.0
        %v1233 = vand.u32 %v380, 4294901760
        %1234 = vmatpush1.msra.mxu0 %v1233
        %v1235 = vand.u32 %v347, 4294901760
        %1236 = vmatprep.mubr.f32.mxu0 %v1235
        %v1237 = vand.u32 %v346, 4294901760
        %1238 = vmatmul.mubr.f32.gmra.mrb[0].mxu0 %v1237
        %v1239 = vpop.f32.mrb[0].mxu0
        %v1240 = vadd.f32 %v1136, %v1239
        %v1241 = vpop.f32.mrb[0].mxu0
        %1242 = vdwg.mxu0
        %v1243 = vld [vmem:[%s2] sm:$0xff]
        %1245 = vset.pattern.permute.xlu0 0
        %1246 = vperm.xlu0 %1245, %v348
        %v1247 = vpop.permute.xlu0 %1246
        %vm1249 = vcmask 64512
        %v1251 = vsel %vm1249, %v1243, 0
        %1253 = vmatprep.subr.mxu0 0.0
        %v1254 = vand.u32 %v1240, 4294901760
        %1255 = vmatpush1.msra.mxu0 %v1254
        %1256 = vmatprep.subr.mxu0 0.0
        %1257 = vmatpush1.msra.mxu0 0.0
        %1258 = vmatprep.subr.mxu0 0.0
        %1259 = vmatpush1.msra.mxu0 0.0
        %1260 = vmatprep.subr.mxu0 0.0
        %1261 = vmatpush1.msra.mxu0 0.0
        %1262 = vmatprep.subr.mxu0 0.0
        %1263 = vmatpush1.msra.mxu0 0.0
        %1264 = vmatprep.subr.mxu0 0.0
        %1265 = vmatpush1.msra.mxu0 0.0
        %1266 = vmatprep.subr.mxu0 0.0
        %1267 = vmatpush1.msra.mxu0 0.0
        %1268 = vmatprep.subr.mxu0 0.0
        %1269 = vmatpush1.msra.mxu0 0.0
        %1270 = vmatprep.subr.mxu0 0.0
        %1271 = vmatpush1.msra.mxu0 0.0
        %1272 = vmatprep.subr.mxu0 0.0
        %1273 = vmatpush1.msra.mxu0 0.0
        %1274 = vmatprep.subr.mxu0 0.0
        %1275 = vmatpush1.msra.mxu0 0.0
        %1276 = vmatprep.subr.mxu0 0.0
        %1277 = vmatpush1.msra.mxu0 0.0
        %1278 = vmatprep.subr.mxu0 0.0
        %1279 = vmatpush1.msra.mxu0 0.0
        %1280 = vmatprep.subr.mxu0 0.0
        %1281 = vmatpush1.msra.mxu0 0.0
        %1282 = vmatprep.subr.mxu0 0.0
        %1283 = vmatpush1.msra.mxu0 0.0
        %1284 = vmatprep.subr.mxu0 0.0
        %1285 = vmatpush1.msra.mxu0 0.0
        %1286 = vmatprep.subr.mxu0 0.0
        %1287 = vmatpush1.msra.mxu0 0.0
        %1288 = vmatprep.subr.mxu0 0.0
        %1289 = vmatpush1.msra.mxu0 0.0
        %1290 = vmatprep.subr.mxu0 0.0
        %1291 = vmatpush1.msra.mxu0 0.0
        %1292 = vmatprep.subr.mxu0 0.0
        %1293 = vmatpush1.msra.mxu0 0.0
        %1294 = vmatprep.subr.mxu0 0.0
        %1295 = vmatpush1.msra.mxu0 0.0
        %1296 = vmatprep.subr.mxu0 0.0
        %1297 = vmatpush1.msra.mxu0 0.0
        %1298 = vmatprep.subr.mxu0 0.0
        %1299 = vmatpush1.msra.mxu0 0.0
        %1300 = vmatprep.subr.mxu0 0.0
        %1301 = vmatpush1.msra.mxu0 0.0
        %1302 = vmatprep.subr.mxu0 0.0
        %1303 = vmatpush1.msra.mxu0 0.0
        %1304 = vmatprep.subr.mxu0 0.0
        %1305 = vmatpush1.msra.mxu0 0.0
        %1306 = vmatprep.subr.mxu0 0.0
        %1307 = vmatpush1.msra.mxu0 0.0
        %1308 = vmatprep.subr.mxu0 0.0
        %1309 = vmatpush1.msra.mxu0 0.0
        %1310 = vmatprep.subr.mxu0 0.0
        %1311 = vmatpush1.msra.mxu0 0.0
        %1312 = vmatprep.subr.mxu0 0.0
        %1313 = vmatpush1.msra.mxu0 0.0
        %1314 = vmatprep.subr.mxu0 0.0
        %1315 = vmatpush1.msra.mxu0 0.0
        %1316 = vmatprep.subr.mxu0 0.0
        %1317 = vmatpush1.msra.mxu0 0.0
        %1318 = vmatprep.mubr.f32.mxu0 0.0
        %v1319 = vand.u32 %v1251, 4294901760
        %v1320 = vsub.f32 %v1251, %v1319
        %v1321 = vand.u32 %v1320, 4294901760
        %v1322 = vsub.f32 %v1320, %v1321
        %v1323 = vand.u32 %v1322, 4294901760
        %1324 = vmatmul.mubr.f32.gmra.mrb[0].mxu0 %v1323
        %v1325 = vpop.f32.mrb[0].mxu0
        %v1326 = vadd.f32 %v1247, %v1325
        %v1327 = vpop.f32.mrb[0].mxu0
        %1328 = vdwg.mxu0
        %1329 = vmatprep.subr.mxu0 0.0
        %v1330 = vand.u32 %v1240, 4294901760
        %v1331 = vsub.f32 %v1240, %v1330
        %v1332 = vand.u32 %v1331, 4294901760
        %v1333 = vsub.f32 %v1331, %v1332
        %v1334 = vand.u32 %v1333, 4294901760
        %1335 = vmatpush1.msra.mxu0 %v1334
        %1336 = vmatprep.subr.mxu0 0.0
        %1337 = vmatpush1.msra.mxu0 0.0
        %1338 = vmatprep.subr.mxu0 0.0
        %1339 = vmatpush1.msra.mxu0 0.0
        %1340 = vmatprep.subr.mxu0 0.0
        %1341 = vmatpush1.msra.mxu0 0.0
        %1342 = vmatprep.subr.mxu0 0.0
        %1343 = vmatpush1.msra.mxu0 0.0
        %1344 = vmatprep.subr.mxu0 0.0
        %1345 = vmatpush1.msra.mxu0 0.0
        %1346 = vmatprep.subr.mxu0 0.0
        %1347 = vmatpush1.msra.mxu0 0.0
        %1348 = vmatprep.subr.mxu0 0.0
        %1349 = vmatpush1.msra.mxu0 0.0
        %1350 = vmatprep.subr.mxu0 0.0
        %1351 = vmatpush1.msra.mxu0 0.0
        %1352 = vmatprep.subr.mxu0 0.0
        %1353 = vmatpush1.msra.mxu0 0.0
        %1354 = vmatprep.subr.mxu0 0.0
        %1355 = vmatpush1.msra.mxu0 0.0
        %1356 = vmatprep.subr.mxu0 0.0
        %1357 = vmatpush1.msra.mxu0 0.0
        %1358 = vmatprep.subr.mxu0 0.0
        %1359 = vmatpush1.msra.mxu0 0.0
        %1360 = vmatprep.subr.mxu0 0.0
        %1361 = vmatpush1.msra.mxu0 0.0
        %1362 = vmatprep.subr.mxu0 0.0
        %1363 = vmatpush1.msra.mxu0 0.0
        %1364 = vmatprep.subr.mxu0 0.0
        %1365 = vmatpush1.msra.mxu0 0.0
        %1366 = vmatprep.subr.mxu0 0.0
        %1367 = vmatpush1.msra.mxu0 0.0
        %1368 = vmatprep.subr.mxu0 0.0
        %1369 = vmatpush1.msra.mxu0 0.0
        %1370 = vmatprep.subr.mxu0 0.0
        %1371 = vmatpush1.msra.mxu0 0.0
        %1372 = vmatprep.subr.mxu0 0.0
        %1373 = vmatpush1.msra.mxu0 0.0
        %1374 = vmatprep.subr.mxu0 0.0
        %1375 = vmatpush1.msra.mxu0 0.0
        %1376 = vmatprep.subr.mxu0 0.0
        %1377 = vmatpush1.msra.mxu0 0.0
        %1378 = vmatprep.subr.mxu0 0.0
        %1379 = vmatpush1.msra.mxu0 0.0
        %1380 = vmatprep.subr.mxu0 0.0
        %1381 = vmatpush1.msra.mxu0 0.0
        %1382 = vmatprep.subr.mxu0 0.0
        %1383 = vmatpush1.msra.mxu0 0.0
        %1384 = vmatprep.subr.mxu0 0.0
        %1385 = vmatpush1.msra.mxu0 0.0
        %1386 = vmatprep.subr.mxu0 0.0
        %1387 = vmatpush1.msra.mxu0 0.0
        %1388 = vmatprep.subr.mxu0 0.0
        %1389 = vmatpush1.msra.mxu0 0.0
        %1390 = vmatprep.subr.mxu0 0.0
        %1391 = vmatpush1.msra.mxu0 0.0
        %1392 = vmatprep.subr.mxu0 0.0
        %1393 = vmatpush1.msra.mxu0 0.0
        %1394 = vmatprep.subr.mxu0 0.0
        %1395 = vmatpush1.msra.mxu0 0.0
        %1396 = vmatprep.subr.mxu0 0.0
        %1397 = vmatpush1.msra.mxu0 0.0
        %1398 = vmatprep.mubr.f32.mxu0 0.0
        %v1399 = vand.u32 %v1251, 4294901760
        %1400 = vmatmul.mubr.f32.gmra.mrb[0].mxu0 %v1399
        %v1401 = vpop.f32.mrb[0].mxu0
        %v1402 = vadd.f32 %v1326, %v1401
        %v1403 = vpop.f32.mrb[0].mxu0
        %1404 = vdwg.mxu0
        %1405 = vmatprep.subr.mxu0 0.0
        %v1406 = vand.u32 %v1240, 4294901760
        %v1407 = vsub.f32 %v1240, %v1406
        %1408 = vmatpush1.msra.mxu0 %v1407
        %1409 = vmatprep.subr.mxu0 0.0
        %1410 = vmatpush1.msra.mxu0 0.0
        %1411 = vmatprep.subr.mxu0 0.0
        %1412 = vmatpush1.msra.mxu0 0.0
        %1413 = vmatprep.subr.mxu0 0.0
        %1414 = vmatpush1.msra.mxu0 0.0
        %1415 = vmatprep.subr.mxu0 0.0
        %1416 = vmatpush1.msra.mxu0 0.0
        %1417 = vmatprep.subr.mxu0 0.0
        %1418 = vmatpush1.msra.mxu0 0.0
        %1419 = vmatprep.subr.mxu0 0.0
        %1420 = vmatpush1.msra.mxu0 0.0
        %1421 = vmatprep.subr.mxu0 0.0
        %1422 = vmatpush1.msra.mxu0 0.0
        %1423 = vmatprep.subr.mxu0 0.0
        %1424 = vmatpush1.msra.mxu0 0.0
        %1425 = vmatprep.subr.mxu0 0.0
        %1426 = vmatpush1.msra.mxu0 0.0
        %1427 = vmatprep.subr.mxu0 0.0
        %1428 = vmatpush1.msra.mxu0 0.0
        %1429 = vmatprep.subr.mxu0 0.0
        %1430 = vmatpush1.msra.mxu0 0.0
        %1431 = vmatprep.subr.mxu0 0.0
        %1432 = vmatpush1.msra.mxu0 0.0
        %1433 = vmatprep.subr.mxu0 0.0
        %1434 = vmatpush1.msra.mxu0 0.0
        %1435 = vmatprep.subr.mxu0 0.0
        %1436 = vmatpush1.msra.mxu0 0.0
        %1437 = vmatprep.subr.mxu0 0.0
        %1438 = vmatpush1.msra.mxu0 0.0
        %1439 = vmatprep.subr.mxu0 0.0
        %1440 = vmatpush1.msra.mxu0 0.0
        %1441 = vmatprep.subr.mxu0 0.0
        %1442 = vmatpush1.msra.mxu0 0.0
        %1443 = vmatprep.subr.mxu0 0.0
        %1444 = vmatpush1.msra.mxu0 0.0
        %1445 = vmatprep.subr.mxu0 0.0
        %1446 = vmatpush1.msra.mxu0 0.0
        %1447 = vmatprep.subr.mxu0 0.0
        %1448 = vmatpush1.msra.mxu0 0.0
        %1449 = vmatprep.subr.mxu0 0.0
        %1450 = vmatpush1.msra.mxu0 0.0
        %1451 = vmatprep.subr.mxu0 0.0
        %1452 = vmatpush1.msra.mxu0 0.0
        %1453 = vmatprep.subr.mxu0 0.0
        %1454 = vmatpush1.msra.mxu0 0.0
        %1455 = vmatprep.subr.mxu0 0.0
        %1456 = vmatpush1.msra.mxu0 0.0
        %1457 = vmatprep.subr.mxu0 0.0
        %1458 = vmatpush1.msra.mxu0 0.0
        %1459 = vmatprep.subr.mxu0 0.0
        %1460 = vmatpush1.msra.mxu0 0.0
        %1461 = vmatprep.subr.mxu0 0.0
        %1462 = vmatpush1.msra.mxu0 0.0
        %1463 = vmatprep.subr.mxu0 0.0
        %1464 = vmatpush1.msra.mxu0 0.0
        %1465 = vmatprep.subr.mxu0 0.0
        %1466 = vmatpush1.msra.mxu0 0.0
        %1467 = vmatprep.subr.mxu0 0.0
        %1468 = vmatpush1.msra.mxu0 0.0
        %1469 = vmatprep.subr.mxu0 0.0
        %1470 = vmatpush1.msra.mxu0 0.0
        %1471 = vmatprep.mubr.f32.mxu0 0.0
        %v1472 = vand.u32 %v1251, 4294901760
        %v1473 = vsub.f32 %v1251, %v1472
        %1474 = vmatmul.mubr.f32.gmra.mrb[0].mxu0 %v1473
        %v1475 = vpop.f32.mrb[0].mxu0
        %v1476 = vadd.f32 %v1402, %v1475
        %v1477 = vpop.f32.mrb[0].mxu0
        %1478 = vdwg.mxu0
        %1479 = vmatprep.subr.mxu0 0.0
        %v1480 = vand.u32 %v1240, 4294901760
        %1481 = vmatpush1.msra.mxu0 %v1480
        %1482 = vmatprep.subr.mxu0 0.0
        %1483 = vmatpush1.msra.mxu0 0.0
        %1484 = vmatprep.subr.mxu0 0.0
        %1485 = vmatpush1.msra.mxu0 0.0
        %1486 = vmatprep.subr.mxu0 0.0
        %1487 = vmatpush1.msra.mxu0 0.0
        %1488 = vmatprep.subr.mxu0 0.0
        %1489 = vmatpush1.msra.mxu0 0.0
        %1490 = vmatprep.subr.mxu0 0.0
        %1491 = vmatpush1.msra.mxu0 0.0
        %1492 = vmatprep.subr.mxu0 0.0
        %1493 = vmatpush1.msra.mxu0 0.0
        %1494 = vmatprep.subr.mxu0 0.0
        %1495 = vmatpush1.msra.mxu0 0.0
        %1496 = vmatprep.subr.mxu0 0.0
        %1497 = vmatpush1.msra.mxu0 0.0
        %1498 = vmatprep.subr.mxu0 0.0
        %1499 = vmatpush1.msra.mxu0 0.0
        %1500 = vmatprep.subr.mxu0 0.0
        %1501 = vmatpush1.msra.mxu0 0.0
        %1502 = vmatprep.subr.mxu0 0.0
        %1503 = vmatpush1.msra.mxu0 0.0
        %1504 = vmatprep.subr.mxu0 0.0
        %1505 = vmatpush1.msra.mxu0 0.0
        %1506 = vmatprep.subr.mxu0 0.0
        %1507 = vmatpush1.msra.mxu0 0.0
        %1508 = vmatprep.subr.mxu0 0.0
        %1509 = vmatpush1.msra.mxu0 0.0
        %1510 = vmatprep.subr.mxu0 0.0
        %1511 = vmatpush1.msra.mxu0 0.0
        %1512 = vmatprep.subr.mxu0 0.0
        %1513 = vmatpush1.msra.mxu0 0.0
        %1514 = vmatprep.subr.mxu0 0.0
        %1515 = vmatpush1.msra.mxu0 0.0
        %1516 = vmatprep.subr.mxu0 0.0
        %1517 = vmatpush1.msra.mxu0 0.0
        %1518 = vmatprep.subr.mxu0 0.0
        %1519 = vmatpush1.msra.mxu0 0.0
        %1520 = vmatprep.subr.mxu0 0.0
        %1521 = vmatpush1.msra.mxu0 0.0
        %1522 = vmatprep.subr.mxu0 0.0
        %1523 = vmatpush1.msra.mxu0 0.0
        %1524 = vmatprep.subr.mxu0 0.0
        %1525 = vmatpush1.msra.mxu0 0.0
        %1526 = vmatprep.subr.mxu0 0.0
        %1527 = vmatpush1.msra.mxu0 0.0
        %1528 = vmatprep.subr.mxu0 0.0
        %1529 = vmatpush1.msra.mxu0 0.0
        %1530 = vmatprep.subr.mxu0 0.0
        %1531 = vmatpush1.msra.mxu0 0.0
        %1532 = vmatprep.subr.mxu0 0.0
        %1533 = vmatpush1.msra.mxu0 0.0
        %1534 = vmatprep.subr.mxu0 0.0
        %1535 = vmatpush1.msra.mxu0 0.0
        %1536 = vmatprep.subr.mxu0 0.0
        %1537 = vmatpush1.msra.mxu0 0.0
        %1538 = vmatprep.subr.mxu0 0.0
        %1539 = vmatpush1.msra.mxu0 0.0
        %1540 = vmatprep.subr.mxu0 0.0
        %1541 = vmatpush1.msra.mxu0 0.0
        %1542 = vmatprep.subr.mxu0 0.0
        %1543 = vmatpush1.msra.mxu0 0.0
        %1544 = vmatprep.mubr.f32.mxu0 0.0
        %v1545 = vand.u32 %v1251, 4294901760
        %v1546 = vsub.f32 %v1251, %v1545
        %v1547 = vand.u32 %v1546, 4294901760
        %1548 = vmatmul.mubr.f32.gmra.mrb[0].mxu0 %v1547
        %v1549 = vpop.f32.mrb[0].mxu0
        %v1550 = vadd.f32 %v1476, %v1549
        %v1551 = vpop.f32.mrb[0].mxu0
        %1552 = vdwg.mxu0
        %1553 = vmatprep.subr.mxu0 0.0
        %v1554 = vand.u32 %v1240, 4294901760
        %v1555 = vsub.f32 %v1240, %v1554
        %v1556 = vand.u32 %v1555, 4294901760
        %1557 = vmatpush1.msra.mxu0 %v1556
        %1558 = vmatprep.subr.mxu0 0.0
        %1559 = vmatpush1.msra.mxu0 0.0
        %1560 = vmatprep.subr.mxu0 0.0
        %1561 = vmatpush1.msra.mxu0 0.0
        %1562 = vmatprep.subr.mxu0 0.0
        %1563 = vmatpush1.msra.mxu0 0.0
        %1564 = vmatprep.subr.mxu0 0.0
        %1565 = vmatpush1.msra.mxu0 0.0
        %1566 = vmatprep.subr.mxu0 0.0
        %1567 = vmatpush1.msra.mxu0 0.0
        %1568 = vmatprep.subr.mxu0 0.0
        %1569 = vmatpush1.msra.mxu0 0.0
        %1570 = vmatprep.subr.mxu0 0.0
        %1571 = vmatpush1.msra.mxu0 0.0
        %1572 = vmatprep.subr.mxu0 0.0
        %1573 = vmatpush1.msra.mxu0 0.0
        %1574 = vmatprep.subr.mxu0 0.0
        %1575 = vmatpush1.msra.mxu0 0.0
        %1576 = vmatprep.subr.mxu0 0.0
        %1577 = vmatpush1.msra.mxu0 0.0
        %1578 = vmatprep.subr.mxu0 0.0
        %1579 = vmatpush1.msra.mxu0 0.0
        %1580 = vmatprep.subr.mxu0 0.0
        %1581 = vmatpush1.msra.mxu0 0.0
        %1582 = vmatprep.subr.mxu0 0.0
        %1583 = vmatpush1.msra.mxu0 0.0
        %1584 = vmatprep.subr.mxu0 0.0
        %1585 = vmatpush1.msra.mxu0 0.0
        %1586 = vmatprep.subr.mxu0 0.0
        %1587 = vmatpush1.msra.mxu0 0.0
        %1588 = vmatprep.subr.mxu0 0.0
        %1589 = vmatpush1.msra.mxu0 0.0
        %1590 = vmatprep.subr.mxu0 0.0
        %1591 = vmatpush1.msra.mxu0 0.0
        %1592 = vmatprep.subr.mxu0 0.0
        %1593 = vmatpush1.msra.mxu0 0.0
        %1594 = vmatprep.subr.mxu0 0.0
        %1595 = vmatpush1.msra.mxu0 0.0
        %1596 = vmatprep.subr.mxu0 0.0
        %1597 = vmatpush1.msra.mxu0 0.0
        %1598 = vmatprep.subr.mxu0 0.0
        %1599 = vmatpush1.msra.mxu0 0.0
        %1600 = vmatprep.subr.mxu0 0.0
        %1601 = vmatpush1.msra.mxu0 0.0
        %1602 = vmatprep.subr.mxu0 0.0
        %1603 = vmatpush1.msra.mxu0 0.0
        %1604 = vmatprep.subr.mxu0 0.0
        %1605 = vmatpush1.msra.mxu0 0.0
        %1606 = vmatprep.subr.mxu0 0.0
        %1607 = vmatpush1.msra.mxu0 0.0
        %1608 = vmatprep.subr.mxu0 0.0
        %1609 = vmatpush1.msra.mxu0 0.0
        %1610 = vmatprep.subr.mxu0 0.0
        %1611 = vmatpush1.msra.mxu0 0.0
        %1612 = vmatprep.subr.mxu0 0.0
        %1613 = vmatpush1.msra.mxu0 0.0
        %1614 = vmatprep.subr.mxu0 0.0
        %1615 = vmatpush1.msra.mxu0 0.0
        %1616 = vmatprep.subr.mxu0 0.0
        %1617 = vmatpush1.msra.mxu0 0.0
        %1618 = vmatprep.subr.mxu0 0.0
        %1619 = vmatpush1.msra.mxu0 0.0
        %1620 = vmatprep.mubr.f32.mxu0 0.0
        %v1621 = vand.u32 %v1251, 4294901760
        %1622 = vmatmul.mubr.f32.gmra.mrb[0].mxu0 %v1621
        %v1623 = vpop.f32.mrb[0].mxu0
        %v1624 = vadd.f32 %v1550, %v1623
        %v1625 = vpop.f32.mrb[0].mxu0
        %1626 = vdwg.mxu0
        %1627 = vmatprep.subr.mxu0 0.0
        %v1628 = vand.u32 %v1240, 4294901760
        %1629 = vmatpush1.msra.mxu0 %v1628
        %1630 = vmatprep.subr.mxu0 0.0
        %1631 = vmatpush1.msra.mxu0 0.0
        %1632 = vmatprep.subr.mxu0 0.0
        %1633 = vmatpush1.msra.mxu0 0.0
        %1634 = vmatprep.subr.mxu0 0.0
        %1635 = vmatpush1.msra.mxu0 0.0
        %1636 = vmatprep.subr.mxu0 0.0
        %1637 = vmatpush1.msra.mxu0 0.0
        %1638 = vmatprep.subr.mxu0 0.0
        %1639 = vmatpush1.msra.mxu0 0.0
        %1640 = vmatprep.subr.mxu0 0.0
        %1641 = vmatpush1.msra.mxu0 0.0
        %1642 = vmatprep.subr.mxu0 0.0
        %1643 = vmatpush1.msra.mxu0 0.0
        %1644 = vmatprep.subr.mxu0 0.0
        %1645 = vmatpush1.msra.mxu0 0.0
        %1646 = vmatprep.subr.mxu0 0.0
        %1647 = vmatpush1.msra.mxu0 0.0
        %1648 = vmatprep.subr.mxu0 0.0
        %1649 = vmatpush1.msra.mxu0 0.0
        %1650 = vmatprep.subr.mxu0 0.0
        %1651 = vmatpush1.msra.mxu0 0.0
        %1652 = vmatprep.subr.mxu0 0.0
        %1653 = vmatpush1.msra.mxu0 0.0
        %1654 = vmatprep.subr.mxu0 0.0
        %1655 = vmatpush1.msra.mxu0 0.0
        %1656 = vmatprep.subr.mxu0 0.0
        %1657 = vmatpush1.msra.mxu0 0.0
        %1658 = vmatprep.subr.mxu0 0.0
        %1659 = vmatpush1.msra.mxu0 0.0
        %1660 = vmatprep.subr.mxu0 0.0
        %1661 = vmatpush1.msra.mxu0 0.0
        %1662 = vmatprep.subr.mxu0 0.0
        %1663 = vmatpush1.msra.mxu0 0.0
        %1664 = vmatprep.subr.mxu0 0.0
        %1665 = vmatpush1.msra.mxu0 0.0
        %1666 = vmatprep.subr.mxu0 0.0
        %1667 = vmatpush1.msra.mxu0 0.0
        %1668 = vmatprep.subr.mxu0 0.0
        %1669 = vmatpush1.msra.mxu0 0.0
        %1670 = vmatprep.subr.mxu0 0.0
        %1671 = vmatpush1.msra.mxu0 0.0
        %1672 = vmatprep.subr.mxu0 0.0
        %1673 = vmatpush1.msra.mxu0 0.0
        %1674 = vmatprep.subr.mxu0 0.0
        %1675 = vmatpush1.msra.mxu0 0.0
        %1676 = vmatprep.subr.mxu0 0.0
        %1677 = vmatpush1.msra.mxu0 0.0
        %1678 = vmatprep.subr.mxu0 0.0
        %1679 = vmatpush1.msra.mxu0 0.0
        %1680 = vmatprep.subr.mxu0 0.0
        %1681 = vmatpush1.msra.mxu0 0.0
        %1682 = vmatprep.subr.mxu0 0.0
        %1683 = vmatpush1.msra.mxu0 0.0
        %1684 = vmatprep.subr.mxu0 0.0
        %1685 = vmatpush1.msra.mxu0 0.0
        %1686 = vmatprep.subr.mxu0 0.0
        %1687 = vmatpush1.msra.mxu0 0.0
        %1688 = vmatprep.subr.mxu0 0.0
        %1689 = vmatpush1.msra.mxu0 0.0
        %1690 = vmatprep.subr.mxu0 0.0
        %1691 = vmatpush1.msra.mxu0 0.0
        %1692 = vmatprep.mubr.f32.mxu0 0.0
        %v1693 = vand.u32 %v1251, 4294901760
        %1694 = vmatmul.mubr.f32.gmra.mrb[0].mxu0 %v1693
        %v1695 = vpop.f32.mrb[0].mxu0
        %v1696 = vadd.f32 %v1624, %v1695
        %v1697 = vpop.f32.mrb[0].mxu0
        %1698 = vdwg.mxu0
        %v1699 = vxor.u32 %v1696, 2147483648
        %v1700 = vmul.f32 %v1699, 1.442695
        %v1701 = vpow.pop %v1700
        %v1702 = vadd.f32 %v1701, 1.0
        %v1703 = vrcp.pop %v1702
        %v1704 = vmul.f32 1.0, %v1703
        %v1705 = vld [vmem:[%s6] sm:$0xff]
        %v1706 = vld [vmem:[%s6 + $0x8] sm:$0xff]
        %v1707 = vld [vmem:[%s6 + $0x10] sm:$0xff]
        %v1708 = vld [vmem:[%s6 + $0x18] sm:$0xff]
        %v1709 = vld [vmem:[%s6 + $0x20] sm:$0xff]
        %v1710 = vld [vmem:[%s6 + $0x28] sm:$0xff]
        %v1711 = vld [vmem:[%s6 + $0x30] sm:$0xff]
        %v1712 = vld [vmem:[%s6 + $0x38] sm:$0xff]
        %v1713 = vld [vmem:[%s6 + $0x40] sm:$0xff]
        %v1714 = vld [vmem:[%s6 + $0x48] sm:$0xff]
        %v1715 = vld [vmem:[%s6 + $0x50] sm:$0xff]
        %v1716 = vld [vmem:[%s6 + $0x58] sm:$0xff]
        %v1717 = vld [vmem:[%s6 + $0x60] sm:$0xff]
        %v1718 = vld [vmem:[%s6 + $0x68] sm:$0xff]
        %v1719 = vld [vmem:[%s6 + $0x70] sm:$0xff]
        %v1720 = vld [vmem:[%s6 + $0x78] sm:$0xff]
        %vm1721 = vcmask 261120
        %v1723 = vsel %vm1721, %v1704, 0
        %v1725 = vand.u32 %v1706, 4294901760
        %1726 = vmatprep.subr.mxu0 %v1725
        %v1727 = vand.u32 %v1705, 4294901760
        %1728 = vmatpush1.msra.mxu0 %v1727
        %v1729 = vand.u32 %v1710, 4294901760
        %1730 = vmatprep.subr.mxu0 %v1729
        %v1731 = vand.u32 %v1709, 4294901760
        %1732 = vmatpush1.msra.mxu0 %v1731
        %v1733 = vand.u32 %v1714, 4294901760
        %1734 = vmatprep.subr.mxu0 %v1733
        %v1735 = vand.u32 %v1713, 4294901760
        %1736 = vmatpush1.msra.mxu0 %v1735
        %v1737 = vand.u32 %v1718, 4294901760
        %1738 = vmatprep.subr.mxu0 %v1737
        %v1739 = vand.u32 %v1717, 4294901760
        %1740 = vmatpush1.msra.mxu0 %v1739
        %1741 = vmatprep.subr.mxu0 0.0
        %1742 = vmatpush1.msra.mxu0 0.0
        %1743 = vmatprep.subr.mxu0 0.0
        %1744 = vmatpush1.msra.mxu0 0.0
        %1745 = vmatprep.subr.mxu0 0.0
        %1746 = vmatpush1.msra.mxu0 0.0
        %1747 = vmatprep.subr.mxu0 0.0
        %1748 = vmatpush1.msra.mxu0 0.0
        %1749 = vmatprep.subr.mxu0 0.0
        %1750 = vmatpush1.msra.mxu0 0.0
        %1751 = vmatprep.subr.mxu0 0.0
        %1752 = vmatpush1.msra.mxu0 0.0
        %1753 = vmatprep.subr.mxu0 0.0
        %1754 = vmatpush1.msra.mxu0 0.0
        %1755 = vmatprep.subr.mxu0 0.0
        %1756 = vmatpush1.msra.mxu0 0.0
        %1757 = vmatprep.subr.mxu0 0.0
        %1758 = vmatpush1.msra.mxu0 0.0
        %1759 = vmatprep.subr.mxu0 0.0
        %1760 = vmatpush1.msra.mxu0 0.0
        %1761 = vmatprep.subr.mxu0 0.0
        %1762 = vmatpush1.msra.mxu0 0.0
        %1763 = vmatprep.subr.mxu0 0.0
        %1764 = vmatpush1.msra.mxu0 0.0
        %1765 = vmatprep.subr.mxu0 0.0
        %1766 = vmatpush1.msra.mxu0 0.0
        %1767 = vmatprep.subr.mxu0 0.0
        %1768 = vmatpush1.msra.mxu0 0.0
        %1769 = vmatprep.subr.mxu0 0.0
        %1770 = vmatpush1.msra.mxu0 0.0
        %1771 = vmatprep.subr.mxu0 0.0
        %1772 = vmatpush1.msra.mxu0 0.0
        %1773 = vmatprep.subr.mxu0 0.0
        %1774 = vmatpush1.msra.mxu0 0.0
        %1775 = vmatprep.subr.mxu0 0.0
        %1776 = vmatpush1.msra.mxu0 0.0
        %1777 = vmatprep.subr.mxu0 0.0
        %1778 = vmatpush1.msra.mxu0 0.0
        %1779 = vmatprep.subr.mxu0 0.0
        %1780 = vmatpush1.msra.mxu0 0.0
        %1781 = vmatprep.subr.mxu0 0.0
        %1782 = vmatpush1.msra.mxu0 0.0
        %1783 = vmatprep.subr.mxu0 0.0
        %1784 = vmatpush1.msra.mxu0 0.0
        %1785 = vmatprep.subr.mxu0 0.0
        %1786 = vmatpush1.msra.mxu0 0.0
        %1787 = vmatprep.subr.mxu0 0.0
        %1788 = vmatpush1.msra.mxu0 0.0
        %1789 = vmatprep.subr.mxu0 0.0
        %1790 = vmatpush1.msra.mxu0 0.0
        %1791 = vmatprep.subr.mxu0 0.0
        %1792 = vmatpush1.msra.mxu0 0.0
        %1793 = vmatprep.subr.mxu0 0.0
        %1794 = vmatpush1.msra.mxu0 0.0
        %1795 = vmatprep.subr.mxu0 0.0
        %1796 = vmatpush1.msra.mxu0 0.0
        %1797 = vmatprep.mubr.f32.mxu0 0.0
        %v1798 = vand.u32 %v1723, 4294901760
        %v1799 = vsub.f32 %v1723, %v1798
        %v1800 = vand.u32 %v1799, 4294901760
        %v1801 = vsub.f32 %v1799, %v1800
        %v1802 = vand.u32 %v1801, 4294901760
        %1803 = vmatmul.mubr.f32.gmra.mrb[0].mxu0 %v1802
        %v1804 = vpop.f32.mrb[0].mxu0
        %v1805 = vadd.f32 0.0, %v1804
        %v1806 = vpop.f32.mrb[0].mxu0
        %v1807 = vadd.f32 0.0, %v1806
        %1808 = vdwg.mxu0
        %v1809 = vand.u32 %v1706, 4294901760
        %v1810 = vsub.f32 %v1706, %v1809
        %v1811 = vand.u32 %v1810, 4294901760
        %v1812 = vsub.f32 %v1810, %v1811
        %v1813 = vand.u32 %v1812, 4294901760
        %1814 = vmatprep.subr.mxu0 %v1813
        %v1815 = vand.u32 %v1705, 4294901760
        %v1816 = vsub.f32 %v1705, %v1815
        %v1817 = vand.u32 %v1816, 4294901760
        %v1818 = vsub.f32 %v1816, %v1817
        %v1819 = vand.u32 %v1818, 4294901760
        %1820 = vmatpush1.msra.mxu0 %v1819
        %v1821 = vand.u32 %v1710, 4294901760
        %v1822 = vsub.f32 %v1710, %v1821
        %v1823 = vand.u32 %v1822, 4294901760
        %v1824 = vsub.f32 %v1822, %v1823
        %v1825 = vand.u32 %v1824, 4294901760
        %1826 = vmatprep.subr.mxu0 %v1825
        %v1827 = vand.u32 %v1709, 4294901760
        %v1828 = vsub.f32 %v1709, %v1827
        %v1829 = vand.u32 %v1828, 4294901760
        %v1830 = vsub.f32 %v1828, %v1829
        %v1831 = vand.u32 %v1830, 4294901760
        %1832 = vmatpush1.msra.mxu0 %v1831
        %v1833 = vand.u32 %v1714, 4294901760
        %v1834 = vsub.f32 %v1714, %v1833
        %v1835 = vand.u32 %v1834, 4294901760
        %v1836 = vsub.f32 %v1834, %v1835
        %v1837 = vand.u32 %v1836, 4294901760
        %1838 = vmatprep.subr.mxu0 %v1837
        %v1839 = vand.u32 %v1713, 4294901760
        %v1840 = vsub.f32 %v1713, %v1839
        %v1841 = vand.u32 %v1840, 4294901760
        %v1842 = vsub.f32 %v1840, %v1841
        %v1843 = vand.u32 %v1842, 4294901760
        %1844 = vmatpush1.msra.mxu0 %v1843
        %v1845 = vand.u32 %v1718, 4294901760
        %v1846 = vsub.f32 %v1718, %v1845
        %v1847 = vand.u32 %v1846, 4294901760
        %v1848 = vsub.f32 %v1846, %v1847
        %v1849 = vand.u32 %v1848, 4294901760
        %1850 = vmatprep.subr.mxu0 %v1849
        %v1851 = vand.u32 %v1717, 4294901760
        %v1852 = vsub.f32 %v1717, %v1851
        %v1853 = vand.u32 %v1852, 4294901760
        %v1854 = vsub.f32 %v1852, %v1853
        %v1855 = vand.u32 %v1854, 4294901760
        %1856 = vmatpush1.msra.mxu0 %v1855
        %1857 = vmatprep.subr.mxu0 0.0
        %1858 = vmatpush1.msra.mxu0 0.0
        %1859 = vmatprep.subr.mxu0 0.0
        %1860 = vmatpush1.msra.mxu0 0.0
        %1861 = vmatprep.subr.mxu0 0.0
        %1862 = vmatpush1.msra.mxu0 0.0
        %1863 = vmatprep.subr.mxu0 0.0
        %1864 = vmatpush1.msra.mxu0 0.0
        %1865 = vmatprep.subr.mxu0 0.0
        %1866 = vmatpush1.msra.mxu0 0.0
        %1867 = vmatprep.subr.mxu0 0.0
        %1868 = vmatpush1.msra.mxu0 0.0
        %1869 = vmatprep.subr.mxu0 0.0
        %1870 = vmatpush1.msra.mxu0 0.0
        %1871 = vmatprep.subr.mxu0 0.0
        %1872 = vmatpush1.msra.mxu0 0.0
        %1873 = vmatprep.subr.mxu0 0.0
        %1874 = vmatpush1.msra.mxu0 0.0
        %1875 = vmatprep.subr.mxu0 0.0
        %1876 = vmatpush1.msra.mxu0 0.0
        %1877 = vmatprep.subr.mxu0 0.0
        %1878 = vmatpush1.msra.mxu0 0.0
        %1879 = vmatprep.subr.mxu0 0.0
        %1880 = vmatpush1.msra.mxu0 0.0
        %1881 = vmatprep.subr.mxu0 0.0
        %1882 = vmatpush1.msra.mxu0 0.0
        %1883 = vmatprep.subr.mxu0 0.0
        %1884 = vmatpush1.msra.mxu0 0.0
        %1885 = vmatprep.subr.mxu0 0.0
        %1886 = vmatpush1.msra.mxu0 0.0
        %1887 = vmatprep.subr.mxu0 0.0
        %1888 = vmatpush1.msra.mxu0 0.0
        %1889 = vmatprep.subr.mxu0 0.0
        %1890 = vmatpush1.msra.mxu0 0.0
        %1891 = vmatprep.subr.mxu0 0.0
        %1892 = vmatpush1.msra.mxu0 0.0
        %1893 = vmatprep.subr.mxu0 0.0
        %1894 = vmatpush1.msra.mxu0 0.0
        %1895 = vmatprep.subr.mxu0 0.0
        %1896 = vmatpush1.msra.mxu0 0.0
        %1897 = vmatprep.subr.mxu0 0.0
        %1898 = vmatpush1.msra.mxu0 0.0
        %1899 = vmatprep.subr.mxu0 0.0
        %1900 = vmatpush1.msra.mxu0 0.0
        %1901 = vmatprep.subr.mxu0 0.0
        %1902 = vmatpush1.msra.mxu0 0.0
        %1903 = vmatprep.subr.mxu0 0.0
        %1904 = vmatpush1.msra.mxu0 0.0
        %1905 = vmatprep.subr.mxu0 0.0
        %1906 = vmatpush1.msra.mxu0 0.0
        %1907 = vmatprep.subr.mxu0 0.0
        %1908 = vmatpush1.msra.mxu0 0.0
        %1909 = vmatprep.subr.mxu0 0.0
        %1910 = vmatpush1.msra.mxu0 0.0
        %1911 = vmatprep.subr.mxu0 0.0
        %1912 = vmatpush1.msra.mxu0 0.0
        %1913 = vmatprep.mubr.f32.mxu0 0.0
        %v1914 = vand.u32 %v1723, 4294901760
        %1915 = vmatmul.mubr.f32.gmra.mrb[0].mxu0 %v1914
        %v1916 = vpop.f32.mrb[0].mxu0
        %v1917 = vadd.f32 %v1805, %v1916
        %v1918 = vpop.f32.mrb[0].mxu0
        %v1919 = vadd.f32 %v1807, %v1918
        %1920 = vdwg.mxu0
        %v1921 = vand.u32 %v1706, 4294901760
        %v1922 = vsub.f32 %v1706, %v1921
        %1923 = vmatprep.subr.mxu0 %v1922
        %v1924 = vand.u32 %v1705, 4294901760
        %v1925 = vsub.f32 %v1705, %v1924
        %1926 = vmatpush1.msra.mxu0 %v1925
        %v1927 = vand.u32 %v1710, 4294901760
        %v1928 = vsub.f32 %v1710, %v1927
        %1929 = vmatprep.subr.mxu0 %v1928
        %v1930 = vand.u32 %v1709, 4294901760
        %v1931 = vsub.f32 %v1709, %v1930
        %1932 = vmatpush1.msra.mxu0 %v1931
        %v1933 = vand.u32 %v1714, 4294901760
        %v1934 = vsub.f32 %v1714, %v1933
        %1935 = vmatprep.subr.mxu0 %v1934
        %v1936 = vand.u32 %v1713, 4294901760
        %v1937 = vsub.f32 %v1713, %v1936
        %1938 = vmatpush1.msra.mxu0 %v1937
        %v1939 = vand.u32 %v1718, 4294901760
        %v1940 = vsub.f32 %v1718, %v1939
        %1941 = vmatprep.subr.mxu0 %v1940
        %v1942 = vand.u32 %v1717, 4294901760
        %v1943 = vsub.f32 %v1717, %v1942
        %1944 = vmatpush1.msra.mxu0 %v1943
        %1945 = vmatprep.subr.mxu0 0.0
        %1946 = vmatpush1.msra.mxu0 0.0
        %1947 = vmatprep.subr.mxu0 0.0
        %1948 = vmatpush1.msra.mxu0 0.0
        %1949 = vmatprep.subr.mxu0 0.0
        %1950 = vmatpush1.msra.mxu0 0.0
        %1951 = vmatprep.subr.mxu0 0.0
        %1952 = vmatpush1.msra.mxu0 0.0
        %1953 = vmatprep.subr.mxu0 0.0
        %1954 = vmatpush1.msra.mxu0 0.0
        %1955 = vmatprep.subr.mxu0 0.0
        %1956 = vmatpush1.msra.mxu0 0.0
        %1957 = vmatprep.subr.mxu0 0.0
        %1958 = vmatpush1.msra.mxu0 0.0
        %1959 = vmatprep.subr.mxu0 0.0
        %1960 = vmatpush1.msra.mxu0 0.0
        %1961 = vmatprep.subr.mxu0 0.0
        %1962 = vmatpush1.msra.mxu0 0.0
        %1963 = vmatprep.subr.mxu0 0.0
        %1964 = vmatpush1.msra.mxu0 0.0
        %1965 = vmatprep.subr.mxu0 0.0
        %1966 = vmatpush1.msra.mxu0 0.0
        %1967 = vmatprep.subr.mxu0 0.0
        %1968 = vmatpush1.msra.mxu0 0.0
        %1969 = vmatprep.subr.mxu0 0.0
        %1970 = vmatpush1.msra.mxu0 0.0
        %1971 = vmatprep.subr.mxu0 0.0
        %1972 = vmatpush1.msra.mxu0 0.0
        %1973 = vmatprep.subr.mxu0 0.0
        %1974 = vmatpush1.msra.mxu0 0.0
        %1975 = vmatprep.subr.mxu0 0.0
        %1976 = vmatpush1.msra.mxu0 0.0
        %1977 = vmatprep.subr.mxu0 0.0
        %1978 = vmatpush1.msra.mxu0 0.0
        %1979 = vmatprep.subr.mxu0 0.0
        %1980 = vmatpush1.msra.mxu0 0.0
        %1981 = vmatprep.subr.mxu0 0.0
        %1982 = vmatpush1.msra.mxu0 0.0
        %1983 = vmatprep.subr.mxu0 0.0
        %1984 = vmatpush1.msra.mxu0 0.0
        %1985 = vmatprep.subr.mxu0 0.0
        %1986 = vmatpush1.msra.mxu0 0.0
        %1987 = vmatprep.subr.mxu0 0.0
        %1988 = vmatpush1.msra.mxu0 0.0
        %1989 = vmatprep.subr.mxu0 0.0
        %1990 = vmatpush1.msra.mxu0 0.0
        %1991 = vmatprep.subr.mxu0 0.0
        %1992 = vmatpush1.msra.mxu0 0.0
        %1993 = vmatprep.subr.mxu0 0.0
        %1994 = vmatpush1.msra.mxu0 0.0
        %1995 = vmatprep.subr.mxu0 0.0
        %1996 = vmatpush1.msra.mxu0 0.0
        %1997 = vmatprep.subr.mxu0 0.0
        %1998 = vmatpush1.msra.mxu0 0.0
        %1999 = vmatprep.subr.mxu0 0.0
        %2000 = vmatpush1.msra.mxu0 0.0
        %2001 = vmatprep.mubr.f32.mxu0 0.0
        %v2002 = vand.u32 %v1723, 4294901760
        %v2003 = vsub.f32 %v1723, %v2002
        %2004 = vmatmul.mubr.f32.gmra.mrb[0].mxu0 %v2003
        %v2005 = vpop.f32.mrb[0].mxu0
        %v2006 = vadd.f32 %v1917, %v2005
        %v2007 = vpop.f32.mrb[0].mxu0
        %v2008 = vadd.f32 %v1919, %v2007
        %2009 = vdwg.mxu0
        %v2010 = vand.u32 %v1706, 4294901760
        %2011 = vmatprep.subr.mxu0 %v2010
        %v2012 = vand.u32 %v1705, 4294901760
        %2013 = vmatpush1.msra.mxu0 %v2012
        %v2014 = vand.u32 %v1710, 4294901760
        %2015 = vmatprep.subr.mxu0 %v2014
        %v2016 = vand.u32 %v1709, 4294901760
        %2017 = vmatpush1.msra.mxu0 %v2016
        %v2018 = vand.u32 %v1714, 4294901760
        %2019 = vmatprep.subr.mxu0 %v2018
        %v2020 = vand.u32 %v1713, 4294901760
        %2021 = vmatpush1.msra.mxu0 %v2020
        %v2022 = vand.u32 %v1718, 4294901760
        %2023 = vmatprep.subr.mxu0 %v2022
        %v2024 = vand.u32 %v1717, 4294901760
        %2025 = vmatpush1.msra.mxu0 %v2024
        %2026 = vmatprep.subr.mxu0 0.0
        %2027 = vmatpush1.msra.mxu0 0.0
        %2028 = vmatprep.subr.mxu0 0.0
        %2029 = vmatpush1.msra.mxu0 0.0
        %2030 = vmatprep.subr.mxu0 0.0
        %2031 = vmatpush1.msra.mxu0 0.0
        %2032 = vmatprep.subr.mxu0 0.0
        %2033 = vmatpush1.msra.mxu0 0.0
        %2034 = vmatprep.subr.mxu0 0.0
        %2035 = vmatpush1.msra.mxu0 0.0
        %2036 = vmatprep.subr.mxu0 0.0
        %2037 = vmatpush1.msra.mxu0 0.0
        %2038 = vmatprep.subr.mxu0 0.0
        %2039 = vmatpush1.msra.mxu0 0.0
        %2040 = vmatprep.subr.mxu0 0.0
        %2041 = vmatpush1.msra.mxu0 0.0
        %2042 = vmatprep.subr.mxu0 0.0
        %2043 = vmatpush1.msra.mxu0 0.0
        %2044 = vmatprep.subr.mxu0 0.0
        %2045 = vmatpush1.msra.mxu0 0.0
        %2046 = vmatprep.subr.mxu0 0.0
        %2047 = vmatpush1.msra.mxu0 0.0
        %2048 = vmatprep.subr.mxu0 0.0
        %2049 = vmatpush1.msra.mxu0 0.0
        %2050 = vmatprep.subr.mxu0 0.0
        %2051 = vmatpush1.msra.mxu0 0.0
        %2052 = vmatprep.subr.mxu0 0.0
        %2053 = vmatpush1.msra.mxu0 0.0
        %2054 = vmatprep.subr.mxu0 0.0
        %2055 = vmatpush1.msra.mxu0 0.0
        %2056 = vmatprep.subr.mxu0 0.0
        %2057 = vmatpush1.msra.mxu0 0.0
        %2058 = vmatprep.subr.mxu0 0.0
        %2059 = vmatpush1.msra.mxu0 0.0
        %2060 = vmatprep.subr.mxu0 0.0
        %2061 = vmatpush1.msra.mxu0 0.0
        %2062 = vmatprep.subr.mxu0 0.0
        %2063 = vmatpush1.msra.mxu0 0.0
        %2064 = vmatprep.subr.mxu0 0.0
        %2065 = vmatpush1.msra.mxu0 0.0
        %2066 = vmatprep.subr.mxu0 0.0
        %2067 = vmatpush1.msra.mxu0 0.0
        %2068 = vmatprep.subr.mxu0 0.0
        %2069 = vmatpush1.msra.mxu0 0.0
        %2070 = vmatprep.subr.mxu0 0.0
        %2071 = vmatpush1.msra.mxu0 0.0
        %2072 = vmatprep.subr.mxu0 0.0
        %2073 = vmatpush1.msra.mxu0 0.0
        %2074 = vmatprep.subr.mxu0 0.0
        %2075 = vmatpush1.msra.mxu0 0.0
        %2076 = vmatprep.subr.mxu0 0.0
        %2077 = vmatpush1.msra.mxu0 0.0
        %2078 = vmatprep.subr.mxu0 0.0
        %2079 = vmatpush1.msra.mxu0 0.0
        %2080 = vmatprep.subr.mxu0 0.0
        %2081 = vmatpush1.msra.mxu0 0.0
        %2082 = vmatprep.mubr.f32.mxu0 0.0
        %v2083 = vand.u32 %v1723, 4294901760
        %v2084 = vsub.f32 %v1723, %v2083
        %v2085 = vand.u32 %v2084, 4294901760
        %2086 = vmatmul.mubr.f32.gmra.mrb[0].mxu0 %v2085
        %v2087 = vpop.f32.mrb[0].mxu0
        %v2088 = vadd.f32 %v2006, %v2087
        %v2089 = vpop.f32.mrb[0].mxu0
        %v2090 = vadd.f32 %v2008, %v2089
        %2091 = vdwg.mxu0
        %v2092 = vand.u32 %v1706, 4294901760
        %v2093 = vsub.f32 %v1706, %v2092
        %v2094 = vand.u32 %v2093, 4294901760
        %2095 = vmatprep.subr.mxu0 %v2094
        %v2096 = vand.u32 %v1705, 4294901760
        %v2097 = vsub.f32 %v1705, %v2096
        %v2098 = vand.u32 %v2097, 4294901760
        %2099 = vmatpush1.msra.mxu0 %v2098
        %v2100 = vand.u32 %v1710, 4294901760
        %v2101 = vsub.f32 %v1710, %v2100
        %v2102 = vand.u32 %v2101, 4294901760
        %2103 = vmatprep.subr.mxu0 %v2102
        %v2104 = vand.u32 %v1709, 4294901760
        %v2105 = vsub.f32 %v1709, %v2104
        %v2106 = vand.u32 %v2105, 4294901760
        %2107 = vmatpush1.msra.mxu0 %v2106
        %v2108 = vand.u32 %v1714, 4294901760
        %v2109 = vsub.f32 %v1714, %v2108
        %v2110 = vand.u32 %v2109, 4294901760
        %2111 = vmatprep.subr.mxu0 %v2110
        %v2112 = vand.u32 %v1713, 4294901760
        %v2113 = vsub.f32 %v1713, %v2112
        %v2114 = vand.u32 %v2113, 4294901760
        %2115 = vmatpush1.msra.mxu0 %v2114
        %v2116 = vand.u32 %v1718, 4294901760
        %v2117 = vsub.f32 %v1718, %v2116
        %v2118 = vand.u32 %v2117, 4294901760
        %2119 = vmatprep.subr.mxu0 %v2118
        %v2120 = vand.u32 %v1717, 4294901760
        %v2121 = vsub.f32 %v1717, %v2120
        %v2122 = vand.u32 %v2121, 4294901760
        %2123 = vmatpush1.msra.mxu0 %v2122
        %2124 = vmatprep.subr.mxu0 0.0
        %2125 = vmatpush1.msra.mxu0 0.0
        %2126 = vmatprep.subr.mxu0 0.0
        %2127 = vmatpush1.msra.mxu0 0.0
        %2128 = vmatprep.subr.mxu0 0.0
        %2129 = vmatpush1.msra.mxu0 0.0
        %2130 = vmatprep.subr.mxu0 0.0
        %2131 = vmatpush1.msra.mxu0 0.0
        %2132 = vmatprep.subr.mxu0 0.0
        %2133 = vmatpush1.msra.mxu0 0.0
        %2134 = vmatprep.subr.mxu0 0.0
        %2135 = vmatpush1.msra.mxu0 0.0
        %2136 = vmatprep.subr.mxu0 0.0
        %2137 = vmatpush1.msra.mxu0 0.0
        %2138 = vmatprep.subr.mxu0 0.0
        %2139 = vmatpush1.msra.mxu0 0.0
        %2140 = vmatprep.subr.mxu0 0.0
        %2141 = vmatpush1.msra.mxu0 0.0
        %2142 = vmatprep.subr.mxu0 0.0
        %2143 = vmatpush1.msra.mxu0 0.0
        %2144 = vmatprep.subr.mxu0 0.0
        %2145 = vmatpush1.msra.mxu0 0.0
        %2146 = vmatprep.subr.mxu0 0.0
        %2147 = vmatpush1.msra.mxu0 0.0
        %2148 = vmatprep.subr.mxu0 0.0
        %2149 = vmatpush1.msra.mxu0 0.0
        %2150 = vmatprep.subr.mxu0 0.0
        %2151 = vmatpush1.msra.mxu0 0.0
        %2152 = vmatprep.subr.mxu0 0.0
        %2153 = vmatpush1.msra.mxu0 0.0
        %2154 = vmatprep.subr.mxu0 0.0
        %2155 = vmatpush1.msra.mxu0 0.0
        %2156 = vmatprep.subr.mxu0 0.0
        %2157 = vmatpush1.msra.mxu0 0.0
        %2158 = vmatprep.subr.mxu0 0.0
        %2159 = vmatpush1.msra.mxu0 0.0
        %2160 = vmatprep.subr.mxu0 0.0
        %2161 = vmatpush1.msra.mxu0 0.0
        %2162 = vmatprep.subr.mxu0 0.0
        %2163 = vmatpush1.msra.mxu0 0.0
        %2164 = vmatprep.subr.mxu0 0.0
        %2165 = vmatpush1.msra.mxu0 0.0
        %2166 = vmatprep.subr.mxu0 0.0
        %2167 = vmatpush1.msra.mxu0 0.0
        %2168 = vmatprep.subr.mxu0 0.0
        %2169 = vmatpush1.msra.mxu0 0.0
        %2170 = vmatprep.subr.mxu0 0.0
        %2171 = vmatpush1.msra.mxu0 0.0
        %2172 = vmatprep.subr.mxu0 0.0
        %2173 = vmatpush1.msra.mxu0 0.0
        %2174 = vmatprep.subr.mxu0 0.0
        %2175 = vmatpush1.msra.mxu0 0.0
        %2176 = vmatprep.subr.mxu0 0.0
        %2177 = vmatpush1.msra.mxu0 0.0
        %2178 = vmatprep.subr.mxu0 0.0
        %2179 = vmatpush1.msra.mxu0 0.0
        %2180 = vmatprep.mubr.f32.mxu0 0.0
        %v2181 = vand.u32 %v1723, 4294901760
        %2182 = vmatmul.mubr.f32.gmra.mrb[0].mxu0 %v2181
        %v2183 = vpop.f32.mrb[0].mxu0
        %v2184 = vadd.f32 %v2088, %v2183
        %v2185 = vpop.f32.mrb[0].mxu0
        %v2186 = vadd.f32 %v2090, %v2185
        %2187 = vdwg.mxu0
        %v2188 = vand.u32 %v1706, 4294901760
        %2189 = vmatprep.subr.mxu0 %v2188
        %v2190 = vand.u32 %v1705, 4294901760
        %2191 = vmatpush1.msra.mxu0 %v2190
        %v2192 = vand.u32 %v1710, 4294901760
        %2193 = vmatprep.subr.mxu0 %v2192
        %v2194 = vand.u32 %v1709, 4294901760
        %2195 = vmatpush1.msra.mxu0 %v2194
        %v2196 = vand.u32 %v1714, 4294901760
        %2197 = vmatprep.subr.mxu0 %v2196
        %v2198 = vand.u32 %v1713, 4294901760
        %2199 = vmatpush1.msra.mxu0 %v2198
        %v2200 = vand.u32 %v1718, 4294901760
        %2201 = vmatprep.subr.mxu0 %v2200
        %v2202 = vand.u32 %v1717, 4294901760
        %2203 = vmatpush1.msra.mxu0 %v2202
        %2204 = vmatprep.subr.mxu0 0.0
        %2205 = vmatpush1.msra.mxu0 0.0
        %2206 = vmatprep.subr.mxu0 0.0
        %2207 = vmatpush1.msra.mxu0 0.0
        %2208 = vmatprep.subr.mxu0 0.0
        %2209 = vmatpush1.msra.mxu0 0.0
        %2210 = vmatprep.subr.mxu0 0.0
        %2211 = vmatpush1.msra.mxu0 0.0
        %2212 = vmatprep.subr.mxu0 0.0
        %2213 = vmatpush1.msra.mxu0 0.0
        %2214 = vmatprep.subr.mxu0 0.0
        %2215 = vmatpush1.msra.mxu0 0.0
        %2216 = vmatprep.subr.mxu0 0.0
        %2217 = vmatpush1.msra.mxu0 0.0
        %2218 = vmatprep.subr.mxu0 0.0
        %2219 = vmatpush1.msra.mxu0 0.0
        %2220 = vmatprep.subr.mxu0 0.0
        %2221 = vmatpush1.msra.mxu0 0.0
        %2222 = vmatprep.subr.mxu0 0.0
        %2223 = vmatpush1.msra.mxu0 0.0
        %2224 = vmatprep.subr.mxu0 0.0
        %2225 = vmatpush1.msra.mxu0 0.0
        %2226 = vmatprep.subr.mxu0 0.0
        %2227 = vmatpush1.msra.mxu0 0.0
        %2228 = vmatprep.subr.mxu0 0.0
        %2229 = vmatpush1.msra.mxu0 0.0
        %2230 = vmatprep.subr.mxu0 0.0
        %2231 = vmatpush1.msra.mxu0 0.0
        %2232 = vmatprep.subr.mxu0 0.0
        %2233 = vmatpush1.msra.mxu0 0.0
        %2234 = vmatprep.subr.mxu0 0.0
        %2235 = vmatpush1.msra.mxu0 0.0
        %2236 = vmatprep.subr.mxu0 0.0
        %2237 = vmatpush1.msra.mxu0 0.0
        %2238 = vmatprep.subr.mxu0 0.0
        %2239 = vmatpush1.msra.mxu0 0.0
        %2240 = vmatprep.subr.mxu0 0.0
        %2241 = vmatpush1.msra.mxu0 0.0
        %2242 = vmatprep.subr.mxu0 0.0
        %2243 = vmatpush1.msra.mxu0 0.0
        %2244 = vmatprep.subr.mxu0 0.0
        %2245 = vmatpush1.msra.mxu0 0.0
        %2246 = vmatprep.subr.mxu0 0.0
        %2247 = vmatpush1.msra.mxu0 0.0
        %2248 = vmatprep.subr.mxu0 0.0
        %2249 = vmatpush1.msra.mxu0 0.0
        %2250 = vmatprep.subr.mxu0 0.0
        %2251 = vmatpush1.msra.mxu0 0.0
        %2252 = vmatprep.subr.mxu0 0.0
        %2253 = vmatpush1.msra.mxu0 0.0
        %2254 = vmatprep.subr.mxu0 0.0
        %2255 = vmatpush1.msra.mxu0 0.0
        %2256 = vmatprep.subr.mxu0 0.0
        %2257 = vmatpush1.msra.mxu0 0.0
        %2258 = vmatprep.subr.mxu0 0.0
        %2259 = vmatpush1.msra.mxu0 0.0
        %2260 = vmatprep.mubr.f32.mxu0 0.0
        %v2261 = vand.u32 %v1723, 4294901760
        %2262 = vmatmul.mubr.f32.gmra.mrb[0].mxu0 %v2261
        %v2263 = vpop.f32.mrb[0].mxu0
        %v2264 = vadd.f32 %v2184, %v2263
        %v2265 = vpop.f32.mrb[0].mxu0
        %v2266 = vadd.f32 %v2186, %v2265
        %2267 = vdwg.mxu0
        %v2268 = vand.u32 %v1708, 4294901760
        %2269 = vmatprep.subr.mxu0 %v2268
        %v2270 = vand.u32 %v1707, 4294901760
        %2271 = vmatpush1.msra.mxu0 %v2270
        %v2272 = vand.u32 %v1712, 4294901760
        %2273 = vmatprep.subr.mxu0 %v2272
        %v2274 = vand.u32 %v1711, 4294901760
        %2275 = vmatpush1.msra.mxu0 %v2274
        %v2276 = vand.u32 %v1716, 4294901760
        %2277 = vmatprep.subr.mxu0 %v2276
        %v2278 = vand.u32 %v1715, 4294901760
        %2279 = vmatpush1.msra.mxu0 %v2278
        %v2280 = vand.u32 %v1720, 4294901760
        %2281 = vmatprep.subr.mxu0 %v2280
        %v2282 = vand.u32 %v1719, 4294901760
        %2283 = vmatpush1.msra.mxu0 %v2282
        %2284 = vmatprep.subr.mxu0 0.0
        %2285 = vmatpush1.msra.mxu0 0.0
        %2286 = vmatprep.subr.mxu0 0.0
        %2287 = vmatpush1.msra.mxu0 0.0
        %2288 = vmatprep.subr.mxu0 0.0
        %2289 = vmatpush1.msra.mxu0 0.0
        %2290 = vmatprep.subr.mxu0 0.0
        %2291 = vmatpush1.msra.mxu0 0.0
        %2292 = vmatprep.subr.mxu0 0.0
        %2293 = vmatpush1.msra.mxu0 0.0
        %2294 = vmatprep.subr.mxu0 0.0
        %2295 = vmatpush1.msra.mxu0 0.0
        %2296 = vmatprep.subr.mxu0 0.0
        %2297 = vmatpush1.msra.mxu0 0.0
        %2298 = vmatprep.subr.mxu0 0.0
        %2299 = vmatpush1.msra.mxu0 0.0
        %2300 = vmatprep.subr.mxu0 0.0
        %2301 = vmatpush1.msra.mxu0 0.0
        %2302 = vmatprep.subr.mxu0 0.0
        %2303 = vmatpush1.msra.mxu0 0.0
        %2304 = vmatprep.subr.mxu0 0.0
        %2305 = vmatpush1.msra.mxu0 0.0
        %2306 = vmatprep.subr.mxu0 0.0
        %2307 = vmatpush1.msra.mxu0 0.0
        %2308 = vmatprep.subr.mxu0 0.0
        %2309 = vmatpush1.msra.mxu0 0.0
        %2310 = vmatprep.subr.mxu0 0.0
        %2311 = vmatpush1.msra.mxu0 0.0
        %2312 = vmatprep.subr.mxu0 0.0
        %2313 = vmatpush1.msra.mxu0 0.0
        %2314 = vmatprep.subr.mxu0 0.0
        %2315 = vmatpush1.msra.mxu0 0.0
        %2316 = vmatprep.subr.mxu0 0.0
        %2317 = vmatpush1.msra.mxu0 0.0
        %2318 = vmatprep.subr.mxu0 0.0
        %2319 = vmatpush1.msra.mxu0 0.0
        %2320 = vmatprep.subr.mxu0 0.0
        %2321 = vmatpush1.msra.mxu0 0.0
        %2322 = vmatprep.subr.mxu0 0.0
        %2323 = vmatpush1.msra.mxu0 0.0
        %2324 = vmatprep.subr.mxu0 0.0
        %2325 = vmatpush1.msra.mxu0 0.0
        %2326 = vmatprep.subr.mxu0 0.0
        %2327 = vmatpush1.msra.mxu0 0.0
        %2328 = vmatprep.subr.mxu0 0.0
        %2329 = vmatpush1.msra.mxu0 0.0
        %2330 = vmatprep.subr.mxu0 0.0
        %2331 = vmatpush1.msra.mxu0 0.0
        %2332 = vmatprep.subr.mxu0 0.0
        %2333 = vmatpush1.msra.mxu0 0.0
        %2334 = vmatprep.subr.mxu0 0.0
        %2335 = vmatpush1.msra.mxu0 0.0
        %2336 = vmatprep.subr.mxu0 0.0
        %2337 = vmatpush1.msra.mxu0 0.0
        %2338 = vmatprep.subr.mxu0 0.0
        %2339 = vmatpush1.msra.mxu0 0.0
        %2340 = vmatprep.mubr.f32.mxu0 0.0
        %v2341 = vand.u32 %v1723, 4294901760
        %v2342 = vsub.f32 %v1723, %v2341
        %v2343 = vand.u32 %v2342, 4294901760
        %v2344 = vsub.f32 %v2342, %v2343
        %v2345 = vand.u32 %v2344, 4294901760
        %2346 = vmatmul.mubr.f32.gmra.mrb[0].mxu0 %v2345
        %v2347 = vpop.f32.mrb[0].mxu0
        %v2348 = vadd.f32 0.0, %v2347
        %v2349 = vpop.f32.mrb[0].mxu0
        %v2350 = vadd.f32 0.0, %v2349
        %2351 = vdwg.mxu0
        %v2352 = vand.u32 %v1708, 4294901760
        %v2353 = vsub.f32 %v1708, %v2352
        %v2354 = vand.u32 %v2353, 4294901760
        %v2355 = vsub.f32 %v2353, %v2354
        %v2356 = vand.u32 %v2355, 4294901760
        %2357 = vmatprep.subr.mxu0 %v2356
        %v2358 = vand.u32 %v1707, 4294901760
        %v2359 = vsub.f32 %v1707, %v2358
        %v2360 = vand.u32 %v2359, 4294901760
        %v2361 = vsub.f32 %v2359, %v2360
        %v2362 = vand.u32 %v2361, 4294901760
        %2363 = vmatpush1.msra.mxu0 %v2362
        %v2364 = vand.u32 %v1712, 4294901760
        %v2365 = vsub.f32 %v1712, %v2364
        %v2366 = vand.u32 %v2365, 4294901760
        %v2367 = vsub.f32 %v2365, %v2366
        %v2368 = vand.u32 %v2367, 4294901760
        %2369 = vmatprep.subr.mxu0 %v2368
        %v2370 = vand.u32 %v1711, 4294901760
        %v2371 = vsub.f32 %v1711, %v2370
        %v2372 = vand.u32 %v2371, 4294901760
        %v2373 = vsub.f32 %v2371, %v2372
        %v2374 = vand.u32 %v2373, 4294901760
        %2375 = vmatpush1.msra.mxu0 %v2374
        %v2376 = vand.u32 %v1716, 4294901760
        %v2377 = vsub.f32 %v1716, %v2376
        %v2378 = vand.u32 %v2377, 4294901760
        %v2379 = vsub.f32 %v2377, %v2378
        %v2380 = vand.u32 %v2379, 4294901760
        %2381 = vmatprep.subr.mxu0 %v2380
        %v2382 = vand.u32 %v1715, 4294901760
        %v2383 = vsub.f32 %v1715, %v2382
        %v2384 = vand.u32 %v2383, 4294901760
        %v2385 = vsub.f32 %v2383, %v2384
        %v2386 = vand.u32 %v2385, 4294901760
        %2387 = vmatpush1.msra.mxu0 %v2386
        %v2388 = vand.u32 %v1720, 4294901760
        %v2389 = vsub.f32 %v1720, %v2388
        %v2390 = vand.u32 %v2389, 4294901760
        %v2391 = vsub.f32 %v2389, %v2390
        %v2392 = vand.u32 %v2391, 4294901760
        %2393 = vmatprep.subr.mxu0 %v2392
        %v2394 = vand.u32 %v1719, 4294901760
        %v2395 = vsub.f32 %v1719, %v2394
        %v2396 = vand.u32 %v2395, 4294901760
        %v2397 = vsub.f32 %v2395, %v2396
        %v2398 = vand.u32 %v2397, 4294901760
        %2399 = vmatpush1.msra.mxu0 %v2398
        %2400 = vmatprep.subr.mxu0 0.0
        %2401 = vmatpush1.msra.mxu0 0.0
        %2402 = vmatprep.subr.mxu0 0.0
        %2403 = vmatpush1.msra.mxu0 0.0
        %2404 = vmatprep.subr.mxu0 0.0
        %2405 = vmatpush1.msra.mxu0 0.0
        %2406 = vmatprep.subr.mxu0 0.0
        %2407 = vmatpush1.msra.mxu0 0.0
        %2408 = vmatprep.subr.mxu0 0.0
        %2409 = vmatpush1.msra.mxu0 0.0
        %2410 = vmatprep.subr.mxu0 0.0
        %2411 = vmatpush1.msra.mxu0 0.0
        %2412 = vmatprep.subr.mxu0 0.0
        %2413 = vmatpush1.msra.mxu0 0.0
        %2414 = vmatprep.subr.mxu0 0.0
        %2415 = vmatpush1.msra.mxu0 0.0
        %2416 = vmatprep.subr.mxu0 0.0
        %2417 = vmatpush1.msra.mxu0 0.0
        %2418 = vmatprep.subr.mxu0 0.0
        %2419 = vmatpush1.msra.mxu0 0.0
        %2420 = vmatprep.subr.mxu0 0.0
        %2421 = vmatpush1.msra.mxu0 0.0
        %2422 = vmatprep.subr.mxu0 0.0
        %2423 = vmatpush1.msra.mxu0 0.0
        %2424 = vmatprep.subr.mxu0 0.0
        %2425 = vmatpush1.msra.mxu0 0.0
        %2426 = vmatprep.subr.mxu0 0.0
        %2427 = vmatpush1.msra.mxu0 0.0
        %2428 = vmatprep.subr.mxu0 0.0
        %2429 = vmatpush1.msra.mxu0 0.0
        %2430 = vmatprep.subr.mxu0 0.0
        %2431 = vmatpush1.msra.mxu0 0.0
        %2432 = vmatprep.subr.mxu0 0.0
        %2433 = vmatpush1.msra.mxu0 0.0
        %2434 = vmatprep.subr.mxu0 0.0
        %2435 = vmatpush1.msra.mxu0 0.0
        %2436 = vmatprep.subr.mxu0 0.0
        %2437 = vmatpush1.msra.mxu0 0.0
        %2438 = vmatprep.subr.mxu0 0.0
        %2439 = vmatpush1.msra.mxu0 0.0
        %2440 = vmatprep.subr.mxu0 0.0
        %2441 = vmatpush1.msra.mxu0 0.0
        %2442 = vmatprep.subr.mxu0 0.0
        %2443 = vmatpush1.msra.mxu0 0.0
        %2444 = vmatprep.subr.mxu0 0.0
        %2445 = vmatpush1.msra.mxu0 0.0
        %2446 = vmatprep.subr.mxu0 0.0
        %2447 = vmatpush1.msra.mxu0 0.0
        %2448 = vmatprep.subr.mxu0 0.0
        %2449 = vmatpush1.msra.mxu0 0.0
        %2450 = vmatprep.subr.mxu0 0.0
        %2451 = vmatpush1.msra.mxu0 0.0
        %2452 = vmatprep.subr.mxu0 0.0
        %2453 = vmatpush1.msra.mxu0 0.0
        %2454 = vmatprep.subr.mxu0 0.0
        %2455 = vmatpush1.msra.mxu0 0.0
        %2456 = vmatprep.mubr.f32.mxu0 0.0
        %v2457 = vand.u32 %v1723, 4294901760
        %2458 = vmatmul.mubr.f32.gmra.mrb[0].mxu0 %v2457
        %v2459 = vpop.f32.mrb[0].mxu0
        %v2460 = vadd.f32 %v2348, %v2459
        %v2461 = vpop.f32.mrb[0].mxu0
        %v2462 = vadd.f32 %v2350, %v2461
        %2463 = vdwg.mxu0
        %v2464 = vand.u32 %v1708, 4294901760
        %v2465 = vsub.f32 %v1708, %v2464
        %2466 = vmatprep.subr.mxu0 %v2465
        %v2467 = vand.u32 %v1707, 4294901760
        %v2468 = vsub.f32 %v1707, %v2467
        %2469 = vmatpush1.msra.mxu0 %v2468
        %v2470 = vand.u32 %v1712, 4294901760
        %v2471 = vsub.f32 %v1712, %v2470
        %2472 = vmatprep.subr.mxu0 %v2471
        %v2473 = vand.u32 %v1711, 4294901760
        %v2474 = vsub.f32 %v1711, %v2473
        %2475 = vmatpush1.msra.mxu0 %v2474
        %v2476 = vand.u32 %v1716, 4294901760
        %v2477 = vsub.f32 %v1716, %v2476
        %2478 = vmatprep.subr.mxu0 %v2477
        %v2479 = vand.u32 %v1715, 4294901760
        %v2480 = vsub.f32 %v1715, %v2479
        %2481 = vmatpush1.msra.mxu0 %v2480
        %v2482 = vand.u32 %v1720, 4294901760
        %v2483 = vsub.f32 %v1720, %v2482
        %2484 = vmatprep.subr.mxu0 %v2483
        %v2485 = vand.u32 %v1719, 4294901760
        %v2486 = vsub.f32 %v1719, %v2485
        %2487 = vmatpush1.msra.mxu0 %v2486
        %2488 = vmatprep.subr.mxu0 0.0
        %2489 = vmatpush1.msra.mxu0 0.0
        %2490 = vmatprep.subr.mxu0 0.0
        %2491 = vmatpush1.msra.mxu0 0.0
        %2492 = vmatprep.subr.mxu0 0.0
        %2493 = vmatpush1.msra.mxu0 0.0
        %2494 = vmatprep.subr.mxu0 0.0
        %2495 = vmatpush1.msra.mxu0 0.0
        %2496 = vmatprep.subr.mxu0 0.0
        %2497 = vmatpush1.msra.mxu0 0.0
        %2498 = vmatprep.subr.mxu0 0.0
        %2499 = vmatpush1.msra.mxu0 0.0
        %2500 = vmatprep.subr.mxu0 0.0
        %2501 = vmatpush1.msra.mxu0 0.0
        %2502 = vmatprep.subr.mxu0 0.0
        %2503 = vmatpush1.msra.mxu0 0.0
        %2504 = vmatprep.subr.mxu0 0.0
        %2505 = vmatpush1.msra.mxu0 0.0
        %2506 = vmatprep.subr.mxu0 0.0
        %2507 = vmatpush1.msra.mxu0 0.0
        %2508 = vmatprep.subr.mxu0 0.0
        %2509 = vmatpush1.msra.mxu0 0.0
        %2510 = vmatprep.subr.mxu0 0.0
        %2511 = vmatpush1.msra.mxu0 0.0
        %2512 = vmatprep.subr.mxu0 0.0
        %2513 = vmatpush1.msra.mxu0 0.0
        %2514 = vmatprep.subr.mxu0 0.0
        %2515 = vmatpush1.msra.mxu0 0.0
        %2516 = vmatprep.subr.mxu0 0.0
        %2517 = vmatpush1.msra.mxu0 0.0
        %2518 = vmatprep.subr.mxu0 0.0
        %2519 = vmatpush1.msra.mxu0 0.0
        %2520 = vmatprep.subr.mxu0 0.0
        %2521 = vmatpush1.msra.mxu0 0.0
        %2522 = vmatprep.subr.mxu0 0.0
        %2523 = vmatpush1.msra.mxu0 0.0
        %2524 = vmatprep.subr.mxu0 0.0
        %2525 = vmatpush1.msra.mxu0 0.0
        %2526 = vmatprep.subr.mxu0 0.0
        %2527 = vmatpush1.msra.mxu0 0.0
        %2528 = vmatprep.subr.mxu0 0.0
        %2529 = vmatpush1.msra.mxu0 0.0
        %2530 = vmatprep.subr.mxu0 0.0
        %2531 = vmatpush1.msra.mxu0 0.0
        %2532 = vmatprep.subr.mxu0 0.0
        %2533 = vmatpush1.msra.mxu0 0.0
        %2534 = vmatprep.subr.mxu0 0.0
        %2535 = vmatpush1.msra.mxu0 0.0
        %2536 = vmatprep.subr.mxu0 0.0
        %2537 = vmatpush1.msra.mxu0 0.0
        %2538 = vmatprep.subr.mxu0 0.0
        %2539 = vmatpush1.msra.mxu0 0.0
        %2540 = vmatprep.subr.mxu0 0.0
        %2541 = vmatpush1.msra.mxu0 0.0
        %2542 = vmatprep.subr.mxu0 0.0
        %2543 = vmatpush1.msra.mxu0 0.0
        %2544 = vmatprep.mubr.f32.mxu0 0.0
        %v2545 = vand.u32 %v1723, 4294901760
        %v2546 = vsub.f32 %v1723, %v2545
        %2547 = vmatmul.mubr.f32.gmra.mrb[0].mxu0 %v2546
        %v2548 = vpop.f32.mrb[0].mxu0
        %v2549 = vadd.f32 %v2460, %v2548
        %v2550 = vpop.f32.mrb[0].mxu0
        %v2551 = vadd.f32 %v2462, %v2550
        %2552 = vdwg.mxu0
        %v2553 = vand.u32 %v1708, 4294901760
        %2554 = vmatprep.subr.mxu0 %v2553
        %v2555 = vand.u32 %v1707, 4294901760
        %2556 = vmatpush1.msra.mxu0 %v2555
        %v2557 = vand.u32 %v1712, 4294901760
        %2558 = vmatprep.subr.mxu0 %v2557
        %v2559 = vand.u32 %v1711, 4294901760
        %2560 = vmatpush1.msra.mxu0 %v2559
        %v2561 = vand.u32 %v1716, 4294901760
        %2562 = vmatprep.subr.mxu0 %v2561
        %v2563 = vand.u32 %v1715, 4294901760
        %2564 = vmatpush1.msra.mxu0 %v2563
        %v2565 = vand.u32 %v1720, 4294901760
        %2566 = vmatprep.subr.mxu0 %v2565
        %v2567 = vand.u32 %v1719, 4294901760
        %2568 = vmatpush1.msra.mxu0 %v2567
        %2569 = vmatprep.subr.mxu0 0.0
        %2570 = vmatpush1.msra.mxu0 0.0
        %2571 = vmatprep.subr.mxu0 0.0
        %2572 = vmatpush1.msra.mxu0 0.0
        %2573 = vmatprep.subr.mxu0 0.0
        %2574 = vmatpush1.msra.mxu0 0.0
        %2575 = vmatprep.subr.mxu0 0.0
        %2576 = vmatpush1.msra.mxu0 0.0
        %2577 = vmatprep.subr.mxu0 0.0
        %2578 = vmatpush1.msra.mxu0 0.0
        %2579 = vmatprep.subr.mxu0 0.0
        %2580 = vmatpush1.msra.mxu0 0.0
        %2581 = vmatprep.subr.mxu0 0.0
        %2582 = vmatpush1.msra.mxu0 0.0
        %2583 = vmatprep.subr.mxu0 0.0
        %2584 = vmatpush1.msra.mxu0 0.0
        %2585 = vmatprep.subr.mxu0 0.0
        %2586 = vmatpush1.msra.mxu0 0.0
        %2587 = vmatprep.subr.mxu0 0.0
        %2588 = vmatpush1.msra.mxu0 0.0
        %2589 = vmatprep.subr.mxu0 0.0
        %2590 = vmatpush1.msra.mxu0 0.0
        %2591 = vmatprep.subr.mxu0 0.0
        %2592 = vmatpush1.msra.mxu0 0.0
        %2593 = vmatprep.subr.mxu0 0.0
        %2594 = vmatpush1.msra.mxu0 0.0
        %2595 = vmatprep.subr.mxu0 0.0
        %2596 = vmatpush1.msra.mxu0 0.0
        %2597 = vmatprep.subr.mxu0 0.0
        %2598 = vmatpush1.msra.mxu0 0.0
        %2599 = vmatprep.subr.mxu0 0.0
        %2600 = vmatpush1.msra.mxu0 0.0
        %2601 = vmatprep.subr.mxu0 0.0
        %2602 = vmatpush1.msra.mxu0 0.0
        %2603 = vmatprep.subr.mxu0 0.0
        %2604 = vmatpush1.msra.mxu0 0.0
        %2605 = vmatprep.subr.mxu0 0.0
        %2606 = vmatpush1.msra.mxu0 0.0
        %2607 = vmatprep.subr.mxu0 0.0
        %2608 = vmatpush1.msra.mxu0 0.0
        %2609 = vmatprep.subr.mxu0 0.0
        %2610 = vmatpush1.msra.mxu0 0.0
        %2611 = vmatprep.subr.mxu0 0.0
        %2612 = vmatpush1.msra.mxu0 0.0
        %2613 = vmatprep.subr.mxu0 0.0
        %2614 = vmatpush1.msra.mxu0 0.0
        %2615 = vmatprep.subr.mxu0 0.0
        %2616 = vmatpush1.msra.mxu0 0.0
        %2617 = vmatprep.subr.mxu0 0.0
        %2618 = vmatpush1.msra.mxu0 0.0
        %2619 = vmatprep.subr.mxu0 0.0
        %2620 = vmatpush1.msra.mxu0 0.0
        %2621 = vmatprep.subr.mxu0 0.0
        %2622 = vmatpush1.msra.mxu0 0.0
        %2623 = vmatprep.subr.mxu0 0.0
        %2624 = vmatpush1.msra.mxu0 0.0
        %2625 = vmatprep.mubr.f32.mxu0 0.0
        %v2626 = vand.u32 %v1723, 4294901760
        %v2627 = vsub.f32 %v1723, %v2626
        %v2628 = vand.u32 %v2627, 4294901760
        %2629 = vmatmul.mubr.f32.gmra.mrb[0].mxu0 %v2628
        %v2630 = vpop.f32.mrb[0].mxu0
        %v2631 = vadd.f32 %v2549, %v2630
        %v2632 = vpop.f32.mrb[0].mxu0
        %v2633 = vadd.f32 %v2551, %v2632
        %2634 = vdwg.mxu0
        %v2635 = vand.u32 %v1708, 4294901760
        %v2636 = vsub.f32 %v1708, %v2635
        %v2637 = vand.u32 %v2636, 4294901760
        %2638 = vmatprep.subr.mxu0 %v2637
        %v2639 = vand.u32 %v1707, 4294901760
        %v2640 = vsub.f32 %v1707, %v2639
        %v2641 = vand.u32 %v2640, 4294901760
        %2642 = vmatpush1.msra.mxu0 %v2641
        %v2643 = vand.u32 %v1712, 4294901760
        %v2644 = vsub.f32 %v1712, %v2643
        %v2645 = vand.u32 %v2644, 4294901760
        %2646 = vmatprep.subr.mxu0 %v2645
        %v2647 = vand.u32 %v1711, 4294901760
        %v2648 = vsub.f32 %v1711, %v2647
        %v2649 = vand.u32 %v2648, 4294901760
        %2650 = vmatpush1.msra.mxu0 %v2649
        %v2651 = vand.u32 %v1716, 4294901760
        %v2652 = vsub.f32 %v1716, %v2651
        %v2653 = vand.u32 %v2652, 4294901760
        %2654 = vmatprep.subr.mxu0 %v2653
        %v2655 = vand.u32 %v1715, 4294901760
        %v2656 = vsub.f32 %v1715, %v2655
        %v2657 = vand.u32 %v2656, 4294901760
        %2658 = vmatpush1.msra.mxu0 %v2657
        %v2659 = vand.u32 %v1720, 4294901760
        %v2660 = vsub.f32 %v1720, %v2659
        %v2661 = vand.u32 %v2660, 4294901760
        %2662 = vmatprep.subr.mxu0 %v2661
        %v2663 = vand.u32 %v1719, 4294901760
        %v2664 = vsub.f32 %v1719, %v2663
        %v2665 = vand.u32 %v2664, 4294901760
        %2666 = vmatpush1.msra.mxu0 %v2665
        %2667 = vmatprep.subr.mxu0 0.0
        %2668 = vmatpush1.msra.mxu0 0.0
        %2669 = vmatprep.subr.mxu0 0.0
        %2670 = vmatpush1.msra.mxu0 0.0
        %2671 = vmatprep.subr.mxu0 0.0
        %2672 = vmatpush1.msra.mxu0 0.0
        %2673 = vmatprep.subr.mxu0 0.0
        %2674 = vmatpush1.msra.mxu0 0.0
        %2675 = vmatprep.subr.mxu0 0.0
        %2676 = vmatpush1.msra.mxu0 0.0
        %2677 = vmatprep.subr.mxu0 0.0
        %2678 = vmatpush1.msra.mxu0 0.0
        %2679 = vmatprep.subr.mxu0 0.0
        %2680 = vmatpush1.msra.mxu0 0.0
        %2681 = vmatprep.subr.mxu0 0.0
        %2682 = vmatpush1.msra.mxu0 0.0
        %2683 = vmatprep.subr.mxu0 0.0
        %2684 = vmatpush1.msra.mxu0 0.0
        %2685 = vmatprep.subr.mxu0 0.0
        %2686 = vmatpush1.msra.mxu0 0.0
        %2687 = vmatprep.subr.mxu0 0.0
        %2688 = vmatpush1.msra.mxu0 0.0
        %2689 = vmatprep.subr.mxu0 0.0
        %2690 = vmatpush1.msra.mxu0 0.0
        %2691 = vmatprep.subr.mxu0 0.0
        %2692 = vmatpush1.msra.mxu0 0.0
        %2693 = vmatprep.subr.mxu0 0.0
        %2694 = vmatpush1.msra.mxu0 0.0
        %2695 = vmatprep.subr.mxu0 0.0
        %2696 = vmatpush1.msra.mxu0 0.0
        %2697 = vmatprep.subr.mxu0 0.0
        %2698 = vmatpush1.msra.mxu0 0.0
        %2699 = vmatprep.subr.mxu0 0.0
        %2700 = vmatpush1.msra.mxu0 0.0
        %2701 = vmatprep.subr.mxu0 0.0
        %2702 = vmatpush1.msra.mxu0 0.0
        %2703 = vmatprep.subr.mxu0 0.0
        %2704 = vmatpush1.msra.mxu0 0.0
        %2705 = vmatprep.subr.mxu0 0.0
        %2706 = vmatpush1.msra.mxu0 0.0
        %2707 = vmatprep.subr.mxu0 0.0
        %2708 = vmatpush1.msra.mxu0 0.0
        %2709 = vmatprep.subr.mxu0 0.0
        %2710 = vmatpush1.msra.mxu0 0.0
        %2711 = vmatprep.subr.mxu0 0.0
        %2712 = vmatpush1.msra.mxu0 0.0
        %2713 = vmatprep.subr.mxu0 0.0
        %2714 = vmatpush1.msra.mxu0 0.0
        %2715 = vmatprep.subr.mxu0 0.0
        %2716 = vmatpush1.msra.mxu0 0.0
        %2717 = vmatprep.subr.mxu0 0.0
        %2718 = vmatpush1.msra.mxu0 0.0
        %2719 = vmatprep.subr.mxu0 0.0
        %2720 = vmatpush1.msra.mxu0 0.0
        %2721 = vmatprep.subr.mxu0 0.0
        %2722 = vmatpush1.msra.mxu0 0.0
        %2723 = vmatprep.mubr.f32.mxu0 0.0
        %v2724 = vand.u32 %v1723, 4294901760
        %2725 = vmatmul.mubr.f32.gmra.mrb[0].mxu0 %v2724
        %v2726 = vpop.f32.mrb[0].mxu0
        %v2727 = vadd.f32 %v2631, %v2726
        %v2728 = vpop.f32.mrb[0].mxu0
        %v2729 = vadd.f32 %v2633, %v2728
        %2730 = vdwg.mxu0
        %v2731 = vand.u32 %v1708, 4294901760
        %2732 = vmatprep.subr.mxu0 %v2731
        %v2733 = vand.u32 %v1707, 4294901760
        %2734 = vmatpush1.msra.mxu0 %v2733
        %v2735 = vand.u32 %v1712, 4294901760
        %2736 = vmatprep.subr.mxu0 %v2735
        %v2737 = vand.u32 %v1711, 4294901760
        %2738 = vmatpush1.msra.mxu0 %v2737
        %v2739 = vand.u32 %v1716, 4294901760
        %2740 = vmatprep.subr.mxu0 %v2739
        %v2741 = vand.u32 %v1715, 4294901760
        %2742 = vmatpush1.msra.mxu0 %v2741
        %v2743 = vand.u32 %v1720, 4294901760
        %2744 = vmatprep.subr.mxu0 %v2743
        %v2745 = vand.u32 %v1719, 4294901760
        %2746 = vmatpush1.msra.mxu0 %v2745
        %2747 = vmatprep.subr.mxu0 0.0
        %2748 = vmatpush1.msra.mxu0 0.0
        %2749 = vmatprep.subr.mxu0 0.0
        %2750 = vmatpush1.msra.mxu0 0.0
        %2751 = vmatprep.subr.mxu0 0.0
        %2752 = vmatpush1.msra.mxu0 0.0
        %2753 = vmatprep.subr.mxu0 0.0
        %2754 = vmatpush1.msra.mxu0 0.0
        %2755 = vmatprep.subr.mxu0 0.0
        %2756 = vmatpush1.msra.mxu0 0.0
        %2757 = vmatprep.subr.mxu0 0.0
        %2758 = vmatpush1.msra.mxu0 0.0
        %2759 = vmatprep.subr.mxu0 0.0
        %2760 = vmatpush1.msra.mxu0 0.0
        %2761 = vmatprep.subr.mxu0 0.0
        %2762 = vmatpush1.msra.mxu0 0.0
        %2763 = vmatprep.subr.mxu0 0.0
        %2764 = vmatpush1.msra.mxu0 0.0
        %2765 = vmatprep.subr.mxu0 0.0
        %2766 = vmatpush1.msra.mxu0 0.0
        %2767 = vmatprep.subr.mxu0 0.0
        %2768 = vmatpush1.msra.mxu0 0.0
        %2769 = vmatprep.subr.mxu0 0.0
        %2770 = vmatpush1.msra.mxu0 0.0
        %2771 = vmatprep.subr.mxu0 0.0
        %2772 = vmatpush1.msra.mxu0 0.0
        %2773 = vmatprep.subr.mxu0 0.0
        %2774 = vmatpush1.msra.mxu0 0.0
        %2775 = vmatprep.subr.mxu0 0.0
        %2776 = vmatpush1.msra.mxu0 0.0
        %2777 = vmatprep.subr.mxu0 0.0
        %2778 = vmatpush1.msra.mxu0 0.0
        %2779 = vmatprep.subr.mxu0 0.0
        %2780 = vmatpush1.msra.mxu0 0.0
        %2781 = vmatprep.subr.mxu0 0.0
        %2782 = vmatpush1.msra.mxu0 0.0
        %2783 = vmatprep.subr.mxu0 0.0
        %2784 = vmatpush1.msra.mxu0 0.0
        %2785 = vmatprep.subr.mxu0 0.0
        %2786 = vmatpush1.msra.mxu0 0.0
        %2787 = vmatprep.subr.mxu0 0.0
        %2788 = vmatpush1.msra.mxu0 0.0
        %2789 = vmatprep.subr.mxu0 0.0
        %2790 = vmatpush1.msra.mxu0 0.0
        %2791 = vmatprep.subr.mxu0 0.0
        %2792 = vmatpush1.msra.mxu0 0.0
        %2793 = vmatprep.subr.mxu0 0.0
        %2794 = vmatpush1.msra.mxu0 0.0
        %2795 = vmatprep.subr.mxu0 0.0
        %2796 = vmatpush1.msra.mxu0 0.0
        %2797 = vmatprep.subr.mxu0 0.0
        %2798 = vmatpush1.msra.mxu0 0.0
        %2799 = vmatprep.subr.mxu0 0.0
        %2800 = vmatpush1.msra.mxu0 0.0
        %2801 = vmatprep.subr.mxu0 0.0
        %2802 = vmatpush1.msra.mxu0 0.0
        %2803 = vmatprep.mubr.f32.mxu0 0.0
        %v2804 = vand.u32 %v1723, 4294901760
        %2805 = vmatmul.mubr.f32.gmra.mrb[0].mxu0 %v2804
        %v2806 = vpop.f32.mrb[0].mxu0
        %v2807 = vadd.f32 %v2727, %v2806
        %v2808 = vpop.f32.mrb[0].mxu0
        %v2809 = vadd.f32 %v2729, %v2808
        %2810 = vdwg.mxu0
        %v2811 = vmul.f32 %v346, %v2264
        %v2812 = vmul.f32 %v347, %v2266
        %v2813 = vmul.f32 %v2811, %v2807
        %v2814 = vmul.f32 %v2812, %v2809
        %v2815 = vadd.f32 %v2813, %v2814
        %2816 = vadd.xlane.f32.xlu0 %v2815
        %v2817 = vpop.xlane.xlu0 %2816
        %v2818 = vrcp.pop 256.0
        %v2819 = vmul.f32 %v2817, %v2818
        %v2820 = vsub.f32 %v2813, %v2819
        %v2821 = vsub.f32 %v2814, %v2819
        %v2822 = vmul.f32 %v2820, %v2820
        %v2823 = vmul.f32 %v2821, %v2821
        %v2824 = vadd.f32 %v2822, %v2823
        %2825 = vadd.xlane.f32.xlu0 %v2824
        %v2826 = vpop.xlane.xlu0 %2825
        %v2827 = vmul.f32 %v2826, %v2818
        %v2828 = vadd.f32 %v2827, 1e-05
        %v2829 = vrsqrt.pop %v2828
        %v2830 = vmul.f32 %v2820, %v2829
        %v2831 = vmul.f32 %v2821, %v2829
        %2832 = vset.pattern.permute.xlu0 2
        %2833 = vperm.xlu0 %2832, %v348
        %v2834 = vpop.permute.xlu0 %2833
        %v2836 = vmul.f32 %v2830, %v2834
        %v2837 = vmul.f32 %v2831, %v2834
        %2838 = vset.pattern.permute.xlu0 3
        %2839 = vperm.xlu0 %2838, %v348
        %v2840 = vpop.permute.xlu0 %2839
        %v2842 = vadd.f32 %v2836, %v2840
        %v2843 = vadd.f32 %v2837, %v2840
        %2844 = vrot.lane.b32.xlu0 %v346, 17
        %v2845 = vpop.permute.xlu0 %2844
        %2846 = vrot.lane.b32.xlu0 %v347, 17
        %v2847 = vpop.permute.xlu0 %2846
        %v2848 = vlaneseq
        %v2849 = vand.u32 %v2848, 127
        %vm2850 = vcmp.lt.s32.totalorder %v2849, 17
        %v2851 = vsel %vm2850, %v2845, %v2847
        %v2852 = vsel %vm2850, %v2847, %v2845
        %v2853 = vld [vmem:[%s8] sm:$0x3]
        %v2855 = vlaneseq
        %v2856 = vshrl.u32 %v2855, 7
        %v2857 = vsub.s32 0, %v2856
        %v2858 = vrot.slane %v2853, %v2857
        %v2859 = vlaneseq
        %v2860 = vshrl.u32 %v2859, 7
        %v2861 = vsub.s32 1, %v2860
        %v2862 = vrot.slane %v2853, %v2861
        %v2865 = vmul.f32 %v2852, %v2858
        %v2866 = vmul.f32 %v2851, %v2862
        %2867 = vrot.lane.b32.xlu0 %v346, 16
        %v2868 = vpop.permute.xlu0 %2867
        %2869 = vrot.lane.b32.xlu0 %v347, 16
        %v2870 = vpop.permute.xlu0 %2869
        %vm2871 = vcmp.lt.s32.totalorder %v2849, 16
        %v2872 = vsel %vm2871, %v2868, %v2870
        %v2873 = vsel %vm2871, %v2870, %v2868
        %s2874 = scalar_lea.vmem %s8, 2
        %v2875 = vld [vmem:[%s2874] sm:$0x3]
        %v2877 = vlaneseq
        %v2878 = vshrl.u32 %v2877, 7
        %v2879 = vsub.s32 0, %v2878
        %v2880 = vrot.slane %v2875, %v2879
        %v2881 = vlaneseq
        %v2882 = vshrl.u32 %v2881, 7
        %v2883 = vsub.s32 1, %v2882
        %v2884 = vrot.slane %v2875, %v2883
        %v2887 = vmul.f32 %v2873, %v2880
        %v2888 = vmul.f32 %v2872, %v2884
        %2889 = vrot.lane.b32.xlu0 %v346, 15
        %v2890 = vpop.permute.xlu0 %2889
        %2891 = vrot.lane.b32.xlu0 %v347, 15
        %v2892 = vpop.permute.xlu0 %2891
        %vm2893 = vcmp.lt.s32.totalorder %v2849, 15
        %v2894 = vsel %vm2893, %v2890, %v2892
        %v2895 = vsel %vm2893, %v2892, %v2890
        %s2896 = scalar_lea.vmem %s8, 4
        %v2897 = vld [vmem:[%s2896] sm:$0x3]
        %v2899 = vlaneseq
        %v2900 = vshrl.u32 %v2899, 7
        %v2901 = vsub.s32 0, %v2900
        %v2902 = vrot.slane %v2897, %v2901
        %v2903 = vlaneseq
        %v2904 = vshrl.u32 %v2903, 7
        %v2905 = vsub.s32 1, %v2904
        %v2906 = vrot.slane %v2897, %v2905
        %v2909 = vmul.f32 %v2895, %v2902
        %v2910 = vmul.f32 %v2894, %v2906
        %2911 = vrot.lane.b32.xlu0 %v346, 1
        %v2912 = vpop.permute.xlu0 %2911
        %2913 = vrot.lane.b32.xlu0 %v347, 1
        %v2914 = vpop.permute.xlu0 %2913
        %vm2915 = vcmp.lt.s32.totalorder %v2849, 1
        %v2916 = vsel %vm2915, %v2912, %v2914
        %v2917 = vsel %vm2915, %v2914, %v2912
        %s2918 = scalar_lea.vmem %s8, 6
        %v2919 = vld [vmem:[%s2918] sm:$0x3]
        %v2921 = vlaneseq
        %v2922 = vshrl.u32 %v2921, 7
        %v2923 = vsub.s32 0, %v2922
        %v2924 = vrot.slane %v2919, %v2923
        %v2925 = vlaneseq
        %v2926 = vshrl.u32 %v2925, 7
        %v2927 = vsub.s32 1, %v2926
        %v2928 = vrot.slane %v2919, %v2927
        %v2931 = vmul.f32 %v2917, %v2924
        %v2932 = vmul.f32 %v2916, %v2928
        %2933 = vrot.lane.b32.xlu0 %v346, 127
        %v2934 = vpop.permute.xlu0 %2933
        %2935 = vrot.lane.b32.xlu0 %v347, 127
        %v2936 = vpop.permute.xlu0 %2935
        %vm2937 = vcmp.lt.s32.totalorder %v2849, 127
        %v2938 = vsel %vm2937, %v2934, %v2936
        %v2939 = vsel %vm2937, %v2936, %v2934
        %s2940 = scalar_lea.vmem %s8, 10
        %v2941 = vld [vmem:[%s2940] sm:$0x3]
        %v2943 = vlaneseq
        %v2944 = vshrl.u32 %v2943, 7
        %v2945 = vsub.s32 0, %v2944
        %v2946 = vrot.slane %v2941, %v2945
        %v2947 = vlaneseq
        %v2948 = vshrl.u32 %v2947, 7
        %v2949 = vsub.s32 1, %v2948
        %v2950 = vrot.slane %v2941, %v2949
        %v2953 = vmul.f32 %v2938, %v2946
        %v2954 = vmul.f32 %v2939, %v2950
        %2955 = vrot.lane.b32.xlu0 %v346, 113
        %v2956 = vpop.permute.xlu0 %2955
        %2957 = vrot.lane.b32.xlu0 %v347, 113
        %v2958 = vpop.permute.xlu0 %2957
        %vm2959 = vcmp.lt.s32.totalorder %v2849, 113
        %v2960 = vsel %vm2959, %v2956, %v2958
        %v2961 = vsel %vm2959, %v2958, %v2956
        %s2962 = scalar_lea.vmem %s8, 12
        %v2963 = vld [vmem:[%s2962] sm:$0x3]
        %v2965 = vlaneseq
        %v2966 = vshrl.u32 %v2965, 7
        %v2967 = vsub.s32 0, %v2966
        %v2968 = vrot.slane %v2963, %v2967
        %v2969 = vlaneseq
        %v2970 = vshrl.u32 %v2969, 7
        %v2971 = vsub.s32 1, %v2970
        %v2972 = vrot.slane %v2963, %v2971
        %v2975 = vmul.f32 %v2960, %v2968
        %v2976 = vmul.f32 %v2961, %v2972
        %2977 = vrot.lane.b32.xlu0 %v346, 112
        %v2978 = vpop.permute.xlu0 %2977
        %2979 = vrot.lane.b32.xlu0 %v347, 112
        %v2980 = vpop.permute.xlu0 %2979
        %vm2981 = vcmp.lt.s32.totalorder %v2849, 112
        %v2982 = vsel %vm2981, %v2978, %v2980
        %v2983 = vsel %vm2981, %v2980, %v2978
        %s2984 = scalar_lea.vmem %s8, 14
        %v2985 = vld [vmem:[%s2984] sm:$0x3]
        %v2987 = vlaneseq
        %v2988 = vshrl.u32 %v2987, 7
        %v2989 = vsub.s32 0, %v2988
        %v2990 = vrot.slane %v2985, %v2989
        %v2991 = vlaneseq
        %v2992 = vshrl.u32 %v2991, 7
        %v2993 = vsub.s32 1, %v2992
        %v2994 = vrot.slane %v2985, %v2993
        %v2997 = vmul.f32 %v2982, %v2990
        %v2998 = vmul.f32 %v2983, %v2994
        %2999 = vrot.lane.b32.xlu0 %v346, 111
        %v3000 = vpop.permute.xlu0 %2999
        %3001 = vrot.lane.b32.xlu0 %v347, 111
        %v3002 = vpop.permute.xlu0 %3001
        %vm3003 = vcmp.lt.s32.totalorder %v2849, 111
        %v3004 = vsel %vm3003, %v3000, %v3002
        %v3005 = vsel %vm3003, %v3002, %v3000
        %s3006 = scalar_lea.vmem %s8, 16
        %v3007 = vld [vmem:[%s3006] sm:$0x3]
        %v3009 = vlaneseq
        %v3010 = vshrl.u32 %v3009, 7
        %v3011 = vsub.s32 0, %v3010
        %v3012 = vrot.slane %v3007, %v3011
        %v3013 = vlaneseq
        %v3014 = vshrl.u32 %v3013, 7
        %v3015 = vsub.s32 1, %v3014
        %v3016 = vrot.slane %v3007, %v3015
        %v3019 = vmul.f32 %v3004, %v3012
        %v3020 = vmul.f32 %v3005, %v3016
        %v3021 = vld [vmem:[%s3] sm:$0xff]
        %3022 = vset.pattern.permute.xlu0 1
        %3023 = vperm.xlu0 %3022, %v348
        %v3024 = vpop.permute.xlu0 %3023
        %vm3026 = vcmask 588800
        %v3028 = vsel %vm3026, %v3021, 0
        %v3030 = vand.u32 %v2866, 4294901760
        %3031 = vmatprep.subr.mxu0 %v3030
        %v3032 = vand.u32 %v2865, 4294901760
        %3033 = vmatpush1.msra.mxu0 %v3032
        %v3034 = vand.u32 %v2888, 4294901760
        %3035 = vmatprep.subr.mxu0 %v3034
        %v3036 = vand.u32 %v2887, 4294901760
        %3037 = vmatpush1.msra.mxu0 %v3036
        %v3038 = vand.u32 %v2910, 4294901760
        %3039 = vmatprep.subr.mxu0 %v3038
        %v3040 = vand.u32 %v2909, 4294901760
        %3041 = vmatpush1.msra.mxu0 %v3040
        %v3042 = vand.u32 %v2932, 4294901760
        %3043 = vmatprep.subr.mxu0 %v3042
        %v3044 = vand.u32 %v2931, 4294901760
        %3045 = vmatpush1.msra.mxu0 %v3044
        %v3046 = vand.u32 %v347, 4294901760
        %3047 = vmatprep.subr.mxu0 %v3046
        %v3048 = vand.u32 %v346, 4294901760
        %3049 = vmatpush1.msra.mxu0 %v3048
        %v3050 = vand.u32 %v2954, 4294901760
        %3051 = vmatprep.subr.mxu0 %v3050
        %v3052 = vand.u32 %v2953, 4294901760
        %3053 = vmatpush1.msra.mxu0 %v3052
        %v3054 = vand.u32 %v2976, 4294901760
        %3055 = vmatprep.subr.mxu0 %v3054
        %v3056 = vand.u32 %v2975, 4294901760
        %3057 = vmatpush1.msra.mxu0 %v3056
        %v3058 = vand.u32 %v2998, 4294901760
        %3059 = vmatprep.subr.mxu0 %v3058
        %v3060 = vand.u32 %v2997, 4294901760
        %3061 = vmatpush1.msra.mxu0 %v3060
        %v3062 = vand.u32 %v3020, 4294901760
        %3063 = vmatprep.subr.mxu0 %v3062
        %v3064 = vand.u32 %v3019, 4294901760
        %3065 = vmatpush1.msra.mxu0 %v3064
        %3066 = vmatprep.subr.mxu0 0.0
        %3067 = vmatpush1.msra.mxu0 0.0
        %3068 = vmatprep.subr.mxu0 0.0
        %3069 = vmatpush1.msra.mxu0 0.0
        %3070 = vmatprep.subr.mxu0 0.0
        %3071 = vmatpush1.msra.mxu0 0.0
        %3072 = vmatprep.subr.mxu0 0.0
        %3073 = vmatpush1.msra.mxu0 0.0
        %3074 = vmatprep.subr.mxu0 0.0
        %3075 = vmatpush1.msra.mxu0 0.0
        %3076 = vmatprep.subr.mxu0 0.0
        %3077 = vmatpush1.msra.mxu0 0.0
        %3078 = vmatprep.subr.mxu0 0.0
        %3079 = vmatpush1.msra.mxu0 0.0
        %3080 = vmatprep.subr.mxu0 0.0
        %3081 = vmatpush1.msra.mxu0 0.0
        %3082 = vmatprep.subr.mxu0 0.0
        %3083 = vmatpush1.msra.mxu0 0.0
        %3084 = vmatprep.subr.mxu0 0.0
        %3085 = vmatpush1.msra.mxu0 0.0
        %3086 = vmatprep.subr.mxu0 0.0
        %3087 = vmatpush1.msra.mxu0 0.0
        %3088 = vmatprep.subr.mxu0 0.0
        %3089 = vmatpush1.msra.mxu0 0.0
        %3090 = vmatprep.subr.mxu0 0.0
        %3091 = vmatpush1.msra.mxu0 0.0
        %3092 = vmatprep.subr.mxu0 0.0
        %3093 = vmatpush1.msra.mxu0 0.0
        %3094 = vmatprep.subr.mxu0 0.0
        %3095 = vmatpush1.msra.mxu0 0.0
        %3096 = vmatprep.subr.mxu0 0.0
        %3097 = vmatpush1.msra.mxu0 0.0
        %3098 = vmatprep.subr.mxu0 0.0
        %3099 = vmatpush1.msra.mxu0 0.0
        %3100 = vmatprep.subr.mxu0 0.0
        %3101 = vmatpush1.msra.mxu0 0.0
        %3102 = vmatprep.subr.mxu0 0.0
        %3103 = vmatpush1.msra.mxu0 0.0
        %3104 = vmatprep.subr.mxu0 0.0
        %3105 = vmatpush1.msra.mxu0 0.0
        %3106 = vmatprep.subr.mxu0 0.0
        %3107 = vmatpush1.msra.mxu0 0.0
        %3108 = vmatprep.subr.mxu0 0.0
        %3109 = vmatpush1.msra.mxu0 0.0
        %3110 = vmatprep.subr.mxu0 0.0
        %3111 = vmatpush1.msra.mxu0 0.0
        %3112 = vmatprep.mubr.f32.mxu0 0.0
        %v3113 = vand.u32 %v3028, 4294901760
        %v3114 = vsub.f32 %v3028, %v3113
        %v3115 = vand.u32 %v3114, 4294901760
        %v3116 = vsub.f32 %v3114, %v3115
        %v3117 = vand.u32 %v3116, 4294901760
        %3118 = vmatmul.mubr.f32.gmra.mrb[0].mxu0 %v3117
        %v3119 = vpop.f32.mrb[0].mxu0
        %v3120 = vadd.f32 %v3024, %v3119
        %v3121 = vpop.f32.mrb[0].mxu0
        %v3122 = vadd.f32 %v3024, %v3121
        %3123 = vdwg.mxu0
        %v3124 = vand.u32 %v2866, 4294901760
        %v3125 = vsub.f32 %v2866, %v3124
        %v3126 = vand.u32 %v3125, 4294901760
        %v3127 = vsub.f32 %v3125, %v3126
        %v3128 = vand.u32 %v3127, 4294901760
        %3129 = vmatprep.subr.mxu0 %v3128
        %v3130 = vand.u32 %v2865, 4294901760
        %v3131 = vsub.f32 %v2865, %v3130
        %v3132 = vand.u32 %v3131, 4294901760
        %v3133 = vsub.f32 %v3131, %v3132
        %v3134 = vand.u32 %v3133, 4294901760
        %3135 = vmatpush1.msra.mxu0 %v3134
        %v3136 = vand.u32 %v2888, 4294901760
        %v3137 = vsub.f32 %v2888, %v3136
        %v3138 = vand.u32 %v3137, 4294901760
        %v3139 = vsub.f32 %v3137, %v3138
        %v3140 = vand.u32 %v3139, 4294901760
        %3141 = vmatprep.subr.mxu0 %v3140
        %v3142 = vand.u32 %v2887, 4294901760
        %v3143 = vsub.f32 %v2887, %v3142
        %v3144 = vand.u32 %v3143, 4294901760
        %v3145 = vsub.f32 %v3143, %v3144
        %v3146 = vand.u32 %v3145, 4294901760
        %3147 = vmatpush1.msra.mxu0 %v3146
        %v3148 = vand.u32 %v2910, 4294901760
        %v3149 = vsub.f32 %v2910, %v3148
        %v3150 = vand.u32 %v3149, 4294901760
        %v3151 = vsub.f32 %v3149, %v3150
        %v3152 = vand.u32 %v3151, 4294901760
        %3153 = vmatprep.subr.mxu0 %v3152
        %v3154 = vand.u32 %v2909, 4294901760
        %v3155 = vsub.f32 %v2909, %v3154
        %v3156 = vand.u32 %v3155, 4294901760
        %v3157 = vsub.f32 %v3155, %v3156
        %v3158 = vand.u32 %v3157, 4294901760
        %3159 = vmatpush1.msra.mxu0 %v3158
        %v3160 = vand.u32 %v2932, 4294901760
        %v3161 = vsub.f32 %v2932, %v3160
        %v3162 = vand.u32 %v3161, 4294901760
        %v3163 = vsub.f32 %v3161, %v3162
        %v3164 = vand.u32 %v3163, 4294901760
        %3165 = vmatprep.subr.mxu0 %v3164
        %v3166 = vand.u32 %v2931, 4294901760
        %v3167 = vsub.f32 %v2931, %v3166
        %v3168 = vand.u32 %v3167, 4294901760
        %v3169 = vsub.f32 %v3167, %v3168
        %v3170 = vand.u32 %v3169, 4294901760
        %3171 = vmatpush1.msra.mxu0 %v3170
        %v3172 = vand.u32 %v347, 4294901760
        %v3173 = vsub.f32 %v347, %v3172
        %v3174 = vand.u32 %v3173, 4294901760
        %v3175 = vsub.f32 %v3173, %v3174
        %v3176 = vand.u32 %v3175, 4294901760
        %3177 = vmatprep.subr.mxu0 %v3176
        %v3178 = vand.u32 %v346, 4294901760
        %v3179 = vsub.f32 %v346, %v3178
        %v3180 = vand.u32 %v3179, 4294901760
        %v3181 = vsub.f32 %v3179, %v3180
        %v3182 = vand.u32 %v3181, 4294901760
        %3183 = vmatpush1.msra.mxu0 %v3182
        %v3184 = vand.u32 %v2954, 4294901760
        %v3185 = vsub.f32 %v2954, %v3184
        %v3186 = vand.u32 %v3185, 4294901760
        %v3187 = vsub.f32 %v3185, %v3186
        %v3188 = vand.u32 %v3187, 4294901760
        %3189 = vmatprep.subr.mxu0 %v3188
        %v3190 = vand.u32 %v2953, 4294901760
        %v3191 = vsub.f32 %v2953, %v3190
        %v3192 = vand.u32 %v3191, 4294901760
        %v3193 = vsub.f32 %v3191, %v3192
        %v3194 = vand.u32 %v3193, 4294901760
        %3195 = vmatpush1.msra.mxu0 %v3194
        %v3196 = vand.u32 %v2976, 4294901760
        %v3197 = vsub.f32 %v2976, %v3196
        %v3198 = vand.u32 %v3197, 4294901760
        %v3199 = vsub.f32 %v3197, %v3198
        %v3200 = vand.u32 %v3199, 4294901760
        %3201 = vmatprep.subr.mxu0 %v3200
        %v3202 = vand.u32 %v2975, 4294901760
        %v3203 = vsub.f32 %v2975, %v3202
        %v3204 = vand.u32 %v3203, 4294901760
        %v3205 = vsub.f32 %v3203, %v3204
        %v3206 = vand.u32 %v3205, 4294901760
        %3207 = vmatpush1.msra.mxu0 %v3206
        %v3208 = vand.u32 %v2998, 4294901760
        %v3209 = vsub.f32 %v2998, %v3208
        %v3210 = vand.u32 %v3209, 4294901760
        %v3211 = vsub.f32 %v3209, %v3210
        %v3212 = vand.u32 %v3211, 4294901760
        %3213 = vmatprep.subr.mxu0 %v3212
        %v3214 = vand.u32 %v2997, 4294901760
        %v3215 = vsub.f32 %v2997, %v3214
        %v3216 = vand.u32 %v3215, 4294901760
        %v3217 = vsub.f32 %v3215, %v3216
        %v3218 = vand.u32 %v3217, 4294901760
        %3219 = vmatpush1.msra.mxu0 %v3218
        %v3220 = vand.u32 %v3020, 4294901760
        %v3221 = vsub.f32 %v3020, %v3220
        %v3222 = vand.u32 %v3221, 4294901760
        %v3223 = vsub.f32 %v3221, %v3222
        %v3224 = vand.u32 %v3223, 4294901760
        %3225 = vmatprep.subr.mxu0 %v3224
        %v3226 = vand.u32 %v3019, 4294901760
        %v3227 = vsub.f32 %v3019, %v3226
        %v3228 = vand.u32 %v3227, 4294901760
        %v3229 = vsub.f32 %v3227, %v3228
        %v3230 = vand.u32 %v3229, 4294901760
        %3231 = vmatpush1.msra.mxu0 %v3230
        %3232 = vmatprep.subr.mxu0 0.0
        %3233 = vmatpush1.msra.mxu0 0.0
        %3234 = vmatprep.subr.mxu0 0.0
        %3235 = vmatpush1.msra.mxu0 0.0
        %3236 = vmatprep.subr.mxu0 0.0
        %3237 = vmatpush1.msra.mxu0 0.0
        %3238 = vmatprep.subr.mxu0 0.0
        %3239 = vmatpush1.msra.mxu0 0.0
        %3240 = vmatprep.subr.mxu0 0.0
        %3241 = vmatpush1.msra.mxu0 0.0
        %3242 = vmatprep.subr.mxu0 0.0
        %3243 = vmatpush1.msra.mxu0 0.0
        %3244 = vmatprep.subr.mxu0 0.0
        %3245 = vmatpush1.msra.mxu0 0.0
        %3246 = vmatprep.subr.mxu0 0.0
        %3247 = vmatpush1.msra.mxu0 0.0
        %3248 = vmatprep.subr.mxu0 0.0
        %3249 = vmatpush1.msra.mxu0 0.0
        %3250 = vmatprep.subr.mxu0 0.0
        %3251 = vmatpush1.msra.mxu0 0.0
        %3252 = vmatprep.subr.mxu0 0.0
        %3253 = vmatpush1.msra.mxu0 0.0
        %3254 = vmatprep.subr.mxu0 0.0
        %3255 = vmatpush1.msra.mxu0 0.0
        %3256 = vmatprep.subr.mxu0 0.0
        %3257 = vmatpush1.msra.mxu0 0.0
        %3258 = vmatprep.subr.mxu0 0.0
        %3259 = vmatpush1.msra.mxu0 0.0
        %3260 = vmatprep.subr.mxu0 0.0
        %3261 = vmatpush1.msra.mxu0 0.0
        %3262 = vmatprep.subr.mxu0 0.0
        %3263 = vmatpush1.msra.mxu0 0.0
        %3264 = vmatprep.subr.mxu0 0.0
        %3265 = vmatpush1.msra.mxu0 0.0
        %3266 = vmatprep.subr.mxu0 0.0
        %3267 = vmatpush1.msra.mxu0 0.0
        %3268 = vmatprep.subr.mxu0 0.0
        %3269 = vmatpush1.msra.mxu0 0.0
        %3270 = vmatprep.subr.mxu0 0.0
        %3271 = vmatpush1.msra.mxu0 0.0
        %3272 = vmatprep.subr.mxu0 0.0
        %3273 = vmatpush1.msra.mxu0 0.0
        %3274 = vmatprep.subr.mxu0 0.0
        %3275 = vmatpush1.msra.mxu0 0.0
        %3276 = vmatprep.subr.mxu0 0.0
        %3277 = vmatpush1.msra.mxu0 0.0
        %3278 = vmatprep.mubr.f32.mxu0 0.0
        %v3279 = vand.u32 %v3028, 4294901760
        %3280 = vmatmul.mubr.f32.gmra.mrb[0].mxu0 %v3279
        %v3281 = vpop.f32.mrb[0].mxu0
        %v3282 = vadd.f32 %v3120, %v3281
        %v3283 = vpop.f32.mrb[0].mxu0
        %v3284 = vadd.f32 %v3122, %v3283
        %3285 = vdwg.mxu0
        %v3286 = vand.u32 %v2866, 4294901760
        %v3287 = vsub.f32 %v2866, %v3286
        %3288 = vmatprep.subr.mxu0 %v3287
        %v3289 = vand.u32 %v2865, 4294901760
        %v3290 = vsub.f32 %v2865, %v3289
        %3291 = vmatpush1.msra.mxu0 %v3290
        %v3292 = vand.u32 %v2888, 4294901760
        %v3293 = vsub.f32 %v2888, %v3292
        %3294 = vmatprep.subr.mxu0 %v3293
        %v3295 = vand.u32 %v2887, 4294901760
        %v3296 = vsub.f32 %v2887, %v3295
        %3297 = vmatpush1.msra.mxu0 %v3296
        %v3298 = vand.u32 %v2910, 4294901760
        %v3299 = vsub.f32 %v2910, %v3298
        %3300 = vmatprep.subr.mxu0 %v3299
        %v3301 = vand.u32 %v2909, 4294901760
        %v3302 = vsub.f32 %v2909, %v3301
        %3303 = vmatpush1.msra.mxu0 %v3302
        %v3304 = vand.u32 %v2932, 4294901760
        %v3305 = vsub.f32 %v2932, %v3304
        %3306 = vmatprep.subr.mxu0 %v3305
        %v3307 = vand.u32 %v2931, 4294901760
        %v3308 = vsub.f32 %v2931, %v3307
        %3309 = vmatpush1.msra.mxu0 %v3308
        %v3310 = vand.u32 %v347, 4294901760
        %v3311 = vsub.f32 %v347, %v3310
        %3312 = vmatprep.subr.mxu0 %v3311
        %v3313 = vand.u32 %v346, 4294901760
        %v3314 = vsub.f32 %v346, %v3313
        %3315 = vmatpush1.msra.mxu0 %v3314
        %v3316 = vand.u32 %v2954, 4294901760
        %v3317 = vsub.f32 %v2954, %v3316
        %3318 = vmatprep.subr.mxu0 %v3317
        %v3319 = vand.u32 %v2953, 4294901760
        %v3320 = vsub.f32 %v2953, %v3319
        %3321 = vmatpush1.msra.mxu0 %v3320
        %v3322 = vand.u32 %v2976, 4294901760
        %v3323 = vsub.f32 %v2976, %v3322
        %3324 = vmatprep.subr.mxu0 %v3323
        %v3325 = vand.u32 %v2975, 4294901760
        %v3326 = vsub.f32 %v2975, %v3325
        %3327 = vmatpush1.msra.mxu0 %v3326
        %v3328 = vand.u32 %v2998, 4294901760
        %v3329 = vsub.f32 %v2998, %v3328
        %3330 = vmatprep.subr.mxu0 %v3329
        %v3331 = vand.u32 %v2997, 4294901760
        %v3332 = vsub.f32 %v2997, %v3331
        %3333 = vmatpush1.msra.mxu0 %v3332
        %v3334 = vand.u32 %v3020, 4294901760
        %v3335 = vsub.f32 %v3020, %v3334
        %3336 = vmatprep.subr.mxu0 %v3335
        %v3337 = vand.u32 %v3019, 4294901760
        %v3338 = vsub.f32 %v3019, %v3337
        %3339 = vmatpush1.msra.mxu0 %v3338
        %3340 = vmatprep.subr.mxu0 0.0
        %3341 = vmatpush1.msra.mxu0 0.0
        %3342 = vmatprep.subr.mxu0 0.0
        %3343 = vmatpush1.msra.mxu0 0.0
        %3344 = vmatprep.subr.mxu0 0.0
        %3345 = vmatpush1.msra.mxu0 0.0
        %3346 = vmatprep.subr.mxu0 0.0
        %3347 = vmatpush1.msra.mxu0 0.0
        %3348 = vmatprep.subr.mxu0 0.0
        %3349 = vmatpush1.msra.mxu0 0.0
        %3350 = vmatprep.subr.mxu0 0.0
        %3351 = vmatpush1.msra.mxu0 0.0
        %3352 = vmatprep.subr.mxu0 0.0
        %3353 = vmatpush1.msra.mxu0 0.0
        %3354 = vmatprep.subr.mxu0 0.0
        %3355 = vmatpush1.msra.mxu0 0.0
        %3356 = vmatprep.subr.mxu0 0.0
        %3357 = vmatpush1.msra.mxu0 0.0
        %3358 = vmatprep.subr.mxu0 0.0
        %3359 = vmatpush1.msra.mxu0 0.0
        %3360 = vmatprep.subr.mxu0 0.0
        %3361 = vmatpush1.msra.mxu0 0.0
        %3362 = vmatprep.subr.mxu0 0.0
        %3363 = vmatpush1.msra.mxu0 0.0
        %3364 = vmatprep.subr.mxu0 0.0
        %3365 = vmatpush1.msra.mxu0 0.0
        %3366 = vmatprep.subr.mxu0 0.0
        %3367 = vmatpush1.msra.mxu0 0.0
        %3368 = vmatprep.subr.mxu0 0.0
        %3369 = vmatpush1.msra.mxu0 0.0
        %3370 = vmatprep.subr.mxu0 0.0
        %3371 = vmatpush1.msra.mxu0 0.0
        %3372 = vmatprep.subr.mxu0 0.0
        %3373 = vmatpush1.msra.mxu0 0.0
        %3374 = vmatprep.subr.mxu0 0.0
        %3375 = vmatpush1.msra.mxu0 0.0
        %3376 = vmatprep.subr.mxu0 0.0
        %3377 = vmatpush1.msra.mxu0 0.0
        %3378 = vmatprep.subr.mxu0 0.0
        %3379 = vmatpush1.msra.mxu0 0.0
        %3380 = vmatprep.subr.mxu0 0.0
        %3381 = vmatpush1.msra.mxu0 0.0
        %3382 = vmatprep.subr.mxu0 0.0
        %3383 = vmatpush1.msra.mxu0 0.0
        %3384 = vmatprep.subr.mxu0 0.0
        %3385 = vmatpush1.msra.mxu0 0.0
        %3386 = vmatprep.mubr.f32.mxu0 0.0
        %v3387 = vand.u32 %v3028, 4294901760
        %v3388 = vsub.f32 %v3028, %v3387
        %3389 = vmatmul.mubr.f32.gmra.mrb[0].mxu0 %v3388
        %v3390 = vpop.f32.mrb[0].mxu0
        %v3391 = vadd.f32 %v3282, %v3390
        %v3392 = vpop.f32.mrb[0].mxu0
        %v3393 = vadd.f32 %v3284, %v3392
        %3394 = vdwg.mxu0
        %v3395 = vand.u32 %v2866, 4294901760
        %3396 = vmatprep.subr.mxu0 %v3395
        %v3397 = vand.u32 %v2865, 4294901760
        %3398 = vmatpush1.msra.mxu0 %v3397
        %v3399 = vand.u32 %v2888, 4294901760
        %3400 = vmatprep.subr.mxu0 %v3399
        %v3401 = vand.u32 %v2887, 4294901760
        %3402 = vmatpush1.msra.mxu0 %v3401
        %v3403 = vand.u32 %v2910, 4294901760
        %3404 = vmatprep.subr.mxu0 %v3403
        %v3405 = vand.u32 %v2909, 4294901760
        %3406 = vmatpush1.msra.mxu0 %v3405
        %v3407 = vand.u32 %v2932, 4294901760
        %3408 = vmatprep.subr.mxu0 %v3407
        %v3409 = vand.u32 %v2931, 4294901760
        %3410 = vmatpush1.msra.mxu0 %v3409
        %v3411 = vand.u32 %v347, 4294901760
        %3412 = vmatprep.subr.mxu0 %v3411
        %v3413 = vand.u32 %v346, 4294901760
        %3414 = vmatpush1.msra.mxu0 %v3413
        %v3415 = vand.u32 %v2954, 4294901760
        %3416 = vmatprep.subr.mxu0 %v3415
        %v3417 = vand.u32 %v2953, 4294901760
        %3418 = vmatpush1.msra.mxu0 %v3417
        %v3419 = vand.u32 %v2976, 4294901760
        %3420 = vmatprep.subr.mxu0 %v3419
        %v3421 = vand.u32 %v2975, 4294901760
        %3422 = vmatpush1.msra.mxu0 %v3421
        %v3423 = vand.u32 %v2998, 4294901760
        %3424 = vmatprep.subr.mxu0 %v3423
        %v3425 = vand.u32 %v2997, 4294901760
        %3426 = vmatpush1.msra.mxu0 %v3425
        %v3427 = vand.u32 %v3020, 4294901760
        %3428 = vmatprep.subr.mxu0 %v3427
        %v3429 = vand.u32 %v3019, 4294901760
        %3430 = vmatpush1.msra.mxu0 %v3429
        %3431 = vmatprep.subr.mxu0 0.0
        %3432 = vmatpush1.msra.mxu0 0.0
        %3433 = vmatprep.subr.mxu0 0.0
        %3434 = vmatpush1.msra.mxu0 0.0
        %3435 = vmatprep.subr.mxu0 0.0
        %3436 = vmatpush1.msra.mxu0 0.0
        %3437 = vmatprep.subr.mxu0 0.0
        %3438 = vmatpush1.msra.mxu0 0.0
        %3439 = vmatprep.subr.mxu0 0.0
        %3440 = vmatpush1.msra.mxu0 0.0
        %3441 = vmatprep.subr.mxu0 0.0
        %3442 = vmatpush1.msra.mxu0 0.0
        %3443 = vmatprep.subr.mxu0 0.0
        %3444 = vmatpush1.msra.mxu0 0.0
        %3445 = vmatprep.subr.mxu0 0.0
        %3446 = vmatpush1.msra.mxu0 0.0
        %3447 = vmatprep.subr.mxu0 0.0
        %3448 = vmatpush1.msra.mxu0 0.0
        %3449 = vmatprep.subr.mxu0 0.0
        %3450 = vmatpush1.msra.mxu0 0.0
        %3451 = vmatprep.subr.mxu0 0.0
        %3452 = vmatpush1.msra.mxu0 0.0
        %3453 = vmatprep.subr.mxu0 0.0
        %3454 = vmatpush1.msra.mxu0 0.0
        %3455 = vmatprep.subr.mxu0 0.0
        %3456 = vmatpush1.msra.mxu0 0.0
        %3457 = vmatprep.subr.mxu0 0.0
        %3458 = vmatpush1.msra.mxu0 0.0
        %3459 = vmatprep.subr.mxu0 0.0
        %3460 = vmatpush1.msra.mxu0 0.0
        %3461 = vmatprep.subr.mxu0 0.0
        %3462 = vmatpush1.msra.mxu0 0.0
        %3463 = vmatprep.subr.mxu0 0.0
        %3464 = vmatpush1.msra.mxu0 0.0
        %3465 = vmatprep.subr.mxu0 0.0
        %3466 = vmatpush1.msra.mxu0 0.0
        %3467 = vmatprep.subr.mxu0 0.0
        %3468 = vmatpush1.msra.mxu0 0.0
        %3469 = vmatprep.subr.mxu0 0.0
        %3470 = vmatpush1.msra.mxu0 0.0
        %3471 = vmatprep.subr.mxu0 0.0
        %3472 = vmatpush1.msra.mxu0 0.0
        %3473 = vmatprep.subr.mxu0 0.0
        %3474 = vmatpush1.msra.mxu0 0.0
        %3475 = vmatprep.subr.mxu0 0.0
        %3476 = vmatpush1.msra.mxu0 0.0
        %3477 = vmatprep.mubr.f32.mxu0 0.0
        %v3478 = vand.u32 %v3028, 4294901760
        %v3479 = vsub.f32 %v3028, %v3478
        %v3480 = vand.u32 %v3479, 4294901760
        %3481 = vmatmul.mubr.f32.gmra.mrb[0].mxu0 %v3480
        %v3482 = vpop.f32.mrb[0].mxu0
        %v3483 = vadd.f32 %v3391, %v3482
        %v3484 = vpop.f32.mrb[0].mxu0
        %v3485 = vadd.f32 %v3393, %v3484
        %3486 = vdwg.mxu0
        %v3487 = vand.u32 %v2866, 4294901760
        %v3488 = vsub.f32 %v2866, %v3487
        %v3489 = vand.u32 %v3488, 4294901760
        %3490 = vmatprep.subr.mxu0 %v3489
        %v3491 = vand.u32 %v2865, 4294901760
        %v3492 = vsub.f32 %v2865, %v3491
        %v3493 = vand.u32 %v3492, 4294901760
        %3494 = vmatpush1.msra.mxu0 %v3493
        %v3495 = vand.u32 %v2888, 4294901760
        %v3496 = vsub.f32 %v2888, %v3495
        %v3497 = vand.u32 %v3496, 4294901760
        %3498 = vmatprep.subr.mxu0 %v3497
        %v3499 = vand.u32 %v2887, 4294901760
        %v3500 = vsub.f32 %v2887, %v3499
        %v3501 = vand.u32 %v3500, 4294901760
        %3502 = vmatpush1.msra.mxu0 %v3501
        %v3503 = vand.u32 %v2910, 4294901760
        %v3504 = vsub.f32 %v2910, %v3503
        %v3505 = vand.u32 %v3504, 4294901760
        %3506 = vmatprep.subr.mxu0 %v3505
        %v3507 = vand.u32 %v2909, 4294901760
        %v3508 = vsub.f32 %v2909, %v3507
        %v3509 = vand.u32 %v3508, 4294901760
        %3510 = vmatpush1.msra.mxu0 %v3509
        %v3511 = vand.u32 %v2932, 4294901760
        %v3512 = vsub.f32 %v2932, %v3511
        %v3513 = vand.u32 %v3512, 4294901760
        %3514 = vmatprep.subr.mxu0 %v3513
        %v3515 = vand.u32 %v2931, 4294901760
        %v3516 = vsub.f32 %v2931, %v3515
        %v3517 = vand.u32 %v3516, 4294901760
        %3518 = vmatpush1.msra.mxu0 %v3517
        %v3519 = vand.u32 %v347, 4294901760
        %v3520 = vsub.f32 %v347, %v3519
        %v3521 = vand.u32 %v3520, 4294901760
        %3522 = vmatprep.subr.mxu0 %v3521
        %v3523 = vand.u32 %v346, 4294901760
        %v3524 = vsub.f32 %v346, %v3523
        %v3525 = vand.u32 %v3524, 4294901760
        %3526 = vmatpush1.msra.mxu0 %v3525
        %v3527 = vand.u32 %v2954, 4294901760
        %v3528 = vsub.f32 %v2954, %v3527
        %v3529 = vand.u32 %v3528, 4294901760
        %3530 = vmatprep.subr.mxu0 %v3529
        %v3531 = vand.u32 %v2953, 4294901760
        %v3532 = vsub.f32 %v2953, %v3531
        %v3533 = vand.u32 %v3532, 4294901760
        %3534 = vmatpush1.msra.mxu0 %v3533
        %v3535 = vand.u32 %v2976, 4294901760
        %v3536 = vsub.f32 %v2976, %v3535
        %v3537 = vand.u32 %v3536, 4294901760
        %3538 = vmatprep.subr.mxu0 %v3537
        %v3539 = vand.u32 %v2975, 4294901760
        %v3540 = vsub.f32 %v2975, %v3539
        %v3541 = vand.u32 %v3540, 4294901760
        %3542 = vmatpush1.msra.mxu0 %v3541
        %v3543 = vand.u32 %v2998, 4294901760
        %v3544 = vsub.f32 %v2998, %v3543
        %v3545 = vand.u32 %v3544, 4294901760
        %3546 = vmatprep.subr.mxu0 %v3545
        %v3547 = vand.u32 %v2997, 4294901760
        %v3548 = vsub.f32 %v2997, %v3547
        %v3549 = vand.u32 %v3548, 4294901760
        %3550 = vmatpush1.msra.mxu0 %v3549
        %v3551 = vand.u32 %v3020, 4294901760
        %v3552 = vsub.f32 %v3020, %v3551
        %v3553 = vand.u32 %v3552, 4294901760
        %3554 = vmatprep.subr.mxu0 %v3553
        %v3555 = vand.u32 %v3019, 4294901760
        %v3556 = vsub.f32 %v3019, %v3555
        %v3557 = vand.u32 %v3556, 4294901760
        %3558 = vmatpush1.msra.mxu0 %v3557
        %3559 = vmatprep.subr.mxu0 0.0
        %3560 = vmatpush1.msra.mxu0 0.0
        %3561 = vmatprep.subr.mxu0 0.0
        %3562 = vmatpush1.msra.mxu0 0.0
        %3563 = vmatprep.subr.mxu0 0.0
        %3564 = vmatpush1.msra.mxu0 0.0
        %3565 = vmatprep.subr.mxu0 0.0
        %3566 = vmatpush1.msra.mxu0 0.0
        %3567 = vmatprep.subr.mxu0 0.0
        %3568 = vmatpush1.msra.mxu0 0.0
        %3569 = vmatprep.subr.mxu0 0.0
        %3570 = vmatpush1.msra.mxu0 0.0
        %3571 = vmatprep.subr.mxu0 0.0
        %3572 = vmatpush1.msra.mxu0 0.0
        %3573 = vmatprep.subr.mxu0 0.0
        %3574 = vmatpush1.msra.mxu0 0.0
        %3575 = vmatprep.subr.mxu0 0.0
        %3576 = vmatpush1.msra.mxu0 0.0
        %3577 = vmatprep.subr.mxu0 0.0
        %3578 = vmatpush1.msra.mxu0 0.0
        %3579 = vmatprep.subr.mxu0 0.0
        %3580 = vmatpush1.msra.mxu0 0.0
        %3581 = vmatprep.subr.mxu0 0.0
        %3582 = vmatpush1.msra.mxu0 0.0
        %3583 = vmatprep.subr.mxu0 0.0
        %3584 = vmatpush1.msra.mxu0 0.0
        %3585 = vmatprep.subr.mxu0 0.0
        %3586 = vmatpush1.msra.mxu0 0.0
        %3587 = vmatprep.subr.mxu0 0.0
        %3588 = vmatpush1.msra.mxu0 0.0
        %3589 = vmatprep.subr.mxu0 0.0
        %3590 = vmatpush1.msra.mxu0 0.0
        %3591 = vmatprep.subr.mxu0 0.0
        %3592 = vmatpush1.msra.mxu0 0.0
        %3593 = vmatprep.subr.mxu0 0.0
        %3594 = vmatpush1.msra.mxu0 0.0
        %3595 = vmatprep.subr.mxu0 0.0
        %3596 = vmatpush1.msra.mxu0 0.0
        %3597 = vmatprep.subr.mxu0 0.0
        %3598 = vmatpush1.msra.mxu0 0.0
        %3599 = vmatprep.subr.mxu0 0.0
        %3600 = vmatpush1.msra.mxu0 0.0
        %3601 = vmatprep.subr.mxu0 0.0
        %3602 = vmatpush1.msra.mxu0 0.0
        %3603 = vmatprep.subr.mxu0 0.0
        %3604 = vmatpush1.msra.mxu0 0.0
        %3605 = vmatprep.mubr.f32.mxu0 0.0
        %v3606 = vand.u32 %v3028, 4294901760
        %3607 = vmatmul.mubr.f32.gmra.mrb[0].mxu0 %v3606
        %v3608 = vpop.f32.mrb[0].mxu0
        %v3609 = vadd.f32 %v3483, %v3608
        %v3610 = vpop.f32.mrb[0].mxu0
        %v3611 = vadd.f32 %v3485, %v3610
        %3612 = vdwg.mxu0
        %v3613 = vand.u32 %v2866, 4294901760
        %3614 = vmatprep.subr.mxu0 %v3613
        %v3615 = vand.u32 %v2865, 4294901760
        %3616 = vmatpush1.msra.mxu0 %v3615
        %v3617 = vand.u32 %v2888, 4294901760
        %3618 = vmatprep.subr.mxu0 %v3617
        %v3619 = vand.u32 %v2887, 4294901760
        %3620 = vmatpush1.msra.mxu0 %v3619
        %v3621 = vand.u32 %v2910, 4294901760
        %3622 = vmatprep.subr.mxu0 %v3621
        %v3623 = vand.u32 %v2909, 4294901760
        %3624 = vmatpush1.msra.mxu0 %v3623
        %v3625 = vand.u32 %v2932, 4294901760
        %3626 = vmatprep.subr.mxu0 %v3625
        %v3627 = vand.u32 %v2931, 4294901760
        %3628 = vmatpush1.msra.mxu0 %v3627
        %v3629 = vand.u32 %v347, 4294901760
        %3630 = vmatprep.subr.mxu0 %v3629
        %v3631 = vand.u32 %v346, 4294901760
        %3632 = vmatpush1.msra.mxu0 %v3631
        %v3633 = vand.u32 %v2954, 4294901760
        %3634 = vmatprep.subr.mxu0 %v3633
        %v3635 = vand.u32 %v2953, 4294901760
        %3636 = vmatpush1.msra.mxu0 %v3635
        %v3637 = vand.u32 %v2976, 4294901760
        %3638 = vmatprep.subr.mxu0 %v3637
        %v3639 = vand.u32 %v2975, 4294901760
        %3640 = vmatpush1.msra.mxu0 %v3639
        %v3641 = vand.u32 %v2998, 4294901760
        %3642 = vmatprep.subr.mxu0 %v3641
        %v3643 = vand.u32 %v2997, 4294901760
        %3644 = vmatpush1.msra.mxu0 %v3643
        %v3645 = vand.u32 %v3020, 4294901760
        %3646 = vmatprep.subr.mxu0 %v3645
        %v3647 = vand.u32 %v3019, 4294901760
        %3648 = vmatpush1.msra.mxu0 %v3647
        %3649 = vmatprep.subr.mxu0 0.0
        %3650 = vmatpush1.msra.mxu0 0.0
        %3651 = vmatprep.subr.mxu0 0.0
        %3652 = vmatpush1.msra.mxu0 0.0
        %3653 = vmatprep.subr.mxu0 0.0
        %3654 = vmatpush1.msra.mxu0 0.0
        %3655 = vmatprep.subr.mxu0 0.0
        %3656 = vmatpush1.msra.mxu0 0.0
        %3657 = vmatprep.subr.mxu0 0.0
        %3658 = vmatpush1.msra.mxu0 0.0
        %3659 = vmatprep.subr.mxu0 0.0
        %3660 = vmatpush1.msra.mxu0 0.0
        %3661 = vmatprep.subr.mxu0 0.0
        %3662 = vmatpush1.msra.mxu0 0.0
        %3663 = vmatprep.subr.mxu0 0.0
        %3664 = vmatpush1.msra.mxu0 0.0
        %3665 = vmatprep.subr.mxu0 0.0
        %3666 = vmatpush1.msra.mxu0 0.0
        %3667 = vmatprep.subr.mxu0 0.0
        %3668 = vmatpush1.msra.mxu0 0.0
        %3669 = vmatprep.subr.mxu0 0.0
        %3670 = vmatpush1.msra.mxu0 0.0
        %3671 = vmatprep.subr.mxu0 0.0
        %3672 = vmatpush1.msra.mxu0 0.0
        %3673 = vmatprep.subr.mxu0 0.0
        %3674 = vmatpush1.msra.mxu0 0.0
        %3675 = vmatprep.subr.mxu0 0.0
        %3676 = vmatpush1.msra.mxu0 0.0
        %3677 = vmatprep.subr.mxu0 0.0
        %3678 = vmatpush1.msra.mxu0 0.0
        %3679 = vmatprep.subr.mxu0 0.0
        %3680 = vmatpush1.msra.mxu0 0.0
        %3681 = vmatprep.subr.mxu0 0.0
        %3682 = vmatpush1.msra.mxu0 0.0
        %3683 = vmatprep.subr.mxu0 0.0
        %3684 = vmatpush1.msra.mxu0 0.0
        %3685 = vmatprep.subr.mxu0 0.0
        %3686 = vmatpush1.msra.mxu0 0.0
        %3687 = vmatprep.subr.mxu0 0.0
        %3688 = vmatpush1.msra.mxu0 0.0
        %3689 = vmatprep.subr.mxu0 0.0
        %3690 = vmatpush1.msra.mxu0 0.0
        %3691 = vmatprep.subr.mxu0 0.0
        %3692 = vmatpush1.msra.mxu0 0.0
        %3693 = vmatprep.subr.mxu0 0.0
        %3694 = vmatpush1.msra.mxu0 0.0
        %3695 = vmatprep.mubr.f32.mxu0 0.0
        %v3696 = vand.u32 %v3028, 4294901760
        %3697 = vmatmul.mubr.f32.gmra.mrb[0].mxu0 %v3696
        %v3698 = vpop.f32.mrb[0].mxu0
        %v3699 = vadd.f32 %v3609, %v3698
        %v3700 = vpop.f32.mrb[0].mxu0
        %v3701 = vadd.f32 %v3611, %v3700
        %3702 = vdwg.mxu0
        %v3703 = vadd.f32 %v2842, %v2843
        %3704 = vadd.xlane.f32.xlu0 %v3703
        %v3705 = vpop.xlane.xlu0 %3704
        %v3706 = vmul.f32 %v3705, %v2818
        %v3707 = vrot.slane %v3706, 4
        %v3708 = vmax.f32 %v3706, %v3707
        %v3709 = vrot.slane %v3708, 2
        %v3710 = vmax.f32 %v3708, %v3709
        %v3711 = vrot.slane %v3710, 1
        %v3712 = vmax.f32 %v3710, %v3711
        %v3713 = vsub.f32 %v3706, %v3712
        %v3714 = vmul.f32 %v3713, 1.442695
        %v3715 = vpow.pop %v3714
        %v3716 = vld [vmem:[%s4] sm:$0xff]
        %v3718 = vsel %vm1249, %v3716, 0
        %3720 = vmatprep.subr.mxu0 0.0
        %v3721 = vand.u32 %v3715, 4294901760
        %3722 = vmatpush1.msra.mxu0 %v3721
        %3723 = vmatprep.subr.mxu0 0.0
        %3724 = vmatpush1.msra.mxu0 0.0
        %3725 = vmatprep.subr.mxu0 0.0
        %3726 = vmatpush1.msra.mxu0 0.0
        %3727 = vmatprep.subr.mxu0 0.0
        %3728 = vmatpush1.msra.mxu0 0.0
        %3729 = vmatprep.subr.mxu0 0.0
        %3730 = vmatpush1.msra.mxu0 0.0
        %3731 = vmatprep.subr.mxu0 0.0
        %3732 = vmatpush1.msra.mxu0 0.0
        %3733 = vmatprep.subr.mxu0 0.0
        %3734 = vmatpush1.msra.mxu0 0.0
        %3735 = vmatprep.subr.mxu0 0.0
        %3736 = vmatpush1.msra.mxu0 0.0
        %3737 = vmatprep.subr.mxu0 0.0
        %3738 = vmatpush1.msra.mxu0 0.0
        %3739 = vmatprep.subr.mxu0 0.0
        %3740 = vmatpush1.msra.mxu0 0.0
        %3741 = vmatprep.subr.mxu0 0.0
        %3742 = vmatpush1.msra.mxu0 0.0
        %3743 = vmatprep.subr.mxu0 0.0
        %3744 = vmatpush1.msra.mxu0 0.0
        %3745 = vmatprep.subr.mxu0 0.0
        %3746 = vmatpush1.msra.mxu0 0.0
        %3747 = vmatprep.subr.mxu0 0.0
        %3748 = vmatpush1.msra.mxu0 0.0
        %3749 = vmatprep.subr.mxu0 0.0
        %3750 = vmatpush1.msra.mxu0 0.0
        %3751 = vmatprep.subr.mxu0 0.0
        %3752 = vmatpush1.msra.mxu0 0.0
        %3753 = vmatprep.subr.mxu0 0.0
        %3754 = vmatpush1.msra.mxu0 0.0
        %3755 = vmatprep.subr.mxu0 0.0
        %3756 = vmatpush1.msra.mxu0 0.0
        %3757 = vmatprep.subr.mxu0 0.0
        %3758 = vmatpush1.msra.mxu0 0.0
        %3759 = vmatprep.subr.mxu0 0.0
        %3760 = vmatpush1.msra.mxu0 0.0
        %3761 = vmatprep.subr.mxu0 0.0
        %3762 = vmatpush1.msra.mxu0 0.0
        %3763 = vmatprep.subr.mxu0 0.0
        %3764 = vmatpush1.msra.mxu0 0.0
        %3765 = vmatprep.subr.mxu0 0.0
        %3766 = vmatpush1.msra.mxu0 0.0
        %3767 = vmatprep.subr.mxu0 0.0
        %3768 = vmatpush1.msra.mxu0 0.0
        %3769 = vmatprep.subr.mxu0 0.0
        %3770 = vmatpush1.msra.mxu0 0.0
        %3771 = vmatprep.subr.mxu0 0.0
        %3772 = vmatpush1.msra.mxu0 0.0
        %3773 = vmatprep.subr.mxu0 0.0
        %3774 = vmatpush1.msra.mxu0 0.0
        %3775 = vmatprep.subr.mxu0 0.0
        %3776 = vmatpush1.msra.mxu0 0.0
        %3777 = vmatprep.subr.mxu0 0.0
        %3778 = vmatpush1.msra.mxu0 0.0
        %3779 = vmatprep.subr.mxu0 0.0
        %3780 = vmatpush1.msra.mxu0 0.0
        %3781 = vmatprep.subr.mxu0 0.0
        %3782 = vmatpush1.msra.mxu0 0.0
        %3783 = vmatprep.subr.mxu0 0.0
        %3784 = vmatpush1.msra.mxu0 0.0
        %3785 = vmatprep.mubr.f32.mxu0 0.0
        %v3786 = vand.u32 %v3718, 4294901760
        %v3787 = vsub.f32 %v3718, %v3786
        %v3788 = vand.u32 %v3787, 4294901760
        %v3789 = vsub.f32 %v3787, %v3788
        %v3790 = vand.u32 %v3789, 4294901760
        %3791 = vmatmul.mubr.f32.gmra.mrb[0].mxu0 %v3790
        %v3792 = vpop.f32.mrb[0].mxu0
        %v3793 = vadd.f32 0.0, %v3792
        %v3794 = vpop.f32.mrb[0].mxu0
        %3795 = vdwg.mxu0
        %3796 = vmatprep.subr.mxu0 0.0
        %v3797 = vand.u32 %v3715, 4294901760
        %v3798 = vsub.f32 %v3715, %v3797
        %v3799 = vand.u32 %v3798, 4294901760
        %v3800 = vsub.f32 %v3798, %v3799
        %v3801 = vand.u32 %v3800, 4294901760
        %3802 = vmatpush1.msra.mxu0 %v3801
        %3803 = vmatprep.subr.mxu0 0.0
        %3804 = vmatpush1.msra.mxu0 0.0
        %3805 = vmatprep.subr.mxu0 0.0
        %3806 = vmatpush1.msra.mxu0 0.0
        %3807 = vmatprep.subr.mxu0 0.0
        %3808 = vmatpush1.msra.mxu0 0.0
        %3809 = vmatprep.subr.mxu0 0.0
        %3810 = vmatpush1.msra.mxu0 0.0
        %3811 = vmatprep.subr.mxu0 0.0
        %3812 = vmatpush1.msra.mxu0 0.0
        %3813 = vmatprep.subr.mxu0 0.0
        %3814 = vmatpush1.msra.mxu0 0.0
        %3815 = vmatprep.subr.mxu0 0.0
        %3816 = vmatpush1.msra.mxu0 0.0
        %3817 = vmatprep.subr.mxu0 0.0
        %3818 = vmatpush1.msra.mxu0 0.0
        %3819 = vmatprep.subr.mxu0 0.0
        %3820 = vmatpush1.msra.mxu0 0.0
        %3821 = vmatprep.subr.mxu0 0.0
        %3822 = vmatpush1.msra.mxu0 0.0
        %3823 = vmatprep.subr.mxu0 0.0
        %3824 = vmatpush1.msra.mxu0 0.0
        %3825 = vmatprep.subr.mxu0 0.0
        %3826 = vmatpush1.msra.mxu0 0.0
        %3827 = vmatprep.subr.mxu0 0.0
        %3828 = vmatpush1.msra.mxu0 0.0
        %3829 = vmatprep.subr.mxu0 0.0
        %3830 = vmatpush1.msra.mxu0 0.0
        %3831 = vmatprep.subr.mxu0 0.0
        %3832 = vmatpush1.msra.mxu0 0.0
        %3833 = vmatprep.subr.mxu0 0.0
        %3834 = vmatpush1.msra.mxu0 0.0
        %3835 = vmatprep.subr.mxu0 0.0
        %3836 = vmatpush1.msra.mxu0 0.0
        %3837 = vmatprep.subr.mxu0 0.0
        %3838 = vmatpush1.msra.mxu0 0.0
        %3839 = vmatprep.subr.mxu0 0.0
        %3840 = vmatpush1.msra.mxu0 0.0
        %3841 = vmatprep.subr.mxu0 0.0
        %3842 = vmatpush1.msra.mxu0 0.0
        %3843 = vmatprep.subr.mxu0 0.0
        %3844 = vmatpush1.msra.mxu0 0.0
        %3845 = vmatprep.subr.mxu0 0.0
        %3846 = vmatpush1.msra.mxu0 0.0
        %3847 = vmatprep.subr.mxu0 0.0
        %3848 = vmatpush1.msra.mxu0 0.0
        %3849 = vmatprep.subr.mxu0 0.0
        %3850 = vmatpush1.msra.mxu0 0.0
        %3851 = vmatprep.subr.mxu0 0.0
        %3852 = vmatpush1.msra.mxu0 0.0
        %3853 = vmatprep.subr.mxu0 0.0
        %3854 = vmatpush1.msra.mxu0 0.0
        %3855 = vmatprep.subr.mxu0 0.0
        %3856 = vmatpush1.msra.mxu0 0.0
        %3857 = vmatprep.subr.mxu0 0.0
        %3858 = vmatpush1.msra.mxu0 0.0
        %3859 = vmatprep.subr.mxu0 0.0
        %3860 = vmatpush1.msra.mxu0 0.0
        %3861 = vmatprep.subr.mxu0 0.0
        %3862 = vmatpush1.msra.mxu0 0.0
        %3863 = vmatprep.subr.mxu0 0.0
        %3864 = vmatpush1.msra.mxu0 0.0
        %3865 = vmatprep.mubr.f32.mxu0 0.0
        %v3866 = vand.u32 %v3718, 4294901760
        %3867 = vmatmul.mubr.f32.gmra.mrb[0].mxu0 %v3866
        %v3868 = vpop.f32.mrb[0].mxu0
        %v3869 = vadd.f32 %v3793, %v3868
        %v3870 = vpop.f32.mrb[0].mxu0
        %3871 = vdwg.mxu0
        %3872 = vmatprep.subr.mxu0 0.0
        %v3873 = vand.u32 %v3715, 4294901760
        %v3874 = vsub.f32 %v3715, %v3873
        %3875 = vmatpush1.msra.mxu0 %v3874
        %3876 = vmatprep.subr.mxu0 0.0
        %3877 = vmatpush1.msra.mxu0 0.0
        %3878 = vmatprep.subr.mxu0 0.0
        %3879 = vmatpush1.msra.mxu0 0.0
        %3880 = vmatprep.subr.mxu0 0.0
        %3881 = vmatpush1.msra.mxu0 0.0
        %3882 = vmatprep.subr.mxu0 0.0
        %3883 = vmatpush1.msra.mxu0 0.0
        %3884 = vmatprep.subr.mxu0 0.0
        %3885 = vmatpush1.msra.mxu0 0.0
        %3886 = vmatprep.subr.mxu0 0.0
        %3887 = vmatpush1.msra.mxu0 0.0
        %3888 = vmatprep.subr.mxu0 0.0
        %3889 = vmatpush1.msra.mxu0 0.0
        %3890 = vmatprep.subr.mxu0 0.0
        %3891 = vmatpush1.msra.mxu0 0.0
        %3892 = vmatprep.subr.mxu0 0.0
        %3893 = vmatpush1.msra.mxu0 0.0
        %3894 = vmatprep.subr.mxu0 0.0
        %3895 = vmatpush1.msra.mxu0 0.0
        %3896 = vmatprep.subr.mxu0 0.0
        %3897 = vmatpush1.msra.mxu0 0.0
        %3898 = vmatprep.subr.mxu0 0.0
        %3899 = vmatpush1.msra.mxu0 0.0
        %3900 = vmatprep.subr.mxu0 0.0
        %3901 = vmatpush1.msra.mxu0 0.0
        %3902 = vmatprep.subr.mxu0 0.0
        %3903 = vmatpush1.msra.mxu0 0.0
        %3904 = vmatprep.subr.mxu0 0.0
        %3905 = vmatpush1.msra.mxu0 0.0
        %3906 = vmatprep.subr.mxu0 0.0
        %3907 = vmatpush1.msra.mxu0 0.0
        %3908 = vmatprep.subr.mxu0 0.0
        %3909 = vmatpush1.msra.mxu0 0.0
        %3910 = vmatprep.subr.mxu0 0.0
        %3911 = vmatpush1.msra.mxu0 0.0
        %3912 = vmatprep.subr.mxu0 0.0
        %3913 = vmatpush1.msra.mxu0 0.0
        %3914 = vmatprep.subr.mxu0 0.0
        %3915 = vmatpush1.msra.mxu0 0.0
        %3916 = vmatprep.subr.mxu0 0.0
        %3917 = vmatpush1.msra.mxu0 0.0
        %3918 = vmatprep.subr.mxu0 0.0
        %3919 = vmatpush1.msra.mxu0 0.0
        %3920 = vmatprep.subr.mxu0 0.0
        %3921 = vmatpush1.msra.mxu0 0.0
        %3922 = vmatprep.subr.mxu0 0.0
        %3923 = vmatpush1.msra.mxu0 0.0
        %3924 = vmatprep.subr.mxu0 0.0
        %3925 = vmatpush1.msra.mxu0 0.0
        %3926 = vmatprep.subr.mxu0 0.0
        %3927 = vmatpush1.msra.mxu0 0.0
        %3928 = vmatprep.subr.mxu0 0.0
        %3929 = vmatpush1.msra.mxu0 0.0
        %3930 = vmatprep.subr.mxu0 0.0
        %3931 = vmatpush1.msra.mxu0 0.0
        %3932 = vmatprep.subr.mxu0 0.0
        %3933 = vmatpush1.msra.mxu0 0.0
        %3934 = vmatprep.subr.mxu0 0.0
        %3935 = vmatpush1.msra.mxu0 0.0
        %3936 = vmatprep.subr.mxu0 0.0
        %3937 = vmatpush1.msra.mxu0 0.0
        %3938 = vmatprep.mubr.f32.mxu0 0.0
        %v3939 = vand.u32 %v3718, 4294901760
        %v3940 = vsub.f32 %v3718, %v3939
        %3941 = vmatmul.mubr.f32.gmra.mrb[0].mxu0 %v3940
        %v3942 = vpop.f32.mrb[0].mxu0
        %v3943 = vadd.f32 %v3869, %v3942
        %v3944 = vpop.f32.mrb[0].mxu0
        %3945 = vdwg.mxu0
        %3946 = vmatprep.subr.mxu0 0.0
        %v3947 = vand.u32 %v3715, 4294901760
        %3948 = vmatpush1.msra.mxu0 %v3947
        %3949 = vmatprep.subr.mxu0 0.0
        %3950 = vmatpush1.msra.mxu0 0.0
        %3951 = vmatprep.subr.mxu0 0.0
        %3952 = vmatpush1.msra.mxu0 0.0
        %3953 = vmatprep.subr.mxu0 0.0
        %3954 = vmatpush1.msra.mxu0 0.0
        %3955 = vmatprep.subr.mxu0 0.0
        %3956 = vmatpush1.msra.mxu0 0.0
        %3957 = vmatprep.subr.mxu0 0.0
        %3958 = vmatpush1.msra.mxu0 0.0
        %3959 = vmatprep.subr.mxu0 0.0
        %3960 = vmatpush1.msra.mxu0 0.0
        %3961 = vmatprep.subr.mxu0 0.0
        %3962 = vmatpush1.msra.mxu0 0.0
        %3963 = vmatprep.subr.mxu0 0.0
        %3964 = vmatpush1.msra.mxu0 0.0
        %3965 = vmatprep.subr.mxu0 0.0
        %3966 = vmatpush1.msra.mxu0 0.0
        %3967 = vmatprep.subr.mxu0 0.0
        %3968 = vmatpush1.msra.mxu0 0.0
        %3969 = vmatprep.subr.mxu0 0.0
        %3970 = vmatpush1.msra.mxu0 0.0
        %3971 = vmatprep.subr.mxu0 0.0
        %3972 = vmatpush1.msra.mxu0 0.0
        %3973 = vmatprep.subr.mxu0 0.0
        %3974 = vmatpush1.msra.mxu0 0.0
        %3975 = vmatprep.subr.mxu0 0.0
        %3976 = vmatpush1.msra.mxu0 0.0
        %3977 = vmatprep.subr.mxu0 0.0
        %3978 = vmatpush1.msra.mxu0 0.0
        %3979 = vmatprep.subr.mxu0 0.0
        %3980 = vmatpush1.msra.mxu0 0.0
        %3981 = vmatprep.subr.mxu0 0.0
        %3982 = vmatpush1.msra.mxu0 0.0
        %3983 = vmatprep.subr.mxu0 0.0
        %3984 = vmatpush1.msra.mxu0 0.0
        %3985 = vmatprep.subr.mxu0 0.0
        %3986 = vmatpush1.msra.mxu0 0.0
        %3987 = vmatprep.subr.mxu0 0.0
        %3988 = vmatpush1.msra.mxu0 0.0
        %3989 = vmatprep.subr.mxu0 0.0
        %3990 = vmatpush1.msra.mxu0 0.0
        %3991 = vmatprep.subr.mxu0 0.0
        %3992 = vmatpush1.msra.mxu0 0.0
        %3993 = vmatprep.subr.mxu0 0.0
        %3994 = vmatpush1.msra.mxu0 0.0
        %3995 = vmatprep.subr.mxu0 0.0
        %3996 = vmatpush1.msra.mxu0 0.0
        %3997 = vmatprep.subr.mxu0 0.0
        %3998 = vmatpush1.msra.mxu0 0.0
        %3999 = vmatprep.subr.mxu0 0.0
        %4000 = vmatpush1.msra.mxu0 0.0
        %4001 = vmatprep.subr.mxu0 0.0
        %4002 = vmatpush1.msra.mxu0 0.0
        %4003 = vmatprep.subr.mxu0 0.0
        %4004 = vmatpush1.msra.mxu0 0.0
        %4005 = vmatprep.subr.mxu0 0.0
        %4006 = vmatpush1.msra.mxu0 0.0
        %4007 = vmatprep.subr.mxu0 0.0
        %4008 = vmatpush1.msra.mxu0 0.0
        %4009 = vmatprep.subr.mxu0 0.0
        %4010 = vmatpush1.msra.mxu0 0.0
        %4011 = vmatprep.mubr.f32.mxu0 0.0
        %v4012 = vand.u32 %v3718, 4294901760
        %v4013 = vsub.f32 %v3718, %v4012
        %v4014 = vand.u32 %v4013, 4294901760
        %4015 = vmatmul.mubr.f32.gmra.mrb[0].mxu0 %v4014
        %v4016 = vpop.f32.mrb[0].mxu0
        %v4017 = vadd.f32 %v3943, %v4016
        %v4018 = vpop.f32.mrb[0].mxu0
        %4019 = vdwg.mxu0
        %4020 = vmatprep.subr.mxu0 0.0
        %v4021 = vand.u32 %v3715, 4294901760
        %v4022 = vsub.f32 %v3715, %v4021
        %v4023 = vand.u32 %v4022, 4294901760
        %4024 = vmatpush1.msra.mxu0 %v4023
        %4025 = vmatprep.subr.mxu0 0.0
        %4026 = vmatpush1.msra.mxu0 0.0
        %4027 = vmatprep.subr.mxu0 0.0
        %4028 = vmatpush1.msra.mxu0 0.0
        %4029 = vmatprep.subr.mxu0 0.0
        %4030 = vmatpush1.msra.mxu0 0.0
        %4031 = vmatprep.subr.mxu0 0.0
        %4032 = vmatpush1.msra.mxu0 0.0
        %4033 = vmatprep.subr.mxu0 0.0
        %4034 = vmatpush1.msra.mxu0 0.0
        %4035 = vmatprep.subr.mxu0 0.0
        %4036 = vmatpush1.msra.mxu0 0.0
        %4037 = vmatprep.subr.mxu0 0.0
        %4038 = vmatpush1.msra.mxu0 0.0
        %4039 = vmatprep.subr.mxu0 0.0
        %4040 = vmatpush1.msra.mxu0 0.0
        %4041 = vmatprep.subr.mxu0 0.0
        %4042 = vmatpush1.msra.mxu0 0.0
        %4043 = vmatprep.subr.mxu0 0.0
        %4044 = vmatpush1.msra.mxu0 0.0
        %4045 = vmatprep.subr.mxu0 0.0
        %4046 = vmatpush1.msra.mxu0 0.0
        %4047 = vmatprep.subr.mxu0 0.0
        %4048 = vmatpush1.msra.mxu0 0.0
        %4049 = vmatprep.subr.mxu0 0.0
        %4050 = vmatpush1.msra.mxu0 0.0
        %4051 = vmatprep.subr.mxu0 0.0
        %4052 = vmatpush1.msra.mxu0 0.0
        %4053 = vmatprep.subr.mxu0 0.0
        %4054 = vmatpush1.msra.mxu0 0.0
        %4055 = vmatprep.subr.mxu0 0.0
        %4056 = vmatpush1.msra.mxu0 0.0
        %4057 = vmatprep.subr.mxu0 0.0
        %4058 = vmatpush1.msra.mxu0 0.0
        %4059 = vmatprep.subr.mxu0 0.0
        %4060 = vmatpush1.msra.mxu0 0.0
        %4061 = vmatprep.subr.mxu0 0.0
        %4062 = vmatpush1.msra.mxu0 0.0
        %4063 = vmatprep.subr.mxu0 0.0
        %4064 = vmatpush1.msra.mxu0 0.0
        %4065 = vmatprep.subr.mxu0 0.0
        %4066 = vmatpush1.msra.mxu0 0.0
        %4067 = vmatprep.subr.mxu0 0.0
        %4068 = vmatpush1.msra.mxu0 0.0
        %4069 = vmatprep.subr.mxu0 0.0
        %4070 = vmatpush1.msra.mxu0 0.0
        %4071 = vmatprep.subr.mxu0 0.0
        %4072 = vmatpush1.msra.mxu0 0.0
        %4073 = vmatprep.subr.mxu0 0.0
        %4074 = vmatpush1.msra.mxu0 0.0
        %4075 = vmatprep.subr.mxu0 0.0
        %4076 = vmatpush1.msra.mxu0 0.0
        %4077 = vmatprep.subr.mxu0 0.0
        %4078 = vmatpush1.msra.mxu0 0.0
        %4079 = vmatprep.subr.mxu0 0.0
        %4080 = vmatpush1.msra.mxu0 0.0
        %4081 = vmatprep.subr.mxu0 0.0
        %4082 = vmatpush1.msra.mxu0 0.0
        %4083 = vmatprep.subr.mxu0 0.0
        %4084 = vmatpush1.msra.mxu0 0.0
        %4085 = vmatprep.subr.mxu0 0.0
        %4086 = vmatpush1.msra.mxu0 0.0
        %4087 = vmatprep.mubr.f32.mxu0 0.0
        %v4088 = vand.u32 %v3718, 4294901760
        %4089 = vmatmul.mubr.f32.gmra.mrb[0].mxu0 %v4088
        %v4090 = vpop.f32.mrb[0].mxu0
        %v4091 = vadd.f32 %v4017, %v4090
        %v4092 = vpop.f32.mrb[0].mxu0
        %4093 = vdwg.mxu0
        %4094 = vmatprep.subr.mxu0 0.0
        %v4095 = vand.u32 %v3715, 4294901760
        %4096 = vmatpush1.msra.mxu0 %v4095
        %4097 = vmatprep.subr.mxu0 0.0
        %4098 = vmatpush1.msra.mxu0 0.0
        %4099 = vmatprep.subr.mxu0 0.0
        %4100 = vmatpush1.msra.mxu0 0.0
        %4101 = vmatprep.subr.mxu0 0.0
        %4102 = vmatpush1.msra.mxu0 0.0
        %4103 = vmatprep.subr.mxu0 0.0
        %4104 = vmatpush1.msra.mxu0 0.0
        %4105 = vmatprep.subr.mxu0 0.0
        %4106 = vmatpush1.msra.mxu0 0.0
        %4107 = vmatprep.subr.mxu0 0.0
        %4108 = vmatpush1.msra.mxu0 0.0
        %4109 = vmatprep.subr.mxu0 0.0
        %4110 = vmatpush1.msra.mxu0 0.0
        %4111 = vmatprep.subr.mxu0 0.0
        %4112 = vmatpush1.msra.mxu0 0.0
        %4113 = vmatprep.subr.mxu0 0.0
        %4114 = vmatpush1.msra.mxu0 0.0
        %4115 = vmatprep.subr.mxu0 0.0
        %4116 = vmatpush1.msra.mxu0 0.0
        %4117 = vmatprep.subr.mxu0 0.0
        %4118 = vmatpush1.msra.mxu0 0.0
        %4119 = vmatprep.subr.mxu0 0.0
        %4120 = vmatpush1.msra.mxu0 0.0
        %4121 = vmatprep.subr.mxu0 0.0
        %4122 = vmatpush1.msra.mxu0 0.0
        %4123 = vmatprep.subr.mxu0 0.0
        %4124 = vmatpush1.msra.mxu0 0.0
        %4125 = vmatprep.subr.mxu0 0.0
        %4126 = vmatpush1.msra.mxu0 0.0
        %4127 = vmatprep.subr.mxu0 0.0
        %4128 = vmatpush1.msra.mxu0 0.0
        %4129 = vmatprep.subr.mxu0 0.0
        %4130 = vmatpush1.msra.mxu0 0.0
        %4131 = vmatprep.subr.mxu0 0.0
        %4132 = vmatpush1.msra.mxu0 0.0
        %4133 = vmatprep.subr.mxu0 0.0
        %4134 = vmatpush1.msra.mxu0 0.0
        %4135 = vmatprep.subr.mxu0 0.0
        %4136 = vmatpush1.msra.mxu0 0.0
        %4137 = vmatprep.subr.mxu0 0.0
        %4138 = vmatpush1.msra.mxu0 0.0
        %4139 = vmatprep.subr.mxu0 0.0
        %4140 = vmatpush1.msra.mxu0 0.0
        %4141 = vmatprep.subr.mxu0 0.0
        %4142 = vmatpush1.msra.mxu0 0.0
        %4143 = vmatprep.subr.mxu0 0.0
        %4144 = vmatpush1.msra.mxu0 0.0
        %4145 = vmatprep.subr.mxu0 0.0
        %4146 = vmatpush1.msra.mxu0 0.0
        %4147 = vmatprep.subr.mxu0 0.0
        %4148 = vmatpush1.msra.mxu0 0.0
        %4149 = vmatprep.subr.mxu0 0.0
        %4150 = vmatpush1.msra.mxu0 0.0
        %4151 = vmatprep.subr.mxu0 0.0
        %4152 = vmatpush1.msra.mxu0 0.0
        %4153 = vmatprep.subr.mxu0 0.0
        %4154 = vmatpush1.msra.mxu0 0.0
        %4155 = vmatprep.subr.mxu0 0.0
        %4156 = vmatpush1.msra.mxu0 0.0
        %4157 = vmatprep.subr.mxu0 0.0
        %4158 = vmatpush1.msra.mxu0 0.0
        %4159 = vmatprep.mubr.f32.mxu0 0.0
        %v4160 = vand.u32 %v3718, 4294901760
        %4161 = vmatmul.mubr.f32.gmra.mrb[0].mxu0 %v4160
        %v4162 = vpop.f32.mrb[0].mxu0
        %v4163 = vadd.f32 %v4091, %v4162
        %v4164 = vpop.f32.mrb[0].mxu0
        %4165 = vdwg.mxu0
        %v4166 = vrcp.pop %v4163
        %v4167 = vmul.f32 %v3715, %v4166
        %v4168 = vadd.f32 %v3699, %v3701
        %4169 = vadd.xlane.f32.xlu0 %v4168
        %v4170 = vpop.xlane.xlu0 %4169
        %v4171 = vmul.f32 %v4170, %v2818
        %v4172 = vrot.slane %v4171, 4
        %v4173 = vmax.f32 %v4171, %v4172
        %v4174 = vrot.slane %v4173, 2
        %v4175 = vmax.f32 %v4173, %v4174
        %v4176 = vrot.slane %v4175, 1
        %v4177 = vmax.f32 %v4175, %v4176
        %v4178 = vsub.f32 %v4171, %v4177
        %v4179 = vmul.f32 %v4178, 1.442695
        %v4180 = vpow.pop %v4179
        %4181 = vmatprep.subr.mxu0 0.0
        %v4182 = vand.u32 %v4180, 4294901760
        %4183 = vmatpush1.msra.mxu0 %v4182
        %4184 = vmatprep.subr.mxu0 0.0
        %4185 = vmatpush1.msra.mxu0 0.0
        %4186 = vmatprep.subr.mxu0 0.0
        %4187 = vmatpush1.msra.mxu0 0.0
        %4188 = vmatprep.subr.mxu0 0.0
        %4189 = vmatpush1.msra.mxu0 0.0
        %4190 = vmatprep.subr.mxu0 0.0
        %4191 = vmatpush1.msra.mxu0 0.0
        %4192 = vmatprep.subr.mxu0 0.0
        %4193 = vmatpush1.msra.mxu0 0.0
        %4194 = vmatprep.subr.mxu0 0.0
        %4195 = vmatpush1.msra.mxu0 0.0
        %4196 = vmatprep.subr.mxu0 0.0
        %4197 = vmatpush1.msra.mxu0 0.0
        %4198 = vmatprep.subr.mxu0 0.0
        %4199 = vmatpush1.msra.mxu0 0.0
        %4200 = vmatprep.subr.mxu0 0.0
        %4201 = vmatpush1.msra.mxu0 0.0
        %4202 = vmatprep.subr.mxu0 0.0
        %4203 = vmatpush1.msra.mxu0 0.0
        %4204 = vmatprep.subr.mxu0 0.0
        %4205 = vmatpush1.msra.mxu0 0.0
        %4206 = vmatprep.subr.mxu0 0.0
        %4207 = vmatpush1.msra.mxu0 0.0
        %4208 = vmatprep.subr.mxu0 0.0
        %4209 = vmatpush1.msra.mxu0 0.0
        %4210 = vmatprep.subr.mxu0 0.0
        %4211 = vmatpush1.msra.mxu0 0.0
        %4212 = vmatprep.subr.mxu0 0.0
        %4213 = vmatpush1.msra.mxu0 0.0
        %4214 = vmatprep.subr.mxu0 0.0
        %4215 = vmatpush1.msra.mxu0 0.0
        %4216 = vmatprep.subr.mxu0 0.0
        %4217 = vmatpush1.msra.mxu0 0.0
        %4218 = vmatprep.subr.mxu0 0.0
        %4219 = vmatpush1.msra.mxu0 0.0
        %4220 = vmatprep.subr.mxu0 0.0
        %4221 = vmatpush1.msra.mxu0 0.0
        %4222 = vmatprep.subr.mxu0 0.0
        %4223 = vmatpush1.msra.mxu0 0.0
        %4224 = vmatprep.subr.mxu0 0.0
        %4225 = vmatpush1.msra.mxu0 0.0
        %4226 = vmatprep.subr.mxu0 0.0
        %4227 = vmatpush1.msra.mxu0 0.0
        %4228 = vmatprep.subr.mxu0 0.0
        %4229 = vmatpush1.msra.mxu0 0.0
        %4230 = vmatprep.subr.mxu0 0.0
        %4231 = vmatpush1.msra.mxu0 0.0
        %4232 = vmatprep.subr.mxu0 0.0
        %4233 = vmatpush1.msra.mxu0 0.0
        %4234 = vmatprep.subr.mxu0 0.0
        %4235 = vmatpush1.msra.mxu0 0.0
        %4236 = vmatprep.subr.mxu0 0.0
        %4237 = vmatpush1.msra.mxu0 0.0
        %4238 = vmatprep.subr.mxu0 0.0
        %4239 = vmatpush1.msra.mxu0 0.0
        %4240 = vmatprep.subr.mxu0 0.0
        %4241 = vmatpush1.msra.mxu0 0.0
        %4242 = vmatprep.subr.mxu0 0.0
        %4243 = vmatpush1.msra.mxu0 0.0
        %4244 = vmatprep.subr.mxu0 0.0
        %4245 = vmatpush1.msra.mxu0 0.0
        %4246 = vmatprep.mubr.f32.mxu0 0.0
        %v4247 = vand.u32 %v3718, 4294901760
        %v4248 = vsub.f32 %v3718, %v4247
        %v4249 = vand.u32 %v4248, 4294901760
        %v4250 = vsub.f32 %v4248, %v4249
        %v4251 = vand.u32 %v4250, 4294901760
        %4252 = vmatmul.mubr.f32.gmra.mrb[0].mxu0 %v4251
        %v4253 = vpop.f32.mrb[0].mxu0
        %v4254 = vadd.f32 0.0, %v4253
        %v4255 = vpop.f32.mrb[0].mxu0
        %4256 = vdwg.mxu0
        %4257 = vmatprep.subr.mxu0 0.0
        %v4258 = vand.u32 %v4180, 4294901760
        %v4259 = vsub.f32 %v4180, %v4258
        %v4260 = vand.u32 %v4259, 4294901760
        %v4261 = vsub.f32 %v4259, %v4260
        %v4262 = vand.u32 %v4261, 4294901760
        %4263 = vmatpush1.msra.mxu0 %v4262
        %4264 = vmatprep.subr.mxu0 0.0
        %4265 = vmatpush1.msra.mxu0 0.0
        %4266 = vmatprep.subr.mxu0 0.0
        %4267 = vmatpush1.msra.mxu0 0.0
        %4268 = vmatprep.subr.mxu0 0.0
        %4269 = vmatpush1.msra.mxu0 0.0
        %4270 = vmatprep.subr.mxu0 0.0
        %4271 = vmatpush1.msra.mxu0 0.0
        %4272 = vmatprep.subr.mxu0 0.0
        %4273 = vmatpush1.msra.mxu0 0.0
        %4274 = vmatprep.subr.mxu0 0.0
        %4275 = vmatpush1.msra.mxu0 0.0
        %4276 = vmatprep.subr.mxu0 0.0
        %4277 = vmatpush1.msra.mxu0 0.0
        %4278 = vmatprep.subr.mxu0 0.0
        %4279 = vmatpush1.msra.mxu0 0.0
        %4280 = vmatprep.subr.mxu0 0.0
        %4281 = vmatpush1.msra.mxu0 0.0
        %4282 = vmatprep.subr.mxu0 0.0
        %4283 = vmatpush1.msra.mxu0 0.0
        %4284 = vmatprep.subr.mxu0 0.0
        %4285 = vmatpush1.msra.mxu0 0.0
        %4286 = vmatprep.subr.mxu0 0.0
        %4287 = vmatpush1.msra.mxu0 0.0
        %4288 = vmatprep.subr.mxu0 0.0
        %4289 = vmatpush1.msra.mxu0 0.0
        %4290 = vmatprep.subr.mxu0 0.0
        %4291 = vmatpush1.msra.mxu0 0.0
        %4292 = vmatprep.subr.mxu0 0.0
        %4293 = vmatpush1.msra.mxu0 0.0
        %4294 = vmatprep.subr.mxu0 0.0
        %4295 = vmatpush1.msra.mxu0 0.0
        %4296 = vmatprep.subr.mxu0 0.0
        %4297 = vmatpush1.msra.mxu0 0.0
        %4298 = vmatprep.subr.mxu0 0.0
        %4299 = vmatpush1.msra.mxu0 0.0
        %4300 = vmatprep.subr.mxu0 0.0
        %4301 = vmatpush1.msra.mxu0 0.0
        %4302 = vmatprep.subr.mxu0 0.0
        %4303 = vmatpush1.msra.mxu0 0.0
        %4304 = vmatprep.subr.mxu0 0.0
        %4305 = vmatpush1.msra.mxu0 0.0
        %4306 = vmatprep.subr.mxu0 0.0
        %4307 = vmatpush1.msra.mxu0 0.0
        %4308 = vmatprep.subr.mxu0 0.0
        %4309 = vmatpush1.msra.mxu0 0.0
        %4310 = vmatprep.subr.mxu0 0.0
        %4311 = vmatpush1.msra.mxu0 0.0
        %4312 = vmatprep.subr.mxu0 0.0
        %4313 = vmatpush1.msra.mxu0 0.0
        %4314 = vmatprep.subr.mxu0 0.0
        %4315 = vmatpush1.msra.mxu0 0.0
        %4316 = vmatprep.subr.mxu0 0.0
        %4317 = vmatpush1.msra.mxu0 0.0
        %4318 = vmatprep.subr.mxu0 0.0
        %4319 = vmatpush1.msra.mxu0 0.0
        %4320 = vmatprep.subr.mxu0 0.0
        %4321 = vmatpush1.msra.mxu0 0.0
        %4322 = vmatprep.subr.mxu0 0.0
        %4323 = vmatpush1.msra.mxu0 0.0
        %4324 = vmatprep.subr.mxu0 0.0
        %4325 = vmatpush1.msra.mxu0 0.0
        %4326 = vmatprep.mubr.f32.mxu0 0.0
        %v4327 = vand.u32 %v3718, 4294901760
        %4328 = vmatmul.mubr.f32.gmra.mrb[0].mxu0 %v4327
        %v4329 = vpop.f32.mrb[0].mxu0
        %v4330 = vadd.f32 %v4254, %v4329
        %v4331 = vpop.f32.mrb[0].mxu0
        %4332 = vdwg.mxu0
        %4333 = vmatprep.subr.mxu0 0.0
        %v4334 = vand.u32 %v4180, 4294901760
        %v4335 = vsub.f32 %v4180, %v4334
        %4336 = vmatpush1.msra.mxu0 %v4335
        %4337 = vmatprep.subr.mxu0 0.0
        %4338 = vmatpush1.msra.mxu0 0.0
        %4339 = vmatprep.subr.mxu0 0.0
        %4340 = vmatpush1.msra.mxu0 0.0
        %4341 = vmatprep.subr.mxu0 0.0
        %4342 = vmatpush1.msra.mxu0 0.0
        %4343 = vmatprep.subr.mxu0 0.0
        %4344 = vmatpush1.msra.mxu0 0.0
        %4345 = vmatprep.subr.mxu0 0.0
        %4346 = vmatpush1.msra.mxu0 0.0
        %4347 = vmatprep.subr.mxu0 0.0
        %4348 = vmatpush1.msra.mxu0 0.0
        %4349 = vmatprep.subr.mxu0 0.0
        %4350 = vmatpush1.msra.mxu0 0.0
        %4351 = vmatprep.subr.mxu0 0.0
        %4352 = vmatpush1.msra.mxu0 0.0
        %4353 = vmatprep.subr.mxu0 0.0
        %4354 = vmatpush1.msra.mxu0 0.0
        %4355 = vmatprep.subr.mxu0 0.0
        %4356 = vmatpush1.msra.mxu0 0.0
        %4357 = vmatprep.subr.mxu0 0.0
        %4358 = vmatpush1.msra.mxu0 0.0
        %4359 = vmatprep.subr.mxu0 0.0
        %4360 = vmatpush1.msra.mxu0 0.0
        %4361 = vmatprep.subr.mxu0 0.0
        %4362 = vmatpush1.msra.mxu0 0.0
        %4363 = vmatprep.subr.mxu0 0.0
        %4364 = vmatpush1.msra.mxu0 0.0
        %4365 = vmatprep.subr.mxu0 0.0
        %4366 = vmatpush1.msra.mxu0 0.0
        %4367 = vmatprep.subr.mxu0 0.0
        %4368 = vmatpush1.msra.mxu0 0.0
        %4369 = vmatprep.subr.mxu0 0.0
        %4370 = vmatpush1.msra.mxu0 0.0
        %4371 = vmatprep.subr.mxu0 0.0
        %4372 = vmatpush1.msra.mxu0 0.0
        %4373 = vmatprep.subr.mxu0 0.0
        %4374 = vmatpush1.msra.mxu0 0.0
        %4375 = vmatprep.subr.mxu0 0.0
        %4376 = vmatpush1.msra.mxu0 0.0
        %4377 = vmatprep.subr.mxu0 0.0
        %4378 = vmatpush1.msra.mxu0 0.0
        %4379 = vmatprep.subr.mxu0 0.0
        %4380 = vmatpush1.msra.mxu0 0.0
        %4381 = vmatprep.subr.mxu0 0.0
        %4382 = vmatpush1.msra.mxu0 0.0
        %4383 = vmatprep.subr.mxu0 0.0
        %4384 = vmatpush1.msra.mxu0 0.0
        %4385 = vmatprep.subr.mxu0 0.0
        %4386 = vmatpush1.msra.mxu0 0.0
        %4387 = vmatprep.subr.mxu0 0.0
        %4388 = vmatpush1.msra.mxu0 0.0
        %4389 = vmatprep.subr.mxu0 0.0
        %4390 = vmatpush1.msra.mxu0 0.0
        %4391 = vmatprep.subr.mxu0 0.0
        %4392 = vmatpush1.msra.mxu0 0.0
        %4393 = vmatprep.subr.mxu0 0.0
        %4394 = vmatpush1.msra.mxu0 0.0
        %4395 = vmatprep.subr.mxu0 0.0
        %4396 = vmatpush1.msra.mxu0 0.0
        %4397 = vmatprep.subr.mxu0 0.0
        %4398 = vmatpush1.msra.mxu0 0.0
        %4399 = vmatprep.mubr.f32.mxu0 0.0
        %v4400 = vand.u32 %v3718, 4294901760
        %v4401 = vsub.f32 %v3718, %v4400
        %4402 = vmatmul.mubr.f32.gmra.mrb[0].mxu0 %v4401
        %v4403 = vpop.f32.mrb[0].mxu0
        %v4404 = vadd.f32 %v4330, %v4403
        %v4405 = vpop.f32.mrb[0].mxu0
        %4406 = vdwg.mxu0
        %4407 = vmatprep.subr.mxu0 0.0
        %v4408 = vand.u32 %v4180, 4294901760
        %4409 = vmatpush1.msra.mxu0 %v4408
        %4410 = vmatprep.subr.mxu0 0.0
        %4411 = vmatpush1.msra.mxu0 0.0
        %4412 = vmatprep.subr.mxu0 0.0
        %4413 = vmatpush1.msra.mxu0 0.0
        %4414 = vmatprep.subr.mxu0 0.0
        %4415 = vmatpush1.msra.mxu0 0.0
        %4416 = vmatprep.subr.mxu0 0.0
        %4417 = vmatpush1.msra.mxu0 0.0
        %4418 = vmatprep.subr.mxu0 0.0
        %4419 = vmatpush1.msra.mxu0 0.0
        %4420 = vmatprep.subr.mxu0 0.0
        %4421 = vmatpush1.msra.mxu0 0.0
        %4422 = vmatprep.subr.mxu0 0.0
        %4423 = vmatpush1.msra.mxu0 0.0
        %4424 = vmatprep.subr.mxu0 0.0
        %4425 = vmatpush1.msra.mxu0 0.0
        %4426 = vmatprep.subr.mxu0 0.0
        %4427 = vmatpush1.msra.mxu0 0.0
        %4428 = vmatprep.subr.mxu0 0.0
        %4429 = vmatpush1.msra.mxu0 0.0
        %4430 = vmatprep.subr.mxu0 0.0
        %4431 = vmatpush1.msra.mxu0 0.0
        %4432 = vmatprep.subr.mxu0 0.0
        %4433 = vmatpush1.msra.mxu0 0.0
        %4434 = vmatprep.subr.mxu0 0.0
        %4435 = vmatpush1.msra.mxu0 0.0
        %4436 = vmatprep.subr.mxu0 0.0
        %4437 = vmatpush1.msra.mxu0 0.0
        %4438 = vmatprep.subr.mxu0 0.0
        %4439 = vmatpush1.msra.mxu0 0.0
        %4440 = vmatprep.subr.mxu0 0.0
        %4441 = vmatpush1.msra.mxu0 0.0
        %4442 = vmatprep.subr.mxu0 0.0
        %4443 = vmatpush1.msra.mxu0 0.0
        %4444 = vmatprep.subr.mxu0 0.0
        %4445 = vmatpush1.msra.mxu0 0.0
        %4446 = vmatprep.subr.mxu0 0.0
        %4447 = vmatpush1.msra.mxu0 0.0
        %4448 = vmatprep.subr.mxu0 0.0
        %4449 = vmatpush1.msra.mxu0 0.0
        %4450 = vmatprep.subr.mxu0 0.0
        %4451 = vmatpush1.msra.mxu0 0.0
        %4452 = vmatprep.subr.mxu0 0.0
        %4453 = vmatpush1.msra.mxu0 0.0
        %4454 = vmatprep.subr.mxu0 0.0
        %4455 = vmatpush1.msra.mxu0 0.0
        %4456 = vmatprep.subr.mxu0 0.0
        %4457 = vmatpush1.msra.mxu0 0.0
        %4458 = vmatprep.subr.mxu0 0.0
        %4459 = vmatpush1.msra.mxu0 0.0
        %4460 = vmatprep.subr.mxu0 0.0
        %4461 = vmatpush1.msra.mxu0 0.0
        %4462 = vmatprep.subr.mxu0 0.0
        %4463 = vmatpush1.msra.mxu0 0.0
        %4464 = vmatprep.subr.mxu0 0.0
        %4465 = vmatpush1.msra.mxu0 0.0
        %4466 = vmatprep.subr.mxu0 0.0
        %4467 = vmatpush1.msra.mxu0 0.0
        %4468 = vmatprep.subr.mxu0 0.0
        %4469 = vmatpush1.msra.mxu0 0.0
        %4470 = vmatprep.subr.mxu0 0.0
        %4471 = vmatpush1.msra.mxu0 0.0
        %4472 = vmatprep.mubr.f32.mxu0 0.0
        %v4473 = vand.u32 %v3718, 4294901760
        %v4474 = vsub.f32 %v3718, %v4473
        %v4475 = vand.u32 %v4474, 4294901760
        %4476 = vmatmul.mubr.f32.gmra.mrb[0].mxu0 %v4475
        %v4477 = vpop.f32.mrb[0].mxu0
        %v4478 = vadd.f32 %v4404, %v4477
        %v4479 = vpop.f32.mrb[0].mxu0
        %4480 = vdwg.mxu0
        %4481 = vmatprep.subr.mxu0 0.0
        %v4482 = vand.u32 %v4180, 4294901760
        %v4483 = vsub.f32 %v4180, %v4482
        %v4484 = vand.u32 %v4483, 4294901760
        %4485 = vmatpush1.msra.mxu0 %v4484
        %4486 = vmatprep.subr.mxu0 0.0
        %4487 = vmatpush1.msra.mxu0 0.0
        %4488 = vmatprep.subr.mxu0 0.0
        %4489 = vmatpush1.msra.mxu0 0.0
        %4490 = vmatprep.subr.mxu0 0.0
        %4491 = vmatpush1.msra.mxu0 0.0
        %4492 = vmatprep.subr.mxu0 0.0
        %4493 = vmatpush1.msra.mxu0 0.0
        %4494 = vmatprep.subr.mxu0 0.0
        %4495 = vmatpush1.msra.mxu0 0.0
        %4496 = vmatprep.subr.mxu0 0.0
        %4497 = vmatpush1.msra.mxu0 0.0
        %4498 = vmatprep.subr.mxu0 0.0
        %4499 = vmatpush1.msra.mxu0 0.0
        %4500 = vmatprep.subr.mxu0 0.0
        %4501 = vmatpush1.msra.mxu0 0.0
        %4502 = vmatprep.subr.mxu0 0.0
        %4503 = vmatpush1.msra.mxu0 0.0
        %4504 = vmatprep.subr.mxu0 0.0
        %4505 = vmatpush1.msra.mxu0 0.0
        %4506 = vmatprep.subr.mxu0 0.0
        %4507 = vmatpush1.msra.mxu0 0.0
        %4508 = vmatprep.subr.mxu0 0.0
        %4509 = vmatpush1.msra.mxu0 0.0
        %4510 = vmatprep.subr.mxu0 0.0
        %4511 = vmatpush1.msra.mxu0 0.0
        %4512 = vmatprep.subr.mxu0 0.0
        %4513 = vmatpush1.msra.mxu0 0.0
        %4514 = vmatprep.subr.mxu0 0.0
        %4515 = vmatpush1.msra.mxu0 0.0
        %4516 = vmatprep.subr.mxu0 0.0
        %4517 = vmatpush1.msra.mxu0 0.0
        %4518 = vmatprep.subr.mxu0 0.0
        %4519 = vmatpush1.msra.mxu0 0.0
        %4520 = vmatprep.subr.mxu0 0.0
        %4521 = vmatpush1.msra.mxu0 0.0
        %4522 = vmatprep.subr.mxu0 0.0
        %4523 = vmatpush1.msra.mxu0 0.0
        %4524 = vmatprep.subr.mxu0 0.0
        %4525 = vmatpush1.msra.mxu0 0.0
        %4526 = vmatprep.subr.mxu0 0.0
        %4527 = vmatpush1.msra.mxu0 0.0
        %4528 = vmatprep.subr.mxu0 0.0
        %4529 = vmatpush1.msra.mxu0 0.0
        %4530 = vmatprep.subr.mxu0 0.0
        %4531 = vmatpush1.msra.mxu0 0.0
        %4532 = vmatprep.subr.mxu0 0.0
        %4533 = vmatpush1.msra.mxu0 0.0
        %4534 = vmatprep.subr.mxu0 0.0
        %4535 = vmatpush1.msra.mxu0 0.0
        %4536 = vmatprep.subr.mxu0 0.0
        %4537 = vmatpush1.msra.mxu0 0.0
        %4538 = vmatprep.subr.mxu0 0.0
        %4539 = vmatpush1.msra.mxu0 0.0
        %4540 = vmatprep.subr.mxu0 0.0
        %4541 = vmatpush1.msra.mxu0 0.0
        %4542 = vmatprep.subr.mxu0 0.0
        %4543 = vmatpush1.msra.mxu0 0.0
        %4544 = vmatprep.subr.mxu0 0.0
        %4545 = vmatpush1.msra.mxu0 0.0
        %4546 = vmatprep.subr.mxu0 0.0
        %4547 = vmatpush1.msra.mxu0 0.0
        %4548 = vmatprep.mubr.f32.mxu0 0.0
        %v4549 = vand.u32 %v3718, 4294901760
        %4550 = vmatmul.mubr.f32.gmra.mrb[0].mxu0 %v4549
        %v4551 = vpop.f32.mrb[0].mxu0
        %v4552 = vadd.f32 %v4478, %v4551
        %v4553 = vpop.f32.mrb[0].mxu0
        %4554 = vdwg.mxu0
        %4555 = vmatprep.subr.mxu0 0.0
        %v4556 = vand.u32 %v4180, 4294901760
        %4557 = vmatpush1.msra.mxu0 %v4556
        %4558 = vmatprep.subr.mxu0 0.0
        %4559 = vmatpush1.msra.mxu0 0.0
        %4560 = vmatprep.subr.mxu0 0.0
        %4561 = vmatpush1.msra.mxu0 0.0
        %4562 = vmatprep.subr.mxu0 0.0
        %4563 = vmatpush1.msra.mxu0 0.0
        %4564 = vmatprep.subr.mxu0 0.0
        %4565 = vmatpush1.msra.mxu0 0.0
        %4566 = vmatprep.subr.mxu0 0.0
        %4567 = vmatpush1.msra.mxu0 0.0
        %4568 = vmatprep.subr.mxu0 0.0
        %4569 = vmatpush1.msra.mxu0 0.0
        %4570 = vmatprep.subr.mxu0 0.0
        %4571 = vmatpush1.msra.mxu0 0.0
        %4572 = vmatprep.subr.mxu0 0.0
        %4573 = vmatpush1.msra.mxu0 0.0
        %4574 = vmatprep.subr.mxu0 0.0
        %4575 = vmatpush1.msra.mxu0 0.0
        %4576 = vmatprep.subr.mxu0 0.0
        %4577 = vmatpush1.msra.mxu0 0.0
        %4578 = vmatprep.subr.mxu0 0.0
        %4579 = vmatpush1.msra.mxu0 0.0
        %4580 = vmatprep.subr.mxu0 0.0
        %4581 = vmatpush1.msra.mxu0 0.0
        %4582 = vmatprep.subr.mxu0 0.0
        %4583 = vmatpush1.msra.mxu0 0.0
        %4584 = vmatprep.subr.mxu0 0.0
        %4585 = vmatpush1.msra.mxu0 0.0
        %4586 = vmatprep.subr.mxu0 0.0
        %4587 = vmatpush1.msra.mxu0 0.0
        %4588 = vmatprep.subr.mxu0 0.0
        %4589 = vmatpush1.msra.mxu0 0.0
        %4590 = vmatprep.subr.mxu0 0.0
        %4591 = vmatpush1.msra.mxu0 0.0
        %4592 = vmatprep.subr.mxu0 0.0
        %4593 = vmatpush1.msra.mxu0 0.0
        %4594 = vmatprep.subr.mxu0 0.0
        %4595 = vmatpush1.msra.mxu0 0.0
        %4596 = vmatprep.subr.mxu0 0.0
        %4597 = vmatpush1.msra.mxu0 0.0
        %4598 = vmatprep.subr.mxu0 0.0
        %4599 = vmatpush1.msra.mxu0 0.0
        %4600 = vmatprep.subr.mxu0 0.0
        %4601 = vmatpush1.msra.mxu0 0.0
        %4602 = vmatprep.subr.mxu0 0.0
        %4603 = vmatpush1.msra.mxu0 0.0
        %4604 = vmatprep.subr.mxu0 0.0
        %4605 = vmatpush1.msra.mxu0 0.0
        %4606 = vmatprep.subr.mxu0 0.0
        %4607 = vmatpush1.msra.mxu0 0.0
        %4608 = vmatprep.subr.mxu0 0.0
        %4609 = vmatpush1.msra.mxu0 0.0
        %4610 = vmatprep.subr.mxu0 0.0
        %4611 = vmatpush1.msra.mxu0 0.0
        %4612 = vmatprep.subr.mxu0 0.0
        %4613 = vmatpush1.msra.mxu0 0.0
        %4614 = vmatprep.subr.mxu0 0.0
        %4615 = vmatpush1.msra.mxu0 0.0
        %4616 = vmatprep.subr.mxu0 0.0
        %4617 = vmatpush1.msra.mxu0 0.0
        %4618 = vmatprep.subr.mxu0 0.0
        %4619 = vmatpush1.msra.mxu0 0.0
        %4620 = vmatprep.mubr.f32.mxu0 0.0
        %v4621 = vand.u32 %v3718, 4294901760
        %4622 = vmatmul.mubr.f32.gmra.mrb[0].mxu0 %v4621
        %v4623 = vpop.f32.mrb[0].mxu0
        %v4624 = vadd.f32 %v4552, %v4623
        %v4625 = vpop.f32.mrb[0].mxu0
        %4626 = vdwg.mxu0
        %v4627 = vrcp.pop %v4624
        %v4628 = vmul.f32 %v4180, %v4627
        %4630 = vset.pattern.permute.xlu0 0
        %4631 = vperm.xlu0 %4630, %v4167
        %v4632 = vpop.permute.xlu0 %4631
        %v4634 = vmul.f32 %v4632, %v3699
        %v4635 = vmul.f32 %v4632, %v3701
        %4637 = vset.pattern.permute.xlu0 0
        %4638 = vperm.xlu0 %4637, %v4628
        %v4639 = vpop.permute.xlu0 %4638
        %v4641 = vmul.f32 %v4639, %v2842
        %v4642 = vmul.f32 %v4639, %v2843
        %v4643 = vadd.f32 %v4634, %v4641
        %v4644 = vadd.f32 %v4635, %v4642
        %v4645 = vand.u32 %v4644, 4294901760
        %4646 = vmatprep.subr.mxu0 %v4645
        %v4647 = vand.u32 %v4643, 4294901760
        %4648 = vmatpush1.msra.mxu0 %v4647
        %4649 = vmatprep.subr.mxu0 0.0
        %4650 = vmatpush1.msra.mxu0 0.0
        %4651 = vmatprep.subr.mxu0 0.0
        %4652 = vmatpush1.msra.mxu0 0.0
        %4653 = vmatprep.subr.mxu0 0.0
        %4654 = vmatpush1.msra.mxu0 0.0
        %4655 = vmatprep.subr.mxu0 0.0
        %4656 = vmatpush1.msra.mxu0 0.0
        %4657 = vmatprep.subr.mxu0 0.0
        %4658 = vmatpush1.msra.mxu0 0.0
        %4659 = vmatprep.subr.mxu0 0.0
        %4660 = vmatpush1.msra.mxu0 0.0
        %4661 = vmatprep.subr.mxu0 0.0
        %4662 = vmatpush1.msra.mxu0 0.0
        %4663 = vmatprep.subr.mxu0 0.0
        %4664 = vmatpush1.msra.mxu0 0.0
        %4665 = vmatprep.subr.mxu0 0.0
        %4666 = vmatpush1.msra.mxu0 0.0
        %4667 = vmatprep.subr.mxu0 0.0
        %4668 = vmatpush1.msra.mxu0 0.0
        %4669 = vmatprep.subr.mxu0 0.0
        %4670 = vmatpush1.msra.mxu0 0.0
        %4671 = vmatprep.subr.mxu0 0.0
        %4672 = vmatpush1.msra.mxu0 0.0
        %4673 = vmatprep.subr.mxu0 0.0
        %4674 = vmatpush1.msra.mxu0 0.0
        %4675 = vmatprep.subr.mxu0 0.0
        %4676 = vmatpush1.msra.mxu0 0.0
        %4677 = vmatprep.subr.mxu0 0.0
        %4678 = vmatpush1.msra.mxu0 0.0
        %4679 = vmatprep.subr.mxu0 0.0
        %4680 = vmatpush1.msra.mxu0 0.0
        %4681 = vmatprep.subr.mxu0 0.0
        %4682 = vmatpush1.msra.mxu0 0.0
        %4683 = vmatprep.subr.mxu0 0.0
        %4684 = vmatpush1.msra.mxu0 0.0
        %4685 = vmatprep.subr.mxu0 0.0
        %4686 = vmatpush1.msra.mxu0 0.0
        %4687 = vmatprep.subr.mxu0 0.0
        %4688 = vmatpush1.msra.mxu0 0.0
        %4689 = vmatprep.subr.mxu0 0.0
        %4690 = vmatpush1.msra.mxu0 0.0
        %4691 = vmatprep.subr.mxu0 0.0
        %4692 = vmatpush1.msra.mxu0 0.0
        %4693 = vmatprep.subr.mxu0 0.0
        %4694 = vmatpush1.msra.mxu0 0.0
        %4695 = vmatprep.subr.mxu0 0.0
        %4696 = vmatpush1.msra.mxu0 0.0
        %4697 = vmatprep.subr.mxu0 0.0
        %4698 = vmatpush1.msra.mxu0 0.0
        %4699 = vmatprep.subr.mxu0 0.0
        %4700 = vmatpush1.msra.mxu0 0.0
        %4701 = vmatprep.subr.mxu0 0.0
        %4702 = vmatpush1.msra.mxu0 0.0
        %4703 = vmatprep.subr.mxu0 0.0
        %4704 = vmatpush1.msra.mxu0 0.0
        %4705 = vmatprep.subr.mxu0 0.0
        %4706 = vmatpush1.msra.mxu0 0.0
        %4707 = vmatprep.subr.mxu0 0.0
        %4708 = vmatpush1.msra.mxu0 0.0
        %4709 = vmatprep.subr.mxu0 0.0
        %4710 = vmatpush1.msra.mxu0 0.0
        %4711 = vmatprep.mubr.f32.mxu0 0.0
        %v4712 = vand.u32 %v3718, 4294901760
        %v4713 = vsub.f32 %v3718, %v4712
        %v4714 = vand.u32 %v4713, 4294901760
        %v4715 = vsub.f32 %v4713, %v4714
        %v4716 = vand.u32 %v4715, 4294901760
        %4717 = vmatmul.mubr.f32.gmra.mrb[0].mxu0 %v4716
        %v4718 = vpop.f32.mrb[0].mxu0
        %v4719 = vadd.f32 0.0, %v4718
        %v4720 = vpop.f32.mrb[0].mxu0
        %v4721 = vadd.f32 0.0, %v4720
        %4722 = vdwg.mxu0
        %v4723 = vand.u32 %v4644, 4294901760
        %v4724 = vsub.f32 %v4644, %v4723
        %v4725 = vand.u32 %v4724, 4294901760
        %v4726 = vsub.f32 %v4724, %v4725
        %v4727 = vand.u32 %v4726, 4294901760
        %4728 = vmatprep.subr.mxu0 %v4727
        %v4729 = vand.u32 %v4643, 4294901760
        %v4730 = vsub.f32 %v4643, %v4729
        %v4731 = vand.u32 %v4730, 4294901760
        %v4732 = vsub.f32 %v4730, %v4731
        %v4733 = vand.u32 %v4732, 4294901760
        %4734 = vmatpush1.msra.mxu0 %v4733
        %4735 = vmatprep.subr.mxu0 0.0
        %4736 = vmatpush1.msra.mxu0 0.0
        %4737 = vmatprep.subr.mxu0 0.0
        %4738 = vmatpush1.msra.mxu0 0.0
        %4739 = vmatprep.subr.mxu0 0.0
        %4740 = vmatpush1.msra.mxu0 0.0
        %4741 = vmatprep.subr.mxu0 0.0
        %4742 = vmatpush1.msra.mxu0 0.0
        %4743 = vmatprep.subr.mxu0 0.0
        %4744 = vmatpush1.msra.mxu0 0.0
        %4745 = vmatprep.subr.mxu0 0.0
        %4746 = vmatpush1.msra.mxu0 0.0
        %4747 = vmatprep.subr.mxu0 0.0
        %4748 = vmatpush1.msra.mxu0 0.0
        %4749 = vmatprep.subr.mxu0 0.0
        %4750 = vmatpush1.msra.mxu0 0.0
        %4751 = vmatprep.subr.mxu0 0.0
        %4752 = vmatpush1.msra.mxu0 0.0
        %4753 = vmatprep.subr.mxu0 0.0
        %4754 = vmatpush1.msra.mxu0 0.0
        %4755 = vmatprep.subr.mxu0 0.0
        %4756 = vmatpush1.msra.mxu0 0.0
        %4757 = vmatprep.subr.mxu0 0.0
        %4758 = vmatpush1.msra.mxu0 0.0
        %4759 = vmatprep.subr.mxu0 0.0
        %4760 = vmatpush1.msra.mxu0 0.0
        %4761 = vmatprep.subr.mxu0 0.0
        %4762 = vmatpush1.msra.mxu0 0.0
        %4763 = vmatprep.subr.mxu0 0.0
        %4764 = vmatpush1.msra.mxu0 0.0
        %4765 = vmatprep.subr.mxu0 0.0
        %4766 = vmatpush1.msra.mxu0 0.0
        %4767 = vmatprep.subr.mxu0 0.0
        %4768 = vmatpush1.msra.mxu0 0.0
        %4769 = vmatprep.subr.mxu0 0.0
        %4770 = vmatpush1.msra.mxu0 0.0
        %4771 = vmatprep.subr.mxu0 0.0
        %4772 = vmatpush1.msra.mxu0 0.0
        %4773 = vmatprep.subr.mxu0 0.0
        %4774 = vmatpush1.msra.mxu0 0.0
        %4775 = vmatprep.subr.mxu0 0.0
        %4776 = vmatpush1.msra.mxu0 0.0
        %4777 = vmatprep.subr.mxu0 0.0
        %4778 = vmatpush1.msra.mxu0 0.0
        %4779 = vmatprep.subr.mxu0 0.0
        %4780 = vmatpush1.msra.mxu0 0.0
        %4781 = vmatprep.subr.mxu0 0.0
        %4782 = vmatpush1.msra.mxu0 0.0
        %4783 = vmatprep.subr.mxu0 0.0
        %4784 = vmatpush1.msra.mxu0 0.0
        %4785 = vmatprep.subr.mxu0 0.0
        %4786 = vmatpush1.msra.mxu0 0.0
        %4787 = vmatprep.subr.mxu0 0.0
        %4788 = vmatpush1.msra.mxu0 0.0
        %4789 = vmatprep.subr.mxu0 0.0
        %4790 = vmatpush1.msra.mxu0 0.0
        %4791 = vmatprep.subr.mxu0 0.0
        %4792 = vmatpush1.msra.mxu0 0.0
        %4793 = vmatprep.subr.mxu0 0.0
        %4794 = vmatpush1.msra.mxu0 0.0
        %4795 = vmatprep.subr.mxu0 0.0
        %4796 = vmatpush1.msra.mxu0 0.0
        %4797 = vmatprep.mubr.f32.mxu0 0.0
        %v4798 = vand.u32 %v3718, 4294901760
        %4799 = vmatmul.mubr.f32.gmra.mrb[0].mxu0 %v4798
        %v4800 = vpop.f32.mrb[0].mxu0
        %v4801 = vadd.f32 %v4719, %v4800
        %v4802 = vpop.f32.mrb[0].mxu0
        %v4803 = vadd.f32 %v4721, %v4802
        %4804 = vdwg.mxu0
        %v4805 = vand.u32 %v4644, 4294901760
        %v4806 = vsub.f32 %v4644, %v4805
        %4807 = vmatprep.subr.mxu0 %v4806
        %v4808 = vand.u32 %v4643, 4294901760
        %v4809 = vsub.f32 %v4643, %v4808
        %4810 = vmatpush1.msra.mxu0 %v4809
        %4811 = vmatprep.subr.mxu0 0.0
        %4812 = vmatpush1.msra.mxu0 0.0
        %4813 = vmatprep.subr.mxu0 0.0
        %4814 = vmatpush1.msra.mxu0 0.0
        %4815 = vmatprep.subr.mxu0 0.0
        %4816 = vmatpush1.msra.mxu0 0.0
        %4817 = vmatprep.subr.mxu0 0.0
        %4818 = vmatpush1.msra.mxu0 0.0
        %4819 = vmatprep.subr.mxu0 0.0
        %4820 = vmatpush1.msra.mxu0 0.0
        %4821 = vmatprep.subr.mxu0 0.0
        %4822 = vmatpush1.msra.mxu0 0.0
        %4823 = vmatprep.subr.mxu0 0.0
        %4824 = vmatpush1.msra.mxu0 0.0
        %4825 = vmatprep.subr.mxu0 0.0
        %4826 = vmatpush1.msra.mxu0 0.0
        %4827 = vmatprep.subr.mxu0 0.0
        %4828 = vmatpush1.msra.mxu0 0.0
        %4829 = vmatprep.subr.mxu0 0.0
        %4830 = vmatpush1.msra.mxu0 0.0
        %4831 = vmatprep.subr.mxu0 0.0
        %4832 = vmatpush1.msra.mxu0 0.0
        %4833 = vmatprep.subr.mxu0 0.0
        %4834 = vmatpush1.msra.mxu0 0.0
        %4835 = vmatprep.subr.mxu0 0.0
        %4836 = vmatpush1.msra.mxu0 0.0
        %4837 = vmatprep.subr.mxu0 0.0
        %4838 = vmatpush1.msra.mxu0 0.0
        %4839 = vmatprep.subr.mxu0 0.0
        %4840 = vmatpush1.msra.mxu0 0.0
        %4841 = vmatprep.subr.mxu0 0.0
        %4842 = vmatpush1.msra.mxu0 0.0
        %4843 = vmatprep.subr.mxu0 0.0
        %4844 = vmatpush1.msra.mxu0 0.0
        %4845 = vmatprep.subr.mxu0 0.0
        %4846 = vmatpush1.msra.mxu0 0.0
        %4847 = vmatprep.subr.mxu0 0.0
        %4848 = vmatpush1.msra.mxu0 0.0
        %4849 = vmatprep.subr.mxu0 0.0
        %4850 = vmatpush1.msra.mxu0 0.0
        %4851 = vmatprep.subr.mxu0 0.0
        %4852 = vmatpush1.msra.mxu0 0.0
        %4853 = vmatprep.subr.mxu0 0.0
        %4854 = vmatpush1.msra.mxu0 0.0
        %4855 = vmatprep.subr.mxu0 0.0
        %4856 = vmatpush1.msra.mxu0 0.0
        %4857 = vmatprep.subr.mxu0 0.0
        %4858 = vmatpush1.msra.mxu0 0.0
        %4859 = vmatprep.subr.mxu0 0.0
        %4860 = vmatpush1.msra.mxu0 0.0
        %4861 = vmatprep.subr.mxu0 0.0
        %4862 = vmatpush1.msra.mxu0 0.0
        %4863 = vmatprep.subr.mxu0 0.0
        %4864 = vmatpush1.msra.mxu0 0.0
        %4865 = vmatprep.subr.mxu0 0.0
        %4866 = vmatpush1.msra.mxu0 0.0
        %4867 = vmatprep.subr.mxu0 0.0
        %4868 = vmatpush1.msra.mxu0 0.0
        %4869 = vmatprep.subr.mxu0 0.0
        %4870 = vmatpush1.msra.mxu0 0.0
        %4871 = vmatprep.subr.mxu0 0.0
        %4872 = vmatpush1.msra.mxu0 0.0
        %4873 = vmatprep.mubr.f32.mxu0 0.0
        %v4874 = vand.u32 %v3718, 4294901760
        %v4875 = vsub.f32 %v3718, %v4874
        %4876 = vmatmul.mubr.f32.gmra.mrb[0].mxu0 %v4875
        %v4877 = vpop.f32.mrb[0].mxu0
        %v4878 = vadd.f32 %v4801, %v4877
        %v4879 = vpop.f32.mrb[0].mxu0
        %v4880 = vadd.f32 %v4803, %v4879
        %4881 = vdwg.mxu0
        %v4882 = vand.u32 %v4644, 4294901760
        %4883 = vmatprep.subr.mxu0 %v4882
        %v4884 = vand.u32 %v4643, 4294901760
        %4885 = vmatpush1.msra.mxu0 %v4884
        %4886 = vmatprep.subr.mxu0 0.0
        %4887 = vmatpush1.msra.mxu0 0.0
        %4888 = vmatprep.subr.mxu0 0.0
        %4889 = vmatpush1.msra.mxu0 0.0
        %4890 = vmatprep.subr.mxu0 0.0
        %4891 = vmatpush1.msra.mxu0 0.0
        %4892 = vmatprep.subr.mxu0 0.0
        %4893 = vmatpush1.msra.mxu0 0.0
        %4894 = vmatprep.subr.mxu0 0.0
        %4895 = vmatpush1.msra.mxu0 0.0
        %4896 = vmatprep.subr.mxu0 0.0
        %4897 = vmatpush1.msra.mxu0 0.0
        %4898 = vmatprep.subr.mxu0 0.0
        %4899 = vmatpush1.msra.mxu0 0.0
        %4900 = vmatprep.subr.mxu0 0.0
        %4901 = vmatpush1.msra.mxu0 0.0
        %4902 = vmatprep.subr.mxu0 0.0
        %4903 = vmatpush1.msra.mxu0 0.0
        %4904 = vmatprep.subr.mxu0 0.0
        %4905 = vmatpush1.msra.mxu0 0.0
        %4906 = vmatprep.subr.mxu0 0.0
        %4907 = vmatpush1.msra.mxu0 0.0
        %4908 = vmatprep.subr.mxu0 0.0
        %4909 = vmatpush1.msra.mxu0 0.0
        %4910 = vmatprep.subr.mxu0 0.0
        %4911 = vmatpush1.msra.mxu0 0.0
        %4912 = vmatprep.subr.mxu0 0.0
        %4913 = vmatpush1.msra.mxu0 0.0
        %4914 = vmatprep.subr.mxu0 0.0
        %4915 = vmatpush1.msra.mxu0 0.0
        %4916 = vmatprep.subr.mxu0 0.0
        %4917 = vmatpush1.msra.mxu0 0.0
        %4918 = vmatprep.subr.mxu0 0.0
        %4919 = vmatpush1.msra.mxu0 0.0
        %4920 = vmatprep.subr.mxu0 0.0
        %4921 = vmatpush1.msra.mxu0 0.0
        %4922 = vmatprep.subr.mxu0 0.0
        %4923 = vmatpush1.msra.mxu0 0.0
        %4924 = vmatprep.subr.mxu0 0.0
        %4925 = vmatpush1.msra.mxu0 0.0
        %4926 = vmatprep.subr.mxu0 0.0
        %4927 = vmatpush1.msra.mxu0 0.0
        %4928 = vmatprep.subr.mxu0 0.0
        %4929 = vmatpush1.msra.mxu0 0.0
        %4930 = vmatprep.subr.mxu0 0.0
        %4931 = vmatpush1.msra.mxu0 0.0
        %4932 = vmatprep.subr.mxu0 0.0
        %4933 = vmatpush1.msra.mxu0 0.0
        %4934 = vmatprep.subr.mxu0 0.0
        %4935 = vmatpush1.msra.mxu0 0.0
        %4936 = vmatprep.subr.mxu0 0.0
        %4937 = vmatpush1.msra.mxu0 0.0
        %4938 = vmatprep.subr.mxu0 0.0
        %4939 = vmatpush1.msra.mxu0 0.0
        %4940 = vmatprep.subr.mxu0 0.0
        %4941 = vmatpush1.msra.mxu0 0.0
        %4942 = vmatprep.subr.mxu0 0.0
        %4943 = vmatpush1.msra.mxu0 0.0
        %4944 = vmatprep.subr.mxu0 0.0
        %4945 = vmatpush1.msra.mxu0 0.0
        %4946 = vmatprep.subr.mxu0 0.0
        %4947 = vmatpush1.msra.mxu0 0.0
        %4948 = vmatprep.mubr.f32.mxu0 0.0
        %v4949 = vand.u32 %v3718, 4294901760
        %v4950 = vsub.f32 %v3718, %v4949
        %v4951 = vand.u32 %v4950, 4294901760
        %4952 = vmatmul.mubr.f32.gmra.mrb[0].mxu0 %v4951
        %v4953 = vpop.f32.mrb[0].mxu0
        %v4954 = vadd.f32 %v4878, %v4953
        %v4955 = vpop.f32.mrb[0].mxu0
        %v4956 = vadd.f32 %v4880, %v4955
        %4957 = vdwg.mxu0
        %v4958 = vand.u32 %v4644, 4294901760
        %v4959 = vsub.f32 %v4644, %v4958
        %v4960 = vand.u32 %v4959, 4294901760
        %4961 = vmatprep.subr.mxu0 %v4960
        %v4962 = vand.u32 %v4643, 4294901760
        %v4963 = vsub.f32 %v4643, %v4962
        %v4964 = vand.u32 %v4963, 4294901760
        %4965 = vmatpush1.msra.mxu0 %v4964
        %4966 = vmatprep.subr.mxu0 0.0
        %4967 = vmatpush1.msra.mxu0 0.0
        %4968 = vmatprep.subr.mxu0 0.0
        %4969 = vmatpush1.msra.mxu0 0.0
        %4970 = vmatprep.subr.mxu0 0.0
        %4971 = vmatpush1.msra.mxu0 0.0
        %4972 = vmatprep.subr.mxu0 0.0
        %4973 = vmatpush1.msra.mxu0 0.0
        %4974 = vmatprep.subr.mxu0 0.0
        %4975 = vmatpush1.msra.mxu0 0.0
        %4976 = vmatprep.subr.mxu0 0.0
        %4977 = vmatpush1.msra.mxu0 0.0
        %4978 = vmatprep.subr.mxu0 0.0
        %4979 = vmatpush1.msra.mxu0 0.0
        %4980 = vmatprep.subr.mxu0 0.0
        %4981 = vmatpush1.msra.mxu0 0.0
        %4982 = vmatprep.subr.mxu0 0.0
        %4983 = vmatpush1.msra.mxu0 0.0
        %4984 = vmatprep.subr.mxu0 0.0
        %4985 = vmatpush1.msra.mxu0 0.0
        %4986 = vmatprep.subr.mxu0 0.0
        %4987 = vmatpush1.msra.mxu0 0.0
        %4988 = vmatprep.subr.mxu0 0.0
        %4989 = vmatpush1.msra.mxu0 0.0
        %4990 = vmatprep.subr.mxu0 0.0
        %4991 = vmatpush1.msra.mxu0 0.0
        %4992 = vmatprep.subr.mxu0 0.0
        %4993 = vmatpush1.msra.mxu0 0.0
        %4994 = vmatprep.subr.mxu0 0.0
        %4995 = vmatpush1.msra.mxu0 0.0
        %4996 = vmatprep.subr.mxu0 0.0
        %4997 = vmatpush1.msra.mxu0 0.0
        %4998 = vmatprep.subr.mxu0 0.0
        %4999 = vmatpush1.msra.mxu0 0.0
        %5000 = vmatprep.subr.mxu0 0.0
        %5001 = vmatpush1.msra.mxu0 0.0
        %5002 = vmatprep.subr.mxu0 0.0
        %5003 = vmatpush1.msra.mxu0 0.0
        %5004 = vmatprep.subr.mxu0 0.0
        %5005 = vmatpush1.msra.mxu0 0.0
        %5006 = vmatprep.subr.mxu0 0.0
        %5007 = vmatpush1.msra.mxu0 0.0
        %5008 = vmatprep.subr.mxu0 0.0
        %5009 = vmatpush1.msra.mxu0 0.0
        %5010 = vmatprep.subr.mxu0 0.0
        %5011 = vmatpush1.msra.mxu0 0.0
        %5012 = vmatprep.subr.mxu0 0.0
        %5013 = vmatpush1.msra.mxu0 0.0
        %5014 = vmatprep.subr.mxu0 0.0
        %5015 = vmatpush1.msra.mxu0 0.0
        %5016 = vmatprep.subr.mxu0 0.0
        %5017 = vmatpush1.msra.mxu0 0.0
        %5018 = vmatprep.subr.mxu0 0.0
        %5019 = vmatpush1.msra.mxu0 0.0
        %5020 = vmatprep.subr.mxu0 0.0
        %5021 = vmatpush1.msra.mxu0 0.0
        %5022 = vmatprep.subr.mxu0 0.0
        %5023 = vmatpush1.msra.mxu0 0.0
        %5024 = vmatprep.subr.mxu0 0.0
        %5025 = vmatpush1.msra.mxu0 0.0
        %5026 = vmatprep.subr.mxu0 0.0
        %5027 = vmatpush1.msra.mxu0 0.0
        %5028 = vmatprep.mubr.f32.mxu0 0.0
        %v5029 = vand.u32 %v3718, 4294901760
        %5030 = vmatmul.mubr.f32.gmra.mrb[0].mxu0 %v5029
        %v5031 = vpop.f32.mrb[0].mxu0
        %v5032 = vadd.f32 %v4954, %v5031
        %v5033 = vpop.f32.mrb[0].mxu0
        %v5034 = vadd.f32 %v4956, %v5033
        %5035 = vdwg.mxu0
        %v5036 = vand.u32 %v4644, 4294901760
        %5037 = vmatprep.subr.mxu0 %v5036
        %v5038 = vand.u32 %v4643, 4294901760
        %5039 = vmatpush1.msra.mxu0 %v5038
        %5040 = vmatprep.subr.mxu0 0.0
        %5041 = vmatpush1.msra.mxu0 0.0
        %5042 = vmatprep.subr.mxu0 0.0
        %5043 = vmatpush1.msra.mxu0 0.0
        %5044 = vmatprep.subr.mxu0 0.0
        %5045 = vmatpush1.msra.mxu0 0.0
        %5046 = vmatprep.subr.mxu0 0.0
        %5047 = vmatpush1.msra.mxu0 0.0
        %5048 = vmatprep.subr.mxu0 0.0
        %5049 = vmatpush1.msra.mxu0 0.0
        %5050 = vmatprep.subr.mxu0 0.0
        %5051 = vmatpush1.msra.mxu0 0.0
        %5052 = vmatprep.subr.mxu0 0.0
        %5053 = vmatpush1.msra.mxu0 0.0
        %5054 = vmatprep.subr.mxu0 0.0
        %5055 = vmatpush1.msra.mxu0 0.0
        %5056 = vmatprep.subr.mxu0 0.0
        %5057 = vmatpush1.msra.mxu0 0.0
        %5058 = vmatprep.subr.mxu0 0.0
        %5059 = vmatpush1.msra.mxu0 0.0
        %5060 = vmatprep.subr.mxu0 0.0
        %5061 = vmatpush1.msra.mxu0 0.0
        %5062 = vmatprep.subr.mxu0 0.0
        %5063 = vmatpush1.msra.mxu0 0.0
        %5064 = vmatprep.subr.mxu0 0.0
        %5065 = vmatpush1.msra.mxu0 0.0
        %5066 = vmatprep.subr.mxu0 0.0
        %5067 = vmatpush1.msra.mxu0 0.0
        %5068 = vmatprep.subr.mxu0 0.0
        %5069 = vmatpush1.msra.mxu0 0.0
        %5070 = vmatprep.subr.mxu0 0.0
        %5071 = vmatpush1.msra.mxu0 0.0
        %5072 = vmatprep.subr.mxu0 0.0
        %5073 = vmatpush1.msra.mxu0 0.0
        %5074 = vmatprep.subr.mxu0 0.0
        %5075 = vmatpush1.msra.mxu0 0.0
        %5076 = vmatprep.subr.mxu0 0.0
        %5077 = vmatpush1.msra.mxu0 0.0
        %5078 = vmatprep.subr.mxu0 0.0
        %5079 = vmatpush1.msra.mxu0 0.0
        %5080 = vmatprep.subr.mxu0 0.0
        %5081 = vmatpush1.msra.mxu0 0.0
        %5082 = vmatprep.subr.mxu0 0.0
        %5083 = vmatpush1.msra.mxu0 0.0
        %5084 = vmatprep.subr.mxu0 0.0
        %5085 = vmatpush1.msra.mxu0 0.0
        %5086 = vmatprep.subr.mxu0 0.0
        %5087 = vmatpush1.msra.mxu0 0.0
        %5088 = vmatprep.subr.mxu0 0.0
        %5089 = vmatpush1.msra.mxu0 0.0
        %5090 = vmatprep.subr.mxu0 0.0
        %5091 = vmatpush1.msra.mxu0 0.0
        %5092 = vmatprep.subr.mxu0 0.0
        %5093 = vmatpush1.msra.mxu0 0.0
        %5094 = vmatprep.subr.mxu0 0.0
        %5095 = vmatpush1.msra.mxu0 0.0
        %5096 = vmatprep.subr.mxu0 0.0
        %5097 = vmatpush1.msra.mxu0 0.0
        %5098 = vmatprep.subr.mxu0 0.0
        %5099 = vmatpush1.msra.mxu0 0.0
        %5100 = vmatprep.subr.mxu0 0.0
        %5101 = vmatpush1.msra.mxu0 0.0
        %5102 = vmatprep.mubr.f32.mxu0 0.0
        %v5103 = vand.u32 %v3718, 4294901760
        %5104 = vmatmul.mubr.f32.gmra.mrb[0].mxu0 %v5103
        %v5105 = vpop.f32.mrb[0].mxu0
        %v5106 = vadd.f32 %v5032, %v5105
        %v5107 = vpop.f32.mrb[0].mxu0
        %v5108 = vadd.f32 %v5034, %v5107
        %5109 = vdwg.mxu0
        %v5110 = vxor.u32 %v5106, 2147483648
        %v5111 = vxor.u32 %v5108, 2147483648
        %v5112 = vmul.f32 %v5110, 1.442695
        %v5113 = vpow.pop %v5112
        %v5114 = vmul.f32 %v5111, 1.442695
        %v5115 = vpow.pop %v5114
        %v5116 = vadd.f32 %v5113, 1.0
        %v5117 = vadd.f32 %v5115, 1.0
        %v5118 = vrcp.pop %v5116
        %v5119 = vmul.f32 1.0, %v5118
        %v5120 = vrcp.pop %v5117
        %v5121 = vmul.f32 1.0, %v5120
        %v5122 = vmul.f32 %v346, %v5119
        %v5123 = vmul.f32 %v347, %v5121
        %v5124 = vmul.f32 %v346, %v5122
        %v5125 = vmul.f32 %v347, %v5123
        %v5126 = vrot.slane %v5124, 4
        %v5127 = vadd.f32 %v5124, %v5126
        %v5128 = vrot.slane %v5127, 2
        %v5129 = vadd.f32 %v5127, %v5128
        %v5130 = vrot.slane %v5129, 1
        %v5131 = vadd.f32 %v5129, %v5130
        %v5132 = vrot.slane %v5125, 4
        %v5133 = vadd.f32 %v5125, %v5132
        %v5134 = vrot.slane %v5133, 2
        %v5135 = vadd.f32 %v5133, %v5134
        %v5136 = vrot.slane %v5135, 1
        %v5137 = vadd.f32 %v5135, %v5136
        %v5138 = vrcp.pop 8.0
        %v5139 = vmul.f32 %v5131, %v5138
        %v5140 = vmul.f32 %v5137, %v5138
        %v5141 = vrot.slane %v5124, 4
        %v5142 = vmax.f32 %v5124, %v5141
        %v5143 = vrot.slane %v5142, 2
        %v5144 = vmax.f32 %v5142, %v5143
        %v5145 = vrot.slane %v5144, 1
        %v5146 = vmax.f32 %v5144, %v5145
        %v5147 = vrot.slane %v5125, 4
        %v5148 = vmax.f32 %v5125, %v5147
        %v5149 = vrot.slane %v5148, 2
        %v5150 = vmax.f32 %v5148, %v5149
        %v5151 = vrot.slane %v5150, 1
        %v5152 = vmax.f32 %v5150, %v5151
        %v5153 = vld [vmem:[#allocation2] sm:$0xff]
        %v5154 = vld [vmem:[#allocation2 + $0x8] sm:$0xff]
        %v5155 = vld [vmem:[#allocation2 + $0x10] sm:$0xff]
        %v5156 = vld [vmem:[#allocation2 + $0x18] sm:$0xff]
        %v5157 = vld [vmem:[#allocation2 + $0x20] sm:$0xff]
        %v5158 = vld [vmem:[#allocation2 + $0x28] sm:$0xff]
        %v5159 = vld [vmem:[#allocation2 + $0x30] sm:$0xff]
        %v5160 = vld [vmem:[#allocation2 + $0x38] sm:$0xff]
        %v5161 = vld [vmem:[#allocation2 + $0x40] sm:$0xff]
        %v5162 = vld [vmem:[#allocation2 + $0x48] sm:$0xff]
        %v5163 = vld [vmem:[#allocation2 + $0x50] sm:$0xff]
        %v5164 = vld [vmem:[#allocation2 + $0x58] sm:$0xff]
        %v5165 = vld [vmem:[#allocation2 + $0x60] sm:$0xff]
        %v5166 = vld [vmem:[#allocation2 + $0x68] sm:$0xff]
        %v5167 = vld [vmem:[#allocation2 + $0x70] sm:$0xff]
        %v5168 = vld [vmem:[#allocation2 + $0x78] sm:$0xff]
        %v5169 = vld [vmem:[#allocation2 + $0x80] sm:$0xff]
        %v5170 = vld [vmem:[#allocation2 + $0x88] sm:$0xff]
        %v5171 = vld [vmem:[#allocation2 + $0x90] sm:$0xff]
        %v5172 = vld [vmem:[#allocation2 + $0x98] sm:$0xff]
        %v5173 = vld [vmem:[#allocation2 + $0xa0] sm:$0xff]
        %v5174 = vld [vmem:[#allocation2 + $0xa8] sm:$0xff]
        %v5175 = vld [vmem:[#allocation2 + $0xb0] sm:$0xff]
        %v5176 = vld [vmem:[#allocation2 + $0xb8] sm:$0xff]
        %v5177 = vld [vmem:[#allocation2 + $0xc0] sm:$0xff]
        %v5178 = vld [vmem:[#allocation2 + $0xc8] sm:$0xff]
        %v5179 = vld [vmem:[#allocation2 + $0xd0] sm:$0xff]
        %v5180 = vld [vmem:[#allocation2 + $0xd8] sm:$0xff]
        %v5181 = vld [vmem:[#allocation2 + $0xe0] sm:$0xff]
        %v5182 = vld [vmem:[#allocation2 + $0xe8] sm:$0xff]
        %v5183 = vld [vmem:[#allocation2 + $0xf0] sm:$0xff]
        %v5184 = vld [vmem:[#allocation2 + $0xf8] sm:$0xff]
        %v5185 = vld [vmem:[#allocation2 + $0x100] sm:$0xff]
        %v5186 = vld [vmem:[#allocation2 + $0x108] sm:$0xff]
        %v5187 = vld [vmem:[#allocation2 + $0x110] sm:$0xff]
        %v5188 = vld [vmem:[#allocation2 + $0x118] sm:$0xff]
        %v5189 = vld [vmem:[#allocation2 + $0x120] sm:$0xff]
        %v5190 = vld [vmem:[#allocation2 + $0x128] sm:$0xff]
        %v5191 = vld [vmem:[#allocation2 + $0x130] sm:$0xff]
        %v5192 = vld [vmem:[#allocation2 + $0x138] sm:$0xff]
        %v5193 = vld [vmem:[#allocation2 + $0x140] sm:$0xff]
        %v5194 = vld [vmem:[#allocation2 + $0x148] sm:$0xff]
        %v5195 = vld [vmem:[#allocation2 + $0x150] sm:$0xff]
        %v5196 = vld [vmem:[#allocation2 + $0x158] sm:$0xff]
        %v5197 = vld [vmem:[#allocation2 + $0x160] sm:$0xff]
        %v5198 = vld [vmem:[#allocation2 + $0x168] sm:$0xff]
        %v5199 = vld [vmem:[#allocation2 + $0x170] sm:$0xff]
        %v5200 = vld [vmem:[#allocation2 + $0x178] sm:$0xff]
        %v5201 = vld [vmem:[#allocation2 + $0x180] sm:$0xff]
        %v5202 = vld [vmem:[#allocation2 + $0x188] sm:$0xff]
        %v5203 = vld [vmem:[#allocation2 + $0x190] sm:$0xff]
        %v5204 = vld [vmem:[#allocation2 + $0x198] sm:$0xff]
        %v5205 = vld [vmem:[#allocation2 + $0x1a0] sm:$0xff]
        %v5206 = vld [vmem:[#allocation2 + $0x1a8] sm:$0xff]
        %v5207 = vld [vmem:[#allocation2 + $0x1b0] sm:$0xff]
        %v5208 = vld [vmem:[#allocation2 + $0x1b8] sm:$0xff]
        %v5209 = vld [vmem:[#allocation2 + $0x1c0] sm:$0xff]
        %v5210 = vld [vmem:[#allocation2 + $0x1c8] sm:$0xff]
        %v5211 = vld [vmem:[#allocation2 + $0x1d0] sm:$0xff]
        %v5212 = vld [vmem:[#allocation2 + $0x1d8] sm:$0xff]
        %v5213 = vld [vmem:[#allocation2 + $0x1e0] sm:$0xff]
        %v5214 = vld [vmem:[#allocation2 + $0x1e8] sm:$0xff]
        %v5215 = vld [vmem:[#allocation2 + $0x1f0] sm:$0xff]
        %v5216 = vld [vmem:[#allocation2 + $0x1f8] sm:$0xff]
        %s5217 = scalar_lea.vmem [#allocation2], 512
        %v5218 = vld [vmem:[%s5217] sm:$0xff]
        %v5219 = vld [vmem:[%s5217 + $0x8] sm:$0xff]
        %v5220 = vld [vmem:[%s5217 + $0x10] sm:$0xff]
        %v5221 = vld [vmem:[%s5217 + $0x18] sm:$0xff]
        %v5222 = vld [vmem:[%s5217 + $0x20] sm:$0xff]
        %v5223 = vld [vmem:[%s5217 + $0x28] sm:$0xff]
        %v5224 = vld [vmem:[%s5217 + $0x30] sm:$0xff]
        %v5225 = vld [vmem:[%s5217 + $0x38] sm:$0xff]
        %v5226 = vld [vmem:[%s5217 + $0x40] sm:$0xff]
        %v5227 = vld [vmem:[%s5217 + $0x48] sm:$0xff]
        %v5228 = vld [vmem:[%s5217 + $0x50] sm:$0xff]
        %v5229 = vld [vmem:[%s5217 + $0x58] sm:$0xff]
        %v5230 = vld [vmem:[%s5217 + $0x60] sm:$0xff]
        %v5231 = vld [vmem:[%s5217 + $0x68] sm:$0xff]
        %v5232 = vld [vmem:[%s5217 + $0x70] sm:$0xff]
        %v5233 = vld [vmem:[%s5217 + $0x78] sm:$0xff]
        %v5234 = vld [vmem:[%s5217 + $0x80] sm:$0xff]
        %v5235 = vld [vmem:[%s5217 + $0x88] sm:$0xff]
        %v5236 = vld [vmem:[%s5217 + $0x90] sm:$0xff]
        %v5237 = vld [vmem:[%s5217 + $0x98] sm:$0xff]
        %v5238 = vld [vmem:[%s5217 + $0xa0] sm:$0xff]
        %v5239 = vld [vmem:[%s5217 + $0xa8] sm:$0xff]
        %v5240 = vld [vmem:[%s5217 + $0xb0] sm:$0xff]
        %v5241 = vld [vmem:[%s5217 + $0xb8] sm:$0xff]
        %v5242 = vld [vmem:[%s5217 + $0xc0] sm:$0xff]
        %v5243 = vld [vmem:[%s5217 + $0xc8] sm:$0xff]
        %v5244 = vld [vmem:[%s5217 + $0xd0] sm:$0xff]
        %v5245 = vld [vmem:[%s5217 + $0xd8] sm:$0xff]
        %v5246 = vld [vmem:[%s5217 + $0xe0] sm:$0xff]
        %v5247 = vld [vmem:[%s5217 + $0xe8] sm:$0xff]
        %v5248 = vld [vmem:[%s5217 + $0xf0] sm:$0xff]
        %v5249 = vld [vmem:[%s5217 + $0xf8] sm:$0xff]
        %v5250 = vld [vmem:[%s5217 + $0x100] sm:$0xff]
        %v5251 = vld [vmem:[%s5217 + $0x108] sm:$0xff]
        %v5252 = vld [vmem:[%s5217 + $0x110] sm:$0xff]
        %v5253 = vld [vmem:[%s5217 + $0x118] sm:$0xff]
        %v5254 = vld [vmem:[%s5217 + $0x120] sm:$0xff]
        %v5255 = vld [vmem:[%s5217 + $0x128] sm:$0xff]
        %v5256 = vld [vmem:[%s5217 + $0x130] sm:$0xff]
        %v5257 = vld [vmem:[%s5217 + $0x138] sm:$0xff]
        %v5258 = vld [vmem:[%s5217 + $0x140] sm:$0xff]
        %v5259 = vld [vmem:[%s5217 + $0x148] sm:$0xff]
        %v5260 = vld [vmem:[%s5217 + $0x150] sm:$0xff]
        %v5261 = vld [vmem:[%s5217 + $0x158] sm:$0xff]
        %v5262 = vld [vmem:[%s5217 + $0x160] sm:$0xff]
        %v5263 = vld [vmem:[%s5217 + $0x168] sm:$0xff]
        %v5264 = vld [vmem:[%s5217 + $0x170] sm:$0xff]
        %v5265 = vld [vmem:[%s5217 + $0x178] sm:$0xff]
        %v5266 = vld [vmem:[%s5217 + $0x180] sm:$0xff]
        %v5267 = vld [vmem:[%s5217 + $0x188] sm:$0xff]
        %v5268 = vld [vmem:[%s5217 + $0x190] sm:$0xff]
        %v5269 = vld [vmem:[%s5217 + $0x198] sm:$0xff]
        %v5270 = vld [vmem:[%s5217 + $0x1a0] sm:$0xff]
        %v5271 = vld [vmem:[%s5217 + $0x1a8] sm:$0xff]
        %v5272 = vld [vmem:[%s5217 + $0x1b0] sm:$0xff]
        %v5273 = vld [vmem:[%s5217 + $0x1b8] sm:$0xff]
        %v5274 = vld [vmem:[%s5217 + $0x1c0] sm:$0xff]
        %v5275 = vld [vmem:[%s5217 + $0x1c8] sm:$0xff]
        %v5276 = vld [vmem:[%s5217 + $0x1d0] sm:$0xff]
        %v5277 = vld [vmem:[%s5217 + $0x1d8] sm:$0xff]
        %v5278 = vld [vmem:[%s5217 + $0x1e0] sm:$0xff]
        %v5279 = vld [vmem:[%s5217 + $0x1e8] sm:$0xff]
        %v5280 = vld [vmem:[%s5217 + $0x1f0] sm:$0xff]
        %v5281 = vld [vmem:[%s5217 + $0x1f8] sm:$0xff]
        %v5282 = vand.u32 %v5219, 4294901760
        %5283 = vmatprep.subr.mxu0 %v5282
        %v5284 = vand.u32 %v5218, 4294901760
        %5285 = vmatpush1.msra.mxu0 %v5284
        %v5286 = vand.u32 %v5221, 4294901760
        %5287 = vmatprep.subr.mxu0 %v5286
        %v5288 = vand.u32 %v5220, 4294901760
        %5289 = vmatpush1.msra.mxu0 %v5288
        %v5290 = vand.u32 %v5223, 4294901760
        %5291 = vmatprep.subr.mxu0 %v5290
        %v5292 = vand.u32 %v5222, 4294901760
        %5293 = vmatpush1.msra.mxu0 %v5292
        %v5294 = vand.u32 %v5225, 4294901760
        %5295 = vmatprep.subr.mxu0 %v5294
        %v5296 = vand.u32 %v5224, 4294901760
        %5297 = vmatpush1.msra.mxu0 %v5296
        %v5298 = vand.u32 %v5227, 4294901760
        %5299 = vmatprep.subr.mxu0 %v5298
        %v5300 = vand.u32 %v5226, 4294901760
        %5301 = vmatpush1.msra.mxu0 %v5300
        %v5302 = vand.u32 %v5229, 4294901760
        %5303 = vmatprep.subr.mxu0 %v5302
        %v5304 = vand.u32 %v5228, 4294901760
        %5305 = vmatpush1.msra.mxu0 %v5304
        %v5306 = vand.u32 %v5231, 4294901760
        %5307 = vmatprep.subr.mxu0 %v5306
        %v5308 = vand.u32 %v5230, 4294901760
        %5309 = vmatpush1.msra.mxu0 %v5308
        %v5310 = vand.u32 %v5233, 4294901760
        %5311 = vmatprep.subr.mxu0 %v5310
        %v5312 = vand.u32 %v5232, 4294901760
        %5313 = vmatpush1.msra.mxu0 %v5312
        %v5314 = vand.u32 %v5235, 4294901760
        %5315 = vmatprep.subr.mxu0 %v5314
        %v5316 = vand.u32 %v5234, 4294901760
        %5317 = vmatpush1.msra.mxu0 %v5316
        %v5318 = vand.u32 %v5237, 4294901760
        %5319 = vmatprep.subr.mxu0 %v5318
        %v5320 = vand.u32 %v5236, 4294901760
        %5321 = vmatpush1.msra.mxu0 %v5320
        %v5322 = vand.u32 %v5239, 4294901760
        %5323 = vmatprep.subr.mxu0 %v5322
        %v5324 = vand.u32 %v5238, 4294901760
        %5325 = vmatpush1.msra.mxu0 %v5324
        %v5326 = vand.u32 %v5241, 4294901760
        %5327 = vmatprep.subr.mxu0 %v5326
        %v5328 = vand.u32 %v5240, 4294901760
        %5329 = vmatpush1.msra.mxu0 %v5328
        %v5330 = vand.u32 %v5243, 4294901760
        %5331 = vmatprep.subr.mxu0 %v5330
        %v5332 = vand.u32 %v5242, 4294901760
        %5333 = vmatpush1.msra.mxu0 %v5332
        %v5334 = vand.u32 %v5245, 4294901760
        %5335 = vmatprep.subr.mxu0 %v5334
        %v5336 = vand.u32 %v5244, 4294901760
        %5337 = vmatpush1.msra.mxu0 %v5336
        %v5338 = vand.u32 %v5247, 4294901760
        %5339 = vmatprep.subr.mxu0 %v5338
        %v5340 = vand.u32 %v5246, 4294901760
        %5341 = vmatpush1.msra.mxu0 %v5340
        %v5342 = vand.u32 %v5249, 4294901760
        %5343 = vmatprep.subr.mxu0 %v5342
        %v5344 = vand.u32 %v5248, 4294901760
        %5345 = vmatpush1.msra.mxu0 %v5344
        %v5346 = vand.u32 %v5251, 4294901760
        %5347 = vmatprep.subr.mxu0 %v5346
        %v5348 = vand.u32 %v5250, 4294901760
        %5349 = vmatpush1.msra.mxu0 %v5348
        %v5350 = vand.u32 %v5253, 4294901760
        %5351 = vmatprep.subr.mxu0 %v5350
        %v5352 = vand.u32 %v5252, 4294901760
        %5353 = vmatpush1.msra.mxu0 %v5352
        %v5354 = vand.u32 %v5255, 4294901760
        %5355 = vmatprep.subr.mxu0 %v5354
        %v5356 = vand.u32 %v5254, 4294901760
        %5357 = vmatpush1.msra.mxu0 %v5356
        %v5358 = vand.u32 %v5257, 4294901760
        %5359 = vmatprep.subr.mxu0 %v5358
        %v5360 = vand.u32 %v5256, 4294901760
        %5361 = vmatpush1.msra.mxu0 %v5360
        %v5362 = vand.u32 %v5259, 4294901760
        %5363 = vmatprep.subr.mxu0 %v5362
        %v5364 = vand.u32 %v5258, 4294901760
        %5365 = vmatpush1.msra.mxu0 %v5364
        %v5366 = vand.u32 %v5261, 4294901760
        %5367 = vmatprep.subr.mxu0 %v5366
        %v5368 = vand.u32 %v5260, 4294901760
        %5369 = vmatpush1.msra.mxu0 %v5368
        %v5370 = vand.u32 %v5263, 4294901760
        %5371 = vmatprep.subr.mxu0 %v5370
        %v5372 = vand.u32 %v5262, 4294901760
        %5373 = vmatpush1.msra.mxu0 %v5372
        %v5374 = vand.u32 %v5265, 4294901760
        %5375 = vmatprep.subr.mxu0 %v5374
        %v5376 = vand.u32 %v5264, 4294901760
        %5377 = vmatpush1.msra.mxu0 %v5376
        %v5378 = vand.u32 %v5267, 4294901760
        %5379 = vmatprep.subr.mxu0 %v5378
        %v5380 = vand.u32 %v5266, 4294901760
        %5381 = vmatpush1.msra.mxu0 %v5380
        %v5382 = vand.u32 %v5269, 4294901760
        %5383 = vmatprep.subr.mxu0 %v5382
        %v5384 = vand.u32 %v5268, 4294901760
        %5385 = vmatpush1.msra.mxu0 %v5384
        %v5386 = vand.u32 %v5271, 4294901760
        %5387 = vmatprep.subr.mxu0 %v5386
        %v5388 = vand.u32 %v5270, 4294901760
        %5389 = vmatpush1.msra.mxu0 %v5388
        %v5390 = vand.u32 %v5273, 4294901760
        %5391 = vmatprep.subr.mxu0 %v5390
        %v5392 = vand.u32 %v5272, 4294901760
        %5393 = vmatpush1.msra.mxu0 %v5392
        %v5394 = vand.u32 %v5275, 4294901760
        %5395 = vmatprep.subr.mxu0 %v5394
        %v5396 = vand.u32 %v5274, 4294901760
        %5397 = vmatpush1.msra.mxu0 %v5396
        %v5398 = vand.u32 %v5277, 4294901760
        %5399 = vmatprep.subr.mxu0 %v5398
        %v5400 = vand.u32 %v5276, 4294901760
        %5401 = vmatpush1.msra.mxu0 %v5400
        %v5402 = vand.u32 %v5279, 4294901760
        %5403 = vmatprep.subr.mxu0 %v5402
        %v5404 = vand.u32 %v5278, 4294901760
        %5405 = vmatpush1.msra.mxu0 %v5404
        %v5406 = vand.u32 %v5281, 4294901760
        %5407 = vmatprep.subr.mxu0 %v5406
        %v5408 = vand.u32 %v5280, 4294901760
        %5409 = vmatpush1.msra.mxu0 %v5408
        %v5410 = vand.u32 %v5152, 4294901760
        %v5411 = vsub.f32 %v5152, %v5410
        %v5412 = vand.u32 %v5411, 4294901760
        %v5413 = vsub.f32 %v5411, %v5412
        %v5414 = vand.u32 %v5413, 4294901760
        %5415 = vmatprep.mubr.f32.mxu0 %v5414
        %v5416 = vand.u32 %v5146, 4294901760
        %v5417 = vsub.f32 %v5146, %v5416
        %v5418 = vand.u32 %v5417, 4294901760
        %v5419 = vsub.f32 %v5417, %v5418
        %v5420 = vand.u32 %v5419, 4294901760
        %5421 = vmatmul.mubr.f32.gmra.mrb[0].mxu0 %v5420
        %v5422 = vpop.f32.mrb[0].mxu0
        %v5423 = vadd.f32 0.0, %v5422
        %v5424 = vpop.f32.mrb[0].mxu0
        %v5425 = vadd.f32 0.0, %v5424
        %5426 = vdwg.mxu0
        %v5427 = vand.u32 %v5219, 4294901760
        %v5428 = vsub.f32 %v5219, %v5427
        %v5429 = vand.u32 %v5428, 4294901760
        %v5430 = vsub.f32 %v5428, %v5429
        %v5431 = vand.u32 %v5430, 4294901760
        %5432 = vmatprep.subr.mxu0 %v5431
        %v5433 = vand.u32 %v5218, 4294901760
        %v5434 = vsub.f32 %v5218, %v5433
        %v5435 = vand.u32 %v5434, 4294901760
        %v5436 = vsub.f32 %v5434, %v5435
        %v5437 = vand.u32 %v5436, 4294901760
        %5438 = vmatpush1.msra.mxu0 %v5437
        %v5439 = vand.u32 %v5221, 4294901760
        %v5440 = vsub.f32 %v5221, %v5439
        %v5441 = vand.u32 %v5440, 4294901760
        %v5442 = vsub.f32 %v5440, %v5441
        %v5443 = vand.u32 %v5442, 4294901760
        %5444 = vmatprep.subr.mxu0 %v5443
        %v5445 = vand.u32 %v5220, 4294901760
        %v5446 = vsub.f32 %v5220, %v5445
        %v5447 = vand.u32 %v5446, 4294901760
        %v5448 = vsub.f32 %v5446, %v5447
        %v5449 = vand.u32 %v5448, 4294901760
        %5450 = vmatpush1.msra.mxu0 %v5449
        %v5451 = vand.u32 %v5223, 4294901760
        %v5452 = vsub.f32 %v5223, %v5451
        %v5453 = vand.u32 %v5452, 4294901760
        %v5454 = vsub.f32 %v5452, %v5453
        %v5455 = vand.u32 %v5454, 4294901760
        %5456 = vmatprep.subr.mxu0 %v5455
        %v5457 = vand.u32 %v5222, 4294901760
        %v5458 = vsub.f32 %v5222, %v5457
        %v5459 = vand.u32 %v5458, 4294901760
        %v5460 = vsub.f32 %v5458, %v5459
        %v5461 = vand.u32 %v5460, 4294901760
        %5462 = vmatpush1.msra.mxu0 %v5461
        %v5463 = vand.u32 %v5225, 4294901760
        %v5464 = vsub.f32 %v5225, %v5463
        %v5465 = vand.u32 %v5464, 4294901760
        %v5466 = vsub.f32 %v5464, %v5465
        %v5467 = vand.u32 %v5466, 4294901760
        %5468 = vmatprep.subr.mxu0 %v5467
        %v5469 = vand.u32 %v5224, 4294901760
        %v5470 = vsub.f32 %v5224, %v5469
        %v5471 = vand.u32 %v5470, 4294901760
        %v5472 = vsub.f32 %v5470, %v5471
        %v5473 = vand.u32 %v5472, 4294901760
        %5474 = vmatpush1.msra.mxu0 %v5473
        %v5475 = vand.u32 %v5227, 4294901760
        %v5476 = vsub.f32 %v5227, %v5475
        %v5477 = vand.u32 %v5476, 4294901760
        %v5478 = vsub.f32 %v5476, %v5477
        %v5479 = vand.u32 %v5478, 4294901760
        %5480 = vmatprep.subr.mxu0 %v5479
        %v5481 = vand.u32 %v5226, 4294901760
        %v5482 = vsub.f32 %v5226, %v5481
        %v5483 = vand.u32 %v5482, 4294901760
        %v5484 = vsub.f32 %v5482, %v5483
        %v5485 = vand.u32 %v5484, 4294901760
        %5486 = vmatpush1.msra.mxu0 %v5485
        %v5487 = vand.u32 %v5229, 4294901760
        %v5488 = vsub.f32 %v5229, %v5487
        %v5489 = vand.u32 %v5488, 4294901760
        %v5490 = vsub.f32 %v5488, %v5489
        %v5491 = vand.u32 %v5490, 4294901760
        %5492 = vmatprep.subr.mxu0 %v5491
        %v5493 = vand.u32 %v5228, 4294901760
        %v5494 = vsub.f32 %v5228, %v5493
        %v5495 = vand.u32 %v5494, 4294901760
        %v5496 = vsub.f32 %v5494, %v5495
        %v5497 = vand.u32 %v5496, 4294901760
        %5498 = vmatpush1.msra.mxu0 %v5497
        %v5499 = vand.u32 %v5231, 4294901760
        %v5500 = vsub.f32 %v5231, %v5499
        %v5501 = vand.u32 %v5500, 4294901760
        %v5502 = vsub.f32 %v5500, %v5501
        %v5503 = vand.u32 %v5502, 4294901760
        %5504 = vmatprep.subr.mxu0 %v5503
        %v5505 = vand.u32 %v5230, 4294901760
        %v5506 = vsub.f32 %v5230, %v5505
        %v5507 = vand.u32 %v5506, 4294901760
        %v5508 = vsub.f32 %v5506, %v5507
        %v5509 = vand.u32 %v5508, 4294901760
        %5510 = vmatpush1.msra.mxu0 %v5509
        %v5511 = vand.u32 %v5233, 4294901760
        %v5512 = vsub.f32 %v5233, %v5511
        %v5513 = vand.u32 %v5512, 4294901760
        %v5514 = vsub.f32 %v5512, %v5513
        %v5515 = vand.u32 %v5514, 4294901760
        %5516 = vmatprep.subr.mxu0 %v5515
        %v5517 = vand.u32 %v5232, 4294901760
        %v5518 = vsub.f32 %v5232, %v5517
        %v5519 = vand.u32 %v5518, 4294901760
        %v5520 = vsub.f32 %v5518, %v5519
        %v5521 = vand.u32 %v5520, 4294901760
        %5522 = vmatpush1.msra.mxu0 %v5521
        %v5523 = vand.u32 %v5235, 4294901760
        %v5524 = vsub.f32 %v5235, %v5523
        %v5525 = vand.u32 %v5524, 4294901760
        %v5526 = vsub.f32 %v5524, %v5525
        %v5527 = vand.u32 %v5526, 4294901760
        %5528 = vmatprep.subr.mxu0 %v5527
        %v5529 = vand.u32 %v5234, 4294901760
        %v5530 = vsub.f32 %v5234, %v5529
        %v5531 = vand.u32 %v5530, 4294901760
        %v5532 = vsub.f32 %v5530, %v5531
        %v5533 = vand.u32 %v5532, 4294901760
        %5534 = vmatpush1.msra.mxu0 %v5533
        %v5535 = vand.u32 %v5237, 4294901760
        %v5536 = vsub.f32 %v5237, %v5535
        %v5537 = vand.u32 %v5536, 4294901760
        %v5538 = vsub.f32 %v5536, %v5537
        %v5539 = vand.u32 %v5538, 4294901760
        %5540 = vmatprep.subr.mxu0 %v5539
        %v5541 = vand.u32 %v5236, 4294901760
        %v5542 = vsub.f32 %v5236, %v5541
        %v5543 = vand.u32 %v5542, 4294901760
        %v5544 = vsub.f32 %v5542, %v5543
        %v5545 = vand.u32 %v5544, 4294901760
        %5546 = vmatpush1.msra.mxu0 %v5545
        %v5547 = vand.u32 %v5239, 4294901760
        %v5548 = vsub.f32 %v5239, %v5547
        %v5549 = vand.u32 %v5548, 4294901760
        %v5550 = vsub.f32 %v5548, %v5549
        %v5551 = vand.u32 %v5550, 4294901760
        %5552 = vmatprep.subr.mxu0 %v5551
        %v5553 = vand.u32 %v5238, 4294901760
        %v5554 = vsub.f32 %v5238, %v5553
        %v5555 = vand.u32 %v5554, 4294901760
        %v5556 = vsub.f32 %v5554, %v5555
        %v5557 = vand.u32 %v5556, 4294901760
        %5558 = vmatpush1.msra.mxu0 %v5557
        %v5559 = vand.u32 %v5241, 4294901760
        %v5560 = vsub.f32 %v5241, %v5559
        %v5561 = vand.u32 %v5560, 4294901760
        %v5562 = vsub.f32 %v5560, %v5561
        %v5563 = vand.u32 %v5562, 4294901760
        %5564 = vmatprep.subr.mxu0 %v5563
        %v5565 = vand.u32 %v5240, 4294901760
        %v5566 = vsub.f32 %v5240, %v5565
        %v5567 = vand.u32 %v5566, 4294901760
        %v5568 = vsub.f32 %v5566, %v5567
        %v5569 = vand.u32 %v5568, 4294901760
        %5570 = vmatpush1.msra.mxu0 %v5569
        %v5571 = vand.u32 %v5243, 4294901760
        %v5572 = vsub.f32 %v5243, %v5571
        %v5573 = vand.u32 %v5572, 4294901760
        %v5574 = vsub.f32 %v5572, %v5573
        %v5575 = vand.u32 %v5574, 4294901760
        %5576 = vmatprep.subr.mxu0 %v5575
        %v5577 = vand.u32 %v5242, 4294901760
        %v5578 = vsub.f32 %v5242, %v5577
        %v5579 = vand.u32 %v5578, 4294901760
        %v5580 = vsub.f32 %v5578, %v5579
        %v5581 = vand.u32 %v5580, 4294901760
        %5582 = vmatpush1.msra.mxu0 %v5581
        %v5583 = vand.u32 %v5245, 4294901760
        %v5584 = vsub.f32 %v5245, %v5583
        %v5585 = vand.u32 %v5584, 4294901760
        %v5586 = vsub.f32 %v5584, %v5585
        %v5587 = vand.u32 %v5586, 4294901760
        %5588 = vmatprep.subr.mxu0 %v5587
        %v5589 = vand.u32 %v5244, 4294901760
        %v5590 = vsub.f32 %v5244, %v5589
        %v5591 = vand.u32 %v5590, 4294901760
        %v5592 = vsub.f32 %v5590, %v5591
        %v5593 = vand.u32 %v5592, 4294901760
        %5594 = vmatpush1.msra.mxu0 %v5593
        %v5595 = vand.u32 %v5247, 4294901760
        %v5596 = vsub.f32 %v5247, %v5595
        %v5597 = vand.u32 %v5596, 4294901760
        %v5598 = vsub.f32 %v5596, %v5597
        %v5599 = vand.u32 %v5598, 4294901760
        %5600 = vmatprep.subr.mxu0 %v5599
        %v5601 = vand.u32 %v5246, 4294901760
        %v5602 = vsub.f32 %v5246, %v5601
        %v5603 = vand.u32 %v5602, 4294901760
        %v5604 = vsub.f32 %v5602, %v5603
        %v5605 = vand.u32 %v5604, 4294901760
        %5606 = vmatpush1.msra.mxu0 %v5605
        %v5607 = vand.u32 %v5249, 4294901760
        %v5608 = vsub.f32 %v5249, %v5607
        %v5609 = vand.u32 %v5608, 4294901760
        %v5610 = vsub.f32 %v5608, %v5609
        %v5611 = vand.u32 %v5610, 4294901760
        %5612 = vmatprep.subr.mxu0 %v5611
        %v5613 = vand.u32 %v5248, 4294901760
        %v5614 = vsub.f32 %v5248, %v5613
        %v5615 = vand.u32 %v5614, 4294901760
        %v5616 = vsub.f32 %v5614, %v5615
        %v5617 = vand.u32 %v5616, 4294901760
        %5618 = vmatpush1.msra.mxu0 %v5617
        %v5619 = vand.u32 %v5251, 4294901760
        %v5620 = vsub.f32 %v5251, %v5619
        %v5621 = vand.u32 %v5620, 4294901760
        %v5622 = vsub.f32 %v5620, %v5621
        %v5623 = vand.u32 %v5622, 4294901760
        %5624 = vmatprep.subr.mxu0 %v5623
        %v5625 = vand.u32 %v5250, 4294901760
        %v5626 = vsub.f32 %v5250, %v5625
        %v5627 = vand.u32 %v5626, 4294901760
        %v5628 = vsub.f32 %v5626, %v5627
        %v5629 = vand.u32 %v5628, 4294901760
        %5630 = vmatpush1.msra.mxu0 %v5629
        %v5631 = vand.u32 %v5253, 4294901760
        %v5632 = vsub.f32 %v5253, %v5631
        %v5633 = vand.u32 %v5632, 4294901760
        %v5634 = vsub.f32 %v5632, %v5633
        %v5635 = vand.u32 %v5634, 4294901760
        %5636 = vmatprep.subr.mxu0 %v5635
        %v5637 = vand.u32 %v5252, 4294901760
        %v5638 = vsub.f32 %v5252, %v5637
        %v5639 = vand.u32 %v5638, 4294901760
        %v5640 = vsub.f32 %v5638, %v5639
        %v5641 = vand.u32 %v5640, 4294901760
        %5642 = vmatpush1.msra.mxu0 %v5641
        %v5643 = vand.u32 %v5255, 4294901760
        %v5644 = vsub.f32 %v5255, %v5643
        %v5645 = vand.u32 %v5644, 4294901760
        %v5646 = vsub.f32 %v5644, %v5645
        %v5647 = vand.u32 %v5646, 4294901760
        %5648 = vmatprep.subr.mxu0 %v5647
        %v5649 = vand.u32 %v5254, 4294901760
        %v5650 = vsub.f32 %v5254, %v5649
        %v5651 = vand.u32 %v5650, 4294901760
        %v5652 = vsub.f32 %v5650, %v5651
        %v5653 = vand.u32 %v5652, 4294901760
        %5654 = vmatpush1.msra.mxu0 %v5653
        %v5655 = vand.u32 %v5257, 4294901760
        %v5656 = vsub.f32 %v5257, %v5655
        %v5657 = vand.u32 %v5656, 4294901760
        %v5658 = vsub.f32 %v5656, %v5657
        %v5659 = vand.u32 %v5658, 4294901760
        %5660 = vmatprep.subr.mxu0 %v5659
        %v5661 = vand.u32 %v5256, 4294901760
        %v5662 = vsub.f32 %v5256, %v5661
        %v5663 = vand.u32 %v5662, 4294901760
        %v5664 = vsub.f32 %v5662, %v5663
        %v5665 = vand.u32 %v5664, 4294901760
        %5666 = vmatpush1.msra.mxu0 %v5665
        %v5667 = vand.u32 %v5259, 4294901760
        %v5668 = vsub.f32 %v5259, %v5667
        %v5669 = vand.u32 %v5668, 4294901760
        %v5670 = vsub.f32 %v5668, %v5669
        %v5671 = vand.u32 %v5670, 4294901760
        %5672 = vmatprep.subr.mxu0 %v5671
        %v5673 = vand.u32 %v5258, 4294901760
        %v5674 = vsub.f32 %v5258, %v5673
        %v5675 = vand.u32 %v5674, 4294901760
        %v5676 = vsub.f32 %v5674, %v5675
        %v5677 = vand.u32 %v5676, 4294901760
        %5678 = vmatpush1.msra.mxu0 %v5677
        %v5679 = vand.u32 %v5261, 4294901760
        %v5680 = vsub.f32 %v5261, %v5679
        %v5681 = vand.u32 %v5680, 4294901760
        %v5682 = vsub.f32 %v5680, %v5681
        %v5683 = vand.u32 %v5682, 4294901760
        %5684 = vmatprep.subr.mxu0 %v5683
        %v5685 = vand.u32 %v5260, 4294901760
        %v5686 = vsub.f32 %v5260, %v5685
        %v5687 = vand.u32 %v5686, 4294901760
        %v5688 = vsub.f32 %v5686, %v5687
        %v5689 = vand.u32 %v5688, 4294901760
        %5690 = vmatpush1.msra.mxu0 %v5689
        %v5691 = vand.u32 %v5263, 4294901760
        %v5692 = vsub.f32 %v5263, %v5691
        %v5693 = vand.u32 %v5692, 4294901760
        %v5694 = vsub.f32 %v5692, %v5693
        %v5695 = vand.u32 %v5694, 4294901760
        %5696 = vmatprep.subr.mxu0 %v5695
        %v5697 = vand.u32 %v5262, 4294901760
        %v5698 = vsub.f32 %v5262, %v5697
        %v5699 = vand.u32 %v5698, 4294901760
        %v5700 = vsub.f32 %v5698, %v5699
        %v5701 = vand.u32 %v5700, 4294901760
        %5702 = vmatpush1.msra.mxu0 %v5701
        %v5703 = vand.u32 %v5265, 4294901760
        %v5704 = vsub.f32 %v5265, %v5703
        %v5705 = vand.u32 %v5704, 4294901760
        %v5706 = vsub.f32 %v5704, %v5705
        %v5707 = vand.u32 %v5706, 4294901760
        %5708 = vmatprep.subr.mxu0 %v5707
        %v5709 = vand.u32 %v5264, 4294901760
        %v5710 = vsub.f32 %v5264, %v5709
        %v5711 = vand.u32 %v5710, 4294901760
        %v5712 = vsub.f32 %v5710, %v5711
        %v5713 = vand.u32 %v5712, 4294901760
        %5714 = vmatpush1.msra.mxu0 %v5713
        %v5715 = vand.u32 %v5267, 4294901760
        %v5716 = vsub.f32 %v5267, %v5715
        %v5717 = vand.u32 %v5716, 4294901760
        %v5718 = vsub.f32 %v5716, %v5717
        %v5719 = vand.u32 %v5718, 4294901760
        %5720 = vmatprep.subr.mxu0 %v5719
        %v5721 = vand.u32 %v5266, 4294901760
        %v5722 = vsub.f32 %v5266, %v5721
        %v5723 = vand.u32 %v5722, 4294901760
        %v5724 = vsub.f32 %v5722, %v5723
        %v5725 = vand.u32 %v5724, 4294901760
        %5726 = vmatpush1.msra.mxu0 %v5725
        %v5727 = vand.u32 %v5269, 4294901760
        %v5728 = vsub.f32 %v5269, %v5727
        %v5729 = vand.u32 %v5728, 4294901760
        %v5730 = vsub.f32 %v5728, %v5729
        %v5731 = vand.u32 %v5730, 4294901760
        %5732 = vmatprep.subr.mxu0 %v5731
        %v5733 = vand.u32 %v5268, 4294901760
        %v5734 = vsub.f32 %v5268, %v5733
        %v5735 = vand.u32 %v5734, 4294901760
        %v5736 = vsub.f32 %v5734, %v5735
        %v5737 = vand.u32 %v5736, 4294901760
        %5738 = vmatpush1.msra.mxu0 %v5737
        %v5739 = vand.u32 %v5271, 4294901760
        %v5740 = vsub.f32 %v5271, %v5739
        %v5741 = vand.u32 %v5740, 4294901760
        %v5742 = vsub.f32 %v5740, %v5741
        %v5743 = vand.u32 %v5742, 4294901760
        %5744 = vmatprep.subr.mxu0 %v5743
        %v5745 = vand.u32 %v5270, 4294901760
        %v5746 = vsub.f32 %v5270, %v5745
        %v5747 = vand.u32 %v5746, 4294901760
        %v5748 = vsub.f32 %v5746, %v5747
        %v5749 = vand.u32 %v5748, 4294901760
        %5750 = vmatpush1.msra.mxu0 %v5749
        %v5751 = vand.u32 %v5273, 4294901760
        %v5752 = vsub.f32 %v5273, %v5751
        %v5753 = vand.u32 %v5752, 4294901760
        %v5754 = vsub.f32 %v5752, %v5753
        %v5755 = vand.u32 %v5754, 4294901760
        %5756 = vmatprep.subr.mxu0 %v5755
        %v5757 = vand.u32 %v5272, 4294901760
        %v5758 = vsub.f32 %v5272, %v5757
        %v5759 = vand.u32 %v5758, 4294901760
        %v5760 = vsub.f32 %v5758, %v5759
        %v5761 = vand.u32 %v5760, 4294901760
        %5762 = vmatpush1.msra.mxu0 %v5761
        %v5763 = vand.u32 %v5275, 4294901760
        %v5764 = vsub.f32 %v5275, %v5763
        %v5765 = vand.u32 %v5764, 4294901760
        %v5766 = vsub.f32 %v5764, %v5765
        %v5767 = vand.u32 %v5766, 4294901760
        %5768 = vmatprep.subr.mxu0 %v5767
        %v5769 = vand.u32 %v5274, 4294901760
        %v5770 = vsub.f32 %v5274, %v5769
        %v5771 = vand.u32 %v5770, 4294901760
        %v5772 = vsub.f32 %v5770, %v5771
        %v5773 = vand.u32 %v5772, 4294901760
        %5774 = vmatpush1.msra.mxu0 %v5773
        %v5775 = vand.u32 %v5277, 4294901760
        %v5776 = vsub.f32 %v5277, %v5775
        %v5777 = vand.u32 %v5776, 4294901760
        %v5778 = vsub.f32 %v5776, %v5777
        %v5779 = vand.u32 %v5778, 4294901760
        %5780 = vmatprep.subr.mxu0 %v5779
        %v5781 = vand.u32 %v5276, 4294901760
        %v5782 = vsub.f32 %v5276, %v5781
        %v5783 = vand.u32 %v5782, 4294901760
        %v5784 = vsub.f32 %v5782, %v5783
        %v5785 = vand.u32 %v5784, 4294901760
        %5786 = vmatpush1.msra.mxu0 %v5785
        %v5787 = vand.u32 %v5279, 4294901760
        %v5788 = vsub.f32 %v5279, %v5787
        %v5789 = vand.u32 %v5788, 4294901760
        %v5790 = vsub.f32 %v5788, %v5789
        %v5791 = vand.u32 %v5790, 4294901760
        %5792 = vmatprep.subr.mxu0 %v5791
        %v5793 = vand.u32 %v5278, 4294901760
        %v5794 = vsub.f32 %v5278, %v5793
        %v5795 = vand.u32 %v5794, 4294901760
        %v5796 = vsub.f32 %v5794, %v5795
        %v5797 = vand.u32 %v5796, 4294901760
        %5798 = vmatpush1.msra.mxu0 %v5797
        %v5799 = vand.u32 %v5281, 4294901760
        %v5800 = vsub.f32 %v5281, %v5799
        %v5801 = vand.u32 %v5800, 4294901760
        %v5802 = vsub.f32 %v5800, %v5801
        %v5803 = vand.u32 %v5802, 4294901760
        %5804 = vmatprep.subr.mxu0 %v5803
        %v5805 = vand.u32 %v5280, 4294901760
        %v5806 = vsub.f32 %v5280, %v5805
        %v5807 = vand.u32 %v5806, 4294901760
        %v5808 = vsub.f32 %v5806, %v5807
        %v5809 = vand.u32 %v5808, 4294901760
        %5810 = vmatpush1.msra.mxu0 %v5809
        %v5811 = vand.u32 %v5152, 4294901760
        %5812 = vmatprep.mubr.f32.mxu0 %v5811
        %v5813 = vand.u32 %v5146, 4294901760
        %5814 = vmatmul.mubr.f32.gmra.mrb[0].mxu0 %v5813
        %v5815 = vpop.f32.mrb[0].mxu0
        %v5816 = vadd.f32 %v5423, %v5815
        %v5817 = vpop.f32.mrb[0].mxu0
        %v5818 = vadd.f32 %v5425, %v5817
        %5819 = vdwg.mxu0
        %v5820 = vand.u32 %v5219, 4294901760
        %v5821 = vsub.f32 %v5219, %v5820
        %5822 = vmatprep.subr.mxu0 %v5821
        %v5823 = vand.u32 %v5218, 4294901760
        %v5824 = vsub.f32 %v5218, %v5823
        %5825 = vmatpush1.msra.mxu0 %v5824
        %v5826 = vand.u32 %v5221, 4294901760
        %v5827 = vsub.f32 %v5221, %v5826
        %5828 = vmatprep.subr.mxu0 %v5827
        %v5829 = vand.u32 %v5220, 4294901760
        %v5830 = vsub.f32 %v5220, %v5829
        %5831 = vmatpush1.msra.mxu0 %v5830
        %v5832 = vand.u32 %v5223, 4294901760
        %v5833 = vsub.f32 %v5223, %v5832
        %5834 = vmatprep.subr.mxu0 %v5833
        %v5835 = vand.u32 %v5222, 4294901760
        %v5836 = vsub.f32 %v5222, %v5835
        %5837 = vmatpush1.msra.mxu0 %v5836
        %v5838 = vand.u32 %v5225, 4294901760
        %v5839 = vsub.f32 %v5225, %v5838
        %5840 = vmatprep.subr.mxu0 %v5839
        %v5841 = vand.u32 %v5224, 4294901760
        %v5842 = vsub.f32 %v5224, %v5841
        %5843 = vmatpush1.msra.mxu0 %v5842
        %v5844 = vand.u32 %v5227, 4294901760
        %v5845 = vsub.f32 %v5227, %v5844
        %5846 = vmatprep.subr.mxu0 %v5845
        %v5847 = vand.u32 %v5226, 4294901760
        %v5848 = vsub.f32 %v5226, %v5847
        %5849 = vmatpush1.msra.mxu0 %v5848
        %v5850 = vand.u32 %v5229, 4294901760
        %v5851 = vsub.f32 %v5229, %v5850
        %5852 = vmatprep.subr.mxu0 %v5851
        %v5853 = vand.u32 %v5228, 4294901760
        %v5854 = vsub.f32 %v5228, %v5853
        %5855 = vmatpush1.msra.mxu0 %v5854
        %v5856 = vand.u32 %v5231, 4294901760
        %v5857 = vsub.f32 %v5231, %v5856
        %5858 = vmatprep.subr.mxu0 %v5857
        %v5859 = vand.u32 %v5230, 4294901760
        %v5860 = vsub.f32 %v5230, %v5859
        %5861 = vmatpush1.msra.mxu0 %v5860
        %v5862 = vand.u32 %v5233, 4294901760
        %v5863 = vsub.f32 %v5233, %v5862
        %5864 = vmatprep.subr.mxu0 %v5863
        %v5865 = vand.u32 %v5232, 4294901760
        %v5866 = vsub.f32 %v5232, %v5865
        %5867 = vmatpush1.msra.mxu0 %v5866
        %v5868 = vand.u32 %v5235, 4294901760
        %v5869 = vsub.f32 %v5235, %v5868
        %5870 = vmatprep.subr.mxu0 %v5869
        %v5871 = vand.u32 %v5234, 4294901760
        %v5872 = vsub.f32 %v5234, %v5871
        %5873 = vmatpush1.msra.mxu0 %v5872
        %v5874 = vand.u32 %v5237, 4294901760
        %v5875 = vsub.f32 %v5237, %v5874
        %5876 = vmatprep.subr.mxu0 %v5875
        %v5877 = vand.u32 %v5236, 4294901760
        %v5878 = vsub.f32 %v5236, %v5877
        %5879 = vmatpush1.msra.mxu0 %v5878
        %v5880 = vand.u32 %v5239, 4294901760
        %v5881 = vsub.f32 %v5239, %v5880
        %5882 = vmatprep.subr.mxu0 %v5881
        %v5883 = vand.u32 %v5238, 4294901760
        %v5884 = vsub.f32 %v5238, %v5883
        %5885 = vmatpush1.msra.mxu0 %v5884
        %v5886 = vand.u32 %v5241, 4294901760
        %v5887 = vsub.f32 %v5241, %v5886
        %5888 = vmatprep.subr.mxu0 %v5887
        %v5889 = vand.u32 %v5240, 4294901760
        %v5890 = vsub.f32 %v5240, %v5889
        %5891 = vmatpush1.msra.mxu0 %v5890
        %v5892 = vand.u32 %v5243, 4294901760
        %v5893 = vsub.f32 %v5243, %v5892
        %5894 = vmatprep.subr.mxu0 %v5893
        %v5895 = vand.u32 %v5242, 4294901760
        %v5896 = vsub.f32 %v5242, %v5895
        %5897 = vmatpush1.msra.mxu0 %v5896
        %v5898 = vand.u32 %v5245, 4294901760
        %v5899 = vsub.f32 %v5245, %v5898
        %5900 = vmatprep.subr.mxu0 %v5899
        %v5901 = vand.u32 %v5244, 4294901760
        %v5902 = vsub.f32 %v5244, %v5901
        %5903 = vmatpush1.msra.mxu0 %v5902
        %v5904 = vand.u32 %v5247, 4294901760
        %v5905 = vsub.f32 %v5247, %v5904
        %5906 = vmatprep.subr.mxu0 %v5905
        %v5907 = vand.u32 %v5246, 4294901760
        %v5908 = vsub.f32 %v5246, %v5907
        %5909 = vmatpush1.msra.mxu0 %v5908
        %v5910 = vand.u32 %v5249, 4294901760
        %v5911 = vsub.f32 %v5249, %v5910
        %5912 = vmatprep.subr.mxu0 %v5911
        %v5913 = vand.u32 %v5248, 4294901760
        %v5914 = vsub.f32 %v5248, %v5913
        %5915 = vmatpush1.msra.mxu0 %v5914
        %v5916 = vand.u32 %v5251, 4294901760
        %v5917 = vsub.f32 %v5251, %v5916
        %5918 = vmatprep.subr.mxu0 %v5917
        %v5919 = vand.u32 %v5250, 4294901760
        %v5920 = vsub.f32 %v5250, %v5919
        %5921 = vmatpush1.msra.mxu0 %v5920
        %v5922 = vand.u32 %v5253, 4294901760
        %v5923 = vsub.f32 %v5253, %v5922
        %5924 = vmatprep.subr.mxu0 %v5923
        %v5925 = vand.u32 %v5252, 4294901760
        %v5926 = vsub.f32 %v5252, %v5925
        %5927 = vmatpush1.msra.mxu0 %v5926
        %v5928 = vand.u32 %v5255, 4294901760
        %v5929 = vsub.f32 %v5255, %v5928
        %5930 = vmatprep.subr.mxu0 %v5929
        %v5931 = vand.u32 %v5254, 4294901760
        %v5932 = vsub.f32 %v5254, %v5931
        %5933 = vmatpush1.msra.mxu0 %v5932
        %v5934 = vand.u32 %v5257, 4294901760
        %v5935 = vsub.f32 %v5257, %v5934
        %5936 = vmatprep.subr.mxu0 %v5935
        %v5937 = vand.u32 %v5256, 4294901760
        %v5938 = vsub.f32 %v5256, %v5937
        %5939 = vmatpush1.msra.mxu0 %v5938
        %v5940 = vand.u32 %v5259, 4294901760
        %v5941 = vsub.f32 %v5259, %v5940
        %5942 = vmatprep.subr.mxu0 %v5941
        %v5943 = vand.u32 %v5258, 4294901760
        %v5944 = vsub.f32 %v5258, %v5943
        %5945 = vmatpush1.msra.mxu0 %v5944
        %v5946 = vand.u32 %v5261, 4294901760
        %v5947 = vsub.f32 %v5261, %v5946
        %5948 = vmatprep.subr.mxu0 %v5947
        %v5949 = vand.u32 %v5260, 4294901760
        %v5950 = vsub.f32 %v5260, %v5949
        %5951 = vmatpush1.msra.mxu0 %v5950
        %v5952 = vand.u32 %v5263, 4294901760
        %v5953 = vsub.f32 %v5263, %v5952
        %5954 = vmatprep.subr.mxu0 %v5953
        %v5955 = vand.u32 %v5262, 4294901760
        %v5956 = vsub.f32 %v5262, %v5955
        %5957 = vmatpush1.msra.mxu0 %v5956
        %v5958 = vand.u32 %v5265, 4294901760
        %v5959 = vsub.f32 %v5265, %v5958
        %5960 = vmatprep.subr.mxu0 %v5959
        %v5961 = vand.u32 %v5264, 4294901760
        %v5962 = vsub.f32 %v5264, %v5961
        %5963 = vmatpush1.msra.mxu0 %v5962
        %v5964 = vand.u32 %v5267, 4294901760
        %v5965 = vsub.f32 %v5267, %v5964
        %5966 = vmatprep.subr.mxu0 %v5965
        %v5967 = vand.u32 %v5266, 4294901760
        %v5968 = vsub.f32 %v5266, %v5967
        %5969 = vmatpush1.msra.mxu0 %v5968
        %v5970 = vand.u32 %v5269, 4294901760
        %v5971 = vsub.f32 %v5269, %v5970
        %5972 = vmatprep.subr.mxu0 %v5971
        %v5973 = vand.u32 %v5268, 4294901760
        %v5974 = vsub.f32 %v5268, %v5973
        %5975 = vmatpush1.msra.mxu0 %v5974
        %v5976 = vand.u32 %v5271, 4294901760
        %v5977 = vsub.f32 %v5271, %v5976
        %5978 = vmatprep.subr.mxu0 %v5977
        %v5979 = vand.u32 %v5270, 4294901760
        %v5980 = vsub.f32 %v5270, %v5979
        %5981 = vmatpush1.msra.mxu0 %v5980
        %v5982 = vand.u32 %v5273, 4294901760
        %v5983 = vsub.f32 %v5273, %v5982
        %5984 = vmatprep.subr.mxu0 %v5983
        %v5985 = vand.u32 %v5272, 4294901760
        %v5986 = vsub.f32 %v5272, %v5985
        %5987 = vmatpush1.msra.mxu0 %v5986
        %v5988 = vand.u32 %v5275, 4294901760
        %v5989 = vsub.f32 %v5275, %v5988
        %5990 = vmatprep.subr.mxu0 %v5989
        %v5991 = vand.u32 %v5274, 4294901760
        %v5992 = vsub.f32 %v5274, %v5991
        %5993 = vmatpush1.msra.mxu0 %v5992
        %v5994 = vand.u32 %v5277, 4294901760
        %v5995 = vsub.f32 %v5277, %v5994
        %5996 = vmatprep.subr.mxu0 %v5995
        %v5997 = vand.u32 %v5276, 4294901760
        %v5998 = vsub.f32 %v5276, %v5997
        %5999 = vmatpush1.msra.mxu0 %v5998
        %v6000 = vand.u32 %v5279, 4294901760
        %v6001 = vsub.f32 %v5279, %v6000
        %6002 = vmatprep.subr.mxu0 %v6001
        %v6003 = vand.u32 %v5278, 4294901760
        %v6004 = vsub.f32 %v5278, %v6003
        %6005 = vmatpush1.msra.mxu0 %v6004
        %v6006 = vand.u32 %v5281, 4294901760
        %v6007 = vsub.f32 %v5281, %v6006
        %6008 = vmatprep.subr.mxu0 %v6007
        %v6009 = vand.u32 %v5280, 4294901760
        %v6010 = vsub.f32 %v5280, %v6009
        %6011 = vmatpush1.msra.mxu0 %v6010
        %v6012 = vand.u32 %v5152, 4294901760
        %v6013 = vsub.f32 %v5152, %v6012
        %6014 = vmatprep.mubr.f32.mxu0 %v6013
        %v6015 = vand.u32 %v5146, 4294901760
        %v6016 = vsub.f32 %v5146, %v6015
        %6017 = vmatmul.mubr.f32.gmra.mrb[0].mxu0 %v6016
        %v6018 = vpop.f32.mrb[0].mxu0
        %v6019 = vadd.f32 %v5816, %v6018
        %v6020 = vpop.f32.mrb[0].mxu0
        %v6021 = vadd.f32 %v5818, %v6020
        %6022 = vdwg.mxu0
        %v6023 = vand.u32 %v5219, 4294901760
        %6024 = vmatprep.subr.mxu0 %v6023
        %v6025 = vand.u32 %v5218, 4294901760
        %6026 = vmatpush1.msra.mxu0 %v6025
        %v6027 = vand.u32 %v5221, 4294901760
        %6028 = vmatprep.subr.mxu0 %v6027
        %v6029 = vand.u32 %v5220, 4294901760
        %6030 = vmatpush1.msra.mxu0 %v6029
        %v6031 = vand.u32 %v5223, 4294901760
        %6032 = vmatprep.subr.mxu0 %v6031
        %v6033 = vand.u32 %v5222, 4294901760
        %6034 = vmatpush1.msra.mxu0 %v6033
        %v6035 = vand.u32 %v5225, 4294901760
        %6036 = vmatprep.subr.mxu0 %v6035
        %v6037 = vand.u32 %v5224, 4294901760
        %6038 = vmatpush1.msra.mxu0 %v6037
        %v6039 = vand.u32 %v5227, 4294901760
        %6040 = vmatprep.subr.mxu0 %v6039
        %v6041 = vand.u32 %v5226, 4294901760
        %6042 = vmatpush1.msra.mxu0 %v6041
        %v6043 = vand.u32 %v5229, 4294901760
        %6044 = vmatprep.subr.mxu0 %v6043
        %v6045 = vand.u32 %v5228, 4294901760
        %6046 = vmatpush1.msra.mxu0 %v6045
        %v6047 = vand.u32 %v5231, 4294901760
        %6048 = vmatprep.subr.mxu0 %v6047
        %v6049 = vand.u32 %v5230, 4294901760
        %6050 = vmatpush1.msra.mxu0 %v6049
        %v6051 = vand.u32 %v5233, 4294901760
        %6052 = vmatprep.subr.mxu0 %v6051
        %v6053 = vand.u32 %v5232, 4294901760
        %6054 = vmatpush1.msra.mxu0 %v6053
        %v6055 = vand.u32 %v5235, 4294901760
        %6056 = vmatprep.subr.mxu0 %v6055
        %v6057 = vand.u32 %v5234, 4294901760
        %6058 = vmatpush1.msra.mxu0 %v6057
        %v6059 = vand.u32 %v5237, 4294901760
        %6060 = vmatprep.subr.mxu0 %v6059
        %v6061 = vand.u32 %v5236, 4294901760
        %6062 = vmatpush1.msra.mxu0 %v6061
        %v6063 = vand.u32 %v5239, 4294901760
        %6064 = vmatprep.subr.mxu0 %v6063
        %v6065 = vand.u32 %v5238, 4294901760
        %6066 = vmatpush1.msra.mxu0 %v6065
        %v6067 = vand.u32 %v5241, 4294901760
        %6068 = vmatprep.subr.mxu0 %v6067
        %v6069 = vand.u32 %v5240, 4294901760
        %6070 = vmatpush1.msra.mxu0 %v6069
        %v6071 = vand.u32 %v5243, 4294901760
        %6072 = vmatprep.subr.mxu0 %v6071
        %v6073 = vand.u32 %v5242, 4294901760
        %6074 = vmatpush1.msra.mxu0 %v6073
        %v6075 = vand.u32 %v5245, 4294901760
        %6076 = vmatprep.subr.mxu0 %v6075
        %v6077 = vand.u32 %v5244, 4294901760
        %6078 = vmatpush1.msra.mxu0 %v6077
        %v6079 = vand.u32 %v5247, 4294901760
        %6080 = vmatprep.subr.mxu0 %v6079
        %v6081 = vand.u32 %v5246, 4294901760
        %6082 = vmatpush1.msra.mxu0 %v6081
        %v6083 = vand.u32 %v5249, 4294901760
        %6084 = vmatprep.subr.mxu0 %v6083
        %v6085 = vand.u32 %v5248, 4294901760
        %6086 = vmatpush1.msra.mxu0 %v6085
        %v6087 = vand.u32 %v5251, 4294901760
        %6088 = vmatprep.subr.mxu0 %v6087
        %v6089 = vand.u32 %v5250, 4294901760
        %6090 = vmatpush1.msra.mxu0 %v6089
        %v6091 = vand.u32 %v5253, 4294901760
        %6092 = vmatprep.subr.mxu0 %v6091
        %v6093 = vand.u32 %v5252, 4294901760
        %6094 = vmatpush1.msra.mxu0 %v6093
        %v6095 = vand.u32 %v5255, 4294901760
        %6096 = vmatprep.subr.mxu0 %v6095
        %v6097 = vand.u32 %v5254, 4294901760
        %6098 = vmatpush1.msra.mxu0 %v6097
        %v6099 = vand.u32 %v5257, 4294901760
        %6100 = vmatprep.subr.mxu0 %v6099
        %v6101 = vand.u32 %v5256, 4294901760
        %6102 = vmatpush1.msra.mxu0 %v6101
        %v6103 = vand.u32 %v5259, 4294901760
        %6104 = vmatprep.subr.mxu0 %v6103
        %v6105 = vand.u32 %v5258, 4294901760
        %6106 = vmatpush1.msra.mxu0 %v6105
        %v6107 = vand.u32 %v5261, 4294901760
        %6108 = vmatprep.subr.mxu0 %v6107
        %v6109 = vand.u32 %v5260, 4294901760
        %6110 = vmatpush1.msra.mxu0 %v6109
        %v6111 = vand.u32 %v5263, 4294901760
        %6112 = vmatprep.subr.mxu0 %v6111
        %v6113 = vand.u32 %v5262, 4294901760
        %6114 = vmatpush1.msra.mxu0 %v6113
        %v6115 = vand.u32 %v5265, 4294901760
        %6116 = vmatprep.subr.mxu0 %v6115
        %v6117 = vand.u32 %v5264, 4294901760
        %6118 = vmatpush1.msra.mxu0 %v6117
        %v6119 = vand.u32 %v5267, 4294901760
        %6120 = vmatprep.subr.mxu0 %v6119
        %v6121 = vand.u32 %v5266, 4294901760
        %6122 = vmatpush1.msra.mxu0 %v6121
        %v6123 = vand.u32 %v5269, 4294901760
        %6124 = vmatprep.subr.mxu0 %v6123
        %v6125 = vand.u32 %v5268, 4294901760
        %6126 = vmatpush1.msra.mxu0 %v6125
        %v6127 = vand.u32 %v5271, 4294901760
        %6128 = vmatprep.subr.mxu0 %v6127
        %v6129 = vand.u32 %v5270, 4294901760
        %6130 = vmatpush1.msra.mxu0 %v6129
        %v6131 = vand.u32 %v5273, 4294901760
        %6132 = vmatprep.subr.mxu0 %v6131
        %v6133 = vand.u32 %v5272, 4294901760
        %6134 = vmatpush1.msra.mxu0 %v6133
        %v6135 = vand.u32 %v5275, 4294901760
        %6136 = vmatprep.subr.mxu0 %v6135
        %v6137 = vand.u32 %v5274, 4294901760
        %6138 = vmatpush1.msra.mxu0 %v6137
        %v6139 = vand.u32 %v5277, 4294901760
        %6140 = vmatprep.subr.mxu0 %v6139
        %v6141 = vand.u32 %v5276, 4294901760
        %6142 = vmatpush1.msra.mxu0 %v6141
        %v6143 = vand.u32 %v5279, 4294901760
        %6144 = vmatprep.subr.mxu0 %v6143
        %v6145 = vand.u32 %v5278, 4294901760
        %6146 = vmatpush1.msra.mxu0 %v6145
        %v6147 = vand.u32 %v5281, 4294901760
        %6148 = vmatprep.subr.mxu0 %v6147
        %v6149 = vand.u32 %v5280, 4294901760
        %6150 = vmatpush1.msra.mxu0 %v6149
        %v6151 = vand.u32 %v5152, 4294901760
        %v6152 = vsub.f32 %v5152, %v6151
        %v6153 = vand.u32 %v6152, 4294901760
        %6154 = vmatprep.mubr.f32.mxu0 %v6153
        %v6155 = vand.u32 %v5146, 4294901760
        %v6156 = vsub.f32 %v5146, %v6155
        %v6157 = vand.u32 %v6156, 4294901760
        %6158 = vmatmul.mubr.f32.gmra.mrb[0].mxu0 %v6157
        %v6159 = vpop.f32.mrb[0].mxu0
        %v6160 = vadd.f32 %v6019, %v6159
        %v6161 = vpop.f32.mrb[0].mxu0
        %v6162 = vadd.f32 %v6021, %v6161
        %6163 = vdwg.mxu0
        %v6164 = vand.u32 %v5219, 4294901760
        %v6165 = vsub.f32 %v5219, %v6164
        %v6166 = vand.u32 %v6165, 4294901760
        %6167 = vmatprep.subr.mxu0 %v6166
        %v6168 = vand.u32 %v5218, 4294901760
        %v6169 = vsub.f32 %v5218, %v6168
        %v6170 = vand.u32 %v6169, 4294901760
        %6171 = vmatpush1.msra.mxu0 %v6170
        %v6172 = vand.u32 %v5221, 4294901760
        %v6173 = vsub.f32 %v5221, %v6172
        %v6174 = vand.u32 %v6173, 4294901760
        %6175 = vmatprep.subr.mxu0 %v6174
        %v6176 = vand.u32 %v5220, 4294901760
        %v6177 = vsub.f32 %v5220, %v6176
        %v6178 = vand.u32 %v6177, 4294901760
        %6179 = vmatpush1.msra.mxu0 %v6178
        %v6180 = vand.u32 %v5223, 4294901760
        %v6181 = vsub.f32 %v5223, %v6180
        %v6182 = vand.u32 %v6181, 4294901760
        %6183 = vmatprep.subr.mxu0 %v6182
        %v6184 = vand.u32 %v5222, 4294901760
        %v6185 = vsub.f32 %v5222, %v6184
        %v6186 = vand.u32 %v6185, 4294901760
        %6187 = vmatpush1.msra.mxu0 %v6186
        %v6188 = vand.u32 %v5225, 4294901760
        %v6189 = vsub.f32 %v5225, %v6188
        %v6190 = vand.u32 %v6189, 4294901760
        %6191 = vmatprep.subr.mxu0 %v6190
        %v6192 = vand.u32 %v5224, 4294901760
        %v6193 = vsub.f32 %v5224, %v6192
        %v6194 = vand.u32 %v6193, 4294901760
        %6195 = vmatpush1.msra.mxu0 %v6194
        %v6196 = vand.u32 %v5227, 4294901760
        %v6197 = vsub.f32 %v5227, %v6196
        %v6198 = vand.u32 %v6197, 4294901760
        %6199 = vmatprep.subr.mxu0 %v6198
        %v6200 = vand.u32 %v5226, 4294901760
        %v6201 = vsub.f32 %v5226, %v6200
        %v6202 = vand.u32 %v6201, 4294901760
        %6203 = vmatpush1.msra.mxu0 %v6202
        %v6204 = vand.u32 %v5229, 4294901760
        %v6205 = vsub.f32 %v5229, %v6204
        %v6206 = vand.u32 %v6205, 4294901760
        %6207 = vmatprep.subr.mxu0 %v6206
        %v6208 = vand.u32 %v5228, 4294901760
        %v6209 = vsub.f32 %v5228, %v6208
        %v6210 = vand.u32 %v6209, 4294901760
        %6211 = vmatpush1.msra.mxu0 %v6210
        %v6212 = vand.u32 %v5231, 4294901760
        %v6213 = vsub.f32 %v5231, %v6212
        %v6214 = vand.u32 %v6213, 4294901760
        %6215 = vmatprep.subr.mxu0 %v6214
        %v6216 = vand.u32 %v5230, 4294901760
        %v6217 = vsub.f32 %v5230, %v6216
        %v6218 = vand.u32 %v6217, 4294901760
        %6219 = vmatpush1.msra.mxu0 %v6218
        %v6220 = vand.u32 %v5233, 4294901760
        %v6221 = vsub.f32 %v5233, %v6220
        %v6222 = vand.u32 %v6221, 4294901760
        %6223 = vmatprep.subr.mxu0 %v6222
        %v6224 = vand.u32 %v5232, 4294901760
        %v6225 = vsub.f32 %v5232, %v6224
        %v6226 = vand.u32 %v6225, 4294901760
        %6227 = vmatpush1.msra.mxu0 %v6226
        %v6228 = vand.u32 %v5235, 4294901760
        %v6229 = vsub.f32 %v5235, %v6228
        %v6230 = vand.u32 %v6229, 4294901760
        %6231 = vmatprep.subr.mxu0 %v6230
        %v6232 = vand.u32 %v5234, 4294901760
        %v6233 = vsub.f32 %v5234, %v6232
        %v6234 = vand.u32 %v6233, 4294901760
        %6235 = vmatpush1.msra.mxu0 %v6234
        %v6236 = vand.u32 %v5237, 4294901760
        %v6237 = vsub.f32 %v5237, %v6236
        %v6238 = vand.u32 %v6237, 4294901760
        %6239 = vmatprep.subr.mxu0 %v6238
        %v6240 = vand.u32 %v5236, 4294901760
        %v6241 = vsub.f32 %v5236, %v6240
        %v6242 = vand.u32 %v6241, 4294901760
        %6243 = vmatpush1.msra.mxu0 %v6242
        %v6244 = vand.u32 %v5239, 4294901760
        %v6245 = vsub.f32 %v5239, %v6244
        %v6246 = vand.u32 %v6245, 4294901760
        %6247 = vmatprep.subr.mxu0 %v6246
        %v6248 = vand.u32 %v5238, 4294901760
        %v6249 = vsub.f32 %v5238, %v6248
        %v6250 = vand.u32 %v6249, 4294901760
        %6251 = vmatpush1.msra.mxu0 %v6250
        %v6252 = vand.u32 %v5241, 4294901760
        %v6253 = vsub.f32 %v5241, %v6252
        %v6254 = vand.u32 %v6253, 4294901760
        %6255 = vmatprep.subr.mxu0 %v6254
        %v6256 = vand.u32 %v5240, 4294901760
        %v6257 = vsub.f32 %v5240, %v6256
        %v6258 = vand.u32 %v6257, 4294901760
        %6259 = vmatpush1.msra.mxu0 %v6258
        %v6260 = vand.u32 %v5243, 4294901760
        %v6261 = vsub.f32 %v5243, %v6260
        %v6262 = vand.u32 %v6261, 4294901760
        %6263 = vmatprep.subr.mxu0 %v6262
        %v6264 = vand.u32 %v5242, 4294901760
        %v6265 = vsub.f32 %v5242, %v6264
        %v6266 = vand.u32 %v6265, 4294901760
        %6267 = vmatpush1.msra.mxu0 %v6266
        %v6268 = vand.u32 %v5245, 4294901760
        %v6269 = vsub.f32 %v5245, %v6268
        %v6270 = vand.u32 %v6269, 4294901760
        %6271 = vmatprep.subr.mxu0 %v6270
        %v6272 = vand.u32 %v5244, 4294901760
        %v6273 = vsub.f32 %v5244, %v6272
        %v6274 = vand.u32 %v6273, 4294901760
        %6275 = vmatpush1.msra.mxu0 %v6274
        %v6276 = vand.u32 %v5247, 4294901760
        %v6277 = vsub.f32 %v5247, %v6276
        %v6278 = vand.u32 %v6277, 4294901760
        %6279 = vmatprep.subr.mxu0 %v6278
        %v6280 = vand.u32 %v5246, 4294901760
        %v6281 = vsub.f32 %v5246, %v6280
        %v6282 = vand.u32 %v6281, 4294901760
        %6283 = vmatpush1.msra.mxu0 %v6282
        %v6284 = vand.u32 %v5249, 4294901760
        %v6285 = vsub.f32 %v5249, %v6284
        %v6286 = vand.u32 %v6285, 4294901760
        %6287 = vmatprep.subr.mxu0 %v6286
        %v6288 = vand.u32 %v5248, 4294901760
        %v6289 = vsub.f32 %v5248, %v6288
        %v6290 = vand.u32 %v6289, 4294901760
        %6291 = vmatpush1.msra.mxu0 %v6290
        %v6292 = vand.u32 %v5251, 4294901760
        %v6293 = vsub.f32 %v5251, %v6292
        %v6294 = vand.u32 %v6293, 4294901760
        %6295 = vmatprep.subr.mxu0 %v6294
        %v6296 = vand.u32 %v5250, 4294901760
        %v6297 = vsub.f32 %v5250, %v6296
        %v6298 = vand.u32 %v6297, 4294901760
        %6299 = vmatpush1.msra.mxu0 %v6298
        %v6300 = vand.u32 %v5253, 4294901760
        %v6301 = vsub.f32 %v5253, %v6300
        %v6302 = vand.u32 %v6301, 4294901760
        %6303 = vmatprep.subr.mxu0 %v6302
        %v6304 = vand.u32 %v5252, 4294901760
        %v6305 = vsub.f32 %v5252, %v6304
        %v6306 = vand.u32 %v6305, 4294901760
        %6307 = vmatpush1.msra.mxu0 %v6306
        %v6308 = vand.u32 %v5255, 4294901760
        %v6309 = vsub.f32 %v5255, %v6308
        %v6310 = vand.u32 %v6309, 4294901760
        %6311 = vmatprep.subr.mxu0 %v6310
        %v6312 = vand.u32 %v5254, 4294901760
        %v6313 = vsub.f32 %v5254, %v6312
        %v6314 = vand.u32 %v6313, 4294901760
        %6315 = vmatpush1.msra.mxu0 %v6314
        %v6316 = vand.u32 %v5257, 4294901760
        %v6317 = vsub.f32 %v5257, %v6316
        %v6318 = vand.u32 %v6317, 4294901760
        %6319 = vmatprep.subr.mxu0 %v6318
        %v6320 = vand.u32 %v5256, 4294901760
        %v6321 = vsub.f32 %v5256, %v6320
        %v6322 = vand.u32 %v6321, 4294901760
        %6323 = vmatpush1.msra.mxu0 %v6322
        %v6324 = vand.u32 %v5259, 4294901760
        %v6325 = vsub.f32 %v5259, %v6324
        %v6326 = vand.u32 %v6325, 4294901760
        %6327 = vmatprep.subr.mxu0 %v6326
        %v6328 = vand.u32 %v5258, 4294901760
        %v6329 = vsub.f32 %v5258, %v6328
        %v6330 = vand.u32 %v6329, 4294901760
        %6331 = vmatpush1.msra.mxu0 %v6330
        %v6332 = vand.u32 %v5261, 4294901760
        %v6333 = vsub.f32 %v5261, %v6332
        %v6334 = vand.u32 %v6333, 4294901760
        %6335 = vmatprep.subr.mxu0 %v6334
        %v6336 = vand.u32 %v5260, 4294901760
        %v6337 = vsub.f32 %v5260, %v6336
        %v6338 = vand.u32 %v6337, 4294901760
        %6339 = vmatpush1.msra.mxu0 %v6338
        %v6340 = vand.u32 %v5263, 4294901760
        %v6341 = vsub.f32 %v5263, %v6340
        %v6342 = vand.u32 %v6341, 4294901760
        %6343 = vmatprep.subr.mxu0 %v6342
        %v6344 = vand.u32 %v5262, 4294901760
        %v6345 = vsub.f32 %v5262, %v6344
        %v6346 = vand.u32 %v6345, 4294901760
        %6347 = vmatpush1.msra.mxu0 %v6346
        %v6348 = vand.u32 %v5265, 4294901760
        %v6349 = vsub.f32 %v5265, %v6348
        %v6350 = vand.u32 %v6349, 4294901760
        %6351 = vmatprep.subr.mxu0 %v6350
        %v6352 = vand.u32 %v5264, 4294901760
        %v6353 = vsub.f32 %v5264, %v6352
        %v6354 = vand.u32 %v6353, 4294901760
        %6355 = vmatpush1.msra.mxu0 %v6354
        %v6356 = vand.u32 %v5267, 4294901760
        %v6357 = vsub.f32 %v5267, %v6356
        %v6358 = vand.u32 %v6357, 4294901760
        %6359 = vmatprep.subr.mxu0 %v6358
        %v6360 = vand.u32 %v5266, 4294901760
        %v6361 = vsub.f32 %v5266, %v6360
        %v6362 = vand.u32 %v6361, 4294901760
        %6363 = vmatpush1.msra.mxu0 %v6362
        %v6364 = vand.u32 %v5269, 4294901760
        %v6365 = vsub.f32 %v5269, %v6364
        %v6366 = vand.u32 %v6365, 4294901760
        %6367 = vmatprep.subr.mxu0 %v6366
        %v6368 = vand.u32 %v5268, 4294901760
        %v6369 = vsub.f32 %v5268, %v6368
        %v6370 = vand.u32 %v6369, 4294901760
        %6371 = vmatpush1.msra.mxu0 %v6370
        %v6372 = vand.u32 %v5271, 4294901760
        %v6373 = vsub.f32 %v5271, %v6372
        %v6374 = vand.u32 %v6373, 4294901760
        %6375 = vmatprep.subr.mxu0 %v6374
        %v6376 = vand.u32 %v5270, 4294901760
        %v6377 = vsub.f32 %v5270, %v6376
        %v6378 = vand.u32 %v6377, 4294901760
        %6379 = vmatpush1.msra.mxu0 %v6378
        %v6380 = vand.u32 %v5273, 4294901760
        %v6381 = vsub.f32 %v5273, %v6380
        %v6382 = vand.u32 %v6381, 4294901760
        %6383 = vmatprep.subr.mxu0 %v6382
        %v6384 = vand.u32 %v5272, 4294901760
        %v6385 = vsub.f32 %v5272, %v6384
        %v6386 = vand.u32 %v6385, 4294901760
        %6387 = vmatpush1.msra.mxu0 %v6386
        %v6388 = vand.u32 %v5275, 4294901760
        %v6389 = vsub.f32 %v5275, %v6388
        %v6390 = vand.u32 %v6389, 4294901760
        %6391 = vmatprep.subr.mxu0 %v6390
        %v6392 = vand.u32 %v5274, 4294901760
        %v6393 = vsub.f32 %v5274, %v6392
        %v6394 = vand.u32 %v6393, 4294901760
        %6395 = vmatpush1.msra.mxu0 %v6394
        %v6396 = vand.u32 %v5277, 4294901760
        %v6397 = vsub.f32 %v5277, %v6396
        %v6398 = vand.u32 %v6397, 4294901760
        %6399 = vmatprep.subr.mxu0 %v6398
        %v6400 = vand.u32 %v5276, 4294901760
        %v6401 = vsub.f32 %v5276, %v6400
        %v6402 = vand.u32 %v6401, 4294901760
        %6403 = vmatpush1.msra.mxu0 %v6402
        %v6404 = vand.u32 %v5279, 4294901760
        %v6405 = vsub.f32 %v5279, %v6404
        %v6406 = vand.u32 %v6405, 4294901760
        %6407 = vmatprep.subr.mxu0 %v6406
        %v6408 = vand.u32 %v5278, 4294901760
        %v6409 = vsub.f32 %v5278, %v6408
        %v6410 = vand.u32 %v6409, 4294901760
        %6411 = vmatpush1.msra.mxu0 %v6410
        %v6412 = vand.u32 %v5281, 4294901760
        %v6413 = vsub.f32 %v5281, %v6412
        %v6414 = vand.u32 %v6413, 4294901760
        %6415 = vmatprep.subr.mxu0 %v6414
        %v6416 = vand.u32 %v5280, 4294901760
        %v6417 = vsub.f32 %v5280, %v6416
        %v6418 = vand.u32 %v6417, 4294901760
        %6419 = vmatpush1.msra.mxu0 %v6418
        %v6420 = vand.u32 %v5152, 4294901760
        %6421 = vmatprep.mubr.f32.mxu0 %v6420
        %v6422 = vand.u32 %v5146, 4294901760
        %6423 = vmatmul.mubr.f32.gmra.mrb[0].mxu0 %v6422
        %v6424 = vpop.f32.mrb[0].mxu0
        %v6425 = vadd.f32 %v6160, %v6424
        %v6426 = vpop.f32.mrb[0].mxu0
        %v6427 = vadd.f32 %v6162, %v6426
        %6428 = vdwg.mxu0
        %v6429 = vand.u32 %v5219, 4294901760
        %6430 = vmatprep.subr.mxu0 %v6429
        %v6431 = vand.u32 %v5218, 4294901760
        %6432 = vmatpush1.msra.mxu0 %v6431
        %v6433 = vand.u32 %v5221, 4294901760
        %6434 = vmatprep.subr.mxu0 %v6433
        %v6435 = vand.u32 %v5220, 4294901760
        %6436 = vmatpush1.msra.mxu0 %v6435
        %v6437 = vand.u32 %v5223, 4294901760
        %6438 = vmatprep.subr.mxu0 %v6437
        %v6439 = vand.u32 %v5222, 4294901760
        %6440 = vmatpush1.msra.mxu0 %v6439
        %v6441 = vand.u32 %v5225, 4294901760
        %6442 = vmatprep.subr.mxu0 %v6441
        %v6443 = vand.u32 %v5224, 4294901760
        %6444 = vmatpush1.msra.mxu0 %v6443
        %v6445 = vand.u32 %v5227, 4294901760
        %6446 = vmatprep.subr.mxu0 %v6445
        %v6447 = vand.u32 %v5226, 4294901760
        %6448 = vmatpush1.msra.mxu0 %v6447
        %v6449 = vand.u32 %v5229, 4294901760
        %6450 = vmatprep.subr.mxu0 %v6449
        %v6451 = vand.u32 %v5228, 4294901760
        %6452 = vmatpush1.msra.mxu0 %v6451
        %v6453 = vand.u32 %v5231, 4294901760
        %6454 = vmatprep.subr.mxu0 %v6453
        %v6455 = vand.u32 %v5230, 4294901760
        %6456 = vmatpush1.msra.mxu0 %v6455
        %v6457 = vand.u32 %v5233, 4294901760
        %6458 = vmatprep.subr.mxu0 %v6457
        %v6459 = vand.u32 %v5232, 4294901760
        %6460 = vmatpush1.msra.mxu0 %v6459
        %v6461 = vand.u32 %v5235, 4294901760
        %6462 = vmatprep.subr.mxu0 %v6461
        %v6463 = vand.u32 %v5234, 4294901760
        %6464 = vmatpush1.msra.mxu0 %v6463
        %v6465 = vand.u32 %v5237, 4294901760
        %6466 = vmatprep.subr.mxu0 %v6465
        %v6467 = vand.u32 %v5236, 4294901760
        %6468 = vmatpush1.msra.mxu0 %v6467
        %v6469 = vand.u32 %v5239, 4294901760
        %6470 = vmatprep.subr.mxu0 %v6469
        %v6471 = vand.u32 %v5238, 4294901760
        %6472 = vmatpush1.msra.mxu0 %v6471
        %v6473 = vand.u32 %v5241, 4294901760
        %6474 = vmatprep.subr.mxu0 %v6473
        %v6475 = vand.u32 %v5240, 4294901760
        %6476 = vmatpush1.msra.mxu0 %v6475
        %v6477 = vand.u32 %v5243, 4294901760
        %6478 = vmatprep.subr.mxu0 %v6477
        %v6479 = vand.u32 %v5242, 4294901760
        %6480 = vmatpush1.msra.mxu0 %v6479
        %v6481 = vand.u32 %v5245, 4294901760
        %6482 = vmatprep.subr.mxu0 %v6481
        %v6483 = vand.u32 %v5244, 4294901760
        %6484 = vmatpush1.msra.mxu0 %v6483
        %v6485 = vand.u32 %v5247, 4294901760
        %6486 = vmatprep.subr.mxu0 %v6485
        %v6487 = vand.u32 %v5246, 4294901760
        %6488 = vmatpush1.msra.mxu0 %v6487
        %v6489 = vand.u32 %v5249, 4294901760
        %6490 = vmatprep.subr.mxu0 %v6489
        %v6491 = vand.u32 %v5248, 4294901760
        %6492 = vmatpush1.msra.mxu0 %v6491
        %v6493 = vand.u32 %v5251, 4294901760
        %6494 = vmatprep.subr.mxu0 %v6493
        %v6495 = vand.u32 %v5250, 4294901760
        %6496 = vmatpush1.msra.mxu0 %v6495
        %v6497 = vand.u32 %v5253, 4294901760
        %6498 = vmatprep.subr.mxu0 %v6497
        %v6499 = vand.u32 %v5252, 4294901760
        %6500 = vmatpush1.msra.mxu0 %v6499
        %v6501 = vand.u32 %v5255, 4294901760
        %6502 = vmatprep.subr.mxu0 %v6501
        %v6503 = vand.u32 %v5254, 4294901760
        %6504 = vmatpush1.msra.mxu0 %v6503
        %v6505 = vand.u32 %v5257, 4294901760
        %6506 = vmatprep.subr.mxu0 %v6505
        %v6507 = vand.u32 %v5256, 4294901760
        %6508 = vmatpush1.msra.mxu0 %v6507
        %v6509 = vand.u32 %v5259, 4294901760
        %6510 = vmatprep.subr.mxu0 %v6509
        %v6511 = vand.u32 %v5258, 4294901760
        %6512 = vmatpush1.msra.mxu0 %v6511
        %v6513 = vand.u32 %v5261, 4294901760
        %6514 = vmatprep.subr.mxu0 %v6513
        %v6515 = vand.u32 %v5260, 4294901760
        %6516 = vmatpush1.msra.mxu0 %v6515
        %v6517 = vand.u32 %v5263, 4294901760
        %6518 = vmatprep.subr.mxu0 %v6517
        %v6519 = vand.u32 %v5262, 4294901760
        %6520 = vmatpush1.msra.mxu0 %v6519
        %v6521 = vand.u32 %v5265, 4294901760
        %6522 = vmatprep.subr.mxu0 %v6521
        %v6523 = vand.u32 %v5264, 4294901760
        %6524 = vmatpush1.msra.mxu0 %v6523
        %v6525 = vand.u32 %v5267, 4294901760
        %6526 = vmatprep.subr.mxu0 %v6525
        %v6527 = vand.u32 %v5266, 4294901760
        %6528 = vmatpush1.msra.mxu0 %v6527
        %v6529 = vand.u32 %v5269, 4294901760
        %6530 = vmatprep.subr.mxu0 %v6529
        %v6531 = vand.u32 %v5268, 4294901760
        %6532 = vmatpush1.msra.mxu0 %v6531
        %v6533 = vand.u32 %v5271, 4294901760
        %6534 = vmatprep.subr.mxu0 %v6533
        %v6535 = vand.u32 %v5270, 4294901760
        %6536 = vmatpush1.msra.mxu0 %v6535
        %v6537 = vand.u32 %v5273, 4294901760
        %6538 = vmatprep.subr.mxu0 %v6537
        %v6539 = vand.u32 %v5272, 4294901760
        %6540 = vmatpush1.msra.mxu0 %v6539
        %v6541 = vand.u32 %v5275, 4294901760
        %6542 = vmatprep.subr.mxu0 %v6541
        %v6543 = vand.u32 %v5274, 4294901760
        %6544 = vmatpush1.msra.mxu0 %v6543
        %v6545 = vand.u32 %v5277, 4294901760
        %6546 = vmatprep.subr.mxu0 %v6545
        %v6547 = vand.u32 %v5276, 4294901760
        %6548 = vmatpush1.msra.mxu0 %v6547
        %v6549 = vand.u32 %v5279, 4294901760
        %6550 = vmatprep.subr.mxu0 %v6549
        %v6551 = vand.u32 %v5278, 4294901760
        %6552 = vmatpush1.msra.mxu0 %v6551
        %v6553 = vand.u32 %v5281, 4294901760
        %6554 = vmatprep.subr.mxu0 %v6553
        %v6555 = vand.u32 %v5280, 4294901760
        %6556 = vmatpush1.msra.mxu0 %v6555
        %v6557 = vand.u32 %v5152, 4294901760
        %6558 = vmatprep.mubr.f32.mxu0 %v6557
        %v6559 = vand.u32 %v5146, 4294901760
        %6560 = vmatmul.mubr.f32.gmra.mrb[0].mxu0 %v6559
        %v6561 = vpop.f32.mrb[0].mxu0
        %v6562 = vadd.f32 %v6425, %v6561
        %v6563 = vpop.f32.mrb[0].mxu0
        %v6564 = vadd.f32 %v6427, %v6563
        %6565 = vdwg.mxu0
        %v6566 = vand.u32 %v5154, 4294901760
        %6567 = vmatprep.subr.mxu0 %v6566
        %v6568 = vand.u32 %v5153, 4294901760
        %6569 = vmatpush1.msra.mxu0 %v6568
        %v6570 = vand.u32 %v5156, 4294901760
        %6571 = vmatprep.subr.mxu0 %v6570
        %v6572 = vand.u32 %v5155, 4294901760
        %6573 = vmatpush1.msra.mxu0 %v6572
        %v6574 = vand.u32 %v5158, 4294901760
        %6575 = vmatprep.subr.mxu0 %v6574
        %v6576 = vand.u32 %v5157, 4294901760
        %6577 = vmatpush1.msra.mxu0 %v6576
        %v6578 = vand.u32 %v5160, 4294901760
        %6579 = vmatprep.subr.mxu0 %v6578
        %v6580 = vand.u32 %v5159, 4294901760
        %6581 = vmatpush1.msra.mxu0 %v6580
        %v6582 = vand.u32 %v5162, 4294901760
        %6583 = vmatprep.subr.mxu0 %v6582
        %v6584 = vand.u32 %v5161, 4294901760
        %6585 = vmatpush1.msra.mxu0 %v6584
        %v6586 = vand.u32 %v5164, 4294901760
        %6587 = vmatprep.subr.mxu0 %v6586
        %v6588 = vand.u32 %v5163, 4294901760
        %6589 = vmatpush1.msra.mxu0 %v6588
        %v6590 = vand.u32 %v5166, 4294901760
        %6591 = vmatprep.subr.mxu0 %v6590
        %v6592 = vand.u32 %v5165, 4294901760
        %6593 = vmatpush1.msra.mxu0 %v6592
        %v6594 = vand.u32 %v5168, 4294901760
        %6595 = vmatprep.subr.mxu0 %v6594
        %v6596 = vand.u32 %v5167, 4294901760
        %6597 = vmatpush1.msra.mxu0 %v6596
        %v6598 = vand.u32 %v5170, 4294901760
        %6599 = vmatprep.subr.mxu0 %v6598
        %v6600 = vand.u32 %v5169, 4294901760
        %6601 = vmatpush1.msra.mxu0 %v6600
        %v6602 = vand.u32 %v5172, 4294901760
        %6603 = vmatprep.subr.mxu0 %v6602
        %v6604 = vand.u32 %v5171, 4294901760
        %6605 = vmatpush1.msra.mxu0 %v6604
        %v6606 = vand.u32 %v5174, 4294901760
        %6607 = vmatprep.subr.mxu0 %v6606
        %v6608 = vand.u32 %v5173, 4294901760
        %6609 = vmatpush1.msra.mxu0 %v6608
        %v6610 = vand.u32 %v5176, 4294901760
        %6611 = vmatprep.subr.mxu0 %v6610
        %v6612 = vand.u32 %v5175, 4294901760
        %6613 = vmatpush1.msra.mxu0 %v6612
        %v6614 = vand.u32 %v5178, 4294901760
        %6615 = vmatprep.subr.mxu0 %v6614
        %v6616 = vand.u32 %v5177, 4294901760
        %6617 = vmatpush1.msra.mxu0 %v6616
        %v6618 = vand.u32 %v5180, 4294901760
        %6619 = vmatprep.subr.mxu0 %v6618
        %v6620 = vand.u32 %v5179, 4294901760
        %6621 = vmatpush1.msra.mxu0 %v6620
        %v6622 = vand.u32 %v5182, 4294901760
        %6623 = vmatprep.subr.mxu0 %v6622
        %v6624 = vand.u32 %v5181, 4294901760
        %6625 = vmatpush1.msra.mxu0 %v6624
        %v6626 = vand.u32 %v5184, 4294901760
        %6627 = vmatprep.subr.mxu0 %v6626
        %v6628 = vand.u32 %v5183, 4294901760
        %6629 = vmatpush1.msra.mxu0 %v6628
        %v6630 = vand.u32 %v5186, 4294901760
        %6631 = vmatprep.subr.mxu0 %v6630
        %v6632 = vand.u32 %v5185, 4294901760
        %6633 = vmatpush1.msra.mxu0 %v6632
        %v6634 = vand.u32 %v5188, 4294901760
        %6635 = vmatprep.subr.mxu0 %v6634
        %v6636 = vand.u32 %v5187, 4294901760
        %6637 = vmatpush1.msra.mxu0 %v6636
        %v6638 = vand.u32 %v5190, 4294901760
        %6639 = vmatprep.subr.mxu0 %v6638
        %v6640 = vand.u32 %v5189, 4294901760
        %6641 = vmatpush1.msra.mxu0 %v6640
        %v6642 = vand.u32 %v5192, 4294901760
        %6643 = vmatprep.subr.mxu0 %v6642
        %v6644 = vand.u32 %v5191, 4294901760
        %6645 = vmatpush1.msra.mxu0 %v6644
        %v6646 = vand.u32 %v5194, 4294901760
        %6647 = vmatprep.subr.mxu0 %v6646
        %v6648 = vand.u32 %v5193, 4294901760
        %6649 = vmatpush1.msra.mxu0 %v6648
        %v6650 = vand.u32 %v5196, 4294901760
        %6651 = vmatprep.subr.mxu0 %v6650
        %v6652 = vand.u32 %v5195, 4294901760
        %6653 = vmatpush1.msra.mxu0 %v6652
        %v6654 = vand.u32 %v5198, 4294901760
        %6655 = vmatprep.subr.mxu0 %v6654
        %v6656 = vand.u32 %v5197, 4294901760
        %6657 = vmatpush1.msra.mxu0 %v6656
        %v6658 = vand.u32 %v5200, 4294901760
        %6659 = vmatprep.subr.mxu0 %v6658
        %v6660 = vand.u32 %v5199, 4294901760
        %6661 = vmatpush1.msra.mxu0 %v6660
        %v6662 = vand.u32 %v5202, 4294901760
        %6663 = vmatprep.subr.mxu0 %v6662
        %v6664 = vand.u32 %v5201, 4294901760
        %6665 = vmatpush1.msra.mxu0 %v6664
        %v6666 = vand.u32 %v5204, 4294901760
        %6667 = vmatprep.subr.mxu0 %v6666
        %v6668 = vand.u32 %v5203, 4294901760
        %6669 = vmatpush1.msra.mxu0 %v6668
        %v6670 = vand.u32 %v5206, 4294901760
        %6671 = vmatprep.subr.mxu0 %v6670
        %v6672 = vand.u32 %v5205, 4294901760
        %6673 = vmatpush1.msra.mxu0 %v6672
        %v6674 = vand.u32 %v5208, 4294901760
        %6675 = vmatprep.subr.mxu0 %v6674
        %v6676 = vand.u32 %v5207, 4294901760
        %6677 = vmatpush1.msra.mxu0 %v6676
        %v6678 = vand.u32 %v5210, 4294901760
        %6679 = vmatprep.subr.mxu0 %v6678
        %v6680 = vand.u32 %v5209, 4294901760
        %6681 = vmatpush1.msra.mxu0 %v6680
        %v6682 = vand.u32 %v5212, 4294901760
        %6683 = vmatprep.subr.mxu0 %v6682
        %v6684 = vand.u32 %v5211, 4294901760
        %6685 = vmatpush1.msra.mxu0 %v6684
        %v6686 = vand.u32 %v5214, 4294901760
        %6687 = vmatprep.subr.mxu0 %v6686
        %v6688 = vand.u32 %v5213, 4294901760
        %6689 = vmatpush1.msra.mxu0 %v6688
        %v6690 = vand.u32 %v5216, 4294901760
        %6691 = vmatprep.subr.mxu0 %v6690
        %v6692 = vand.u32 %v5215, 4294901760
        %6693 = vmatpush1.msra.mxu0 %v6692
        %v6694 = vand.u32 %v5140, 4294901760
        %v6695 = vsub.f32 %v5140, %v6694
        %v6696 = vand.u32 %v6695, 4294901760
        %v6697 = vsub.f32 %v6695, %v6696
        %v6698 = vand.u32 %v6697, 4294901760
        %6699 = vmatprep.mubr.f32.mxu0 %v6698
        %v6700 = vand.u32 %v5139, 4294901760
        %v6701 = vsub.f32 %v5139, %v6700
        %v6702 = vand.u32 %v6701, 4294901760
        %v6703 = vsub.f32 %v6701, %v6702
        %v6704 = vand.u32 %v6703, 4294901760
        %6705 = vmatmul.mubr.f32.gmra.mrb[0].mxu0 %v6704
        %v6706 = vpop.f32.mrb[0].mxu0
        %v6707 = vadd.f32 %v6562, %v6706
        %v6708 = vpop.f32.mrb[0].mxu0
        %v6709 = vadd.f32 %v6564, %v6708
        %6710 = vdwg.mxu0
        %v6711 = vand.u32 %v5154, 4294901760
        %v6712 = vsub.f32 %v5154, %v6711
        %v6713 = vand.u32 %v6712, 4294901760
        %v6714 = vsub.f32 %v6712, %v6713
        %v6715 = vand.u32 %v6714, 4294901760
        %6716 = vmatprep.subr.mxu0 %v6715
        %v6717 = vand.u32 %v5153, 4294901760
        %v6718 = vsub.f32 %v5153, %v6717
        %v6719 = vand.u32 %v6718, 4294901760
        %v6720 = vsub.f32 %v6718, %v6719
        %v6721 = vand.u32 %v6720, 4294901760
        %6722 = vmatpush1.msra.mxu0 %v6721
        %v6723 = vand.u32 %v5156, 4294901760
        %v6724 = vsub.f32 %v5156, %v6723
        %v6725 = vand.u32 %v6724, 4294901760
        %v6726 = vsub.f32 %v6724, %v6725
        %v6727 = vand.u32 %v6726, 4294901760
        %6728 = vmatprep.subr.mxu0 %v6727
        %v6729 = vand.u32 %v5155, 4294901760
        %v6730 = vsub.f32 %v5155, %v6729
        %v6731 = vand.u32 %v6730, 4294901760
        %v6732 = vsub.f32 %v6730, %v6731
        %v6733 = vand.u32 %v6732, 4294901760
        %6734 = vmatpush1.msra.mxu0 %v6733
        %v6735 = vand.u32 %v5158, 4294901760
        %v6736 = vsub.f32 %v5158, %v6735
        %v6737 = vand.u32 %v6736, 4294901760
        %v6738 = vsub.f32 %v6736, %v6737
        %v6739 = vand.u32 %v6738, 4294901760
        %6740 = vmatprep.subr.mxu0 %v6739
        %v6741 = vand.u32 %v5157, 4294901760
        %v6742 = vsub.f32 %v5157, %v6741
        %v6743 = vand.u32 %v6742, 4294901760
        %v6744 = vsub.f32 %v6742, %v6743
        %v6745 = vand.u32 %v6744, 4294901760
        %6746 = vmatpush1.msra.mxu0 %v6745
        %v6747 = vand.u32 %v5160, 4294901760
        %v6748 = vsub.f32 %v5160, %v6747
        %v6749 = vand.u32 %v6748, 4294901760
        %v6750 = vsub.f32 %v6748, %v6749
        %v6751 = vand.u32 %v6750, 4294901760
        %6752 = vmatprep.subr.mxu0 %v6751
        %v6753 = vand.u32 %v5159, 4294901760
        %v6754 = vsub.f32 %v5159, %v6753
        %v6755 = vand.u32 %v6754, 4294901760
        %v6756 = vsub.f32 %v6754, %v6755
        %v6757 = vand.u32 %v6756, 4294901760
        %6758 = vmatpush1.msra.mxu0 %v6757
        %v6759 = vand.u32 %v5162, 4294901760
        %v6760 = vsub.f32 %v5162, %v6759
        %v6761 = vand.u32 %v6760, 4294901760
        %v6762 = vsub.f32 %v6760, %v6761
        %v6763 = vand.u32 %v6762, 4294901760
        %6764 = vmatprep.subr.mxu0 %v6763
        %v6765 = vand.u32 %v5161, 4294901760
        %v6766 = vsub.f32 %v5161, %v6765
        %v6767 = vand.u32 %v6766, 4294901760
        %v6768 = vsub.f32 %v6766, %v6767
        %v6769 = vand.u32 %v6768, 4294901760
        %6770 = vmatpush1.msra.mxu0 %v6769
        %v6771 = vand.u32 %v5164, 4294901760
        %v6772 = vsub.f32 %v5164, %v6771
        %v6773 = vand.u32 %v6772, 4294901760
        %v6774 = vsub.f32 %v6772, %v6773
        %v6775 = vand.u32 %v6774, 4294901760
        %6776 = vmatprep.subr.mxu0 %v6775
        %v6777 = vand.u32 %v5163, 4294901760
        %v6778 = vsub.f32 %v5163, %v6777
        %v6779 = vand.u32 %v6778, 4294901760
        %v6780 = vsub.f32 %v6778, %v6779
        %v6781 = vand.u32 %v6780, 4294901760
        %6782 = vmatpush1.msra.mxu0 %v6781
        %v6783 = vand.u32 %v5166, 4294901760
        %v6784 = vsub.f32 %v5166, %v6783
        %v6785 = vand.u32 %v6784, 4294901760
        %v6786 = vsub.f32 %v6784, %v6785
        %v6787 = vand.u32 %v6786, 4294901760
        %6788 = vmatprep.subr.mxu0 %v6787
        %v6789 = vand.u32 %v5165, 4294901760
        %v6790 = vsub.f32 %v5165, %v6789
        %v6791 = vand.u32 %v6790, 4294901760
        %v6792 = vsub.f32 %v6790, %v6791
        %v6793 = vand.u32 %v6792, 4294901760
        %6794 = vmatpush1.msra.mxu0 %v6793
        %v6795 = vand.u32 %v5168, 4294901760
        %v6796 = vsub.f32 %v5168, %v6795
        %v6797 = vand.u32 %v6796, 4294901760
        %v6798 = vsub.f32 %v6796, %v6797
        %v6799 = vand.u32 %v6798, 4294901760
        %6800 = vmatprep.subr.mxu0 %v6799
        %v6801 = vand.u32 %v5167, 4294901760
        %v6802 = vsub.f32 %v5167, %v6801
        %v6803 = vand.u32 %v6802, 4294901760
        %v6804 = vsub.f32 %v6802, %v6803
        %v6805 = vand.u32 %v6804, 4294901760
        %6806 = vmatpush1.msra.mxu0 %v6805
        %v6807 = vand.u32 %v5170, 4294901760
        %v6808 = vsub.f32 %v5170, %v6807
        %v6809 = vand.u32 %v6808, 4294901760
        %v6810 = vsub.f32 %v6808, %v6809
        %v6811 = vand.u32 %v6810, 4294901760
        %6812 = vmatprep.subr.mxu0 %v6811
        %v6813 = vand.u32 %v5169, 4294901760
        %v6814 = vsub.f32 %v5169, %v6813
        %v6815 = vand.u32 %v6814, 4294901760
        %v6816 = vsub.f32 %v6814, %v6815
        %v6817 = vand.u32 %v6816, 4294901760
        %6818 = vmatpush1.msra.mxu0 %v6817
        %v6819 = vand.u32 %v5172, 4294901760
        %v6820 = vsub.f32 %v5172, %v6819
        %v6821 = vand.u32 %v6820, 4294901760
        %v6822 = vsub.f32 %v6820, %v6821
        %v6823 = vand.u32 %v6822, 4294901760
        %6824 = vmatprep.subr.mxu0 %v6823
        %v6825 = vand.u32 %v5171, 4294901760
        %v6826 = vsub.f32 %v5171, %v6825
        %v6827 = vand.u32 %v6826, 4294901760
        %v6828 = vsub.f32 %v6826, %v6827
        %v6829 = vand.u32 %v6828, 4294901760
        %6830 = vmatpush1.msra.mxu0 %v6829
        %v6831 = vand.u32 %v5174, 4294901760
        %v6832 = vsub.f32 %v5174, %v6831
        %v6833 = vand.u32 %v6832, 4294901760
        %v6834 = vsub.f32 %v6832, %v6833
        %v6835 = vand.u32 %v6834, 4294901760
        %6836 = vmatprep.subr.mxu0 %v6835
        %v6837 = vand.u32 %v5173, 4294901760
        %v6838 = vsub.f32 %v5173, %v6837
        %v6839 = vand.u32 %v6838, 4294901760
        %v6840 = vsub.f32 %v6838, %v6839
        %v6841 = vand.u32 %v6840, 4294901760
        %6842 = vmatpush1.msra.mxu0 %v6841
        %v6843 = vand.u32 %v5176, 4294901760
        %v6844 = vsub.f32 %v5176, %v6843
        %v6845 = vand.u32 %v6844, 4294901760
        %v6846 = vsub.f32 %v6844, %v6845
        %v6847 = vand.u32 %v6846, 4294901760
        %6848 = vmatprep.subr.mxu0 %v6847
        %v6849 = vand.u32 %v5175, 4294901760
        %v6850 = vsub.f32 %v5175, %v6849
        %v6851 = vand.u32 %v6850, 4294901760
        %v6852 = vsub.f32 %v6850, %v6851
        %v6853 = vand.u32 %v6852, 4294901760
        %6854 = vmatpush1.msra.mxu0 %v6853
        %v6855 = vand.u32 %v5178, 4294901760
        %v6856 = vsub.f32 %v5178, %v6855
        %v6857 = vand.u32 %v6856, 4294901760
        %v6858 = vsub.f32 %v6856, %v6857
        %v6859 = vand.u32 %v6858, 4294901760
        %6860 = vmatprep.subr.mxu0 %v6859
        %v6861 = vand.u32 %v5177, 4294901760
        %v6862 = vsub.f32 %v5177, %v6861
        %v6863 = vand.u32 %v6862, 4294901760
        %v6864 = vsub.f32 %v6862, %v6863
        %v6865 = vand.u32 %v6864, 4294901760
        %6866 = vmatpush1.msra.mxu0 %v6865
        %v6867 = vand.u32 %v5180, 4294901760
        %v6868 = vsub.f32 %v5180, %v6867
        %v6869 = vand.u32 %v6868, 4294901760
        %v6870 = vsub.f32 %v6868, %v6869
        %v6871 = vand.u32 %v6870, 4294901760
        %6872 = vmatprep.subr.mxu0 %v6871
        %v6873 = vand.u32 %v5179, 4294901760
        %v6874 = vsub.f32 %v5179, %v6873
        %v6875 = vand.u32 %v6874, 4294901760
        %v6876 = vsub.f32 %v6874, %v6875
        %v6877 = vand.u32 %v6876, 4294901760
        %6878 = vmatpush1.msra.mxu0 %v6877
        %v6879 = vand.u32 %v5182, 4294901760
        %v6880 = vsub.f32 %v5182, %v6879
        %v6881 = vand.u32 %v6880, 4294901760
        %v6882 = vsub.f32 %v6880, %v6881
        %v6883 = vand.u32 %v6882, 4294901760
        %6884 = vmatprep.subr.mxu0 %v6883
        %v6885 = vand.u32 %v5181, 4294901760
        %v6886 = vsub.f32 %v5181, %v6885
        %v6887 = vand.u32 %v6886, 4294901760
        %v6888 = vsub.f32 %v6886, %v6887
        %v6889 = vand.u32 %v6888, 4294901760
        %6890 = vmatpush1.msra.mxu0 %v6889
        %v6891 = vand.u32 %v5184, 4294901760
        %v6892 = vsub.f32 %v5184, %v6891
        %v6893 = vand.u32 %v6892, 4294901760
        %v6894 = vsub.f32 %v6892, %v6893
        %v6895 = vand.u32 %v6894, 4294901760
        %6896 = vmatprep.subr.mxu0 %v6895
        %v6897 = vand.u32 %v5183, 4294901760
        %v6898 = vsub.f32 %v5183, %v6897
        %v6899 = vand.u32 %v6898, 4294901760
        %v6900 = vsub.f32 %v6898, %v6899
        %v6901 = vand.u32 %v6900, 4294901760
        %6902 = vmatpush1.msra.mxu0 %v6901
        %v6903 = vand.u32 %v5186, 4294901760
        %v6904 = vsub.f32 %v5186, %v6903
        %v6905 = vand.u32 %v6904, 4294901760
        %v6906 = vsub.f32 %v6904, %v6905
        %v6907 = vand.u32 %v6906, 4294901760
        %6908 = vmatprep.subr.mxu0 %v6907
        %v6909 = vand.u32 %v5185, 4294901760
        %v6910 = vsub.f32 %v5185, %v6909
        %v6911 = vand.u32 %v6910, 4294901760
        %v6912 = vsub.f32 %v6910, %v6911
        %v6913 = vand.u32 %v6912, 4294901760
        %6914 = vmatpush1.msra.mxu0 %v6913
        %v6915 = vand.u32 %v5188, 4294901760
        %v6916 = vsub.f32 %v5188, %v6915
        %v6917 = vand.u32 %v6916, 4294901760
        %v6918 = vsub.f32 %v6916, %v6917
        %v6919 = vand.u32 %v6918, 4294901760
        %6920 = vmatprep.subr.mxu0 %v6919
        %v6921 = vand.u32 %v5187, 4294901760
        %v6922 = vsub.f32 %v5187, %v6921
        %v6923 = vand.u32 %v6922, 4294901760
        %v6924 = vsub.f32 %v6922, %v6923
        %v6925 = vand.u32 %v6924, 4294901760
        %6926 = vmatpush1.msra.mxu0 %v6925
        %v6927 = vand.u32 %v5190, 4294901760
        %v6928 = vsub.f32 %v5190, %v6927
        %v6929 = vand.u32 %v6928, 4294901760
        %v6930 = vsub.f32 %v6928, %v6929
        %v6931 = vand.u32 %v6930, 4294901760
        %6932 = vmatprep.subr.mxu0 %v6931
        %v6933 = vand.u32 %v5189, 4294901760
        %v6934 = vsub.f32 %v5189, %v6933
        %v6935 = vand.u32 %v6934, 4294901760
        %v6936 = vsub.f32 %v6934, %v6935
        %v6937 = vand.u32 %v6936, 4294901760
        %6938 = vmatpush1.msra.mxu0 %v6937
        %v6939 = vand.u32 %v5192, 4294901760
        %v6940 = vsub.f32 %v5192, %v6939
        %v6941 = vand.u32 %v6940, 4294901760
        %v6942 = vsub.f32 %v6940, %v6941
        %v6943 = vand.u32 %v6942, 4294901760
        %6944 = vmatprep.subr.mxu0 %v6943
        %v6945 = vand.u32 %v5191, 4294901760
        %v6946 = vsub.f32 %v5191, %v6945
        %v6947 = vand.u32 %v6946, 4294901760
        %v6948 = vsub.f32 %v6946, %v6947
        %v6949 = vand.u32 %v6948, 4294901760
        %6950 = vmatpush1.msra.mxu0 %v6949
        %v6951 = vand.u32 %v5194, 4294901760
        %v6952 = vsub.f32 %v5194, %v6951
        %v6953 = vand.u32 %v6952, 4294901760
        %v6954 = vsub.f32 %v6952, %v6953
        %v6955 = vand.u32 %v6954, 4294901760
        %6956 = vmatprep.subr.mxu0 %v6955
        %v6957 = vand.u32 %v5193, 4294901760
        %v6958 = vsub.f32 %v5193, %v6957
        %v6959 = vand.u32 %v6958, 4294901760
        %v6960 = vsub.f32 %v6958, %v6959
        %v6961 = vand.u32 %v6960, 4294901760
        %6962 = vmatpush1.msra.mxu0 %v6961
        %v6963 = vand.u32 %v5196, 4294901760
        %v6964 = vsub.f32 %v5196, %v6963
        %v6965 = vand.u32 %v6964, 4294901760
        %v6966 = vsub.f32 %v6964, %v6965
        %v6967 = vand.u32 %v6966, 4294901760
        %6968 = vmatprep.subr.mxu0 %v6967
        %v6969 = vand.u32 %v5195, 4294901760
        %v6970 = vsub.f32 %v5195, %v6969
        %v6971 = vand.u32 %v6970, 4294901760
        %v6972 = vsub.f32 %v6970, %v6971
        %v6973 = vand.u32 %v6972, 4294901760
        %6974 = vmatpush1.msra.mxu0 %v6973
        %v6975 = vand.u32 %v5198, 4294901760
        %v6976 = vsub.f32 %v5198, %v6975
        %v6977 = vand.u32 %v6976, 4294901760
        %v6978 = vsub.f32 %v6976, %v6977
        %v6979 = vand.u32 %v6978, 4294901760
        %6980 = vmatprep.subr.mxu0 %v6979
        %v6981 = vand.u32 %v5197, 4294901760
        %v6982 = vsub.f32 %v5197, %v6981
        %v6983 = vand.u32 %v6982, 4294901760
        %v6984 = vsub.f32 %v6982, %v6983
        %v6985 = vand.u32 %v6984, 4294901760
        %6986 = vmatpush1.msra.mxu0 %v6985
        %v6987 = vand.u32 %v5200, 4294901760
        %v6988 = vsub.f32 %v5200, %v6987
        %v6989 = vand.u32 %v6988, 4294901760
        %v6990 = vsub.f32 %v6988, %v6989
        %v6991 = vand.u32 %v6990, 4294901760
        %6992 = vmatprep.subr.mxu0 %v6991
        %v6993 = vand.u32 %v5199, 4294901760
        %v6994 = vsub.f32 %v5199, %v6993
        %v6995 = vand.u32 %v6994, 4294901760
        %v6996 = vsub.f32 %v6994, %v6995
        %v6997 = vand.u32 %v6996, 4294901760
        %6998 = vmatpush1.msra.mxu0 %v6997
        %v6999 = vand.u32 %v5202, 4294901760
        %v7000 = vsub.f32 %v5202, %v6999
        %v7001 = vand.u32 %v7000, 4294901760
        %v7002 = vsub.f32 %v7000, %v7001
        %v7003 = vand.u32 %v7002, 4294901760
        %7004 = vmatprep.subr.mxu0 %v7003
        %v7005 = vand.u32 %v5201, 4294901760
        %v7006 = vsub.f32 %v5201, %v7005
        %v7007 = vand.u32 %v7006, 4294901760
        %v7008 = vsub.f32 %v7006, %v7007
        %v7009 = vand.u32 %v7008, 4294901760
        %7010 = vmatpush1.msra.mxu0 %v7009
        %v7011 = vand.u32 %v5204, 4294901760
        %v7012 = vsub.f32 %v5204, %v7011
        %v7013 = vand.u32 %v7012, 4294901760
        %v7014 = vsub.f32 %v7012, %v7013
        %v7015 = vand.u32 %v7014, 4294901760
        %7016 = vmatprep.subr.mxu0 %v7015
        %v7017 = vand.u32 %v5203, 4294901760
        %v7018 = vsub.f32 %v5203, %v7017
        %v7019 = vand.u32 %v7018, 4294901760
        %v7020 = vsub.f32 %v7018, %v7019
        %v7021 = vand.u32 %v7020, 4294901760
        %7022 = vmatpush1.msra.mxu0 %v7021
        %v7023 = vand.u32 %v5206, 4294901760
        %v7024 = vsub.f32 %v5206, %v7023
        %v7025 = vand.u32 %v7024, 4294901760
        %v7026 = vsub.f32 %v7024, %v7025
        %v7027 = vand.u32 %v7026, 4294901760
        %7028 = vmatprep.subr.mxu0 %v7027
        %v7029 = vand.u32 %v5205, 4294901760
        %v7030 = vsub.f32 %v5205, %v7029
        %v7031 = vand.u32 %v7030, 4294901760
        %v7032 = vsub.f32 %v7030, %v7031
        %v7033 = vand.u32 %v7032, 4294901760
        %7034 = vmatpush1.msra.mxu0 %v7033
        %v7035 = vand.u32 %v5208, 4294901760
        %v7036 = vsub.f32 %v5208, %v7035
        %v7037 = vand.u32 %v7036, 4294901760
        %v7038 = vsub.f32 %v7036, %v7037
        %v7039 = vand.u32 %v7038, 4294901760
        %7040 = vmatprep.subr.mxu0 %v7039
        %v7041 = vand.u32 %v5207, 4294901760
        %v7042 = vsub.f32 %v5207, %v7041
        %v7043 = vand.u32 %v7042, 4294901760
        %v7044 = vsub.f32 %v7042, %v7043
        %v7045 = vand.u32 %v7044, 4294901760
        %7046 = vmatpush1.msra.mxu0 %v7045
        %v7047 = vand.u32 %v5210, 4294901760
        %v7048 = vsub.f32 %v5210, %v7047
        %v7049 = vand.u32 %v7048, 4294901760
        %v7050 = vsub.f32 %v7048, %v7049
        %v7051 = vand.u32 %v7050, 4294901760
        %7052 = vmatprep.subr.mxu0 %v7051
        %v7053 = vand.u32 %v5209, 4294901760
        %v7054 = vsub.f32 %v5209, %v7053
        %v7055 = vand.u32 %v7054, 4294901760
        %v7056 = vsub.f32 %v7054, %v7055
        %v7057 = vand.u32 %v7056, 4294901760
        %7058 = vmatpush1.msra.mxu0 %v7057
        %v7059 = vand.u32 %v5212, 4294901760
        %v7060 = vsub.f32 %v5212, %v7059
        %v7061 = vand.u32 %v7060, 4294901760
        %v7062 = vsub.f32 %v7060, %v7061
        %v7063 = vand.u32 %v7062, 4294901760
        %7064 = vmatprep.subr.mxu0 %v7063
        %v7065 = vand.u32 %v5211, 4294901760
        %v7066 = vsub.f32 %v5211, %v7065
        %v7067 = vand.u32 %v7066, 4294901760
        %v7068 = vsub.f32 %v7066, %v7067
        %v7069 = vand.u32 %v7068, 4294901760
        %7070 = vmatpush1.msra.mxu0 %v7069
        %v7071 = vand.u32 %v5214, 4294901760
        %v7072 = vsub.f32 %v5214, %v7071
        %v7073 = vand.u32 %v7072, 4294901760
        %v7074 = vsub.f32 %v7072, %v7073
        %v7075 = vand.u32 %v7074, 4294901760
        %7076 = vmatprep.subr.mxu0 %v7075
        %v7077 = vand.u32 %v5213, 4294901760
        %v7078 = vsub.f32 %v5213, %v7077
        %v7079 = vand.u32 %v7078, 4294901760
        %v7080 = vsub.f32 %v7078, %v7079
        %v7081 = vand.u32 %v7080, 4294901760
        %7082 = vmatpush1.msra.mxu0 %v7081
        %v7083 = vand.u32 %v5216, 4294901760
        %v7084 = vsub.f32 %v5216, %v7083
        %v7085 = vand.u32 %v7084, 4294901760
        %v7086 = vsub.f32 %v7084, %v7085
        %v7087 = vand.u32 %v7086, 4294901760
        %7088 = vmatprep.subr.mxu0 %v7087
        %v7089 = vand.u32 %v5215, 4294901760
        %v7090 = vsub.f32 %v5215, %v7089
        %v7091 = vand.u32 %v7090, 4294901760
        %v7092 = vsub.f32 %v7090, %v7091
        %v7093 = vand.u32 %v7092, 4294901760
        %7094 = vmatpush1.msra.mxu0 %v7093
        %v7095 = vand.u32 %v5140, 4294901760
        %7096 = vmatprep.mubr.f32.mxu0 %v7095
        %v7097 = vand.u32 %v5139, 4294901760
        %7098 = vmatmul.mubr.f32.gmra.mrb[0].mxu0 %v7097
        %v7099 = vpop.f32.mrb[0].mxu0
        %v7100 = vadd.f32 %v6707, %v7099
        %v7101 = vpop.f32.mrb[0].mxu0
        %v7102 = vadd.f32 %v6709, %v7101
        %7103 = vdwg.mxu0
        %v7104 = vand.u32 %v5154, 4294901760
        %v7105 = vsub.f32 %v5154, %v7104
        %7106 = vmatprep.subr.mxu0 %v7105
        %v7107 = vand.u32 %v5153, 4294901760
        %v7108 = vsub.f32 %v5153, %v7107
        %7109 = vmatpush1.msra.mxu0 %v7108
        %v7110 = vand.u32 %v5156, 4294901760
        %v7111 = vsub.f32 %v5156, %v7110
        %7112 = vmatprep.subr.mxu0 %v7111
        %v7113 = vand.u32 %v5155, 4294901760
        %v7114 = vsub.f32 %v5155, %v7113
        %7115 = vmatpush1.msra.mxu0 %v7114
        %v7116 = vand.u32 %v5158, 4294901760
        %v7117 = vsub.f32 %v5158, %v7116
        %7118 = vmatprep.subr.mxu0 %v7117
        %v7119 = vand.u32 %v5157, 4294901760
        %v7120 = vsub.f32 %v5157, %v7119
        %7121 = vmatpush1.msra.mxu0 %v7120
        %v7122 = vand.u32 %v5160, 4294901760
        %v7123 = vsub.f32 %v5160, %v7122
        %7124 = vmatprep.subr.mxu0 %v7123
        %v7125 = vand.u32 %v5159, 4294901760
        %v7126 = vsub.f32 %v5159, %v7125
        %7127 = vmatpush1.msra.mxu0 %v7126
        %v7128 = vand.u32 %v5162, 4294901760
        %v7129 = vsub.f32 %v5162, %v7128
        %7130 = vmatprep.subr.mxu0 %v7129
        %v7131 = vand.u32 %v5161, 4294901760
        %v7132 = vsub.f32 %v5161, %v7131
        %7133 = vmatpush1.msra.mxu0 %v7132
        %v7134 = vand.u32 %v5164, 4294901760
        %v7135 = vsub.f32 %v5164, %v7134
        %7136 = vmatprep.subr.mxu0 %v7135
        %v7137 = vand.u32 %v5163, 4294901760
        %v7138 = vsub.f32 %v5163, %v7137
        %7139 = vmatpush1.msra.mxu0 %v7138
        %v7140 = vand.u32 %v5166, 4294901760
        %v7141 = vsub.f32 %v5166, %v7140
        %7142 = vmatprep.subr.mxu0 %v7141
        %v7143 = vand.u32 %v5165, 4294901760
        %v7144 = vsub.f32 %v5165, %v7143
        %7145 = vmatpush1.msra.mxu0 %v7144
        %v7146 = vand.u32 %v5168, 4294901760
        %v7147 = vsub.f32 %v5168, %v7146
        %7148 = vmatprep.subr.mxu0 %v7147
        %v7149 = vand.u32 %v5167, 4294901760
        %v7150 = vsub.f32 %v5167, %v7149
        %7151 = vmatpush1.msra.mxu0 %v7150
        %v7152 = vand.u32 %v5170, 4294901760
        %v7153 = vsub.f32 %v5170, %v7152
        %7154 = vmatprep.subr.mxu0 %v7153
        %v7155 = vand.u32 %v5169, 4294901760
        %v7156 = vsub.f32 %v5169, %v7155
        %7157 = vmatpush1.msra.mxu0 %v7156
        %v7158 = vand.u32 %v5172, 4294901760
        %v7159 = vsub.f32 %v5172, %v7158
        %7160 = vmatprep.subr.mxu0 %v7159
        %v7161 = vand.u32 %v5171, 4294901760
        %v7162 = vsub.f32 %v5171, %v7161
        %7163 = vmatpush1.msra.mxu0 %v7162
        %v7164 = vand.u32 %v5174, 4294901760
        %v7165 = vsub.f32 %v5174, %v7164
        %7166 = vmatprep.subr.mxu0 %v7165
        %v7167 = vand.u32 %v5173, 4294901760
        %v7168 = vsub.f32 %v5173, %v7167
        %7169 = vmatpush1.msra.mxu0 %v7168
        %v7170 = vand.u32 %v5176, 4294901760
        %v7171 = vsub.f32 %v5176, %v7170
        %7172 = vmatprep.subr.mxu0 %v7171
        %v7173 = vand.u32 %v5175, 4294901760
        %v7174 = vsub.f32 %v5175, %v7173
        %7175 = vmatpush1.msra.mxu0 %v7174
        %v7176 = vand.u32 %v5178, 4294901760
        %v7177 = vsub.f32 %v5178, %v7176
        %7178 = vmatprep.subr.mxu0 %v7177
        %v7179 = vand.u32 %v5177, 4294901760
        %v7180 = vsub.f32 %v5177, %v7179
        %7181 = vmatpush1.msra.mxu0 %v7180
        %v7182 = vand.u32 %v5180, 4294901760
        %v7183 = vsub.f32 %v5180, %v7182
        %7184 = vmatprep.subr.mxu0 %v7183
        %v7185 = vand.u32 %v5179, 4294901760
        %v7186 = vsub.f32 %v5179, %v7185
        %7187 = vmatpush1.msra.mxu0 %v7186
        %v7188 = vand.u32 %v5182, 4294901760
        %v7189 = vsub.f32 %v5182, %v7188
        %7190 = vmatprep.subr.mxu0 %v7189
        %v7191 = vand.u32 %v5181, 4294901760
        %v7192 = vsub.f32 %v5181, %v7191
        %7193 = vmatpush1.msra.mxu0 %v7192
        %v7194 = vand.u32 %v5184, 4294901760
        %v7195 = vsub.f32 %v5184, %v7194
        %7196 = vmatprep.subr.mxu0 %v7195
        %v7197 = vand.u32 %v5183, 4294901760
        %v7198 = vsub.f32 %v5183, %v7197
        %7199 = vmatpush1.msra.mxu0 %v7198
        %v7200 = vand.u32 %v5186, 4294901760
        %v7201 = vsub.f32 %v5186, %v7200
        %7202 = vmatprep.subr.mxu0 %v7201
        %v7203 = vand.u32 %v5185, 4294901760
        %v7204 = vsub.f32 %v5185, %v7203
        %7205 = vmatpush1.msra.mxu0 %v7204
        %v7206 = vand.u32 %v5188, 4294901760
        %v7207 = vsub.f32 %v5188, %v7206
        %7208 = vmatprep.subr.mxu0 %v7207
        %v7209 = vand.u32 %v5187, 4294901760
        %v7210 = vsub.f32 %v5187, %v7209
        %7211 = vmatpush1.msra.mxu0 %v7210
        %v7212 = vand.u32 %v5190, 4294901760
        %v7213 = vsub.f32 %v5190, %v7212
        %7214 = vmatprep.subr.mxu0 %v7213
        %v7215 = vand.u32 %v5189, 4294901760
        %v7216 = vsub.f32 %v5189, %v7215
        %7217 = vmatpush1.msra.mxu0 %v7216
        %v7218 = vand.u32 %v5192, 4294901760
        %v7219 = vsub.f32 %v5192, %v7218
        %7220 = vmatprep.subr.mxu0 %v7219
        %v7221 = vand.u32 %v5191, 4294901760
        %v7222 = vsub.f32 %v5191, %v7221
        %7223 = vmatpush1.msra.mxu0 %v7222
        %v7224 = vand.u32 %v5194, 4294901760
        %v7225 = vsub.f32 %v5194, %v7224
        %7226 = vmatprep.subr.mxu0 %v7225
        %v7227 = vand.u32 %v5193, 4294901760
        %v7228 = vsub.f32 %v5193, %v7227
        %7229 = vmatpush1.msra.mxu0 %v7228
        %v7230 = vand.u32 %v5196, 4294901760
        %v7231 = vsub.f32 %v5196, %v7230
        %7232 = vmatprep.subr.mxu0 %v7231
        %v7233 = vand.u32 %v5195, 4294901760
        %v7234 = vsub.f32 %v5195, %v7233
        %7235 = vmatpush1.msra.mxu0 %v7234
        %v7236 = vand.u32 %v5198, 4294901760
        %v7237 = vsub.f32 %v5198, %v7236
        %7238 = vmatprep.subr.mxu0 %v7237
        %v7239 = vand.u32 %v5197, 4294901760
        %v7240 = vsub.f32 %v5197, %v7239
        %7241 = vmatpush1.msra.mxu0 %v7240
        %v7242 = vand.u32 %v5200, 4294901760
        %v7243 = vsub.f32 %v5200, %v7242
        %7244 = vmatprep.subr.mxu0 %v7243
        %v7245 = vand.u32 %v5199, 4294901760
        %v7246 = vsub.f32 %v5199, %v7245
        %7247 = vmatpush1.msra.mxu0 %v7246
        %v7248 = vand.u32 %v5202, 4294901760
        %v7249 = vsub.f32 %v5202, %v7248
        %7250 = vmatprep.subr.mxu0 %v7249
        %v7251 = vand.u32 %v5201, 4294901760
        %v7252 = vsub.f32 %v5201, %v7251
        %7253 = vmatpush1.msra.mxu0 %v7252
        %v7254 = vand.u32 %v5204, 4294901760
        %v7255 = vsub.f32 %v5204, %v7254
        %7256 = vmatprep.subr.mxu0 %v7255
        %v7257 = vand.u32 %v5203, 4294901760
        %v7258 = vsub.f32 %v5203, %v7257
        %7259 = vmatpush1.msra.mxu0 %v7258
        %v7260 = vand.u32 %v5206, 4294901760
        %v7261 = vsub.f32 %v5206, %v7260
        %7262 = vmatprep.subr.mxu0 %v7261
        %v7263 = vand.u32 %v5205, 4294901760
        %v7264 = vsub.f32 %v5205, %v7263
        %7265 = vmatpush1.msra.mxu0 %v7264
        %v7266 = vand.u32 %v5208, 4294901760
        %v7267 = vsub.f32 %v5208, %v7266
        %7268 = vmatprep.subr.mxu0 %v7267
        %v7269 = vand.u32 %v5207, 4294901760
        %v7270 = vsub.f32 %v5207, %v7269
        %7271 = vmatpush1.msra.mxu0 %v7270
        %v7272 = vand.u32 %v5210, 4294901760
        %v7273 = vsub.f32 %v5210, %v7272
        %7274 = vmatprep.subr.mxu0 %v7273
        %v7275 = vand.u32 %v5209, 4294901760
        %v7276 = vsub.f32 %v5209, %v7275
        %7277 = vmatpush1.msra.mxu0 %v7276
        %v7278 = vand.u32 %v5212, 4294901760
        %v7279 = vsub.f32 %v5212, %v7278
        %7280 = vmatprep.subr.mxu0 %v7279
        %v7281 = vand.u32 %v5211, 4294901760
        %v7282 = vsub.f32 %v5211, %v7281
        %7283 = vmatpush1.msra.mxu0 %v7282
        %v7284 = vand.u32 %v5214, 4294901760
        %v7285 = vsub.f32 %v5214, %v7284
        %7286 = vmatprep.subr.mxu0 %v7285
        %v7287 = vand.u32 %v5213, 4294901760
        %v7288 = vsub.f32 %v5213, %v7287
        %7289 = vmatpush1.msra.mxu0 %v7288
        %v7290 = vand.u32 %v5216, 4294901760
        %v7291 = vsub.f32 %v5216, %v7290
        %7292 = vmatprep.subr.mxu0 %v7291
        %v7293 = vand.u32 %v5215, 4294901760
        %v7294 = vsub.f32 %v5215, %v7293
        %7295 = vmatpush1.msra.mxu0 %v7294
        %v7296 = vand.u32 %v5140, 4294901760
        %v7297 = vsub.f32 %v5140, %v7296
        %7298 = vmatprep.mubr.f32.mxu0 %v7297
        %v7299 = vand.u32 %v5139, 4294901760
        %v7300 = vsub.f32 %v5139, %v7299
        %7301 = vmatmul.mubr.f32.gmra.mrb[0].mxu0 %v7300
        %v7302 = vpop.f32.mrb[0].mxu0
        %v7303 = vadd.f32 %v7100, %v7302
        %v7304 = vpop.f32.mrb[0].mxu0
        %v7305 = vadd.f32 %v7102, %v7304
        %7306 = vdwg.mxu0
        %v7307 = vand.u32 %v5154, 4294901760
        %7308 = vmatprep.subr.mxu0 %v7307
        %v7309 = vand.u32 %v5153, 4294901760
        %7310 = vmatpush1.msra.mxu0 %v7309
        %v7311 = vand.u32 %v5156, 4294901760
        %7312 = vmatprep.subr.mxu0 %v7311
        %v7313 = vand.u32 %v5155, 4294901760
        %7314 = vmatpush1.msra.mxu0 %v7313
        %v7315 = vand.u32 %v5158, 4294901760
        %7316 = vmatprep.subr.mxu0 %v7315
        %v7317 = vand.u32 %v5157, 4294901760
        %7318 = vmatpush1.msra.mxu0 %v7317
        %v7319 = vand.u32 %v5160, 4294901760
        %7320 = vmatprep.subr.mxu0 %v7319
        %v7321 = vand.u32 %v5159, 4294901760
        %7322 = vmatpush1.msra.mxu0 %v7321
        %v7323 = vand.u32 %v5162, 4294901760
        %7324 = vmatprep.subr.mxu0 %v7323
        %v7325 = vand.u32 %v5161, 4294901760
        %7326 = vmatpush1.msra.mxu0 %v7325
        %v7327 = vand.u32 %v5164, 4294901760
        %7328 = vmatprep.subr.mxu0 %v7327
        %v7329 = vand.u32 %v5163, 4294901760
        %7330 = vmatpush1.msra.mxu0 %v7329
        %v7331 = vand.u32 %v5166, 4294901760
        %7332 = vmatprep.subr.mxu0 %v7331
        %v7333 = vand.u32 %v5165, 4294901760
        %7334 = vmatpush1.msra.mxu0 %v7333
        %v7335 = vand.u32 %v5168, 4294901760
        %7336 = vmatprep.subr.mxu0 %v7335
        %v7337 = vand.u32 %v5167, 4294901760
        %7338 = vmatpush1.msra.mxu0 %v7337
        %v7339 = vand.u32 %v5170, 4294901760
        %7340 = vmatprep.subr.mxu0 %v7339
        %v7341 = vand.u32 %v5169, 4294901760
        %7342 = vmatpush1.msra.mxu0 %v7341
        %v7343 = vand.u32 %v5172, 4294901760
        %7344 = vmatprep.subr.mxu0 %v7343
        %v7345 = vand.u32 %v5171, 4294901760
        %7346 = vmatpush1.msra.mxu0 %v7345
        %v7347 = vand.u32 %v5174, 4294901760
        %7348 = vmatprep.subr.mxu0 %v7347
        %v7349 = vand.u32 %v5173, 4294901760
        %7350 = vmatpush1.msra.mxu0 %v7349
        %v7351 = vand.u32 %v5176, 4294901760
        %7352 = vmatprep.subr.mxu0 %v7351
        %v7353 = vand.u32 %v5175, 4294901760
        %7354 = vmatpush1.msra.mxu0 %v7353
        %v7355 = vand.u32 %v5178, 4294901760
        %7356 = vmatprep.subr.mxu0 %v7355
        %v7357 = vand.u32 %v5177, 4294901760
        %7358 = vmatpush1.msra.mxu0 %v7357
        %v7359 = vand.u32 %v5180, 4294901760
        %7360 = vmatprep.subr.mxu0 %v7359
        %v7361 = vand.u32 %v5179, 4294901760
        %7362 = vmatpush1.msra.mxu0 %v7361
        %v7363 = vand.u32 %v5182, 4294901760
        %7364 = vmatprep.subr.mxu0 %v7363
        %v7365 = vand.u32 %v5181, 4294901760
        %7366 = vmatpush1.msra.mxu0 %v7365
        %v7367 = vand.u32 %v5184, 4294901760
        %7368 = vmatprep.subr.mxu0 %v7367
        %v7369 = vand.u32 %v5183, 4294901760
        %7370 = vmatpush1.msra.mxu0 %v7369
        %v7371 = vand.u32 %v5186, 4294901760
        %7372 = vmatprep.subr.mxu0 %v7371
        %v7373 = vand.u32 %v5185, 4294901760
        %7374 = vmatpush1.msra.mxu0 %v7373
        %v7375 = vand.u32 %v5188, 4294901760
        %7376 = vmatprep.subr.mxu0 %v7375
        %v7377 = vand.u32 %v5187, 4294901760
        %7378 = vmatpush1.msra.mxu0 %v7377
        %v7379 = vand.u32 %v5190, 4294901760
        %7380 = vmatprep.subr.mxu0 %v7379
        %v7381 = vand.u32 %v5189, 4294901760
        %7382 = vmatpush1.msra.mxu0 %v7381
        %v7383 = vand.u32 %v5192, 4294901760
        %7384 = vmatprep.subr.mxu0 %v7383
        %v7385 = vand.u32 %v5191, 4294901760
        %7386 = vmatpush1.msra.mxu0 %v7385
        %v7387 = vand.u32 %v5194, 4294901760
        %7388 = vmatprep.subr.mxu0 %v7387
        %v7389 = vand.u32 %v5193, 4294901760
        %7390 = vmatpush1.msra.mxu0 %v7389
        %v7391 = vand.u32 %v5196, 4294901760
        %7392 = vmatprep.subr.mxu0 %v7391
        %v7393 = vand.u32 %v5195, 4294901760
        %7394 = vmatpush1.msra.mxu0 %v7393
        %v7395 = vand.u32 %v5198, 4294901760
        %7396 = vmatprep.subr.mxu0 %v7395
        %v7397 = vand.u32 %v5197, 4294901760
        %7398 = vmatpush1.msra.mxu0 %v7397
        %v7399 = vand.u32 %v5200, 4294901760
        %7400 = vmatprep.subr.mxu0 %v7399
        %v7401 = vand.u32 %v5199, 4294901760
        %7402 = vmatpush1.msra.mxu0 %v7401
        %v7403 = vand.u32 %v5202, 4294901760
        %7404 = vmatprep.subr.mxu0 %v7403
        %v7405 = vand.u32 %v5201, 4294901760
        %7406 = vmatpush1.msra.mxu0 %v7405
        %v7407 = vand.u32 %v5204, 4294901760
        %7408 = vmatprep.subr.mxu0 %v7407
        %v7409 = vand.u32 %v5203, 4294901760
        %7410 = vmatpush1.msra.mxu0 %v7409
        %v7411 = vand.u32 %v5206, 4294901760
        %7412 = vmatprep.subr.mxu0 %v7411
        %v7413 = vand.u32 %v5205, 4294901760
        %7414 = vmatpush1.msra.mxu0 %v7413
        %v7415 = vand.u32 %v5208, 4294901760
        %7416 = vmatprep.subr.mxu0 %v7415
        %v7417 = vand.u32 %v5207, 4294901760
        %7418 = vmatpush1.msra.mxu0 %v7417
        %v7419 = vand.u32 %v5210, 4294901760
        %7420 = vmatprep.subr.mxu0 %v7419
        %v7421 = vand.u32 %v5209, 4294901760
        %7422 = vmatpush1.msra.mxu0 %v7421
        %v7423 = vand.u32 %v5212, 4294901760
        %7424 = vmatprep.subr.mxu0 %v7423
        %v7425 = vand.u32 %v5211, 4294901760
        %7426 = vmatpush1.msra.mxu0 %v7425
        %v7427 = vand.u32 %v5214, 4294901760
        %7428 = vmatprep.subr.mxu0 %v7427
        %v7429 = vand.u32 %v5213, 4294901760
        %7430 = vmatpush1.msra.mxu0 %v7429
        %v7431 = vand.u32 %v5216, 4294901760
        %7432 = vmatprep.subr.mxu0 %v7431
        %v7433 = vand.u32 %v5215, 4294901760
        %7434 = vmatpush1.msra.mxu0 %v7433
        %v7435 = vand.u32 %v5140, 4294901760
        %v7436 = vsub.f32 %v5140, %v7435
        %v7437 = vand.u32 %v7436, 4294901760
        %7438 = vmatprep.mubr.f32.mxu0 %v7437
        %v7439 = vand.u32 %v5139, 4294901760
        %v7440 = vsub.f32 %v5139, %v7439
        %v7441 = vand.u32 %v7440, 4294901760
        %7442 = vmatmul.mubr.f32.gmra.mrb[0].mxu0 %v7441
        %v7443 = vpop.f32.mrb[0].mxu0
        %v7444 = vadd.f32 %v7303, %v7443
        %v7445 = vpop.f32.mrb[0].mxu0
        %v7446 = vadd.f32 %v7305, %v7445
        %7447 = vdwg.mxu0
        %v7448 = vand.u32 %v5154, 4294901760
        %v7449 = vsub.f32 %v5154, %v7448
        %v7450 = vand.u32 %v7449, 4294901760
        %7451 = vmatprep.subr.mxu0 %v7450
        %v7452 = vand.u32 %v5153, 4294901760
        %v7453 = vsub.f32 %v5153, %v7452
        %v7454 = vand.u32 %v7453, 4294901760
        %7455 = vmatpush1.msra.mxu0 %v7454
        %v7456 = vand.u32 %v5156, 4294901760
        %v7457 = vsub.f32 %v5156, %v7456
        %v7458 = vand.u32 %v7457, 4294901760
        %7459 = vmatprep.subr.mxu0 %v7458
        %v7460 = vand.u32 %v5155, 4294901760
        %v7461 = vsub.f32 %v5155, %v7460
        %v7462 = vand.u32 %v7461, 4294901760
        %7463 = vmatpush1.msra.mxu0 %v7462
        %v7464 = vand.u32 %v5158, 4294901760
        %v7465 = vsub.f32 %v5158, %v7464
        %v7466 = vand.u32 %v7465, 4294901760
        %7467 = vmatprep.subr.mxu0 %v7466
        %v7468 = vand.u32 %v5157, 4294901760
        %v7469 = vsub.f32 %v5157, %v7468
        %v7470 = vand.u32 %v7469, 4294901760
        %7471 = vmatpush1.msra.mxu0 %v7470
        %v7472 = vand.u32 %v5160, 4294901760
        %v7473 = vsub.f32 %v5160, %v7472
        %v7474 = vand.u32 %v7473, 4294901760
        %7475 = vmatprep.subr.mxu0 %v7474
        %v7476 = vand.u32 %v5159, 4294901760
        %v7477 = vsub.f32 %v5159, %v7476
        %v7478 = vand.u32 %v7477, 4294901760
        %7479 = vmatpush1.msra.mxu0 %v7478
        %v7480 = vand.u32 %v5162, 4294901760
        %v7481 = vsub.f32 %v5162, %v7480
        %v7482 = vand.u32 %v7481, 4294901760
        %7483 = vmatprep.subr.mxu0 %v7482
        %v7484 = vand.u32 %v5161, 4294901760
        %v7485 = vsub.f32 %v5161, %v7484
        %v7486 = vand.u32 %v7485, 4294901760
        %7487 = vmatpush1.msra.mxu0 %v7486
        %v7488 = vand.u32 %v5164, 4294901760
        %v7489 = vsub.f32 %v5164, %v7488
        %v7490 = vand.u32 %v7489, 4294901760
        %7491 = vmatprep.subr.mxu0 %v7490
        %v7492 = vand.u32 %v5163, 4294901760
        %v7493 = vsub.f32 %v5163, %v7492
        %v7494 = vand.u32 %v7493, 4294901760
        %7495 = vmatpush1.msra.mxu0 %v7494
        %v7496 = vand.u32 %v5166, 4294901760
        %v7497 = vsub.f32 %v5166, %v7496
        %v7498 = vand.u32 %v7497, 4294901760
        %7499 = vmatprep.subr.mxu0 %v7498
        %v7500 = vand.u32 %v5165, 4294901760
        %v7501 = vsub.f32 %v5165, %v7500
        %v7502 = vand.u32 %v7501, 4294901760
        %7503 = vmatpush1.msra.mxu0 %v7502
        %v7504 = vand.u32 %v5168, 4294901760
        %v7505 = vsub.f32 %v5168, %v7504
        %v7506 = vand.u32 %v7505, 4294901760
        %7507 = vmatprep.subr.mxu0 %v7506
        %v7508 = vand.u32 %v5167, 4294901760
        %v7509 = vsub.f32 %v5167, %v7508
        %v7510 = vand.u32 %v7509, 4294901760
        %7511 = vmatpush1.msra.mxu0 %v7510
        %v7512 = vand.u32 %v5170, 4294901760
        %v7513 = vsub.f32 %v5170, %v7512
        %v7514 = vand.u32 %v7513, 4294901760
        %7515 = vmatprep.subr.mxu0 %v7514
        %v7516 = vand.u32 %v5169, 4294901760
        %v7517 = vsub.f32 %v5169, %v7516
        %v7518 = vand.u32 %v7517, 4294901760
        %7519 = vmatpush1.msra.mxu0 %v7518
        %v7520 = vand.u32 %v5172, 4294901760
        %v7521 = vsub.f32 %v5172, %v7520
        %v7522 = vand.u32 %v7521, 4294901760
        %7523 = vmatprep.subr.mxu0 %v7522
        %v7524 = vand.u32 %v5171, 4294901760
        %v7525 = vsub.f32 %v5171, %v7524
        %v7526 = vand.u32 %v7525, 4294901760
        %7527 = vmatpush1.msra.mxu0 %v7526
        %v7528 = vand.u32 %v5174, 4294901760
        %v7529 = vsub.f32 %v5174, %v7528
        %v7530 = vand.u32 %v7529, 4294901760
        %7531 = vmatprep.subr.mxu0 %v7530
        %v7532 = vand.u32 %v5173, 4294901760
        %v7533 = vsub.f32 %v5173, %v7532
        %v7534 = vand.u32 %v7533, 4294901760
        %7535 = vmatpush1.msra.mxu0 %v7534
        %v7536 = vand.u32 %v5176, 4294901760
        %v7537 = vsub.f32 %v5176, %v7536
        %v7538 = vand.u32 %v7537, 4294901760
        %7539 = vmatprep.subr.mxu0 %v7538
        %v7540 = vand.u32 %v5175, 4294901760
        %v7541 = vsub.f32 %v5175, %v7540
        %v7542 = vand.u32 %v7541, 4294901760
        %7543 = vmatpush1.msra.mxu0 %v7542
        %v7544 = vand.u32 %v5178, 4294901760
        %v7545 = vsub.f32 %v5178, %v7544
        %v7546 = vand.u32 %v7545, 4294901760
        %7547 = vmatprep.subr.mxu0 %v7546
        %v7548 = vand.u32 %v5177, 4294901760
        %v7549 = vsub.f32 %v5177, %v7548
        %v7550 = vand.u32 %v7549, 4294901760
        %7551 = vmatpush1.msra.mxu0 %v7550
        %v7552 = vand.u32 %v5180, 4294901760
        %v7553 = vsub.f32 %v5180, %v7552
        %v7554 = vand.u32 %v7553, 4294901760
        %7555 = vmatprep.subr.mxu0 %v7554
        %v7556 = vand.u32 %v5179, 4294901760
        %v7557 = vsub.f32 %v5179, %v7556
        %v7558 = vand.u32 %v7557, 4294901760
        %7559 = vmatpush1.msra.mxu0 %v7558
        %v7560 = vand.u32 %v5182, 4294901760
        %v7561 = vsub.f32 %v5182, %v7560
        %v7562 = vand.u32 %v7561, 4294901760
        %7563 = vmatprep.subr.mxu0 %v7562
        %v7564 = vand.u32 %v5181, 4294901760
        %v7565 = vsub.f32 %v5181, %v7564
        %v7566 = vand.u32 %v7565, 4294901760
        %7567 = vmatpush1.msra.mxu0 %v7566
        %v7568 = vand.u32 %v5184, 4294901760
        %v7569 = vsub.f32 %v5184, %v7568
        %v7570 = vand.u32 %v7569, 4294901760
        %7571 = vmatprep.subr.mxu0 %v7570
        %v7572 = vand.u32 %v5183, 4294901760
        %v7573 = vsub.f32 %v5183, %v7572
        %v7574 = vand.u32 %v7573, 4294901760
        %7575 = vmatpush1.msra.mxu0 %v7574
        %v7576 = vand.u32 %v5186, 4294901760
        %v7577 = vsub.f32 %v5186, %v7576
        %v7578 = vand.u32 %v7577, 4294901760
        %7579 = vmatprep.subr.mxu0 %v7578
        %v7580 = vand.u32 %v5185, 4294901760
        %v7581 = vsub.f32 %v5185, %v7580
        %v7582 = vand.u32 %v7581, 4294901760
        %7583 = vmatpush1.msra.mxu0 %v7582
        %v7584 = vand.u32 %v5188, 4294901760
        %v7585 = vsub.f32 %v5188, %v7584
        %v7586 = vand.u32 %v7585, 4294901760
        %7587 = vmatprep.subr.mxu0 %v7586
        %v7588 = vand.u32 %v5187, 4294901760
        %v7589 = vsub.f32 %v5187, %v7588
        %v7590 = vand.u32 %v7589, 4294901760
        %7591 = vmatpush1.msra.mxu0 %v7590
        %v7592 = vand.u32 %v5190, 4294901760
        %v7593 = vsub.f32 %v5190, %v7592
        %v7594 = vand.u32 %v7593, 4294901760
        %7595 = vmatprep.subr.mxu0 %v7594
        %v7596 = vand.u32 %v5189, 4294901760
        %v7597 = vsub.f32 %v5189, %v7596
        %v7598 = vand.u32 %v7597, 4294901760
        %7599 = vmatpush1.msra.mxu0 %v7598
        %v7600 = vand.u32 %v5192, 4294901760
        %v7601 = vsub.f32 %v5192, %v7600
        %v7602 = vand.u32 %v7601, 4294901760
        %7603 = vmatprep.subr.mxu0 %v7602
        %v7604 = vand.u32 %v5191, 4294901760
        %v7605 = vsub.f32 %v5191, %v7604
        %v7606 = vand.u32 %v7605, 4294901760
        %7607 = vmatpush1.msra.mxu0 %v7606
        %v7608 = vand.u32 %v5194, 4294901760
        %v7609 = vsub.f32 %v5194, %v7608
        %v7610 = vand.u32 %v7609, 4294901760
        %7611 = vmatprep.subr.mxu0 %v7610
        %v7612 = vand.u32 %v5193, 4294901760
        %v7613 = vsub.f32 %v5193, %v7612
        %v7614 = vand.u32 %v7613, 4294901760
        %7615 = vmatpush1.msra.mxu0 %v7614
        %v7616 = vand.u32 %v5196, 4294901760
        %v7617 = vsub.f32 %v5196, %v7616
        %v7618 = vand.u32 %v7617, 4294901760
        %7619 = vmatprep.subr.mxu0 %v7618
        %v7620 = vand.u32 %v5195, 4294901760
        %v7621 = vsub.f32 %v5195, %v7620
        %v7622 = vand.u32 %v7621, 4294901760
        %7623 = vmatpush1.msra.mxu0 %v7622
        %v7624 = vand.u32 %v5198, 4294901760
        %v7625 = vsub.f32 %v5198, %v7624
        %v7626 = vand.u32 %v7625, 4294901760
        %7627 = vmatprep.subr.mxu0 %v7626
        %v7628 = vand.u32 %v5197, 4294901760
        %v7629 = vsub.f32 %v5197, %v7628
        %v7630 = vand.u32 %v7629, 4294901760
        %7631 = vmatpush1.msra.mxu0 %v7630
        %v7632 = vand.u32 %v5200, 4294901760
        %v7633 = vsub.f32 %v5200, %v7632
        %v7634 = vand.u32 %v7633, 4294901760
        %7635 = vmatprep.subr.mxu0 %v7634
        %v7636 = vand.u32 %v5199, 4294901760
        %v7637 = vsub.f32 %v5199, %v7636
        %v7638 = vand.u32 %v7637, 4294901760
        %7639 = vmatpush1.msra.mxu0 %v7638
        %v7640 = vand.u32 %v5202, 4294901760
        %v7641 = vsub.f32 %v5202, %v7640
        %v7642 = vand.u32 %v7641, 4294901760
        %7643 = vmatprep.subr.mxu0 %v7642
        %v7644 = vand.u32 %v5201, 4294901760
        %v7645 = vsub.f32 %v5201, %v7644
        %v7646 = vand.u32 %v7645, 4294901760
        %7647 = vmatpush1.msra.mxu0 %v7646
        %v7648 = vand.u32 %v5204, 4294901760
        %v7649 = vsub.f32 %v5204, %v7648
        %v7650 = vand.u32 %v7649, 4294901760
        %7651 = vmatprep.subr.mxu0 %v7650
        %v7652 = vand.u32 %v5203, 4294901760
        %v7653 = vsub.f32 %v5203, %v7652
        %v7654 = vand.u32 %v7653, 4294901760
        %7655 = vmatpush1.msra.mxu0 %v7654
        %v7656 = vand.u32 %v5206, 4294901760
        %v7657 = vsub.f32 %v5206, %v7656
        %v7658 = vand.u32 %v7657, 4294901760
        %7659 = vmatprep.subr.mxu0 %v7658
        %v7660 = vand.u32 %v5205, 4294901760
        %v7661 = vsub.f32 %v5205, %v7660
        %v7662 = vand.u32 %v7661, 4294901760
        %7663 = vmatpush1.msra.mxu0 %v7662
        %v7664 = vand.u32 %v5208, 4294901760
        %v7665 = vsub.f32 %v5208, %v7664
        %v7666 = vand.u32 %v7665, 4294901760
        %7667 = vmatprep.subr.mxu0 %v7666
        %v7668 = vand.u32 %v5207, 4294901760
        %v7669 = vsub.f32 %v5207, %v7668
        %v7670 = vand.u32 %v7669, 4294901760
        %7671 = vmatpush1.msra.mxu0 %v7670
        %v7672 = vand.u32 %v5210, 4294901760
        %v7673 = vsub.f32 %v5210, %v7672
        %v7674 = vand.u32 %v7673, 4294901760
        %7675 = vmatprep.subr.mxu0 %v7674
        %v7676 = vand.u32 %v5209, 4294901760
        %v7677 = vsub.f32 %v5209, %v7676
        %v7678 = vand.u32 %v7677, 4294901760
        %7679 = vmatpush1.msra.mxu0 %v7678
        %v7680 = vand.u32 %v5212, 4294901760
        %v7681 = vsub.f32 %v5212, %v7680
        %v7682 = vand.u32 %v7681, 4294901760
        %7683 = vmatprep.subr.mxu0 %v7682
        %v7684 = vand.u32 %v5211, 4294901760
        %v7685 = vsub.f32 %v5211, %v7684
        %v7686 = vand.u32 %v7685, 4294901760
        %7687 = vmatpush1.msra.mxu0 %v7686
        %v7688 = vand.u32 %v5214, 4294901760
        %v7689 = vsub.f32 %v5214, %v7688
        %v7690 = vand.u32 %v7689, 4294901760
        %7691 = vmatprep.subr.mxu0 %v7690
        %v7692 = vand.u32 %v5213, 4294901760
        %v7693 = vsub.f32 %v5213, %v7692
        %v7694 = vand.u32 %v7693, 4294901760
        %7695 = vmatpush1.msra.mxu0 %v7694
        %v7696 = vand.u32 %v5216, 4294901760
        %v7697 = vsub.f32 %v5216, %v7696
        %v7698 = vand.u32 %v7697, 4294901760
        %7699 = vmatprep.subr.mxu0 %v7698
        %v7700 = vand.u32 %v5215, 4294901760
        %v7701 = vsub.f32 %v5215, %v7700
        %v7702 = vand.u32 %v7701, 4294901760
        %7703 = vmatpush1.msra.mxu0 %v7702
        %v7704 = vand.u32 %v5140, 4294901760
        %7705 = vmatprep.mubr.f32.mxu0 %v7704
        %v7706 = vand.u32 %v5139, 4294901760
        %7707 = vmatmul.mubr.f32.gmra.mrb[0].mxu0 %v7706
        %v7708 = vpop.f32.mrb[0].mxu0
        %v7709 = vadd.f32 %v7444, %v7708
        %v7710 = vpop.f32.mrb[0].mxu0
        %v7711 = vadd.f32 %v7446, %v7710
        %7712 = vdwg.mxu0
        %v7713 = vand.u32 %v5154, 4294901760
        %7714 = vmatprep.subr.mxu0 %v7713
        %v7715 = vand.u32 %v5153, 4294901760
        %7716 = vmatpush1.msra.mxu0 %v7715
        %v7717 = vand.u32 %v5156, 4294901760
        %7718 = vmatprep.subr.mxu0 %v7717
        %v7719 = vand.u32 %v5155, 4294901760
        %7720 = vmatpush1.msra.mxu0 %v7719
        %v7721 = vand.u32 %v5158, 4294901760
        %7722 = vmatprep.subr.mxu0 %v7721
        %v7723 = vand.u32 %v5157, 4294901760
        %7724 = vmatpush1.msra.mxu0 %v7723
        %v7725 = vand.u32 %v5160, 4294901760
        %7726 = vmatprep.subr.mxu0 %v7725
        %v7727 = vand.u32 %v5159, 4294901760
        %7728 = vmatpush1.msra.mxu0 %v7727
        %v7729 = vand.u32 %v5162, 4294901760
        %7730 = vmatprep.subr.mxu0 %v7729
        %v7731 = vand.u32 %v5161, 4294901760
        %7732 = vmatpush1.msra.mxu0 %v7731
        %v7733 = vand.u32 %v5164, 4294901760
        %7734 = vmatprep.subr.mxu0 %v7733
        %v7735 = vand.u32 %v5163, 4294901760
        %7736 = vmatpush1.msra.mxu0 %v7735
        %v7737 = vand.u32 %v5166, 4294901760
        %7738 = vmatprep.subr.mxu0 %v7737
        %v7739 = vand.u32 %v5165, 4294901760
        %7740 = vmatpush1.msra.mxu0 %v7739
        %v7741 = vand.u32 %v5168, 4294901760
        %7742 = vmatprep.subr.mxu0 %v7741
        %v7743 = vand.u32 %v5167, 4294901760
        %7744 = vmatpush1.msra.mxu0 %v7743
        %v7745 = vand.u32 %v5170, 4294901760
        %7746 = vmatprep.subr.mxu0 %v7745
        %v7747 = vand.u32 %v5169, 4294901760
        %7748 = vmatpush1.msra.mxu0 %v7747
        %v7749 = vand.u32 %v5172, 4294901760
        %7750 = vmatprep.subr.mxu0 %v7749
        %v7751 = vand.u32 %v5171, 4294901760
        %7752 = vmatpush1.msra.mxu0 %v7751
        %v7753 = vand.u32 %v5174, 4294901760
        %7754 = vmatprep.subr.mxu0 %v7753
        %v7755 = vand.u32 %v5173, 4294901760
        %7756 = vmatpush1.msra.mxu0 %v7755
        %v7757 = vand.u32 %v5176, 4294901760
        %7758 = vmatprep.subr.mxu0 %v7757
        %v7759 = vand.u32 %v5175, 4294901760
        %7760 = vmatpush1.msra.mxu0 %v7759
        %v7761 = vand.u32 %v5178, 4294901760
        %7762 = vmatprep.subr.mxu0 %v7761
        %v7763 = vand.u32 %v5177, 4294901760
        %7764 = vmatpush1.msra.mxu0 %v7763
        %v7765 = vand.u32 %v5180, 4294901760
        %7766 = vmatprep.subr.mxu0 %v7765
        %v7767 = vand.u32 %v5179, 4294901760
        %7768 = vmatpush1.msra.mxu0 %v7767
        %v7769 = vand.u32 %v5182, 4294901760
        %7770 = vmatprep.subr.mxu0 %v7769
        %v7771 = vand.u32 %v5181, 4294901760
        %7772 = vmatpush1.msra.mxu0 %v7771
        %v7773 = vand.u32 %v5184, 4294901760
        %7774 = vmatprep.subr.mxu0 %v7773
        %v7775 = vand.u32 %v5183, 4294901760
        %7776 = vmatpush1.msra.mxu0 %v7775
        %v7777 = vand.u32 %v5186, 4294901760
        %7778 = vmatprep.subr.mxu0 %v7777
        %v7779 = vand.u32 %v5185, 4294901760
        %7780 = vmatpush1.msra.mxu0 %v7779
        %v7781 = vand.u32 %v5188, 4294901760
        %7782 = vmatprep.subr.mxu0 %v7781
        %v7783 = vand.u32 %v5187, 4294901760
        %7784 = vmatpush1.msra.mxu0 %v7783
        %v7785 = vand.u32 %v5190, 4294901760
        %7786 = vmatprep.subr.mxu0 %v7785
        %v7787 = vand.u32 %v5189, 4294901760
        %7788 = vmatpush1.msra.mxu0 %v7787
        %v7789 = vand.u32 %v5192, 4294901760
        %7790 = vmatprep.subr.mxu0 %v7789
        %v7791 = vand.u32 %v5191, 4294901760
        %7792 = vmatpush1.msra.mxu0 %v7791
        %v7793 = vand.u32 %v5194, 4294901760
        %7794 = vmatprep.subr.mxu0 %v7793
        %v7795 = vand.u32 %v5193, 4294901760
        %7796 = vmatpush1.msra.mxu0 %v7795
        %v7797 = vand.u32 %v5196, 4294901760
        %7798 = vmatprep.subr.mxu0 %v7797
        %v7799 = vand.u32 %v5195, 4294901760
        %7800 = vmatpush1.msra.mxu0 %v7799
        %v7801 = vand.u32 %v5198, 4294901760
        %7802 = vmatprep.subr.mxu0 %v7801
        %v7803 = vand.u32 %v5197, 4294901760
        %7804 = vmatpush1.msra.mxu0 %v7803
        %v7805 = vand.u32 %v5200, 4294901760
        %7806 = vmatprep.subr.mxu0 %v7805
        %v7807 = vand.u32 %v5199, 4294901760
        %7808 = vmatpush1.msra.mxu0 %v7807
        %v7809 = vand.u32 %v5202, 4294901760
        %7810 = vmatprep.subr.mxu0 %v7809
        %v7811 = vand.u32 %v5201, 4294901760
        %7812 = vmatpush1.msra.mxu0 %v7811
        %v7813 = vand.u32 %v5204, 4294901760
        %7814 = vmatprep.subr.mxu0 %v7813
        %v7815 = vand.u32 %v5203, 4294901760
        %7816 = vmatpush1.msra.mxu0 %v7815
        %v7817 = vand.u32 %v5206, 4294901760
        %7818 = vmatprep.subr.mxu0 %v7817
        %v7819 = vand.u32 %v5205, 4294901760
        %7820 = vmatpush1.msra.mxu0 %v7819
        %v7821 = vand.u32 %v5208, 4294901760
        %7822 = vmatprep.subr.mxu0 %v7821
        %v7823 = vand.u32 %v5207, 4294901760
        %7824 = vmatpush1.msra.mxu0 %v7823
        %v7825 = vand.u32 %v5210, 4294901760
        %7826 = vmatprep.subr.mxu0 %v7825
        %v7827 = vand.u32 %v5209, 4294901760
        %7828 = vmatpush1.msra.mxu0 %v7827
        %v7829 = vand.u32 %v5212, 4294901760
        %7830 = vmatprep.subr.mxu0 %v7829
        %v7831 = vand.u32 %v5211, 4294901760
        %7832 = vmatpush1.msra.mxu0 %v7831
        %v7833 = vand.u32 %v5214, 4294901760
        %7834 = vmatprep.subr.mxu0 %v7833
        %v7835 = vand.u32 %v5213, 4294901760
        %7836 = vmatpush1.msra.mxu0 %v7835
        %v7837 = vand.u32 %v5216, 4294901760
        %7838 = vmatprep.subr.mxu0 %v7837
        %v7839 = vand.u32 %v5215, 4294901760
        %7840 = vmatpush1.msra.mxu0 %v7839
        %v7841 = vand.u32 %v5140, 4294901760
        %7842 = vmatprep.mubr.f32.mxu0 %v7841
        %v7843 = vand.u32 %v5139, 4294901760
        %7844 = vmatmul.mubr.f32.gmra.mrb[0].mxu0 %v7843
        %v7845 = vpop.f32.mrb[0].mxu0
        %v7846 = vadd.f32 %v7709, %v7845
        %v7847 = vpop.f32.mrb[0].mxu0
        %v7848 = vadd.f32 %v7711, %v7847
        %7849 = vdwg.mxu0
        %v7850 = vxor.u32 %v7846, 2147483648
        %v7851 = vxor.u32 %v7848, 2147483648
        %v7852 = vmul.f32 %v7850, 1.442695
        %v7853 = vpow.pop %v7852
        %v7854 = vmul.f32 %v7851, 1.442695
        %v7855 = vpow.pop %v7854
        %v7856 = vadd.f32 %v7853, 1.0
        %v7857 = vadd.f32 %v7855, 1.0
        %v7858 = vrcp.pop %v7856
        %v7859 = vmul.f32 1.0, %v7858
        %v7860 = vrcp.pop %v7857
        %v7861 = vmul.f32 1.0, %v7860
        %v7862 = vlaneseq
        %v7863 = vshrl.u32 %v7862, 7
        %v7864 = vsub.s32 0, %v7863
        %v7865 = vrot.slane %v7859, %v7864
        %v7866 = vlaneseq
        %v7867 = vshrl.u32 %v7866, 7
        %v7868 = vsub.s32 0, %v7867
        %v7869 = vrot.slane %v7861, %v7868
        %v7870 = vmul.f32 %v5124, %v7865
        %v7871 = vmul.f32 %v5125, %v7869
        %7872 = vset.pattern.permute.xlu0 4
        %7873 = vperm.xlu0 %7872, %v348
        %v7874 = vpop.permute.xlu0 %7873
        %v7876 = vmul.f32 %v346, %v7874
        %v7877 = vmul.f32 %v347, %v7874
        %7878 = vset.pattern.permute.xlu0 5
        %7879 = vperm.xlu0 %7878, %v348
        %v7880 = vpop.permute.xlu0 %7879
        %v7882 = vadd.f32 %v7876, %v7880
        %v7883 = vadd.f32 %v7877, %v7880
        %7884 = vset.pattern.permute.xlu0 6
        %7885 = vperm.xlu0 %7884, %v348
        %v7886 = vpop.permute.xlu0 %7885
        %v7888 = vmul.f32 %v7882, %v7886
        %v7889 = vmul.f32 %v7883, %v7886
        %v7890 = vxor.u32 %v7888, 2147483648
        %v7891 = vxor.u32 %v7889, 2147483648
        %v7892 = vmul.f32 %v7890, 1.442695
        %v7893 = vpow.pop %v7892
        %v7894 = vmul.f32 %v7891, 1.442695
        %v7895 = vpow.pop %v7894
        %v7896 = vadd.f32 %v7893, 1.0
        %v7897 = vadd.f32 %v7895, 1.0
        %v7898 = vrcp.pop %v7896
        %v7899 = vmul.f32 1.0, %v7898
        %v7900 = vrcp.pop %v7897
        %v7901 = vmul.f32 1.0, %v7900
        %v7902 = vmul.f32 %v346, %v7899
        %v7903 = vmul.f32 %v347, %v7901
        %v7904 = vmul.f32 %v7870, %v7874
        %v7905 = vmul.f32 %v7871, %v7874
        %v7906 = vadd.f32 %v7904, %v7880
        %v7907 = vadd.f32 %v7905, %v7880
        %v7908 = vmul.f32 %v7906, %v7886
        %v7909 = vmul.f32 %v7907, %v7886
        %v7910 = vxor.u32 %v7908, 2147483648
        %v7911 = vxor.u32 %v7909, 2147483648
        %v7912 = vmul.f32 %v7910, 1.442695
        %v7913 = vpow.pop %v7912
        %v7914 = vmul.f32 %v7911, 1.442695
        %v7915 = vpow.pop %v7914
        %v7916 = vadd.f32 %v7913, 1.0
        %v7917 = vadd.f32 %v7915, 1.0
        %v7918 = vrcp.pop %v7916
        %v7919 = vmul.f32 1.0, %v7918
        %v7920 = vrcp.pop %v7917
        %v7921 = vmul.f32 1.0, %v7920
        %v7922 = vmul.f32 %v7870, %v7919
        %v7923 = vmul.f32 %v7871, %v7921
        %v7924 = vadd.f32 %v7902, %v7922
        %v7925 = vadd.f32 %v7903, %v7923
        %7926 = vst [vmem:[%s340] sm:$0xff] %v7924
        %7927 = vst [vmem:[%s340 + $0x8] sm:$0xff] %v7925
        %s7928 = sand.u32 %s226, 1
        %s7929 = scalar_lea.sflag [#allocation4], %s7928
        %s7930 = sand.u32 %s226, 1
        %s7931 = smul.addr %s7930, 16
        %s7932 = scalar_lea.vmem [#allocation5], %s7931
        // Predicated region
        $region61: #{tpu_custom_call.1} parent=55 // pred_check
          %p7933 = pneg %p236
        $region62: #{tpu_custom_call.1} parent=55 // pred_check_branch
          %7935 = sbr.rel (%p7933) target = $region64
        $region63: #{tpu_custom_call.1} parent=55 // pred_region
          %s7937 = ssub.s32 256, 256
          %7938 = vsyncadd %s7929, %s7937
          %s7939 = smul.addr %s24, 2
          %s7940 = smul.addr %s7939, 128
          %s7941 = scalar_lea.hbm %s9, %s7940
          %s7943 = sshll.u32 %s7932, 4
          %s7944 = int_to_ptr.vmem [resolvable:$true] %s7943
          %7946 = dma.vmem_to_hbm [thread:$0]  %s7944, 256, %s7941, %s7929
        $region64: #{tpu_custom_call.1} parent=55 // pred_fallthru
          _
      $region56: #{tpu_custom_call.1} parent=5 // pred_fallthru
        _
      %p7947 = scmp.le.s32.totalorder 2, %s19
      // Predicated region
      $region65: #{tpu_custom_call.1} parent=5 // pred_check
        %p7948 = pneg %p7947
      $region66: #{tpu_custom_call.1} parent=5 // pred_check_branch
        %7950 = sbr.rel (%p7948) target = $region68
      $region67: #{tpu_custom_call.1} parent=5 // pred_region
        %s7951 = ssub.s32 %s19, 2
        // Predicated region
        $region69: #{tpu_custom_call.1} parent=67 // pred_check
          %p7952 = pneg %p242
        $region70: #{tpu_custom_call.1} parent=67 // pred_check_branch
          %7954 = sbr.rel (%p7952) target = $region72
        $region71: #{tpu_custom_call.1} parent=67 // pred_region
          %s7955 = sand.u32 %s227, 1
          %s7956 = scalar_lea.sflag [#allocation4], %s7955
          %s7957 = sand.u32 %s227, 1
          %s7958 = smul.addr %s7957, 16
          %s7959 = scalar_lea.vmem [#allocation5], %s7958
          %7960 = dma.done %s7956, 256
        $region72: #{tpu_custom_call.1} parent=67 // pred_fallthru
          _
      $region68: #{tpu_custom_call.1} parent=5 // pred_fallthru
        _
    $region6: #{tpu_custom_call.1} parent=1 // loop_footer
      %s23 = sadd.s32 1, %s19
    $region7: #{tpu_custom_call.1} parent=1 // loop_footer_branch
      %18 = sbr.rel target = $region3
    $region8: #{tpu_custom_call.1} parent=1 // loop_exit
      _
    %7961 = vsyncpa [#allocation3], 1
    %s7962 = scalar_lea.sflag [#allocation3], 1
    %7963 = vsyncpa %s7962, 1
    %7964 = vsyncpa [#allocation4], 1
    %s7965 = scalar_lea.sflag [#allocation4], 1
    %7966 = vsyncpa %s7965, 1

</llo_original>
